<compile_context>
chip_gen: v5e
topology: v5e:2x2
jax: 0.10.0
libtpu: 0.0.40
codegen_flags: <defaults>
</compile_context>

<pallas_src>
import jax
import jax.numpy as jnp
from jax.experimental import pallas as pl
from jax.experimental.pallas import tpu as pltpu

STATE_DIM = 384                  # df.shape[1] in the reference script
ACTION_DIM = STATE_DIM // 12     # = 32
FLAT_STATE = STATE_DIM * 10      # = 3840  (matches x.reshape(-1, 3840))
H1, H2, OUT = 512, 128, 1


def _round_up(n, m):
    return ((n + m - 1) // m) * m


def critic_kernel(x_ref, u_ref, w1x_ref, w1u_ref, b1_ref, w2_ref, b2_ref,
                  w3_ref, b3_ref, out_ref):
    """Fused 3-layer MLP for one batch tile (dropout = identity in eval mode).

    h1 = relu(x@W1x + u@W1u + b1)
    h2 = relu(h1@W2 + b2)
    q  = sum(h2 * w3_row, -1) + b3    (VPU mul + lane reduce, no N=1 matmul)
    """
    h1 = (jnp.dot(x_ref[...], w1x_ref[...], preferred_element_type=jnp.float32)
          + jnp.dot(u_ref[...], w1u_ref[...], preferred_element_type=jnp.float32)
          + b1_ref[...])
    h1 = jnp.maximum(h1, 0.0)

    h2 = jnp.dot(h1.astype(jnp.bfloat16), w2_ref[...],
                 preferred_element_type=jnp.float32) + b2_ref[...]
    h2 = jnp.maximum(h2, 0.0)

    q = jnp.sum(h2 * w3_ref[...], axis=-1)               # (tb,)
    # Lane-dense (1, 1, tb) row store instead of a (tb, 1) masked-column store.
    out_ref[...] = q.reshape(1, 1, -1) + b3_ref[...].reshape(1, 1, 1)


def _resident(shape):
    """Weights/biases: same block every grid step -> VMEM-resident.

    Request single buffering (an invariant block needs no double buffer);
    fall back gracefully if this jax version lacks the pipeline_mode kwarg.
    """
    index_map = lambda i: (0,) * len(shape)
    try:
        return pl.BlockSpec(shape, index_map, pipeline_mode=pl.Buffered(1))
    except TypeError:
        return pl.BlockSpec(shape, index_map)


def critic_forward(x, u, params, *, batch_tile=512):
    """x: (B, 10, STATE_DIM) or (B, FLAT_STATE); u: (B, ACTION_DIM) -> (B, 1).

    x/u should ideally already be bf16 (the kernel consumes bf16 tiles); if
    not, they are cast here (adds one extra pass over x, so prefer bf16 at the
    producer).
    """
    w1x, w1u, b1, w2, b2, w3, b3 = params
    x2d = x.reshape(-1, FLAT_STATE)
    if x2d.dtype != jnp.bfloat16:
        x2d = x2d.astype(jnp.bfloat16)
    if u.dtype != jnp.bfloat16:
        u = u.astype(jnp.bfloat16)
    B = x2d.shape[0]

    # Batch tile: multiple of 8, at most batch_tile; NO host-side padding
    # (Pallas handles the ragged last block; tail rows are sliced off below).
    tb = min(batch_tile, _round_up(B, 8))
    # If everything fits in one tile but B is large, split in two so the
    # "parallel" batch axis spans both v7x TensorCores (keeps M >= 128).
    if B <= batch_tile and B >= 256:
        tb = max(128, _round_up(pl.cdiv(B, 2), 8))
    if pl.cdiv(B, tb) == 1:
        tb = B        # single full-extent block along batch (always legal)
    nb = pl.cdiv(B, tb)

    out = pl.pallas_call(
        critic_kernel,
        out_shape=jax.ShapeDtypeStruct((nb, 1, tb), jnp.float32),
        grid=(nb,),
        in_specs=[
            pl.BlockSpec((tb, FLAT_STATE), lambda i: (i, 0)),   # x tile (bf16)
            pl.BlockSpec((tb, ACTION_DIM), lambda i: (i, 0)),   # u tile (bf16)
            _resident((FLAT_STATE, H1)),                        # W1_x (bf16)
            _resident((ACTION_DIM, H1)),                        # W1_u (bf16)
            _resident((1, H1)),                                 # b1
            _resident((H1, H2)),                                # W2 (bf16)
            _resident((1, H2)),                                 # b2
            _resident((1, H2)),                                 # w3 row
            _resident((1, OUT)),                                # b3
        ],
        out_specs=pl.BlockSpec((1, 1, tb), lambda i: (i, 0, 0)),
        compiler_params=pltpu.CompilerParams(
            dimension_semantics=("parallel",),   # 2 TCs on v7x; no-op on v5e/v6e
            vmem_limit_bytes=32 << 20,           # ~14 MiB actual at tb=512 (bf16 x)
        ),
    )(x2d, u, w1x, w1u, b1, w2, b2, w3, b3)

    # Lane-dense (nb, 1, tb) rows -> (B, 1); drops garbage rows of the ragged tail.
    return out.reshape(nb * tb)[:B].reshape(B, 1)


def init_params(key):
    """PyTorch-Linear-style init; W1 split into (x, u) parts; W1/W2 stored bf16."""
    ks = jax.random.split(key, 7)
    fan1 = FLAT_STATE + ACTION_DIM  # fan_in of l1 = 3872

    def uniform(k, shape, fan_in):
        bound = 1.0 / jnp.sqrt(fan_in)
        return jax.random.uniform(k, shape, jnp.float32, -bound, bound)

    w1x = uniform(ks[0], (FLAT_STATE, H1), fan1).astype(jnp.bfloat16)
    w1u = uniform(ks[1], (ACTION_DIM, H1), fan1).astype(jnp.bfloat16)
    b1 = uniform(ks[2], (1, H1), fan1)
    w2 = uniform(ks[3], (H1, H2), H1).astype(jnp.bfloat16)
    b2 = uniform(ks[4], (1, H2), H1)
    w3 = uniform(ks[5], (1, H2), H2)            # l3.weight as a (1,128) row
    b3 = uniform(ks[6], (1, OUT), H2)
    return (w1x, w1u, b1, w2, b2, w3, b3)


def reference_forward(x, u, params):
    """Plain-JAX reference with the same bf16-weight / f32-accumulate scheme."""
    w1x, w1u, b1, w2, b2, w3, b3 = params
    x2d = x.reshape(-1, FLAT_STATE).astype(jnp.bfloat16)
    ub = u.astype(jnp.bfloat16)
    h1 = (jnp.dot(x2d, w1x, preferred_element_type=jnp.float32)
          + jnp.dot(ub, w1u, preferred_element_type=jnp.float32) + b1)
    h1 = jnp.maximum(h1, 0.0)
    h2 = jnp.dot(h1.astype(jnp.bfloat16), w2,
                 preferred_element_type=jnp.float32) + b2
    h2 = jnp.maximum(h2, 0.0)
    return jnp.sum(h2 * w3, axis=-1, keepdims=True) + b3


if __name__ == "__main__":
    key = jax.random.PRNGKey(0)
    kp, kx, ku = jax.random.split(key, 3)

    params = init_params(kp)

    # Small primary shape: batch=2, 10 timesteps of the 384-dim state.
    B = 2
    x = jax.random.normal(kx, (B, 10, STATE_DIM), jnp.float32).astype(jnp.bfloat16)
    u = jax.random.normal(ku, (B, ACTION_DIM), jnp.float32).astype(jnp.bfloat16)

    q = critic_forward(x, u, params)
    jax.block_until_ready(q)
    ref = reference_forward(x, u, params)
    assert q.shape == (B, 1)
    assert jnp.allclose(q, ref, atol=5e-3, rtol=5e-3), (q, ref)

    # Exercise the multi-step grid + ragged last block path (no host padding).
    B2 = 40
    kx2, ku2 = jax.random.split(jax.random.PRNGKey(1))
    x2 = jax.random.normal(kx2, (B2, 10, STATE_DIM), jnp.float32).astype(jnp.bfloat16)
    u2 = jax.random.normal(ku2, (B2, ACTION_DIM), jnp.float32).astype(jnp.bfloat16)
    q2 = critic_forward(x2, u2, params, batch_tile=16)
    jax.block_until_ready(q2)
    ref2 = reference_forward(x2, u2, params)
    assert q2.shape == (B2, 1)
    assert jnp.allclose(q2, ref2, atol=5e-3, rtol=5e-3), (q2, ref2)

    print("KERNEL_OK")
</pallas_src>

<mosaic_0001>
module attributes {stable_mosaic.version = 11 : i64} {
  func.func @critic_kernel(%arg0: i32, %arg1: memref<2x3840xbf16, #tpu.memory_space<vmem>>, %arg2: memref<2x32xbf16, #tpu.memory_space<vmem>>, %arg3: memref<3840x512xbf16, #tpu.memory_space<vmem>>, %arg4: memref<32x512xbf16, #tpu.memory_space<vmem>>, %arg5: memref<1x512xf32, #tpu.memory_space<vmem>>, %arg6: memref<512x128xbf16, #tpu.memory_space<vmem>>, %arg7: memref<1x128xf32, #tpu.memory_space<vmem>>, %arg8: memref<1x128xf32, #tpu.memory_space<vmem>>, %arg9: memref<1x1xf32, #tpu.memory_space<vmem>>, %arg10: memref<1x1x2xf32, #tpu.memory_space<vmem>>) attributes {dimension_semantics = [#tpu.dimension_semantics<parallel>], iteration_bounds = array<i64: 1>, scalar_prefetch = 0 : i64, scratch_operands = 0 : i64, tpu.core_type = #tpu.core_type<tc>, window_params = [{transform_indices = @transform_0, window_bounds = array<i64: 2, 3840>}, {transform_indices = @transform_1, window_bounds = array<i64: 2, 32>}, {pipeline_mode = #tpu.pipeline_mode<synchronous>, transform_indices = @transform_2, window_bounds = array<i64: 3840, 512>}, {pipeline_mode = #tpu.pipeline_mode<synchronous>, transform_indices = @transform_3, window_bounds = array<i64: 32, 512>}, {pipeline_mode = #tpu.pipeline_mode<synchronous>, transform_indices = @transform_4, window_bounds = array<i64: 1, 512>}, {pipeline_mode = #tpu.pipeline_mode<synchronous>, transform_indices = @transform_5, window_bounds = array<i64: 512, 128>}, {pipeline_mode = #tpu.pipeline_mode<synchronous>, transform_indices = @transform_6, window_bounds = array<i64: 1, 128>}, {pipeline_mode = #tpu.pipeline_mode<synchronous>, transform_indices = @transform_7, window_bounds = array<i64: 1, 128>}, {pipeline_mode = #tpu.pipeline_mode<synchronous>, transform_indices = @transform_8, window_bounds = array<i64: 1, 1>}, {transform_indices = @transform_9, window_bounds = array<i64: 1, 1, 2>}]} {
    %c0 = arith.constant 0 : index
    %c0_0 = arith.constant 0 : index
    %0 = vector.load %arg1[%c0, %c0_0] : memref<2x3840xbf16, #tpu.memory_space<vmem>>, vector<2x3840xbf16>
    %c0_1 = arith.constant 0 : index
    %c0_2 = arith.constant 0 : index
    %1 = vector.load %arg3[%c0_1, %c0_2] : memref<3840x512xbf16, #tpu.memory_space<vmem>>, vector<3840x512xbf16>
    %cst = arith.constant dense<0.000000e+00> : vector<2x512xf32>
    %2 = tpu.matmul %0, %1, %cst {dimension_numbers = #tpu.dot_dimension_numbers<[1], [0], [0], [1], [0, 0, 1, 1], [], []>} : vector<2x3840xbf16>, vector<3840x512xbf16>, vector<2x512xf32> -> vector<2x512xf32>
    %c0_3 = arith.constant 0 : index
    %c0_4 = arith.constant 0 : index
    %3 = vector.load %arg2[%c0_3, %c0_4] : memref<2x32xbf16, #tpu.memory_space<vmem>>, vector<2x32xbf16>
    %c0_5 = arith.constant 0 : index
    %c0_6 = arith.constant 0 : index
    %4 = vector.load %arg4[%c0_5, %c0_6] : memref<32x512xbf16, #tpu.memory_space<vmem>>, vector<32x512xbf16>
    %cst_7 = arith.constant dense<0.000000e+00> : vector<2x512xf32>
    %5 = tpu.matmul %3, %4, %cst_7 {dimension_numbers = #tpu.dot_dimension_numbers<[1], [0], [0], [1], [0, 0, 1, 1], [], []>} : vector<2x32xbf16>, vector<32x512xbf16>, vector<2x512xf32> -> vector<2x512xf32>
    %6 = arith.addf %2, %5 : vector<2x512xf32>
    %c0_8 = arith.constant 0 : index
    %c0_9 = arith.constant 0 : index
    %7 = vector.load %arg5[%c0_8, %c0_9] : memref<1x512xf32, #tpu.memory_space<vmem>>, vector<1x512xf32>
    %8 = vector.broadcast %7 : vector<1x512xf32> to vector<2x512xf32>
    %9 = arith.addf %6, %8 : vector<2x512xf32>
    %cst_10 = arith.constant 0.000000e+00 : f32
    %10 = vector.broadcast %cst_10 : f32 to vector<2x512xf32>
    %11 = arith.maximumf %9, %10 : vector<2x512xf32>
    %12 = arith.truncf %11 : vector<2x512xf32> to vector<2x512xbf16>
    %c0_11 = arith.constant 0 : index
    %c0_12 = arith.constant 0 : index
    %13 = vector.load %arg6[%c0_11, %c0_12] : memref<512x128xbf16, #tpu.memory_space<vmem>>, vector<512x128xbf16>
    %cst_13 = arith.constant dense<0.000000e+00> : vector<2x128xf32>
    %14 = tpu.matmul %12, %13, %cst_13 {dimension_numbers = #tpu.dot_dimension_numbers<[1], [0], [0], [1], [0, 0, 1, 1], [], []>} : vector<2x512xbf16>, vector<512x128xbf16>, vector<2x128xf32> -> vector<2x128xf32>
    %c0_14 = arith.constant 0 : index
    %c0_15 = arith.constant 0 : index
    %15 = vector.load %arg7[%c0_14, %c0_15] : memref<1x128xf32, #tpu.memory_space<vmem>>, vector<1x128xf32>
    %16 = vector.broadcast %15 : vector<1x128xf32> to vector<2x128xf32>
    %17 = arith.addf %14, %16 : vector<2x128xf32>
    %cst_16 = arith.constant 0.000000e+00 : f32
    %18 = vector.broadcast %cst_16 : f32 to vector<2x128xf32>
    %19 = arith.maximumf %17, %18 : vector<2x128xf32>
    %c0_17 = arith.constant 0 : index
    %c0_18 = arith.constant 0 : index
    %20 = vector.load %arg8[%c0_17, %c0_18] : memref<1x128xf32, #tpu.memory_space<vmem>>, vector<1x128xf32>
    %21 = vector.broadcast %20 : vector<1x128xf32> to vector<2x128xf32>
    %22 = arith.mulf %19, %21 : vector<2x128xf32>
    %cst_19 = arith.constant dense<0.000000e+00> : vector<2xf32>
    %23 = vector.multi_reduction <add>, %22, %cst_19 [1] : vector<2x128xf32> to vector<2xf32>
    %24 = vector.shape_cast %23 : vector<2xf32> to vector<1x1x2xf32>
    %c0_20 = arith.constant 0 : index
    %c0_21 = arith.constant 0 : index
    %25 = vector.load %arg9[%c0_20, %c0_21] : memref<1x1xf32, #tpu.memory_space<vmem>>, vector<1x1xf32>
    %26 = vector.shape_cast %25 : vector<1x1xf32> to vector<1x1x1xf32>
    %27 = vector.broadcast %26 : vector<1x1x1xf32> to vector<1x1x2xf32>
    %28 = arith.addf %24, %27 : vector<1x1x2xf32>
    %c0_22 = arith.constant 0 : index
    %c0_23 = arith.constant 0 : index
    %c0_24 = arith.constant 0 : index
    %29 = vector.load %arg10[%c0_22, %c0_23, %c0_24] : memref<1x1x2xf32, #tpu.memory_space<vmem>>, vector<1x1x2xf32>
    tpu.vector_store %arg10[%c0_22, %c0_23, %c0_24], %28 {strides = array<i32>} : memref<1x1x2xf32, #tpu.memory_space<vmem>>, vector<1x1x2xf32>,
    return
  }
  func.func @transform_0(%arg0: i32) -> (i32, i32) {
    %c0_i32 = arith.constant 0 : i32
    %c0_i32_0 = arith.constant 0 : i32
    return %arg0, %c0_i32 : i32, i32
  }
  func.func @transform_1(%arg0: i32) -> (i32, i32) {
    %c0_i32 = arith.constant 0 : i32
    %c0_i32_0 = arith.constant 0 : i32
    return %arg0, %c0_i32 : i32, i32
  }
  func.func @transform_2(%arg0: i32) -> (i32, i32) {
    %c0_i32 = arith.constant 0 : i32
    %c0_i32_0 = arith.constant 0 : i32
    %c0_i32_1 = arith.constant 0 : i32
    return %c0_i32, %c0_i32_0 : i32, i32
  }
  func.func @transform_3(%arg0: i32) -> (i32, i32) {
    %c0_i32 = arith.constant 0 : i32
    %c0_i32_0 = arith.constant 0 : i32
    %c0_i32_1 = arith.constant 0 : i32
    return %c0_i32, %c0_i32_0 : i32, i32
  }
  func.func @transform_4(%arg0: i32) -> (i32, i32) {
    %c0_i32 = arith.constant 0 : i32
    %c0_i32_0 = arith.constant 0 : i32
    %c0_i32_1 = arith.constant 0 : i32
    return %c0_i32, %c0_i32_0 : i32, i32
  }
  func.func @transform_5(%arg0: i32) -> (i32, i32) {
    %c0_i32 = arith.constant 0 : i32
    %c0_i32_0 = arith.constant 0 : i32
    %c0_i32_1 = arith.constant 0 : i32
    return %c0_i32, %c0_i32_0 : i32, i32
  }
  func.func @transform_6(%arg0: i32) -> (i32, i32) {
    %c0_i32 = arith.constant 0 : i32
    %c0_i32_0 = arith.constant 0 : i32
    %c0_i32_1 = arith.constant 0 : i32
    return %c0_i32, %c0_i32_0 : i32, i32
  }
  func.func @transform_7(%arg0: i32) -> (i32, i32) {
    %c0_i32 = arith.constant 0 : i32
    %c0_i32_0 = arith.constant 0 : i32
    %c0_i32_1 = arith.constant 0 : i32
    return %c0_i32, %c0_i32_0 : i32, i32
  }
  func.func @transform_8(%arg0: i32) -> (i32, i32) {
    %c0_i32 = arith.constant 0 : i32
    %c0_i32_0 = arith.constant 0 : i32
    %c0_i32_1 = arith.constant 0 : i32
    return %c0_i32, %c0_i32_0 : i32, i32
  }
  func.func @transform_9(%arg0: i32) -> (i32, i32, i32) {
    %c0_i32 = arith.constant 0 : i32
    %c0_i32_0 = arith.constant 0 : i32
    %c0_i32_1 = arith.constant 0 : i32
    return %arg0, %c0_i32, %c0_i32_0 : i32, i32, i32
  }
}

</mosaic_0001>

<llo_original>
// kernel: tpu_custom_call.1
$region0: #{tpu_custom_call.1}
  #allocation0 [shape = 'u32[]', space=smem, size = 0x4, offset = 0x4, fixed_abs, tag = 'smem constant byte address 0x4 - core index']
  #allocation1 [shape = 'u32[72,128]{1,0:T(1,128)}', space=vmem, size = 0x9000, scoped, tag = 'internal scratch']
  #allocation2 [shape = 'f32[1,1]{1,0:T(1,128)S(1)}', space=vmem, size = 0x200, scoped, tag = 'scoped memory for tpu_custom_call.1']
  %s0 = inlined_call_operand.hbm [shape: bf16[2,3840], index: 0, kind: input, shape index: {}]
  %s1 = inlined_call_operand.hbm [shape: bf16[2,32], index: 1, kind: input, shape index: {}]
  %s2 = inlined_call_operand.hbm [shape: bf16[3840,512], index: 2, kind: input, shape index: {}]
  %s3 = inlined_call_operand.hbm [shape: bf16[32,512], index: 3, kind: input, shape index: {}]
  %s4 = inlined_call_operand.hbm [shape: f32[1,512], index: 4, kind: input, shape index: {}]
  %s5 = inlined_call_operand.hbm [shape: bf16[512,128], index: 5, kind: input, shape index: {}]
  %s6 = inlined_call_operand.hbm [shape: f32[1,128], index: 6, kind: input, shape index: {}]
  %s7 = inlined_call_operand.hbm [shape: f32[1,128], index: 7, kind: input, shape index: {}]
  %s8 = inlined_call_operand.<no memory space> [shape: f32[1,1], index: 8, kind: input, shape index: {}]
  %s9 = inlined_call_operand.hbm [shape: f32[1,1,2], index: 9, kind: output, shape index: {}]
  %s10 = sld [smem:[#allocation0]]
  $region78: #{tpu_custom_call.1} parent=0
    _
  %s12 = ssub.s32 1, %s10
  %s13 = scalar_select 0, %s12, %s10
  %v14 = vstv %s8
  %15 = vst [vmem:[#allocation2] sm:$0x1] %v14
  $region1: #{tpu_custom_call.1} parent=0
    #allocation3 [shape = 'u8[15360]{0}', space=vmem, size = 0x3c00, scoped, tag = 'input window, operand 0, single buffered']
    #allocation4 [shape = 's32[1]{0}', space=sflag, size = 0x4, scoped, tag = 'scoped memory for tpu_custom_call.1']
    #allocation5 [shape = 's32[1]{0}', space=sflag, size = 0x4, scoped, tag = 'scoped memory for tpu_custom_call.1']
    #allocation6 [shape = 'u8[512]{0}', space=vmem, size = 0x400, scoped, tag = 'input window, operand 1, single buffered']
    #allocation7 [shape = 's32[1]{0}', space=sflag, size = 0x4, scoped, tag = 'scoped memory for tpu_custom_call.1']
    #allocation8 [shape = 'u8[3932160]{0}', space=vmem, size = 0x3c0000, scoped, tag = 'input window, operand 2, single buffered']
    #allocation9 [shape = 'u8[32768]{0}', space=vmem, size = 0x8000, scoped, tag = 'input window, operand 3, single buffered']
    #allocation10 [shape = 's32[1]{0}', space=sflag, size = 0x4, scoped, tag = 'scoped memory for tpu_custom_call.1']
    #allocation11 [shape = 'u8[2048]{0}', space=vmem, size = 0x800, scoped, tag = 'input window, operand 4, single buffered']
    #allocation12 [shape = 'u8[131072]{0}', space=vmem, size = 0x20000, scoped, tag = 'input window, operand 5, single buffered']
    #allocation13 [shape = 's32[1]{0}', space=sflag, size = 0x4, scoped, tag = 'scoped memory for tpu_custom_call.1']
    #allocation14 [shape = 'u8[512]{0}', space=vmem, size = 0x400, scoped, tag = 'input window, operand 6, single buffered']
    #allocation15 [shape = 'u8[512]{0}', space=vmem, size = 0x400, scoped, tag = 'input window, operand 7, single buffered']
    #allocation16 [shape = 's32[1]{0}', space=sflag, size = 0x4, scoped, tag = 'scoped memory for tpu_custom_call.1']
    #allocation17 [shape = 'u8[512]{0}', space=vmem, size = 0x400, scoped, tag = 'output window, operand 0, single buffered']
    %16 = vsyncpa [#allocation4], 0
    %17 = vsyncpa [#allocation7], 0
    %18 = vsyncpa [#allocation10], 0
    %19 = vsyncpa [#allocation13], 0
    %20 = vsyncpa [#allocation16], 0
    %21 = vsyncpa [#allocation5], 0
    // Predicated region
    $region2: #{tpu_custom_call.1} parent=1 // pred_check
      _
    $region3: #{tpu_custom_call.1} parent=1 // pred_check_branch
      %23 = sbr.rel (0) target = $region5
    $region4: #{tpu_custom_call.1} parent=1 // pred_region
      %25 = vsyncadd [#allocation4], 0
      %s27 = sshll.u32 %s0, 4
      %s28 = int_to_ptr.hbm [resolvable:$true] %s27
      %s29 = sshll.u32 [#allocation3], 4
      %s30 = int_to_ptr.vmem [resolvable:$true] %s29
      %32 = dma.hbm_to_vmem [thread:$0]  %s28, 480, %s30, [#allocation4]
    $region5: #{tpu_custom_call.1} parent=1 // pred_fallthru
      _
    // Predicated region
    $region6: #{tpu_custom_call.1} parent=1 // pred_check
      _
    $region7: #{tpu_custom_call.1} parent=1 // pred_check_branch
      %34 = sbr.rel (0) target = $region9
    $region8: #{tpu_custom_call.1} parent=1 // pred_region
      %36 = vsyncadd [#allocation7], 0
      %s38 = sshll.u32 %s1, 4
      %s39 = int_to_ptr.hbm [resolvable:$true] %s38
      %s40 = sshll.u32 [#allocation6], 4
      %s41 = int_to_ptr.vmem [resolvable:$true] %s40
      %43 = dma.hbm_to_vmem [thread:$0]  %s39, 16, %s41, [#allocation7]
    $region9: #{tpu_custom_call.1} parent=1 // pred_fallthru
      _
    // Predicated region
    $region10: #{tpu_custom_call.1} parent=1 // pred_check
      _
    $region11: #{tpu_custom_call.1} parent=1 // pred_check_branch
      %45 = sbr.rel (0) target = $region13
    $region12: #{tpu_custom_call.1} parent=1 // pred_region
      %47 = vsyncadd [#allocation7], 0
      %s48 = sshll.u32 %s2, 4
      %s49 = int_to_ptr.hbm [resolvable:$true] %s48
      %s50 = sshll.u32 [#allocation8], 4
      %s51 = int_to_ptr.vmem [resolvable:$true] %s50
      %56 = dma.hbm_to_vmem [thread:$0]  %s49, 122880, %s51, [#allocation7], 256, 256, 16
    $region13: #{tpu_custom_call.1} parent=1 // pred_fallthru
      _
    // Predicated region
    $region14: #{tpu_custom_call.1} parent=1 // pred_check
      _
    $region15: #{tpu_custom_call.1} parent=1 // pred_check_branch
      %58 = sbr.rel (0) target = $region17
    $region16: #{tpu_custom_call.1} parent=1 // pred_region
      %60 = vsyncadd [#allocation10], 0
      %s61 = sshll.u32 %s3, 4
      %s62 = int_to_ptr.hbm [resolvable:$true] %s61
      %s63 = sshll.u32 [#allocation9], 4
      %s64 = int_to_ptr.vmem [resolvable:$true] %s63
      %69 = dma.hbm_to_vmem [thread:$0]  %s62, 1024, %s64, [#allocation10], 256, 256, 16
    $region17: #{tpu_custom_call.1} parent=1 // pred_fallthru
      _
    // Predicated region
    $region18: #{tpu_custom_call.1} parent=1 // pred_check
      _
    $region19: #{tpu_custom_call.1} parent=1 // pred_check_branch
      %71 = sbr.rel (0) target = $region21
    $region20: #{tpu_custom_call.1} parent=1 // pred_region
      %73 = vsyncadd [#allocation10], 0
      %s75 = sshll.u32 %s4, 4
      %s76 = int_to_ptr.hbm [resolvable:$true] %s75
      %s77 = sshll.u32 [#allocation11], 4
      %s78 = int_to_ptr.vmem [resolvable:$true] %s77
      %80 = dma.hbm_to_vmem [thread:$0]  %s76, 64, %s78, [#allocation10]
    $region21: #{tpu_custom_call.1} parent=1 // pred_fallthru
      _
    // Predicated region
    $region22: #{tpu_custom_call.1} parent=1 // pred_check
      _
    $region23: #{tpu_custom_call.1} parent=1 // pred_check_branch
      %82 = sbr.rel (0) target = $region25
    $region24: #{tpu_custom_call.1} parent=1 // pred_region
      %84 = vsyncadd [#allocation13], 0
      %s85 = sshll.u32 %s5, 4
      %s86 = int_to_ptr.hbm [resolvable:$true] %s85
      %s87 = sshll.u32 [#allocation12], 4
      %s88 = int_to_ptr.vmem [resolvable:$true] %s87
      %93 = dma.hbm_to_vmem [thread:$0]  %s86, 4096, %s88, [#allocation13], 64, 64, 4
    $region25: #{tpu_custom_call.1} parent=1 // pred_fallthru
      _
    // Predicated region
    $region26: #{tpu_custom_call.1} parent=1 // pred_check
      _
    $region27: #{tpu_custom_call.1} parent=1 // pred_check_branch
      %95 = sbr.rel (0) target = $region29
    $region28: #{tpu_custom_call.1} parent=1 // pred_region
      %97 = vsyncadd [#allocation13], 0
      %s99 = sshll.u32 %s6, 4
      %s100 = int_to_ptr.hbm [resolvable:$true] %s99
      %s101 = sshll.u32 [#allocation14], 4
      %s102 = int_to_ptr.vmem [resolvable:$true] %s101
      %104 = dma.hbm_to_vmem [thread:$0]  %s100, 16, %s102, [#allocation13]
    $region29: #{tpu_custom_call.1} parent=1 // pred_fallthru
      _
    // Predicated region
    $region30: #{tpu_custom_call.1} parent=1 // pred_check
      _
    $region31: #{tpu_custom_call.1} parent=1 // pred_check_branch
      %106 = sbr.rel (0) target = $region33
    $region32: #{tpu_custom_call.1} parent=1 // pred_region
      %108 = vsyncadd [#allocation16], 0
      %s110 = sshll.u32 %s7, 4
      %s111 = int_to_ptr.hbm [resolvable:$true] %s110
      %s112 = sshll.u32 [#allocation15], 4
      %s113 = int_to_ptr.vmem [resolvable:$true] %s112
      %115 = dma.hbm_to_vmem [thread:$0]  %s111, 16, %s113, [#allocation16]
    $region33: #{tpu_custom_call.1} parent=1 // pred_fallthru
      _
    // Predicated region
    $region34: #{tpu_custom_call.1} parent=1 // pred_check
      _
    $region35: #{tpu_custom_call.1} parent=1 // pred_check_branch
      %117 = sbr.rel (0) target = $region37
    $region36: #{tpu_custom_call.1} parent=1 // pred_region
      _
    $region37: #{tpu_custom_call.1} parent=1 // pred_fallthru
      _
    // Predicated region
    $region38: #{tpu_custom_call.1} parent=1 // pred_check
      _
    $region39: #{tpu_custom_call.1} parent=1 // pred_check_branch
      %119 = sbr.rel (0) target = $region41
    $region40: #{tpu_custom_call.1} parent=1 // pred_region
      %121 = dma.done [#allocation4], 480
    $region41: #{tpu_custom_call.1} parent=1 // pred_fallthru
      _
    // Predicated region
    $region42: #{tpu_custom_call.1} parent=1 // pred_check
      _
    $region43: #{tpu_custom_call.1} parent=1 // pred_check_branch
      %123 = sbr.rel (0) target = $region45
    $region44: #{tpu_custom_call.1} parent=1 // pred_region
      %125 = dma.done [#allocation7], 16
    $region45: #{tpu_custom_call.1} parent=1 // pred_fallthru
      _
    // Predicated region
    $region46: #{tpu_custom_call.1} parent=1 // pred_check
      _
    $region47: #{tpu_custom_call.1} parent=1 // pred_check_branch
      %127 = sbr.rel (0) target = $region49
    $region48: #{tpu_custom_call.1} parent=1 // pred_region
      %129 = dma.done [#allocation7], 122880
    $region49: #{tpu_custom_call.1} parent=1 // pred_fallthru
      _
    // Predicated region
    $region50: #{tpu_custom_call.1} parent=1 // pred_check
      _
    $region51: #{tpu_custom_call.1} parent=1 // pred_check_branch
      %131 = sbr.rel (0) target = $region53
    $region52: #{tpu_custom_call.1} parent=1 // pred_region
      %133 = dma.done [#allocation10], 1024
    $region53: #{tpu_custom_call.1} parent=1 // pred_fallthru
      _
    // Predicated region
    $region54: #{tpu_custom_call.1} parent=1 // pred_check
      _
    $region55: #{tpu_custom_call.1} parent=1 // pred_check_branch
      %135 = sbr.rel (0) target = $region57
    $region56: #{tpu_custom_call.1} parent=1 // pred_region
      %137 = dma.done [#allocation10], 64
    $region57: #{tpu_custom_call.1} parent=1 // pred_fallthru
      _
    // Predicated region
    $region58: #{tpu_custom_call.1} parent=1 // pred_check
      _
    $region59: #{tpu_custom_call.1} parent=1 // pred_check_branch
      %139 = sbr.rel (0) target = $region61
    $region60: #{tpu_custom_call.1} parent=1 // pred_region
      %141 = dma.done [#allocation13], 4096
    $region61: #{tpu_custom_call.1} parent=1 // pred_fallthru
      _
    // Predicated region
    $region62: #{tpu_custom_call.1} parent=1 // pred_check
      _
    $region63: #{tpu_custom_call.1} parent=1 // pred_check_branch
      %143 = sbr.rel (0) target = $region65
    $region64: #{tpu_custom_call.1} parent=1 // pred_region
      %145 = dma.done [#allocation13], 16
    $region65: #{tpu_custom_call.1} parent=1 // pred_fallthru
      _
    // Predicated region
    $region66: #{tpu_custom_call.1} parent=1 // pred_check
      _
    $region67: #{tpu_custom_call.1} parent=1 // pred_check_branch
      %147 = sbr.rel (0) target = $region69
    $region68: #{tpu_custom_call.1} parent=1 // pred_region
      %149 = dma.done [#allocation16], 16
    $region69: #{tpu_custom_call.1} parent=1 // pred_fallthru
      _
    %v151 = vld [vmem:[#allocation3] sm:$0xff]
    %v152 = vld [vmem:[#allocation3 + $0x8] sm:$0xff]
    %v153 = vld [vmem:[#allocation3 + $0x10] sm:$0xff]
    %v154 = vld [vmem:[#allocation3 + $0x18] sm:$0x3f]
    %v155 = vld [vmem:[#allocation8] sm:$0xff]
    %v156 = vld [vmem:[#allocation8 + $0x8] sm:$0xff]
    %v157 = vld [vmem:[#allocation8 + $0x10] sm:$0xff]
    %v158 = vld [vmem:[#allocation8 + $0x18] sm:$0xff]
    %v159 = vld [vmem:[#allocation8 + $0x20] sm:$0xff]
    %v160 = vld [vmem:[#allocation8 + $0x28] sm:$0xff]
    %v161 = vld [vmem:[#allocation8 + $0x30] sm:$0xff]
    %v162 = vld [vmem:[#allocation8 + $0x38] sm:$0xff]
    %v163 = vld [vmem:[#allocation8 + $0x40] sm:$0xff]
    %v164 = vld [vmem:[#allocation8 + $0x48] sm:$0xff]
    %v165 = vld [vmem:[#allocation8 + $0x50] sm:$0xff]
    %v166 = vld [vmem:[#allocation8 + $0x58] sm:$0xff]
    %v167 = vld [vmem:[#allocation8 + $0x60] sm:$0xff]
    %v168 = vld [vmem:[#allocation8 + $0x68] sm:$0xff]
    %v169 = vld [vmem:[#allocation8 + $0x70] sm:$0xff]
    %v170 = vld [vmem:[#allocation8 + $0x78] sm:$0xff]
    %v171 = vld [vmem:[#allocation8 + $0x80] sm:$0xff]
    %v172 = vld [vmem:[#allocation8 + $0x88] sm:$0xff]
    %v173 = vld [vmem:[#allocation8 + $0x90] sm:$0xff]
    %v174 = vld [vmem:[#allocation8 + $0x98] sm:$0xff]
    %v175 = vld [vmem:[#allocation8 + $0xa0] sm:$0xff]
    %v176 = vld [vmem:[#allocation8 + $0xa8] sm:$0xff]
    %v177 = vld [vmem:[#allocation8 + $0xb0] sm:$0xff]
    %v178 = vld [vmem:[#allocation8 + $0xb8] sm:$0xff]
    %v179 = vld [vmem:[#allocation8 + $0xc0] sm:$0xff]
    %v180 = vld [vmem:[#allocation8 + $0xc8] sm:$0xff]
    %v181 = vld [vmem:[#allocation8 + $0xd0] sm:$0xff]
    %v182 = vld [vmem:[#allocation8 + $0xd8] sm:$0xff]
    %v183 = vld [vmem:[#allocation8 + $0xe0] sm:$0xff]
    %v184 = vld [vmem:[#allocation8 + $0xe8] sm:$0xff]
    %v185 = vld [vmem:[#allocation8 + $0xf0] sm:$0xff]
    %v186 = vld [vmem:[#allocation8 + $0xf8] sm:$0xff]
    %v187 = vld [vmem:[#allocation8 + $0x100] sm:$0xff]
    %v188 = vld [vmem:[#allocation8 + $0x108] sm:$0xff]
    %v189 = vld [vmem:[#allocation8 + $0x110] sm:$0xff]
    %v190 = vld [vmem:[#allocation8 + $0x118] sm:$0xff]
    %v191 = vld [vmem:[#allocation8 + $0x120] sm:$0xff]
    %v192 = vld [vmem:[#allocation8 + $0x128] sm:$0xff]
    %v193 = vld [vmem:[#allocation8 + $0x130] sm:$0xff]
    %v194 = vld [vmem:[#allocation8 + $0x138] sm:$0xff]
    %v195 = vld [vmem:[#allocation8 + $0x140] sm:$0xff]
    %v196 = vld [vmem:[#allocation8 + $0x148] sm:$0xff]
    %v197 = vld [vmem:[#allocation8 + $0x150] sm:$0xff]
    %v198 = vld [vmem:[#allocation8 + $0x158] sm:$0xff]
    %v199 = vld [vmem:[#allocation8 + $0x160] sm:$0xff]
    %v200 = vld [vmem:[#allocation8 + $0x168] sm:$0xff]
    %v201 = vld [vmem:[#allocation8 + $0x170] sm:$0xff]
    %v202 = vld [vmem:[#allocation8 + $0x178] sm:$0xff]
    %v203 = vld [vmem:[#allocation8 + $0x180] sm:$0xff]
    %v204 = vld [vmem:[#allocation8 + $0x188] sm:$0xff]
    %v205 = vld [vmem:[#allocation8 + $0x190] sm:$0xff]
    %v206 = vld [vmem:[#allocation8 + $0x198] sm:$0xff]
    %v207 = vld [vmem:[#allocation8 + $0x1a0] sm:$0xff]
    %v208 = vld [vmem:[#allocation8 + $0x1a8] sm:$0xff]
    %v209 = vld [vmem:[#allocation8 + $0x1b0] sm:$0xff]
    %v210 = vld [vmem:[#allocation8 + $0x1b8] sm:$0xff]
    %v211 = vld [vmem:[#allocation8 + $0x1c0] sm:$0xff]
    %v212 = vld [vmem:[#allocation8 + $0x1c8] sm:$0xff]
    %v213 = vld [vmem:[#allocation8 + $0x1d0] sm:$0xff]
    %v214 = vld [vmem:[#allocation8 + $0x1d8] sm:$0xff]
    %v215 = vld [vmem:[#allocation8 + $0x1e0] sm:$0xff]
    %v216 = vld [vmem:[#allocation8 + $0x1e8] sm:$0xff]
    %v217 = vld [vmem:[#allocation8 + $0x1f0] sm:$0xff]
    %v218 = vld [vmem:[#allocation8 + $0x1f8] sm:$0xff]
    %v219 = vld [vmem:[#allocation8 + $0x200] sm:$0xff]
    %v220 = vld [vmem:[#allocation8 + $0x208] sm:$0xff]
    %v221 = vld [vmem:[#allocation8 + $0x210] sm:$0xff]
    %v222 = vld [vmem:[#allocation8 + $0x218] sm:$0xff]
    %v223 = vld [vmem:[#allocation8 + $0x220] sm:$0xff]
    %v224 = vld [vmem:[#allocation8 + $0x228] sm:$0xff]
    %v225 = vld [vmem:[#allocation8 + $0x230] sm:$0xff]
    %v226 = vld [vmem:[#allocation8 + $0x238] sm:$0xff]
    %v227 = vld [vmem:[#allocation8 + $0x240] sm:$0xff]
    %v228 = vld [vmem:[#allocation8 + $0x248] sm:$0xff]
    %v229 = vld [vmem:[#allocation8 + $0x250] sm:$0xff]
    %v230 = vld [vmem:[#allocation8 + $0x258] sm:$0xff]
    %v231 = vld [vmem:[#allocation8 + $0x260] sm:$0xff]
    %v232 = vld [vmem:[#allocation8 + $0x268] sm:$0xff]
    %v233 = vld [vmem:[#allocation8 + $0x270] sm:$0xff]
    %v234 = vld [vmem:[#allocation8 + $0x278] sm:$0xff]
    %v235 = vld [vmem:[#allocation8 + $0x280] sm:$0xff]
    %v236 = vld [vmem:[#allocation8 + $0x288] sm:$0xff]
    %v237 = vld [vmem:[#allocation8 + $0x290] sm:$0xff]
    %v238 = vld [vmem:[#allocation8 + $0x298] sm:$0xff]
    %v239 = vld [vmem:[#allocation8 + $0x2a0] sm:$0xff]
    %v240 = vld [vmem:[#allocation8 + $0x2a8] sm:$0xff]
    %v241 = vld [vmem:[#allocation8 + $0x2b0] sm:$0xff]
    %v242 = vld [vmem:[#allocation8 + $0x2b8] sm:$0xff]
    %v243 = vld [vmem:[#allocation8 + $0x2c0] sm:$0xff]
    %v244 = vld [vmem:[#allocation8 + $0x2c8] sm:$0xff]
    %v245 = vld [vmem:[#allocation8 + $0x2d0] sm:$0xff]
    %v246 = vld [vmem:[#allocation8 + $0x2d8] sm:$0xff]
    %v247 = vld [vmem:[#allocation8 + $0x2e0] sm:$0xff]
    %v248 = vld [vmem:[#allocation8 + $0x2e8] sm:$0xff]
    %v249 = vld [vmem:[#allocation8 + $0x2f0] sm:$0xff]
    %v250 = vld [vmem:[#allocation8 + $0x2f8] sm:$0xff]
    %v251 = vld [vmem:[#allocation8 + $0x300] sm:$0xff]
    %v252 = vld [vmem:[#allocation8 + $0x308] sm:$0xff]
    %v253 = vld [vmem:[#allocation8 + $0x310] sm:$0xff]
    %v254 = vld [vmem:[#allocation8 + $0x318] sm:$0xff]
    %v255 = vld [vmem:[#allocation8 + $0x320] sm:$0xff]
    %v256 = vld [vmem:[#allocation8 + $0x328] sm:$0xff]
    %v257 = vld [vmem:[#allocation8 + $0x330] sm:$0xff]
    %v258 = vld [vmem:[#allocation8 + $0x338] sm:$0xff]
    %v259 = vld [vmem:[#allocation8 + $0x340] sm:$0xff]
    %v260 = vld [vmem:[#allocation8 + $0x348] sm:$0xff]
    %v261 = vld [vmem:[#allocation8 + $0x350] sm:$0xff]
    %v262 = vld [vmem:[#allocation8 + $0x358] sm:$0xff]
    %v263 = vld [vmem:[#allocation8 + $0x360] sm:$0xff]
    %v264 = vld [vmem:[#allocation8 + $0x368] sm:$0xff]
    %v265 = vld [vmem:[#allocation8 + $0x370] sm:$0xff]
    %v266 = vld [vmem:[#allocation8 + $0x378] sm:$0xff]
    %v267 = vld [vmem:[#allocation8 + $0x380] sm:$0xff]
    %v268 = vld [vmem:[#allocation8 + $0x388] sm:$0xff]
    %v269 = vld [vmem:[#allocation8 + $0x390] sm:$0xff]
    %v270 = vld [vmem:[#allocation8 + $0x398] sm:$0xff]
    %v271 = vld [vmem:[#allocation8 + $0x3a0] sm:$0xff]
    %v272 = vld [vmem:[#allocation8 + $0x3a8] sm:$0xff]
    %v273 = vld [vmem:[#allocation8 + $0x3b0] sm:$0xff]
    %v274 = vld [vmem:[#allocation8 + $0x3b8] sm:$0xff]
    %v275 = vld [vmem:[#allocation8 + $0x3c0] sm:$0xff]
    %v276 = vld [vmem:[#allocation8 + $0x3c8] sm:$0xff]
    %v277 = vld [vmem:[#allocation8 + $0x3d0] sm:$0xff]
    %v278 = vld [vmem:[#allocation8 + $0x3d8] sm:$0xff]
    %v279 = vld [vmem:[#allocation8 + $0x3e0] sm:$0xff]
    %v280 = vld [vmem:[#allocation8 + $0x3e8] sm:$0xff]
    %v281 = vld [vmem:[#allocation8 + $0x3f0] sm:$0xff]
    %v282 = vld [vmem:[#allocation8 + $0x3f8] sm:$0xff]
    %v283 = vld [vmem:[#allocation8 + $0x400] sm:$0xff]
    %v284 = vld [vmem:[#allocation8 + $0x408] sm:$0xff]
    %v285 = vld [vmem:[#allocation8 + $0x410] sm:$0xff]
    %v286 = vld [vmem:[#allocation8 + $0x418] sm:$0xff]
    %v287 = vld [vmem:[#allocation8 + $0x420] sm:$0xff]
    %v288 = vld [vmem:[#allocation8 + $0x428] sm:$0xff]
    %v289 = vld [vmem:[#allocation8 + $0x430] sm:$0xff]
    %v290 = vld [vmem:[#allocation8 + $0x438] sm:$0xff]
    %v291 = vld [vmem:[#allocation8 + $0x440] sm:$0xff]
    %v292 = vld [vmem:[#allocation8 + $0x448] sm:$0xff]
    %v293 = vld [vmem:[#allocation8 + $0x450] sm:$0xff]
    %v294 = vld [vmem:[#allocation8 + $0x458] sm:$0xff]
    %v295 = vld [vmem:[#allocation8 + $0x460] sm:$0xff]
    %v296 = vld [vmem:[#allocation8 + $0x468] sm:$0xff]
    %v297 = vld [vmem:[#allocation8 + $0x470] sm:$0xff]
    %v298 = vld [vmem:[#allocation8 + $0x478] sm:$0xff]
    %v299 = vld [vmem:[#allocation8 + $0x480] sm:$0xff]
    %v300 = vld [vmem:[#allocation8 + $0x488] sm:$0xff]
    %v301 = vld [vmem:[#allocation8 + $0x490] sm:$0xff]
    %v302 = vld [vmem:[#allocation8 + $0x498] sm:$0xff]
    %v303 = vld [vmem:[#allocation8 + $0x4a0] sm:$0xff]
    %v304 = vld [vmem:[#allocation8 + $0x4a8] sm:$0xff]
    %v305 = vld [vmem:[#allocation8 + $0x4b0] sm:$0xff]
    %v306 = vld [vmem:[#allocation8 + $0x4b8] sm:$0xff]
    %v307 = vld [vmem:[#allocation8 + $0x4c0] sm:$0xff]
    %v308 = vld [vmem:[#allocation8 + $0x4c8] sm:$0xff]
    %v309 = vld [vmem:[#allocation8 + $0x4d0] sm:$0xff]
    %v310 = vld [vmem:[#allocation8 + $0x4d8] sm:$0xff]
    %v311 = vld [vmem:[#allocation8 + $0x4e0] sm:$0xff]
    %v312 = vld [vmem:[#allocation8 + $0x4e8] sm:$0xff]
    %v313 = vld [vmem:[#allocation8 + $0x4f0] sm:$0xff]
    %v314 = vld [vmem:[#allocation8 + $0x4f8] sm:$0xff]
    %v315 = vld [vmem:[#allocation8 + $0x500] sm:$0xff]
    %v316 = vld [vmem:[#allocation8 + $0x508] sm:$0xff]
    %v317 = vld [vmem:[#allocation8 + $0x510] sm:$0xff]
    %v318 = vld [vmem:[#allocation8 + $0x518] sm:$0xff]
    %v319 = vld [vmem:[#allocation8 + $0x520] sm:$0xff]
    %v320 = vld [vmem:[#allocation8 + $0x528] sm:$0xff]
    %v321 = vld [vmem:[#allocation8 + $0x530] sm:$0xff]
    %v322 = vld [vmem:[#allocation8 + $0x538] sm:$0xff]
    %v323 = vld [vmem:[#allocation8 + $0x540] sm:$0xff]
    %v324 = vld [vmem:[#allocation8 + $0x548] sm:$0xff]
    %v325 = vld [vmem:[#allocation8 + $0x550] sm:$0xff]
    %v326 = vld [vmem:[#allocation8 + $0x558] sm:$0xff]
    %v327 = vld [vmem:[#allocation8 + $0x560] sm:$0xff]
    %v328 = vld [vmem:[#allocation8 + $0x568] sm:$0xff]
    %v329 = vld [vmem:[#allocation8 + $0x570] sm:$0xff]
    %v330 = vld [vmem:[#allocation8 + $0x578] sm:$0xff]
    %v331 = vld [vmem:[#allocation8 + $0x580] sm:$0xff]
    %v332 = vld [vmem:[#allocation8 + $0x588] sm:$0xff]
    %v333 = vld [vmem:[#allocation8 + $0x590] sm:$0xff]
    %v334 = vld [vmem:[#allocation8 + $0x598] sm:$0xff]
    %v335 = vld [vmem:[#allocation8 + $0x5a0] sm:$0xff]
    %v336 = vld [vmem:[#allocation8 + $0x5a8] sm:$0xff]
    %v337 = vld [vmem:[#allocation8 + $0x5b0] sm:$0xff]
    %v338 = vld [vmem:[#allocation8 + $0x5b8] sm:$0xff]
    %v339 = vld [vmem:[#allocation8 + $0x5c0] sm:$0xff]
    %v340 = vld [vmem:[#allocation8 + $0x5c8] sm:$0xff]
    %v341 = vld [vmem:[#allocation8 + $0x5d0] sm:$0xff]
    %v342 = vld [vmem:[#allocation8 + $0x5d8] sm:$0xff]
    %v343 = vld [vmem:[#allocation8 + $0x5e0] sm:$0xff]
    %v344 = vld [vmem:[#allocation8 + $0x5e8] sm:$0xff]
    %v345 = vld [vmem:[#allocation8 + $0x5f0] sm:$0xff]
    %v346 = vld [vmem:[#allocation8 + $0x5f8] sm:$0xff]
    %v347 = vld [vmem:[#allocation8 + $0x600] sm:$0xff]
    %v348 = vld [vmem:[#allocation8 + $0x608] sm:$0xff]
    %v349 = vld [vmem:[#allocation8 + $0x610] sm:$0xff]
    %v350 = vld [vmem:[#allocation8 + $0x618] sm:$0xff]
    %v351 = vld [vmem:[#allocation8 + $0x620] sm:$0xff]
    %v352 = vld [vmem:[#allocation8 + $0x628] sm:$0xff]
    %v353 = vld [vmem:[#allocation8 + $0x630] sm:$0xff]
    %v354 = vld [vmem:[#allocation8 + $0x638] sm:$0xff]
    %v355 = vld [vmem:[#allocation8 + $0x640] sm:$0xff]
    %v356 = vld [vmem:[#allocation8 + $0x648] sm:$0xff]
    %v357 = vld [vmem:[#allocation8 + $0x650] sm:$0xff]
    %v358 = vld [vmem:[#allocation8 + $0x658] sm:$0xff]
    %v359 = vld [vmem:[#allocation8 + $0x660] sm:$0xff]
    %v360 = vld [vmem:[#allocation8 + $0x668] sm:$0xff]
    %v361 = vld [vmem:[#allocation8 + $0x670] sm:$0xff]
    %v362 = vld [vmem:[#allocation8 + $0x678] sm:$0xff]
    %v363 = vld [vmem:[#allocation8 + $0x680] sm:$0xff]
    %v364 = vld [vmem:[#allocation8 + $0x688] sm:$0xff]
    %v365 = vld [vmem:[#allocation8 + $0x690] sm:$0xff]
    %v366 = vld [vmem:[#allocation8 + $0x698] sm:$0xff]
    %v367 = vld [vmem:[#allocation8 + $0x6a0] sm:$0xff]
    %v368 = vld [vmem:[#allocation8 + $0x6a8] sm:$0xff]
    %v369 = vld [vmem:[#allocation8 + $0x6b0] sm:$0xff]
    %v370 = vld [vmem:[#allocation8 + $0x6b8] sm:$0xff]
    %v371 = vld [vmem:[#allocation8 + $0x6c0] sm:$0xff]
    %v372 = vld [vmem:[#allocation8 + $0x6c8] sm:$0xff]
    %v373 = vld [vmem:[#allocation8 + $0x6d0] sm:$0xff]
    %v374 = vld [vmem:[#allocation8 + $0x6d8] sm:$0xff]
    %v375 = vld [vmem:[#allocation8 + $0x6e0] sm:$0xff]
    %v376 = vld [vmem:[#allocation8 + $0x6e8] sm:$0xff]
    %v377 = vld [vmem:[#allocation8 + $0x6f0] sm:$0xff]
    %v378 = vld [vmem:[#allocation8 + $0x6f8] sm:$0xff]
    %v379 = vld [vmem:[#allocation8 + $0x700] sm:$0xff]
    %v380 = vld [vmem:[#allocation8 + $0x708] sm:$0xff]
    %v381 = vld [vmem:[#allocation8 + $0x710] sm:$0xff]
    %v382 = vld [vmem:[#allocation8 + $0x718] sm:$0xff]
    %v383 = vld [vmem:[#allocation8 + $0x720] sm:$0xff]
    %v384 = vld [vmem:[#allocation8 + $0x728] sm:$0xff]
    %v385 = vld [vmem:[#allocation8 + $0x730] sm:$0xff]
    %v386 = vld [vmem:[#allocation8 + $0x738] sm:$0xff]
    %v387 = vld [vmem:[#allocation8 + $0x740] sm:$0xff]
    %v388 = vld [vmem:[#allocation8 + $0x748] sm:$0xff]
    %v389 = vld [vmem:[#allocation8 + $0x750] sm:$0xff]
    %v390 = vld [vmem:[#allocation8 + $0x758] sm:$0xff]
    %v391 = vld [vmem:[#allocation8 + $0x760] sm:$0xff]
    %v392 = vld [vmem:[#allocation8 + $0x768] sm:$0xff]
    %v393 = vld [vmem:[#allocation8 + $0x770] sm:$0xff]
    %v394 = vld [vmem:[#allocation8 + $0x778] sm:$0xff]
    %v395 = vld [vmem:[#allocation8 + $0x780] sm:$0xff]
    %v396 = vld [vmem:[#allocation8 + $0x788] sm:$0xff]
    %v397 = vld [vmem:[#allocation8 + $0x790] sm:$0xff]
    %v398 = vld [vmem:[#allocation8 + $0x798] sm:$0xff]
    %v399 = vld [vmem:[#allocation8 + $0x7a0] sm:$0xff]
    %v400 = vld [vmem:[#allocation8 + $0x7a8] sm:$0xff]
    %v401 = vld [vmem:[#allocation8 + $0x7b0] sm:$0xff]
    %v402 = vld [vmem:[#allocation8 + $0x7b8] sm:$0xff]
    %v403 = vld [vmem:[#allocation8 + $0x7c0] sm:$0xff]
    %v404 = vld [vmem:[#allocation8 + $0x7c8] sm:$0xff]
    %v405 = vld [vmem:[#allocation8 + $0x7d0] sm:$0xff]
    %v406 = vld [vmem:[#allocation8 + $0x7d8] sm:$0xff]
    %v407 = vld [vmem:[#allocation8 + $0x7e0] sm:$0xff]
    %v408 = vld [vmem:[#allocation8 + $0x7e8] sm:$0xff]
    %v409 = vld [vmem:[#allocation8 + $0x7f0] sm:$0xff]
    %v410 = vld [vmem:[#allocation8 + $0x7f8] sm:$0xff]
    %v411 = vld [vmem:[#allocation8 + $0x800] sm:$0xff]
    %v412 = vld [vmem:[#allocation8 + $0x808] sm:$0xff]
    %v413 = vld [vmem:[#allocation8 + $0x810] sm:$0xff]
    %v414 = vld [vmem:[#allocation8 + $0x818] sm:$0xff]
    %v415 = vld [vmem:[#allocation8 + $0x820] sm:$0xff]
    %v416 = vld [vmem:[#allocation8 + $0x828] sm:$0xff]
    %v417 = vld [vmem:[#allocation8 + $0x830] sm:$0xff]
    %v418 = vld [vmem:[#allocation8 + $0x838] sm:$0xff]
    %v419 = vld [vmem:[#allocation8 + $0x840] sm:$0xff]
    %v420 = vld [vmem:[#allocation8 + $0x848] sm:$0xff]
    %v421 = vld [vmem:[#allocation8 + $0x850] sm:$0xff]
    %v422 = vld [vmem:[#allocation8 + $0x858] sm:$0xff]
    %v423 = vld [vmem:[#allocation8 + $0x860] sm:$0xff]
    %v424 = vld [vmem:[#allocation8 + $0x868] sm:$0xff]
    %v425 = vld [vmem:[#allocation8 + $0x870] sm:$0xff]
    %v426 = vld [vmem:[#allocation8 + $0x878] sm:$0xff]
    %v427 = vld [vmem:[#allocation8 + $0x880] sm:$0xff]
    %v428 = vld [vmem:[#allocation8 + $0x888] sm:$0xff]
    %v429 = vld [vmem:[#allocation8 + $0x890] sm:$0xff]
    %v430 = vld [vmem:[#allocation8 + $0x898] sm:$0xff]
    %v431 = vld [vmem:[#allocation8 + $0x8a0] sm:$0xff]
    %v432 = vld [vmem:[#allocation8 + $0x8a8] sm:$0xff]
    %v433 = vld [vmem:[#allocation8 + $0x8b0] sm:$0xff]
    %v434 = vld [vmem:[#allocation8 + $0x8b8] sm:$0xff]
    %v435 = vld [vmem:[#allocation8 + $0x8c0] sm:$0xff]
    %v436 = vld [vmem:[#allocation8 + $0x8c8] sm:$0xff]
    %v437 = vld [vmem:[#allocation8 + $0x8d0] sm:$0xff]
    %v438 = vld [vmem:[#allocation8 + $0x8d8] sm:$0xff]
    %v439 = vld [vmem:[#allocation8 + $0x8e0] sm:$0xff]
    %v440 = vld [vmem:[#allocation8 + $0x8e8] sm:$0xff]
    %v441 = vld [vmem:[#allocation8 + $0x8f0] sm:$0xff]
    %v442 = vld [vmem:[#allocation8 + $0x8f8] sm:$0xff]
    %v443 = vld [vmem:[#allocation8 + $0x900] sm:$0xff]
    %v444 = vld [vmem:[#allocation8 + $0x908] sm:$0xff]
    %v445 = vld [vmem:[#allocation8 + $0x910] sm:$0xff]
    %v446 = vld [vmem:[#allocation8 + $0x918] sm:$0xff]
    %v447 = vld [vmem:[#allocation8 + $0x920] sm:$0xff]
    %v448 = vld [vmem:[#allocation8 + $0x928] sm:$0xff]
    %v449 = vld [vmem:[#allocation8 + $0x930] sm:$0xff]
    %v450 = vld [vmem:[#allocation8 + $0x938] sm:$0xff]
    %v451 = vld [vmem:[#allocation8 + $0x940] sm:$0xff]
    %v452 = vld [vmem:[#allocation8 + $0x948] sm:$0xff]
    %v453 = vld [vmem:[#allocation8 + $0x950] sm:$0xff]
    %v454 = vld [vmem:[#allocation8 + $0x958] sm:$0xff]
    %v455 = vld [vmem:[#allocation8 + $0x960] sm:$0xff]
    %v456 = vld [vmem:[#allocation8 + $0x968] sm:$0xff]
    %v457 = vld [vmem:[#allocation8 + $0x970] sm:$0xff]
    %v458 = vld [vmem:[#allocation8 + $0x978] sm:$0xff]
    %v459 = vld [vmem:[#allocation8 + $0x980] sm:$0xff]
    %v460 = vld [vmem:[#allocation8 + $0x988] sm:$0xff]
    %v461 = vld [vmem:[#allocation8 + $0x990] sm:$0xff]
    %v462 = vld [vmem:[#allocation8 + $0x998] sm:$0xff]
    %v463 = vld [vmem:[#allocation8 + $0x9a0] sm:$0xff]
    %v464 = vld [vmem:[#allocation8 + $0x9a8] sm:$0xff]
    %v465 = vld [vmem:[#allocation8 + $0x9b0] sm:$0xff]
    %v466 = vld [vmem:[#allocation8 + $0x9b8] sm:$0xff]
    %v467 = vld [vmem:[#allocation8 + $0x9c0] sm:$0xff]
    %v468 = vld [vmem:[#allocation8 + $0x9c8] sm:$0xff]
    %v469 = vld [vmem:[#allocation8 + $0x9d0] sm:$0xff]
    %v470 = vld [vmem:[#allocation8 + $0x9d8] sm:$0xff]
    %v471 = vld [vmem:[#allocation8 + $0x9e0] sm:$0xff]
    %v472 = vld [vmem:[#allocation8 + $0x9e8] sm:$0xff]
    %v473 = vld [vmem:[#allocation8 + $0x9f0] sm:$0xff]
    %v474 = vld [vmem:[#allocation8 + $0x9f8] sm:$0xff]
    %v475 = vld [vmem:[#allocation8 + $0xa00] sm:$0xff]
    %v476 = vld [vmem:[#allocation8 + $0xa08] sm:$0xff]
    %v477 = vld [vmem:[#allocation8 + $0xa10] sm:$0xff]
    %v478 = vld [vmem:[#allocation8 + $0xa18] sm:$0xff]
    %v479 = vld [vmem:[#allocation8 + $0xa20] sm:$0xff]
    %v480 = vld [vmem:[#allocation8 + $0xa28] sm:$0xff]
    %v481 = vld [vmem:[#allocation8 + $0xa30] sm:$0xff]
    %v482 = vld [vmem:[#allocation8 + $0xa38] sm:$0xff]
    %v483 = vld [vmem:[#allocation8 + $0xa40] sm:$0xff]
    %v484 = vld [vmem:[#allocation8 + $0xa48] sm:$0xff]
    %v485 = vld [vmem:[#allocation8 + $0xa50] sm:$0xff]
    %v486 = vld [vmem:[#allocation8 + $0xa58] sm:$0xff]
    %v487 = vld [vmem:[#allocation8 + $0xa60] sm:$0xff]
    %v488 = vld [vmem:[#allocation8 + $0xa68] sm:$0xff]
    %v489 = vld [vmem:[#allocation8 + $0xa70] sm:$0xff]
    %v490 = vld [vmem:[#allocation8 + $0xa78] sm:$0xff]
    %v491 = vld [vmem:[#allocation8 + $0xa80] sm:$0xff]
    %v492 = vld [vmem:[#allocation8 + $0xa88] sm:$0xff]
    %v493 = vld [vmem:[#allocation8 + $0xa90] sm:$0xff]
    %v494 = vld [vmem:[#allocation8 + $0xa98] sm:$0xff]
    %v495 = vld [vmem:[#allocation8 + $0xaa0] sm:$0xff]
    %v496 = vld [vmem:[#allocation8 + $0xaa8] sm:$0xff]
    %v497 = vld [vmem:[#allocation8 + $0xab0] sm:$0xff]
    %v498 = vld [vmem:[#allocation8 + $0xab8] sm:$0xff]
    %v499 = vld [vmem:[#allocation8 + $0xac0] sm:$0xff]
    %v500 = vld [vmem:[#allocation8 + $0xac8] sm:$0xff]
    %v501 = vld [vmem:[#allocation8 + $0xad0] sm:$0xff]
    %v502 = vld [vmem:[#allocation8 + $0xad8] sm:$0xff]
    %v503 = vld [vmem:[#allocation8 + $0xae0] sm:$0xff]
    %v504 = vld [vmem:[#allocation8 + $0xae8] sm:$0xff]
    %v505 = vld [vmem:[#allocation8 + $0xaf0] sm:$0xff]
    %v506 = vld [vmem:[#allocation8 + $0xaf8] sm:$0xff]
    %v507 = vld [vmem:[#allocation8 + $0xb00] sm:$0xff]
    %v508 = vld [vmem:[#allocation8 + $0xb08] sm:$0xff]
    %v509 = vld [vmem:[#allocation8 + $0xb10] sm:$0xff]
    %v510 = vld [vmem:[#allocation8 + $0xb18] sm:$0xff]
    %v511 = vld [vmem:[#allocation8 + $0xb20] sm:$0xff]
    %v512 = vld [vmem:[#allocation8 + $0xb28] sm:$0xff]
    %v513 = vld [vmem:[#allocation8 + $0xb30] sm:$0xff]
    %v514 = vld [vmem:[#allocation8 + $0xb38] sm:$0xff]
    %v515 = vld [vmem:[#allocation8 + $0xb40] sm:$0xff]
    %v516 = vld [vmem:[#allocation8 + $0xb48] sm:$0xff]
    %v517 = vld [vmem:[#allocation8 + $0xb50] sm:$0xff]
    %v518 = vld [vmem:[#allocation8 + $0xb58] sm:$0xff]
    %v519 = vld [vmem:[#allocation8 + $0xb60] sm:$0xff]
    %v520 = vld [vmem:[#allocation8 + $0xb68] sm:$0xff]
    %v521 = vld [vmem:[#allocation8 + $0xb70] sm:$0xff]
    %v522 = vld [vmem:[#allocation8 + $0xb78] sm:$0xff]
    %v523 = vld [vmem:[#allocation8 + $0xb80] sm:$0xff]
    %v524 = vld [vmem:[#allocation8 + $0xb88] sm:$0xff]
    %v525 = vld [vmem:[#allocation8 + $0xb90] sm:$0xff]
    %v526 = vld [vmem:[#allocation8 + $0xb98] sm:$0xff]
    %v527 = vld [vmem:[#allocation8 + $0xba0] sm:$0xff]
    %v528 = vld [vmem:[#allocation8 + $0xba8] sm:$0xff]
    %v529 = vld [vmem:[#allocation8 + $0xbb0] sm:$0xff]
    %v530 = vld [vmem:[#allocation8 + $0xbb8] sm:$0xff]
    %v531 = vld [vmem:[#allocation8 + $0xbc0] sm:$0xff]
    %v532 = vld [vmem:[#allocation8 + $0xbc8] sm:$0xff]
    %v533 = vld [vmem:[#allocation8 + $0xbd0] sm:$0xff]
    %v534 = vld [vmem:[#allocation8 + $0xbd8] sm:$0xff]
    %v535 = vld [vmem:[#allocation8 + $0xbe0] sm:$0xff]
    %v536 = vld [vmem:[#allocation8 + $0xbe8] sm:$0xff]
    %v537 = vld [vmem:[#allocation8 + $0xbf0] sm:$0xff]
    %v538 = vld [vmem:[#allocation8 + $0xbf8] sm:$0xff]
    %v539 = vld [vmem:[#allocation8 + $0xc00] sm:$0xff]
    %v540 = vld [vmem:[#allocation8 + $0xc08] sm:$0xff]
    %v541 = vld [vmem:[#allocation8 + $0xc10] sm:$0xff]
    %v542 = vld [vmem:[#allocation8 + $0xc18] sm:$0xff]
    %v543 = vld [vmem:[#allocation8 + $0xc20] sm:$0xff]
    %v544 = vld [vmem:[#allocation8 + $0xc28] sm:$0xff]
    %v545 = vld [vmem:[#allocation8 + $0xc30] sm:$0xff]
    %v546 = vld [vmem:[#allocation8 + $0xc38] sm:$0xff]
    %v547 = vld [vmem:[#allocation8 + $0xc40] sm:$0xff]
    %v548 = vld [vmem:[#allocation8 + $0xc48] sm:$0xff]
    %v549 = vld [vmem:[#allocation8 + $0xc50] sm:$0xff]
    %v550 = vld [vmem:[#allocation8 + $0xc58] sm:$0xff]
    %v551 = vld [vmem:[#allocation8 + $0xc60] sm:$0xff]
    %v552 = vld [vmem:[#allocation8 + $0xc68] sm:$0xff]
    %v553 = vld [vmem:[#allocation8 + $0xc70] sm:$0xff]
    %v554 = vld [vmem:[#allocation8 + $0xc78] sm:$0xff]
    %v555 = vld [vmem:[#allocation8 + $0xc80] sm:$0xff]
    %v556 = vld [vmem:[#allocation8 + $0xc88] sm:$0xff]
    %v557 = vld [vmem:[#allocation8 + $0xc90] sm:$0xff]
    %v558 = vld [vmem:[#allocation8 + $0xc98] sm:$0xff]
    %v559 = vld [vmem:[#allocation8 + $0xca0] sm:$0xff]
    %v560 = vld [vmem:[#allocation8 + $0xca8] sm:$0xff]
    %v561 = vld [vmem:[#allocation8 + $0xcb0] sm:$0xff]
    %v562 = vld [vmem:[#allocation8 + $0xcb8] sm:$0xff]
    %v563 = vld [vmem:[#allocation8 + $0xcc0] sm:$0xff]
    %v564 = vld [vmem:[#allocation8 + $0xcc8] sm:$0xff]
    %v565 = vld [vmem:[#allocation8 + $0xcd0] sm:$0xff]
    %v566 = vld [vmem:[#allocation8 + $0xcd8] sm:$0xff]
    %v567 = vld [vmem:[#allocation8 + $0xce0] sm:$0xff]
    %v568 = vld [vmem:[#allocation8 + $0xce8] sm:$0xff]
    %v569 = vld [vmem:[#allocation8 + $0xcf0] sm:$0xff]
    %v570 = vld [vmem:[#allocation8 + $0xcf8] sm:$0xff]
    %v571 = vld [vmem:[#allocation8 + $0xd00] sm:$0xff]
    %v572 = vld [vmem:[#allocation8 + $0xd08] sm:$0xff]
    %v573 = vld [vmem:[#allocation8 + $0xd10] sm:$0xff]
    %v574 = vld [vmem:[#allocation8 + $0xd18] sm:$0xff]
    %v575 = vld [vmem:[#allocation8 + $0xd20] sm:$0xff]
    %v576 = vld [vmem:[#allocation8 + $0xd28] sm:$0xff]
    %v577 = vld [vmem:[#allocation8 + $0xd30] sm:$0xff]
    %v578 = vld [vmem:[#allocation8 + $0xd38] sm:$0xff]
    %v579 = vld [vmem:[#allocation8 + $0xd40] sm:$0xff]
    %v580 = vld [vmem:[#allocation8 + $0xd48] sm:$0xff]
    %v581 = vld [vmem:[#allocation8 + $0xd50] sm:$0xff]
    %v582 = vld [vmem:[#allocation8 + $0xd58] sm:$0xff]
    %v583 = vld [vmem:[#allocation8 + $0xd60] sm:$0xff]
    %v584 = vld [vmem:[#allocation8 + $0xd68] sm:$0xff]
    %v585 = vld [vmem:[#allocation8 + $0xd70] sm:$0xff]
    %v586 = vld [vmem:[#allocation8 + $0xd78] sm:$0xff]
    %v587 = vld [vmem:[#allocation8 + $0xd80] sm:$0xff]
    %v588 = vld [vmem:[#allocation8 + $0xd88] sm:$0xff]
    %v589 = vld [vmem:[#allocation8 + $0xd90] sm:$0xff]
    %v590 = vld [vmem:[#allocation8 + $0xd98] sm:$0xff]
    %v591 = vld [vmem:[#allocation8 + $0xda0] sm:$0xff]
    %v592 = vld [vmem:[#allocation8 + $0xda8] sm:$0xff]
    %v593 = vld [vmem:[#allocation8 + $0xdb0] sm:$0xff]
    %v594 = vld [vmem:[#allocation8 + $0xdb8] sm:$0xff]
    %v595 = vld [vmem:[#allocation8 + $0xdc0] sm:$0xff]
    %v596 = vld [vmem:[#allocation8 + $0xdc8] sm:$0xff]
    %v597 = vld [vmem:[#allocation8 + $0xdd0] sm:$0xff]
    %v598 = vld [vmem:[#allocation8 + $0xdd8] sm:$0xff]
    %v599 = vld [vmem:[#allocation8 + $0xde0] sm:$0xff]
    %v600 = vld [vmem:[#allocation8 + $0xde8] sm:$0xff]
    %v601 = vld [vmem:[#allocation8 + $0xdf0] sm:$0xff]
    %v602 = vld [vmem:[#allocation8 + $0xdf8] sm:$0xff]
    %v603 = vld [vmem:[#allocation8 + $0xe00] sm:$0xff]
    %v604 = vld [vmem:[#allocation8 + $0xe08] sm:$0xff]
    %v605 = vld [vmem:[#allocation8 + $0xe10] sm:$0xff]
    %v606 = vld [vmem:[#allocation8 + $0xe18] sm:$0xff]
    %v607 = vld [vmem:[#allocation8 + $0xe20] sm:$0xff]
    %v608 = vld [vmem:[#allocation8 + $0xe28] sm:$0xff]
    %v609 = vld [vmem:[#allocation8 + $0xe30] sm:$0xff]
    %v610 = vld [vmem:[#allocation8 + $0xe38] sm:$0xff]
    %v611 = vld [vmem:[#allocation8 + $0xe40] sm:$0xff]
    %v612 = vld [vmem:[#allocation8 + $0xe48] sm:$0xff]
    %v613 = vld [vmem:[#allocation8 + $0xe50] sm:$0xff]
    %v614 = vld [vmem:[#allocation8 + $0xe58] sm:$0xff]
    %v615 = vld [vmem:[#allocation8 + $0xe60] sm:$0xff]
    %v616 = vld [vmem:[#allocation8 + $0xe68] sm:$0xff]
    %v617 = vld [vmem:[#allocation8 + $0xe70] sm:$0xff]
    %v618 = vld [vmem:[#allocation8 + $0xe78] sm:$0xff]
    %v619 = vld [vmem:[#allocation8 + $0xe80] sm:$0xff]
    %v620 = vld [vmem:[#allocation8 + $0xe88] sm:$0xff]
    %v621 = vld [vmem:[#allocation8 + $0xe90] sm:$0xff]
    %v622 = vld [vmem:[#allocation8 + $0xe98] sm:$0xff]
    %v623 = vld [vmem:[#allocation8 + $0xea0] sm:$0xff]
    %v624 = vld [vmem:[#allocation8 + $0xea8] sm:$0xff]
    %v625 = vld [vmem:[#allocation8 + $0xeb0] sm:$0xff]
    %v626 = vld [vmem:[#allocation8 + $0xeb8] sm:$0xff]
    %v627 = vld [vmem:[#allocation8 + $0xec0] sm:$0xff]
    %v628 = vld [vmem:[#allocation8 + $0xec8] sm:$0xff]
    %v629 = vld [vmem:[#allocation8 + $0xed0] sm:$0xff]
    %v630 = vld [vmem:[#allocation8 + $0xed8] sm:$0xff]
    %v631 = vld [vmem:[#allocation8 + $0xee0] sm:$0xff]
    %v632 = vld [vmem:[#allocation8 + $0xee8] sm:$0xff]
    %v633 = vld [vmem:[#allocation8 + $0xef0] sm:$0xff]
    %v634 = vld [vmem:[#allocation8 + $0xef8] sm:$0xff]
    %v635 = vld [vmem:[#allocation8 + $0xf00] sm:$0xff]
    %v636 = vld [vmem:[#allocation8 + $0xf08] sm:$0xff]
    %v637 = vld [vmem:[#allocation8 + $0xf10] sm:$0xff]
    %v638 = vld [vmem:[#allocation8 + $0xf18] sm:$0xff]
    %v639 = vld [vmem:[#allocation8 + $0xf20] sm:$0xff]
    %v640 = vld [vmem:[#allocation8 + $0xf28] sm:$0xff]
    %v641 = vld [vmem:[#allocation8 + $0xf30] sm:$0xff]
    %v642 = vld [vmem:[#allocation8 + $0xf38] sm:$0xff]
    %v643 = vld [vmem:[#allocation8 + $0xf40] sm:$0xff]
    %v644 = vld [vmem:[#allocation8 + $0xf48] sm:$0xff]
    %v645 = vld [vmem:[#allocation8 + $0xf50] sm:$0xff]
    %v646 = vld [vmem:[#allocation8 + $0xf58] sm:$0xff]
    %v647 = vld [vmem:[#allocation8 + $0xf60] sm:$0xff]
    %v648 = vld [vmem:[#allocation8 + $0xf68] sm:$0xff]
    %v649 = vld [vmem:[#allocation8 + $0xf70] sm:$0xff]
    %v650 = vld [vmem:[#allocation8 + $0xf78] sm:$0xff]
    %v651 = vld [vmem:[#allocation8 + $0xf80] sm:$0xff]
    %v652 = vld [vmem:[#allocation8 + $0xf88] sm:$0xff]
    %v653 = vld [vmem:[#allocation8 + $0xf90] sm:$0xff]
    %v654 = vld [vmem:[#allocation8 + $0xf98] sm:$0xff]
    %v655 = vld [vmem:[#allocation8 + $0xfa0] sm:$0xff]
    %v656 = vld [vmem:[#allocation8 + $0xfa8] sm:$0xff]
    %v657 = vld [vmem:[#allocation8 + $0xfb0] sm:$0xff]
    %v658 = vld [vmem:[#allocation8 + $0xfb8] sm:$0xff]
    %v659 = vld [vmem:[#allocation8 + $0xfc0] sm:$0xff]
    %v660 = vld [vmem:[#allocation8 + $0xfc8] sm:$0xff]
    %v661 = vld [vmem:[#allocation8 + $0xfd0] sm:$0xff]
    %v662 = vld [vmem:[#allocation8 + $0xfd8] sm:$0xff]
    %v663 = vld [vmem:[#allocation8 + $0xfe0] sm:$0xff]
    %v664 = vld [vmem:[#allocation8 + $0xfe8] sm:$0xff]
    %v665 = vld [vmem:[#allocation8 + $0xff0] sm:$0xff]
    %v666 = vld [vmem:[#allocation8 + $0xff8] sm:$0xff]
    %v667 = vld [vmem:[#allocation8 + $0x1000] sm:$0xff]
    %v668 = vld [vmem:[#allocation8 + $0x1008] sm:$0xff]
    %v669 = vld [vmem:[#allocation8 + $0x1010] sm:$0xff]
    %v670 = vld [vmem:[#allocation8 + $0x1018] sm:$0xff]
    %v671 = vld [vmem:[#allocation8 + $0x1020] sm:$0xff]
    %v672 = vld [vmem:[#allocation8 + $0x1028] sm:$0xff]
    %v673 = vld [vmem:[#allocation8 + $0x1030] sm:$0xff]
    %v674 = vld [vmem:[#allocation8 + $0x1038] sm:$0xff]
    %v675 = vld [vmem:[#allocation8 + $0x1040] sm:$0xff]
    %v676 = vld [vmem:[#allocation8 + $0x1048] sm:$0xff]
    %v677 = vld [vmem:[#allocation8 + $0x1050] sm:$0xff]
    %v678 = vld [vmem:[#allocation8 + $0x1058] sm:$0xff]
    %v679 = vld [vmem:[#allocation8 + $0x1060] sm:$0xff]
    %v680 = vld [vmem:[#allocation8 + $0x1068] sm:$0xff]
    %v681 = vld [vmem:[#allocation8 + $0x1070] sm:$0xff]
    %v682 = vld [vmem:[#allocation8 + $0x1078] sm:$0xff]
    %v683 = vld [vmem:[#allocation8 + $0x1080] sm:$0xff]
    %v684 = vld [vmem:[#allocation8 + $0x1088] sm:$0xff]
    %v685 = vld [vmem:[#allocation8 + $0x1090] sm:$0xff]
    %v686 = vld [vmem:[#allocation8 + $0x1098] sm:$0xff]
    %v687 = vld [vmem:[#allocation8 + $0x10a0] sm:$0xff]
    %v688 = vld [vmem:[#allocation8 + $0x10a8] sm:$0xff]
    %v689 = vld [vmem:[#allocation8 + $0x10b0] sm:$0xff]
    %v690 = vld [vmem:[#allocation8 + $0x10b8] sm:$0xff]
    %v691 = vld [vmem:[#allocation8 + $0x10c0] sm:$0xff]
    %v692 = vld [vmem:[#allocation8 + $0x10c8] sm:$0xff]
    %v693 = vld [vmem:[#allocation8 + $0x10d0] sm:$0xff]
    %v694 = vld [vmem:[#allocation8 + $0x10d8] sm:$0xff]
    %v695 = vld [vmem:[#allocation8 + $0x10e0] sm:$0xff]
    %v696 = vld [vmem:[#allocation8 + $0x10e8] sm:$0xff]
    %v697 = vld [vmem:[#allocation8 + $0x10f0] sm:$0xff]
    %v698 = vld [vmem:[#allocation8 + $0x10f8] sm:$0xff]
    %v699 = vld [vmem:[#allocation8 + $0x1100] sm:$0xff]
    %v700 = vld [vmem:[#allocation8 + $0x1108] sm:$0xff]
    %v701 = vld [vmem:[#allocation8 + $0x1110] sm:$0xff]
    %v702 = vld [vmem:[#allocation8 + $0x1118] sm:$0xff]
    %v703 = vld [vmem:[#allocation8 + $0x1120] sm:$0xff]
    %v704 = vld [vmem:[#allocation8 + $0x1128] sm:$0xff]
    %v705 = vld [vmem:[#allocation8 + $0x1130] sm:$0xff]
    %v706 = vld [vmem:[#allocation8 + $0x1138] sm:$0xff]
    %v707 = vld [vmem:[#allocation8 + $0x1140] sm:$0xff]
    %v708 = vld [vmem:[#allocation8 + $0x1148] sm:$0xff]
    %v709 = vld [vmem:[#allocation8 + $0x1150] sm:$0xff]
    %v710 = vld [vmem:[#allocation8 + $0x1158] sm:$0xff]
    %v711 = vld [vmem:[#allocation8 + $0x1160] sm:$0xff]
    %v712 = vld [vmem:[#allocation8 + $0x1168] sm:$0xff]
    %v713 = vld [vmem:[#allocation8 + $0x1170] sm:$0xff]
    %v714 = vld [vmem:[#allocation8 + $0x1178] sm:$0xff]
    %v715 = vld [vmem:[#allocation8 + $0x1180] sm:$0xff]
    %v716 = vld [vmem:[#allocation8 + $0x1188] sm:$0xff]
    %v717 = vld [vmem:[#allocation8 + $0x1190] sm:$0xff]
    %v718 = vld [vmem:[#allocation8 + $0x1198] sm:$0xff]
    %v719 = vld [vmem:[#allocation8 + $0x11a0] sm:$0xff]
    %v720 = vld [vmem:[#allocation8 + $0x11a8] sm:$0xff]
    %v721 = vld [vmem:[#allocation8 + $0x11b0] sm:$0xff]
    %v722 = vld [vmem:[#allocation8 + $0x11b8] sm:$0xff]
    %v723 = vld [vmem:[#allocation8 + $0x11c0] sm:$0xff]
    %v724 = vld [vmem:[#allocation8 + $0x11c8] sm:$0xff]
    %v725 = vld [vmem:[#allocation8 + $0x11d0] sm:$0xff]
    %v726 = vld [vmem:[#allocation8 + $0x11d8] sm:$0xff]
    %v727 = vld [vmem:[#allocation8 + $0x11e0] sm:$0xff]
    %v728 = vld [vmem:[#allocation8 + $0x11e8] sm:$0xff]
    %v729 = vld [vmem:[#allocation8 + $0x11f0] sm:$0xff]
    %v730 = vld [vmem:[#allocation8 + $0x11f8] sm:$0xff]
    %v731 = vld [vmem:[#allocation8 + $0x1200] sm:$0xff]
    %v732 = vld [vmem:[#allocation8 + $0x1208] sm:$0xff]
    %v733 = vld [vmem:[#allocation8 + $0x1210] sm:$0xff]
    %v734 = vld [vmem:[#allocation8 + $0x1218] sm:$0xff]
    %v735 = vld [vmem:[#allocation8 + $0x1220] sm:$0xff]
    %v736 = vld [vmem:[#allocation8 + $0x1228] sm:$0xff]
    %v737 = vld [vmem:[#allocation8 + $0x1230] sm:$0xff]
    %v738 = vld [vmem:[#allocation8 + $0x1238] sm:$0xff]
    %v739 = vld [vmem:[#allocation8 + $0x1240] sm:$0xff]
    %v740 = vld [vmem:[#allocation8 + $0x1248] sm:$0xff]
    %v741 = vld [vmem:[#allocation8 + $0x1250] sm:$0xff]
    %v742 = vld [vmem:[#allocation8 + $0x1258] sm:$0xff]
    %v743 = vld [vmem:[#allocation8 + $0x1260] sm:$0xff]
    %v744 = vld [vmem:[#allocation8 + $0x1268] sm:$0xff]
    %v745 = vld [vmem:[#allocation8 + $0x1270] sm:$0xff]
    %v746 = vld [vmem:[#allocation8 + $0x1278] sm:$0xff]
    %v747 = vld [vmem:[#allocation8 + $0x1280] sm:$0xff]
    %v748 = vld [vmem:[#allocation8 + $0x1288] sm:$0xff]
    %v749 = vld [vmem:[#allocation8 + $0x1290] sm:$0xff]
    %v750 = vld [vmem:[#allocation8 + $0x1298] sm:$0xff]
    %v751 = vld [vmem:[#allocation8 + $0x12a0] sm:$0xff]
    %v752 = vld [vmem:[#allocation8 + $0x12a8] sm:$0xff]
    %v753 = vld [vmem:[#allocation8 + $0x12b0] sm:$0xff]
    %v754 = vld [vmem:[#allocation8 + $0x12b8] sm:$0xff]
    %v755 = vld [vmem:[#allocation8 + $0x12c0] sm:$0xff]
    %v756 = vld [vmem:[#allocation8 + $0x12c8] sm:$0xff]
    %v757 = vld [vmem:[#allocation8 + $0x12d0] sm:$0xff]
    %v758 = vld [vmem:[#allocation8 + $0x12d8] sm:$0xff]
    %v759 = vld [vmem:[#allocation8 + $0x12e0] sm:$0xff]
    %v760 = vld [vmem:[#allocation8 + $0x12e8] sm:$0xff]
    %v761 = vld [vmem:[#allocation8 + $0x12f0] sm:$0xff]
    %v762 = vld [vmem:[#allocation8 + $0x12f8] sm:$0xff]
    %v763 = vld [vmem:[#allocation8 + $0x1300] sm:$0xff]
    %v764 = vld [vmem:[#allocation8 + $0x1308] sm:$0xff]
    %v765 = vld [vmem:[#allocation8 + $0x1310] sm:$0xff]
    %v766 = vld [vmem:[#allocation8 + $0x1318] sm:$0xff]
    %v767 = vld [vmem:[#allocation8 + $0x1320] sm:$0xff]
    %v768 = vld [vmem:[#allocation8 + $0x1328] sm:$0xff]
    %v769 = vld [vmem:[#allocation8 + $0x1330] sm:$0xff]
    %v770 = vld [vmem:[#allocation8 + $0x1338] sm:$0xff]
    %v771 = vld [vmem:[#allocation8 + $0x1340] sm:$0xff]
    %v772 = vld [vmem:[#allocation8 + $0x1348] sm:$0xff]
    %v773 = vld [vmem:[#allocation8 + $0x1350] sm:$0xff]
    %v774 = vld [vmem:[#allocation8 + $0x1358] sm:$0xff]
    %v775 = vld [vmem:[#allocation8 + $0x1360] sm:$0xff]
    %v776 = vld [vmem:[#allocation8 + $0x1368] sm:$0xff]
    %v777 = vld [vmem:[#allocation8 + $0x1370] sm:$0xff]
    %v778 = vld [vmem:[#allocation8 + $0x1378] sm:$0xff]
    %v779 = vld [vmem:[#allocation8 + $0x1380] sm:$0xff]
    %v780 = vld [vmem:[#allocation8 + $0x1388] sm:$0xff]
    %v781 = vld [vmem:[#allocation8 + $0x1390] sm:$0xff]
    %v782 = vld [vmem:[#allocation8 + $0x1398] sm:$0xff]
    %v783 = vld [vmem:[#allocation8 + $0x13a0] sm:$0xff]
    %v784 = vld [vmem:[#allocation8 + $0x13a8] sm:$0xff]
    %v785 = vld [vmem:[#allocation8 + $0x13b0] sm:$0xff]
    %v786 = vld [vmem:[#allocation8 + $0x13b8] sm:$0xff]
    %v787 = vld [vmem:[#allocation8 + $0x13c0] sm:$0xff]
    %v788 = vld [vmem:[#allocation8 + $0x13c8] sm:$0xff]
    %v789 = vld [vmem:[#allocation8 + $0x13d0] sm:$0xff]
    %v790 = vld [vmem:[#allocation8 + $0x13d8] sm:$0xff]
    %v791 = vld [vmem:[#allocation8 + $0x13e0] sm:$0xff]
    %v792 = vld [vmem:[#allocation8 + $0x13e8] sm:$0xff]
    %v793 = vld [vmem:[#allocation8 + $0x13f0] sm:$0xff]
    %v794 = vld [vmem:[#allocation8 + $0x13f8] sm:$0xff]
    %v795 = vld [vmem:[#allocation8 + $0x1400] sm:$0xff]
    %v796 = vld [vmem:[#allocation8 + $0x1408] sm:$0xff]
    %v797 = vld [vmem:[#allocation8 + $0x1410] sm:$0xff]
    %v798 = vld [vmem:[#allocation8 + $0x1418] sm:$0xff]
    %v799 = vld [vmem:[#allocation8 + $0x1420] sm:$0xff]
    %v800 = vld [vmem:[#allocation8 + $0x1428] sm:$0xff]
    %v801 = vld [vmem:[#allocation8 + $0x1430] sm:$0xff]
    %v802 = vld [vmem:[#allocation8 + $0x1438] sm:$0xff]
    %v803 = vld [vmem:[#allocation8 + $0x1440] sm:$0xff]
    %v804 = vld [vmem:[#allocation8 + $0x1448] sm:$0xff]
    %v805 = vld [vmem:[#allocation8 + $0x1450] sm:$0xff]
    %v806 = vld [vmem:[#allocation8 + $0x1458] sm:$0xff]
    %v807 = vld [vmem:[#allocation8 + $0x1460] sm:$0xff]
    %v808 = vld [vmem:[#allocation8 + $0x1468] sm:$0xff]
    %v809 = vld [vmem:[#allocation8 + $0x1470] sm:$0xff]
    %v810 = vld [vmem:[#allocation8 + $0x1478] sm:$0xff]
    %v811 = vld [vmem:[#allocation8 + $0x1480] sm:$0xff]
    %v812 = vld [vmem:[#allocation8 + $0x1488] sm:$0xff]
    %v813 = vld [vmem:[#allocation8 + $0x1490] sm:$0xff]
    %v814 = vld [vmem:[#allocation8 + $0x1498] sm:$0xff]
    %v815 = vld [vmem:[#allocation8 + $0x14a0] sm:$0xff]
    %v816 = vld [vmem:[#allocation8 + $0x14a8] sm:$0xff]
    %v817 = vld [vmem:[#allocation8 + $0x14b0] sm:$0xff]
    %v818 = vld [vmem:[#allocation8 + $0x14b8] sm:$0xff]
    %v819 = vld [vmem:[#allocation8 + $0x14c0] sm:$0xff]
    %v820 = vld [vmem:[#allocation8 + $0x14c8] sm:$0xff]
    %v821 = vld [vmem:[#allocation8 + $0x14d0] sm:$0xff]
    %v822 = vld [vmem:[#allocation8 + $0x14d8] sm:$0xff]
    %v823 = vld [vmem:[#allocation8 + $0x14e0] sm:$0xff]
    %v824 = vld [vmem:[#allocation8 + $0x14e8] sm:$0xff]
    %v825 = vld [vmem:[#allocation8 + $0x14f0] sm:$0xff]
    %v826 = vld [vmem:[#allocation8 + $0x14f8] sm:$0xff]
    %v827 = vld [vmem:[#allocation8 + $0x1500] sm:$0xff]
    %v828 = vld [vmem:[#allocation8 + $0x1508] sm:$0xff]
    %v829 = vld [vmem:[#allocation8 + $0x1510] sm:$0xff]
    %v830 = vld [vmem:[#allocation8 + $0x1518] sm:$0xff]
    %v831 = vld [vmem:[#allocation8 + $0x1520] sm:$0xff]
    %v832 = vld [vmem:[#allocation8 + $0x1528] sm:$0xff]
    %v833 = vld [vmem:[#allocation8 + $0x1530] sm:$0xff]
    %v834 = vld [vmem:[#allocation8 + $0x1538] sm:$0xff]
    %v835 = vld [vmem:[#allocation8 + $0x1540] sm:$0xff]
    %v836 = vld [vmem:[#allocation8 + $0x1548] sm:$0xff]
    %v837 = vld [vmem:[#allocation8 + $0x1550] sm:$0xff]
    %v838 = vld [vmem:[#allocation8 + $0x1558] sm:$0xff]
    %v839 = vld [vmem:[#allocation8 + $0x1560] sm:$0xff]
    %v840 = vld [vmem:[#allocation8 + $0x1568] sm:$0xff]
    %v841 = vld [vmem:[#allocation8 + $0x1570] sm:$0xff]
    %v842 = vld [vmem:[#allocation8 + $0x1578] sm:$0xff]
    %v843 = vld [vmem:[#allocation8 + $0x1580] sm:$0xff]
    %v844 = vld [vmem:[#allocation8 + $0x1588] sm:$0xff]
    %v845 = vld [vmem:[#allocation8 + $0x1590] sm:$0xff]
    %v846 = vld [vmem:[#allocation8 + $0x1598] sm:$0xff]
    %v847 = vld [vmem:[#allocation8 + $0x15a0] sm:$0xff]
    %v848 = vld [vmem:[#allocation8 + $0x15a8] sm:$0xff]
    %v849 = vld [vmem:[#allocation8 + $0x15b0] sm:$0xff]
    %v850 = vld [vmem:[#allocation8 + $0x15b8] sm:$0xff]
    %v851 = vld [vmem:[#allocation8 + $0x15c0] sm:$0xff]
    %v852 = vld [vmem:[#allocation8 + $0x15c8] sm:$0xff]
    %v853 = vld [vmem:[#allocation8 + $0x15d0] sm:$0xff]
    %v854 = vld [vmem:[#allocation8 + $0x15d8] sm:$0xff]
    %v855 = vld [vmem:[#allocation8 + $0x15e0] sm:$0xff]
    %v856 = vld [vmem:[#allocation8 + $0x15e8] sm:$0xff]
    %v857 = vld [vmem:[#allocation8 + $0x15f0] sm:$0xff]
    %v858 = vld [vmem:[#allocation8 + $0x15f8] sm:$0xff]
    %v859 = vld [vmem:[#allocation8 + $0x1600] sm:$0xff]
    %v860 = vld [vmem:[#allocation8 + $0x1608] sm:$0xff]
    %v861 = vld [vmem:[#allocation8 + $0x1610] sm:$0xff]
    %v862 = vld [vmem:[#allocation8 + $0x1618] sm:$0xff]
    %v863 = vld [vmem:[#allocation8 + $0x1620] sm:$0xff]
    %v864 = vld [vmem:[#allocation8 + $0x1628] sm:$0xff]
    %v865 = vld [vmem:[#allocation8 + $0x1630] sm:$0xff]
    %v866 = vld [vmem:[#allocation8 + $0x1638] sm:$0xff]
    %v867 = vld [vmem:[#allocation8 + $0x1640] sm:$0xff]
    %v868 = vld [vmem:[#allocation8 + $0x1648] sm:$0xff]
    %v869 = vld [vmem:[#allocation8 + $0x1650] sm:$0xff]
    %v870 = vld [vmem:[#allocation8 + $0x1658] sm:$0xff]
    %v871 = vld [vmem:[#allocation8 + $0x1660] sm:$0xff]
    %v872 = vld [vmem:[#allocation8 + $0x1668] sm:$0xff]
    %v873 = vld [vmem:[#allocation8 + $0x1670] sm:$0xff]
    %v874 = vld [vmem:[#allocation8 + $0x1678] sm:$0xff]
    %v875 = vld [vmem:[#allocation8 + $0x1680] sm:$0xff]
    %v876 = vld [vmem:[#allocation8 + $0x1688] sm:$0xff]
    %v877 = vld [vmem:[#allocation8 + $0x1690] sm:$0xff]
    %v878 = vld [vmem:[#allocation8 + $0x1698] sm:$0xff]
    %v879 = vld [vmem:[#allocation8 + $0x16a0] sm:$0xff]
    %v880 = vld [vmem:[#allocation8 + $0x16a8] sm:$0xff]
    %v881 = vld [vmem:[#allocation8 + $0x16b0] sm:$0xff]
    %v882 = vld [vmem:[#allocation8 + $0x16b8] sm:$0xff]
    %v883 = vld [vmem:[#allocation8 + $0x16c0] sm:$0xff]
    %v884 = vld [vmem:[#allocation8 + $0x16c8] sm:$0xff]
    %v885 = vld [vmem:[#allocation8 + $0x16d0] sm:$0xff]
    %v886 = vld [vmem:[#allocation8 + $0x16d8] sm:$0xff]
    %v887 = vld [vmem:[#allocation8 + $0x16e0] sm:$0xff]
    %v888 = vld [vmem:[#allocation8 + $0x16e8] sm:$0xff]
    %v889 = vld [vmem:[#allocation8 + $0x16f0] sm:$0xff]
    %v890 = vld [vmem:[#allocation8 + $0x16f8] sm:$0xff]
    %v891 = vld [vmem:[#allocation8 + $0x1700] sm:$0xff]
    %v892 = vld [vmem:[#allocation8 + $0x1708] sm:$0xff]
    %v893 = vld [vmem:[#allocation8 + $0x1710] sm:$0xff]
    %v894 = vld [vmem:[#allocation8 + $0x1718] sm:$0xff]
    %v895 = vld [vmem:[#allocation8 + $0x1720] sm:$0xff]
    %v896 = vld [vmem:[#allocation8 + $0x1728] sm:$0xff]
    %v897 = vld [vmem:[#allocation8 + $0x1730] sm:$0xff]
    %v898 = vld [vmem:[#allocation8 + $0x1738] sm:$0xff]
    %v899 = vld [vmem:[#allocation8 + $0x1740] sm:$0xff]
    %v900 = vld [vmem:[#allocation8 + $0x1748] sm:$0xff]
    %v901 = vld [vmem:[#allocation8 + $0x1750] sm:$0xff]
    %v902 = vld [vmem:[#allocation8 + $0x1758] sm:$0xff]
    %v903 = vld [vmem:[#allocation8 + $0x1760] sm:$0xff]
    %v904 = vld [vmem:[#allocation8 + $0x1768] sm:$0xff]
    %v905 = vld [vmem:[#allocation8 + $0x1770] sm:$0xff]
    %v906 = vld [vmem:[#allocation8 + $0x1778] sm:$0xff]
    %v907 = vld [vmem:[#allocation8 + $0x1780] sm:$0xff]
    %v908 = vld [vmem:[#allocation8 + $0x1788] sm:$0xff]
    %v909 = vld [vmem:[#allocation8 + $0x1790] sm:$0xff]
    %v910 = vld [vmem:[#allocation8 + $0x1798] sm:$0xff]
    %v911 = vld [vmem:[#allocation8 + $0x17a0] sm:$0xff]
    %v912 = vld [vmem:[#allocation8 + $0x17a8] sm:$0xff]
    %v913 = vld [vmem:[#allocation8 + $0x17b0] sm:$0xff]
    %v914 = vld [vmem:[#allocation8 + $0x17b8] sm:$0xff]
    %v915 = vld [vmem:[#allocation8 + $0x17c0] sm:$0xff]
    %v916 = vld [vmem:[#allocation8 + $0x17c8] sm:$0xff]
    %v917 = vld [vmem:[#allocation8 + $0x17d0] sm:$0xff]
    %v918 = vld [vmem:[#allocation8 + $0x17d8] sm:$0xff]
    %v919 = vld [vmem:[#allocation8 + $0x17e0] sm:$0xff]
    %v920 = vld [vmem:[#allocation8 + $0x17e8] sm:$0xff]
    %v921 = vld [vmem:[#allocation8 + $0x17f0] sm:$0xff]
    %v922 = vld [vmem:[#allocation8 + $0x17f8] sm:$0xff]
    %v923 = vld [vmem:[#allocation8 + $0x1800] sm:$0xff]
    %v924 = vld [vmem:[#allocation8 + $0x1808] sm:$0xff]
    %v925 = vld [vmem:[#allocation8 + $0x1810] sm:$0xff]
    %v926 = vld [vmem:[#allocation8 + $0x1818] sm:$0xff]
    %v927 = vld [vmem:[#allocation8 + $0x1820] sm:$0xff]
    %v928 = vld [vmem:[#allocation8 + $0x1828] sm:$0xff]
    %v929 = vld [vmem:[#allocation8 + $0x1830] sm:$0xff]
    %v930 = vld [vmem:[#allocation8 + $0x1838] sm:$0xff]
    %v931 = vld [vmem:[#allocation8 + $0x1840] sm:$0xff]
    %v932 = vld [vmem:[#allocation8 + $0x1848] sm:$0xff]
    %v933 = vld [vmem:[#allocation8 + $0x1850] sm:$0xff]
    %v934 = vld [vmem:[#allocation8 + $0x1858] sm:$0xff]
    %v935 = vld [vmem:[#allocation8 + $0x1860] sm:$0xff]
    %v936 = vld [vmem:[#allocation8 + $0x1868] sm:$0xff]
    %v937 = vld [vmem:[#allocation8 + $0x1870] sm:$0xff]
    %v938 = vld [vmem:[#allocation8 + $0x1878] sm:$0xff]
    %v939 = vld [vmem:[#allocation8 + $0x1880] sm:$0xff]
    %v940 = vld [vmem:[#allocation8 + $0x1888] sm:$0xff]
    %v941 = vld [vmem:[#allocation8 + $0x1890] sm:$0xff]
    %v942 = vld [vmem:[#allocation8 + $0x1898] sm:$0xff]
    %v943 = vld [vmem:[#allocation8 + $0x18a0] sm:$0xff]
    %v944 = vld [vmem:[#allocation8 + $0x18a8] sm:$0xff]
    %v945 = vld [vmem:[#allocation8 + $0x18b0] sm:$0xff]
    %v946 = vld [vmem:[#allocation8 + $0x18b8] sm:$0xff]
    %v947 = vld [vmem:[#allocation8 + $0x18c0] sm:$0xff]
    %v948 = vld [vmem:[#allocation8 + $0x18c8] sm:$0xff]
    %v949 = vld [vmem:[#allocation8 + $0x18d0] sm:$0xff]
    %v950 = vld [vmem:[#allocation8 + $0x18d8] sm:$0xff]
    %v951 = vld [vmem:[#allocation8 + $0x18e0] sm:$0xff]
    %v952 = vld [vmem:[#allocation8 + $0x18e8] sm:$0xff]
    %v953 = vld [vmem:[#allocation8 + $0x18f0] sm:$0xff]
    %v954 = vld [vmem:[#allocation8 + $0x18f8] sm:$0xff]
    %v955 = vld [vmem:[#allocation8 + $0x1900] sm:$0xff]
    %v956 = vld [vmem:[#allocation8 + $0x1908] sm:$0xff]
    %v957 = vld [vmem:[#allocation8 + $0x1910] sm:$0xff]
    %v958 = vld [vmem:[#allocation8 + $0x1918] sm:$0xff]
    %v959 = vld [vmem:[#allocation8 + $0x1920] sm:$0xff]
    %v960 = vld [vmem:[#allocation8 + $0x1928] sm:$0xff]
    %v961 = vld [vmem:[#allocation8 + $0x1930] sm:$0xff]
    %v962 = vld [vmem:[#allocation8 + $0x1938] sm:$0xff]
    %v963 = vld [vmem:[#allocation8 + $0x1940] sm:$0xff]
    %v964 = vld [vmem:[#allocation8 + $0x1948] sm:$0xff]
    %v965 = vld [vmem:[#allocation8 + $0x1950] sm:$0xff]
    %v966 = vld [vmem:[#allocation8 + $0x1958] sm:$0xff]
    %v967 = vld [vmem:[#allocation8 + $0x1960] sm:$0xff]
    %v968 = vld [vmem:[#allocation8 + $0x1968] sm:$0xff]
    %v969 = vld [vmem:[#allocation8 + $0x1970] sm:$0xff]
    %v970 = vld [vmem:[#allocation8 + $0x1978] sm:$0xff]
    %v971 = vld [vmem:[#allocation8 + $0x1980] sm:$0xff]
    %v972 = vld [vmem:[#allocation8 + $0x1988] sm:$0xff]
    %v973 = vld [vmem:[#allocation8 + $0x1990] sm:$0xff]
    %v974 = vld [vmem:[#allocation8 + $0x1998] sm:$0xff]
    %v975 = vld [vmem:[#allocation8 + $0x19a0] sm:$0xff]
    %v976 = vld [vmem:[#allocation8 + $0x19a8] sm:$0xff]
    %v977 = vld [vmem:[#allocation8 + $0x19b0] sm:$0xff]
    %v978 = vld [vmem:[#allocation8 + $0x19b8] sm:$0xff]
    %v979 = vld [vmem:[#allocation8 + $0x19c0] sm:$0xff]
    %v980 = vld [vmem:[#allocation8 + $0x19c8] sm:$0xff]
    %v981 = vld [vmem:[#allocation8 + $0x19d0] sm:$0xff]
    %v982 = vld [vmem:[#allocation8 + $0x19d8] sm:$0xff]
    %v983 = vld [vmem:[#allocation8 + $0x19e0] sm:$0xff]
    %v984 = vld [vmem:[#allocation8 + $0x19e8] sm:$0xff]
    %v985 = vld [vmem:[#allocation8 + $0x19f0] sm:$0xff]
    %v986 = vld [vmem:[#allocation8 + $0x19f8] sm:$0xff]
    %v987 = vld [vmem:[#allocation8 + $0x1a00] sm:$0xff]
    %v988 = vld [vmem:[#allocation8 + $0x1a08] sm:$0xff]
    %v989 = vld [vmem:[#allocation8 + $0x1a10] sm:$0xff]
    %v990 = vld [vmem:[#allocation8 + $0x1a18] sm:$0xff]
    %v991 = vld [vmem:[#allocation8 + $0x1a20] sm:$0xff]
    %v992 = vld [vmem:[#allocation8 + $0x1a28] sm:$0xff]
    %v993 = vld [vmem:[#allocation8 + $0x1a30] sm:$0xff]
    %v994 = vld [vmem:[#allocation8 + $0x1a38] sm:$0xff]
    %v995 = vld [vmem:[#allocation8 + $0x1a40] sm:$0xff]
    %v996 = vld [vmem:[#allocation8 + $0x1a48] sm:$0xff]
    %v997 = vld [vmem:[#allocation8 + $0x1a50] sm:$0xff]
    %v998 = vld [vmem:[#allocation8 + $0x1a58] sm:$0xff]
    %v999 = vld [vmem:[#allocation8 + $0x1a60] sm:$0xff]
    %v1000 = vld [vmem:[#allocation8 + $0x1a68] sm:$0xff]
    %v1001 = vld [vmem:[#allocation8 + $0x1a70] sm:$0xff]
    %v1002 = vld [vmem:[#allocation8 + $0x1a78] sm:$0xff]
    %v1003 = vld [vmem:[#allocation8 + $0x1a80] sm:$0xff]
    %v1004 = vld [vmem:[#allocation8 + $0x1a88] sm:$0xff]
    %v1005 = vld [vmem:[#allocation8 + $0x1a90] sm:$0xff]
    %v1006 = vld [vmem:[#allocation8 + $0x1a98] sm:$0xff]
    %v1007 = vld [vmem:[#allocation8 + $0x1aa0] sm:$0xff]
    %v1008 = vld [vmem:[#allocation8 + $0x1aa8] sm:$0xff]
    %v1009 = vld [vmem:[#allocation8 + $0x1ab0] sm:$0xff]
    %v1010 = vld [vmem:[#allocation8 + $0x1ab8] sm:$0xff]
    %v1011 = vld [vmem:[#allocation8 + $0x1ac0] sm:$0xff]
    %v1012 = vld [vmem:[#allocation8 + $0x1ac8] sm:$0xff]
    %v1013 = vld [vmem:[#allocation8 + $0x1ad0] sm:$0xff]
    %v1014 = vld [vmem:[#allocation8 + $0x1ad8] sm:$0xff]
    %v1015 = vld [vmem:[#allocation8 + $0x1ae0] sm:$0xff]
    %v1016 = vld [vmem:[#allocation8 + $0x1ae8] sm:$0xff]
    %v1017 = vld [vmem:[#allocation8 + $0x1af0] sm:$0xff]
    %v1018 = vld [vmem:[#allocation8 + $0x1af8] sm:$0xff]
    %v1019 = vld [vmem:[#allocation8 + $0x1b00] sm:$0xff]
    %v1020 = vld [vmem:[#allocation8 + $0x1b08] sm:$0xff]
    %v1021 = vld [vmem:[#allocation8 + $0x1b10] sm:$0xff]
    %v1022 = vld [vmem:[#allocation8 + $0x1b18] sm:$0xff]
    %v1023 = vld [vmem:[#allocation8 + $0x1b20] sm:$0xff]
    %v1024 = vld [vmem:[#allocation8 + $0x1b28] sm:$0xff]
    %v1025 = vld [vmem:[#allocation8 + $0x1b30] sm:$0xff]
    %v1026 = vld [vmem:[#allocation8 + $0x1b38] sm:$0xff]
    %v1027 = vld [vmem:[#allocation8 + $0x1b40] sm:$0xff]
    %v1028 = vld [vmem:[#allocation8 + $0x1b48] sm:$0xff]
    %v1029 = vld [vmem:[#allocation8 + $0x1b50] sm:$0xff]
    %v1030 = vld [vmem:[#allocation8 + $0x1b58] sm:$0xff]
    %v1031 = vld [vmem:[#allocation8 + $0x1b60] sm:$0xff]
    %v1032 = vld [vmem:[#allocation8 + $0x1b68] sm:$0xff]
    %v1033 = vld [vmem:[#allocation8 + $0x1b70] sm:$0xff]
    %v1034 = vld [vmem:[#allocation8 + $0x1b78] sm:$0xff]
    %v1035 = vld [vmem:[#allocation8 + $0x1b80] sm:$0xff]
    %v1036 = vld [vmem:[#allocation8 + $0x1b88] sm:$0xff]
    %v1037 = vld [vmem:[#allocation8 + $0x1b90] sm:$0xff]
    %v1038 = vld [vmem:[#allocation8 + $0x1b98] sm:$0xff]
    %v1039 = vld [vmem:[#allocation8 + $0x1ba0] sm:$0xff]
    %v1040 = vld [vmem:[#allocation8 + $0x1ba8] sm:$0xff]
    %v1041 = vld [vmem:[#allocation8 + $0x1bb0] sm:$0xff]
    %v1042 = vld [vmem:[#allocation8 + $0x1bb8] sm:$0xff]
    %v1043 = vld [vmem:[#allocation8 + $0x1bc0] sm:$0xff]
    %v1044 = vld [vmem:[#allocation8 + $0x1bc8] sm:$0xff]
    %v1045 = vld [vmem:[#allocation8 + $0x1bd0] sm:$0xff]
    %v1046 = vld [vmem:[#allocation8 + $0x1bd8] sm:$0xff]
    %v1047 = vld [vmem:[#allocation8 + $0x1be0] sm:$0xff]
    %v1048 = vld [vmem:[#allocation8 + $0x1be8] sm:$0xff]
    %v1049 = vld [vmem:[#allocation8 + $0x1bf0] sm:$0xff]
    %v1050 = vld [vmem:[#allocation8 + $0x1bf8] sm:$0xff]
    %v1051 = vld [vmem:[#allocation8 + $0x1c00] sm:$0xff]
    %v1052 = vld [vmem:[#allocation8 + $0x1c08] sm:$0xff]
    %v1053 = vld [vmem:[#allocation8 + $0x1c10] sm:$0xff]
    %v1054 = vld [vmem:[#allocation8 + $0x1c18] sm:$0xff]
    %v1055 = vld [vmem:[#allocation8 + $0x1c20] sm:$0xff]
    %v1056 = vld [vmem:[#allocation8 + $0x1c28] sm:$0xff]
    %v1057 = vld [vmem:[#allocation8 + $0x1c30] sm:$0xff]
    %v1058 = vld [vmem:[#allocation8 + $0x1c38] sm:$0xff]
    %v1059 = vld [vmem:[#allocation8 + $0x1c40] sm:$0xff]
    %v1060 = vld [vmem:[#allocation8 + $0x1c48] sm:$0xff]
    %v1061 = vld [vmem:[#allocation8 + $0x1c50] sm:$0xff]
    %v1062 = vld [vmem:[#allocation8 + $0x1c58] sm:$0xff]
    %v1063 = vld [vmem:[#allocation8 + $0x1c60] sm:$0xff]
    %v1064 = vld [vmem:[#allocation8 + $0x1c68] sm:$0xff]
    %v1065 = vld [vmem:[#allocation8 + $0x1c70] sm:$0xff]
    %v1066 = vld [vmem:[#allocation8 + $0x1c78] sm:$0xff]
    %v1067 = vld [vmem:[#allocation8 + $0x1c80] sm:$0xff]
    %v1068 = vld [vmem:[#allocation8 + $0x1c88] sm:$0xff]
    %v1069 = vld [vmem:[#allocation8 + $0x1c90] sm:$0xff]
    %v1070 = vld [vmem:[#allocation8 + $0x1c98] sm:$0xff]
    %v1071 = vld [vmem:[#allocation8 + $0x1ca0] sm:$0xff]
    %v1072 = vld [vmem:[#allocation8 + $0x1ca8] sm:$0xff]
    %v1073 = vld [vmem:[#allocation8 + $0x1cb0] sm:$0xff]
    %v1074 = vld [vmem:[#allocation8 + $0x1cb8] sm:$0xff]
    %v1075 = vld [vmem:[#allocation8 + $0x1cc0] sm:$0xff]
    %v1076 = vld [vmem:[#allocation8 + $0x1cc8] sm:$0xff]
    %v1077 = vld [vmem:[#allocation8 + $0x1cd0] sm:$0xff]
    %v1078 = vld [vmem:[#allocation8 + $0x1cd8] sm:$0xff]
    %v1079 = vld [vmem:[#allocation8 + $0x1ce0] sm:$0xff]
    %v1080 = vld [vmem:[#allocation8 + $0x1ce8] sm:$0xff]
    %v1081 = vld [vmem:[#allocation8 + $0x1cf0] sm:$0xff]
    %v1082 = vld [vmem:[#allocation8 + $0x1cf8] sm:$0xff]
    %v1083 = vld [vmem:[#allocation8 + $0x1d00] sm:$0xff]
    %v1084 = vld [vmem:[#allocation8 + $0x1d08] sm:$0xff]
    %v1085 = vld [vmem:[#allocation8 + $0x1d10] sm:$0xff]
    %v1086 = vld [vmem:[#allocation8 + $0x1d18] sm:$0xff]
    %v1087 = vld [vmem:[#allocation8 + $0x1d20] sm:$0xff]
    %v1088 = vld [vmem:[#allocation8 + $0x1d28] sm:$0xff]
    %v1089 = vld [vmem:[#allocation8 + $0x1d30] sm:$0xff]
    %v1090 = vld [vmem:[#allocation8 + $0x1d38] sm:$0xff]
    %v1091 = vld [vmem:[#allocation8 + $0x1d40] sm:$0xff]
    %v1092 = vld [vmem:[#allocation8 + $0x1d48] sm:$0xff]
    %v1093 = vld [vmem:[#allocation8 + $0x1d50] sm:$0xff]
    %v1094 = vld [vmem:[#allocation8 + $0x1d58] sm:$0xff]
    %v1095 = vld [vmem:[#allocation8 + $0x1d60] sm:$0xff]
    %v1096 = vld [vmem:[#allocation8 + $0x1d68] sm:$0xff]
    %v1097 = vld [vmem:[#allocation8 + $0x1d70] sm:$0xff]
    %v1098 = vld [vmem:[#allocation8 + $0x1d78] sm:$0xff]
    %v1099 = vld [vmem:[#allocation8 + $0x1d80] sm:$0xff]
    %v1100 = vld [vmem:[#allocation8 + $0x1d88] sm:$0xff]
    %v1101 = vld [vmem:[#allocation8 + $0x1d90] sm:$0xff]
    %v1102 = vld [vmem:[#allocation8 + $0x1d98] sm:$0xff]
    %v1103 = vld [vmem:[#allocation8 + $0x1da0] sm:$0xff]
    %v1104 = vld [vmem:[#allocation8 + $0x1da8] sm:$0xff]
    %v1105 = vld [vmem:[#allocation8 + $0x1db0] sm:$0xff]
    %v1106 = vld [vmem:[#allocation8 + $0x1db8] sm:$0xff]
    %v1107 = vld [vmem:[#allocation8 + $0x1dc0] sm:$0xff]
    %v1108 = vld [vmem:[#allocation8 + $0x1dc8] sm:$0xff]
    %v1109 = vld [vmem:[#allocation8 + $0x1dd0] sm:$0xff]
    %v1110 = vld [vmem:[#allocation8 + $0x1dd8] sm:$0xff]
    %v1111 = vld [vmem:[#allocation8 + $0x1de0] sm:$0xff]
    %v1112 = vld [vmem:[#allocation8 + $0x1de8] sm:$0xff]
    %v1113 = vld [vmem:[#allocation8 + $0x1df0] sm:$0xff]
    %v1114 = vld [vmem:[#allocation8 + $0x1df8] sm:$0xff]
    %v1115 = vld [vmem:[#allocation6] sm:$0x1]
    %v1116 = vld [vmem:[#allocation9] sm:$0xff]
    %v1117 = vld [vmem:[#allocation9 + $0x8] sm:$0xff]
    %v1118 = vld [vmem:[#allocation9 + $0x10] sm:$0xff]
    %v1119 = vld [vmem:[#allocation9 + $0x18] sm:$0xff]
    %v1120 = vld [vmem:[#allocation9 + $0x20] sm:$0xff]
    %v1121 = vld [vmem:[#allocation9 + $0x28] sm:$0xff]
    %v1122 = vld [vmem:[#allocation9 + $0x30] sm:$0xff]
    %v1123 = vld [vmem:[#allocation9 + $0x38] sm:$0xff]
    %v1132 = vunpack.c.l.b16 %v1116
    %v1133 = vunpack.c.h.b16 %v1116
    %v1134 = vunpack.c.l.b16 %v1117
    %v1135 = vunpack.c.h.b16 %v1117
    %v1136 = vunpack.c.l.b16 %v1118
    %v1137 = vunpack.c.h.b16 %v1118
    %v1138 = vunpack.c.l.b16 %v1119
    %v1139 = vunpack.c.h.b16 %v1119
    %v1140 = vunpack.c.l.b16 %v1120
    %v1141 = vunpack.c.h.b16 %v1120
    %v1142 = vunpack.c.l.b16 %v1121
    %v1143 = vunpack.c.h.b16 %v1121
    %v1144 = vunpack.c.l.b16 %v1122
    %v1145 = vunpack.c.h.b16 %v1122
    %v1146 = vunpack.c.l.b16 %v1123
    %v1147 = vunpack.c.h.b16 %v1123
    %v1148 = vpack.c.b16 %v1136, %v1132
    %v1149 = vpack.c.b16 %v1137, %v1133
    %v1150 = vpack.c.b16 %v1138, %v1134
    %v1151 = vpack.c.b16 %v1139, %v1135
    %v1152 = vpack.c.b16 %v1144, %v1140
    %v1153 = vpack.c.b16 %v1145, %v1141
    %v1154 = vpack.c.b16 %v1146, %v1142
    %v1155 = vpack.c.b16 %v1147, %v1143
    %vm1164 = vcmask 261120
    %v1166 = vsel %vm1164, %v1115, 0
    %1168 = vmatpush.bf16.msra.mxu0 0
    %1169 = vmatpush.bf16.msra.mxu0 0
    %1170 = vmatpush.bf16.msra.mxu0 0
    %1171 = vmatpush.bf16.msra.mxu0 0
    %1172 = vmatpush.bf16.msra.mxu0 0
    %1173 = vmatpush.bf16.msra.mxu0 0
    %1174 = vmatpush.bf16.msra.mxu0 %v1152
    %1175 = vmatpush.bf16.msra.mxu0 %v1148
    %1176 = vmatmul.bf16.gmra.mxu0 %v1166
    %v1177 = vpop.f32.mrf.mxu0
    %v1178 = vadd.f32 0.0, %v1177
    %v1179 = vpop.f32.mrf.mxu0
    %1180 = vdwg.mxu0
    %1181 = vmatpush.bf16.msra.mxu0 0
    %1182 = vmatpush.bf16.msra.mxu0 0
    %1183 = vmatpush.bf16.msra.mxu0 0
    %1184 = vmatpush.bf16.msra.mxu0 0
    %1185 = vmatpush.bf16.msra.mxu0 0
    %1186 = vmatpush.bf16.msra.mxu0 0
    %1187 = vmatpush.bf16.msra.mxu0 %v1153
    %1188 = vmatpush.bf16.msra.mxu0 %v1149
    %1189 = vmatmul.bf16.gmra.mxu0 %v1166
    %v1190 = vpop.f32.mrf.mxu0
    %v1191 = vadd.f32 0.0, %v1190
    %v1192 = vpop.f32.mrf.mxu0
    %1193 = vdwg.mxu0
    %1194 = vmatpush.bf16.msra.mxu0 0
    %1195 = vmatpush.bf16.msra.mxu0 0
    %1196 = vmatpush.bf16.msra.mxu0 0
    %1197 = vmatpush.bf16.msra.mxu0 0
    %1198 = vmatpush.bf16.msra.mxu0 0
    %1199 = vmatpush.bf16.msra.mxu0 0
    %1200 = vmatpush.bf16.msra.mxu0 %v1154
    %1201 = vmatpush.bf16.msra.mxu0 %v1150
    %1202 = vmatmul.bf16.gmra.mxu0 %v1166
    %v1203 = vpop.f32.mrf.mxu0
    %v1204 = vadd.f32 0.0, %v1203
    %v1205 = vpop.f32.mrf.mxu0
    %1206 = vdwg.mxu0
    %1207 = vmatpush.bf16.msra.mxu0 0
    %1208 = vmatpush.bf16.msra.mxu0 0
    %1209 = vmatpush.bf16.msra.mxu0 0
    %1210 = vmatpush.bf16.msra.mxu0 0
    %1211 = vmatpush.bf16.msra.mxu0 0
    %1212 = vmatpush.bf16.msra.mxu0 0
    %1213 = vmatpush.bf16.msra.mxu0 %v1155
    %1214 = vmatpush.bf16.msra.mxu0 %v1151
    %1215 = vmatmul.bf16.gmra.mxu0 %v1166
    %v1216 = vpop.f32.mrf.mxu0
    %v1217 = vadd.f32 0.0, %v1216
    %v1218 = vpop.f32.mrf.mxu0
    %1219 = vdwg.mxu0
    %1221 = vst [vmem:[#allocation1] ss:$9 sm:$0xff] %v151
    %v1222 = vld [vmem:[#allocation1] sm:$0xff]
    %v1223 = vld [vmem:[#allocation1 + $0x9] sm:$0xff]
    %v1224 = vld [vmem:[#allocation1 + $0x12] sm:$0xff]
    %v1225 = vld [vmem:[#allocation1 + $0x1b] sm:$0xff]
    %v1226 = vld [vmem:[#allocation1 + $0x24] sm:$0xff]
    %v1227 = vld [vmem:[#allocation1 + $0x2d] sm:$0xff]
    %v1228 = vld [vmem:[#allocation1 + $0x36] sm:$0xff]
    %v1229 = vld [vmem:[#allocation1 + $0x3f] sm:$0xff]
    %1231 = vst [vmem:[#allocation1] ss:$9 sm:$0xff] %v152
    %v1232 = vld [vmem:[#allocation1] sm:$0xff]
    %v1233 = vld [vmem:[#allocation1 + $0x9] sm:$0xff]
    %v1234 = vld [vmem:[#allocation1 + $0x12] sm:$0xff]
    %v1235 = vld [vmem:[#allocation1 + $0x1b] sm:$0xff]
    %v1236 = vld [vmem:[#allocation1 + $0x24] sm:$0xff]
    %v1237 = vld [vmem:[#allocation1 + $0x2d] sm:$0xff]
    %v1238 = vld [vmem:[#allocation1 + $0x36] sm:$0xff]
    %v1239 = vld [vmem:[#allocation1 + $0x3f] sm:$0xff]
    %1241 = vst [vmem:[#allocation1] ss:$9 sm:$0xff] %v153
    %v1242 = vld [vmem:[#allocation1] sm:$0xff]
    %v1243 = vld [vmem:[#allocation1 + $0x9] sm:$0xff]
    %v1244 = vld [vmem:[#allocation1 + $0x12] sm:$0xff]
    %v1245 = vld [vmem:[#allocation1 + $0x1b] sm:$0xff]
    %v1246 = vld [vmem:[#allocation1 + $0x24] sm:$0xff]
    %v1247 = vld [vmem:[#allocation1 + $0x2d] sm:$0xff]
    %v1248 = vld [vmem:[#allocation1 + $0x36] sm:$0xff]
    %v1249 = vld [vmem:[#allocation1 + $0x3f] sm:$0xff]
    %1251 = vst [vmem:[#allocation1] ss:$9 sm:$0xff] %v154
    %v1252 = vld [vmem:[#allocation1] sm:$0xff]
    %v1253 = vld [vmem:[#allocation1 + $0x9] sm:$0xff]
    %v1254 = vld [vmem:[#allocation1 + $0x12] sm:$0xff]
    %v1255 = vld [vmem:[#allocation1 + $0x1b] sm:$0xff]
    %v1256 = vld [vmem:[#allocation1 + $0x24] sm:$0xff]
    %v1257 = vld [vmem:[#allocation1 + $0x2d] sm:$0xff]
    %v2248 = vunpack.c.l.b16 %v155
    %v2249 = vunpack.c.h.b16 %v155
    %v2250 = vunpack.c.l.b16 %v156
    %v2251 = vunpack.c.h.b16 %v156
    %v2252 = vunpack.c.l.b16 %v157
    %v2253 = vunpack.c.h.b16 %v157
    %v2254 = vunpack.c.l.b16 %v158
    %v2255 = vunpack.c.h.b16 %v158
    %v2256 = vunpack.c.l.b16 %v159
    %v2257 = vunpack.c.h.b16 %v159
    %v2258 = vunpack.c.l.b16 %v160
    %v2259 = vunpack.c.h.b16 %v160
    %v2260 = vunpack.c.l.b16 %v161
    %v2261 = vunpack.c.h.b16 %v161
    %v2262 = vunpack.c.l.b16 %v162
    %v2263 = vunpack.c.h.b16 %v162
    %v2264 = vunpack.c.l.b16 %v163
    %v2265 = vunpack.c.h.b16 %v163
    %v2266 = vunpack.c.l.b16 %v164
    %v2267 = vunpack.c.h.b16 %v164
    %v2268 = vunpack.c.l.b16 %v165
    %v2269 = vunpack.c.h.b16 %v165
    %v2270 = vunpack.c.l.b16 %v166
    %v2271 = vunpack.c.h.b16 %v166
    %v2272 = vunpack.c.l.b16 %v167
    %v2273 = vunpack.c.h.b16 %v167
    %v2274 = vunpack.c.l.b16 %v168
    %v2275 = vunpack.c.h.b16 %v168
    %v2276 = vunpack.c.l.b16 %v169
    %v2277 = vunpack.c.h.b16 %v169
    %v2278 = vunpack.c.l.b16 %v170
    %v2279 = vunpack.c.h.b16 %v170
    %v2280 = vunpack.c.l.b16 %v171
    %v2281 = vunpack.c.h.b16 %v171
    %v2282 = vunpack.c.l.b16 %v172
    %v2283 = vunpack.c.h.b16 %v172
    %v2284 = vunpack.c.l.b16 %v173
    %v2285 = vunpack.c.h.b16 %v173
    %v2286 = vunpack.c.l.b16 %v174
    %v2287 = vunpack.c.h.b16 %v174
    %v2288 = vunpack.c.l.b16 %v175
    %v2289 = vunpack.c.h.b16 %v175
    %v2290 = vunpack.c.l.b16 %v176
    %v2291 = vunpack.c.h.b16 %v176
    %v2292 = vunpack.c.l.b16 %v177
    %v2293 = vunpack.c.h.b16 %v177
    %v2294 = vunpack.c.l.b16 %v178
    %v2295 = vunpack.c.h.b16 %v178
    %v2296 = vunpack.c.l.b16 %v179
    %v2297 = vunpack.c.h.b16 %v179
    %v2298 = vunpack.c.l.b16 %v180
    %v2299 = vunpack.c.h.b16 %v180
    %v2300 = vunpack.c.l.b16 %v181
    %v2301 = vunpack.c.h.b16 %v181
    %v2302 = vunpack.c.l.b16 %v182
    %v2303 = vunpack.c.h.b16 %v182
    %v2304 = vunpack.c.l.b16 %v183
    %v2305 = vunpack.c.h.b16 %v183
    %v2306 = vunpack.c.l.b16 %v184
    %v2307 = vunpack.c.h.b16 %v184
    %v2308 = vunpack.c.l.b16 %v185
    %v2309 = vunpack.c.h.b16 %v185
    %v2310 = vunpack.c.l.b16 %v186
    %v2311 = vunpack.c.h.b16 %v186
    %v2312 = vunpack.c.l.b16 %v187
    %v2313 = vunpack.c.h.b16 %v187
    %v2314 = vunpack.c.l.b16 %v188
    %v2315 = vunpack.c.h.b16 %v188
    %v2316 = vunpack.c.l.b16 %v189
    %v2317 = vunpack.c.h.b16 %v189
    %v2318 = vunpack.c.l.b16 %v190
    %v2319 = vunpack.c.h.b16 %v190
    %v2320 = vunpack.c.l.b16 %v191
    %v2321 = vunpack.c.h.b16 %v191
    %v2322 = vunpack.c.l.b16 %v192
    %v2323 = vunpack.c.h.b16 %v192
    %v2324 = vunpack.c.l.b16 %v193
    %v2325 = vunpack.c.h.b16 %v193
    %v2326 = vunpack.c.l.b16 %v194
    %v2327 = vunpack.c.h.b16 %v194
    %v2328 = vunpack.c.l.b16 %v195
    %v2329 = vunpack.c.h.b16 %v195
    %v2330 = vunpack.c.l.b16 %v196
    %v2331 = vunpack.c.h.b16 %v196
    %v2332 = vunpack.c.l.b16 %v197
    %v2333 = vunpack.c.h.b16 %v197
    %v2334 = vunpack.c.l.b16 %v198
    %v2335 = vunpack.c.h.b16 %v198
    %v2336 = vunpack.c.l.b16 %v199
    %v2337 = vunpack.c.h.b16 %v199
    %v2338 = vunpack.c.l.b16 %v200
    %v2339 = vunpack.c.h.b16 %v200
    %v2340 = vunpack.c.l.b16 %v201
    %v2341 = vunpack.c.h.b16 %v201
    %v2342 = vunpack.c.l.b16 %v202
    %v2343 = vunpack.c.h.b16 %v202
    %v2344 = vunpack.c.l.b16 %v203
    %v2345 = vunpack.c.h.b16 %v203
    %v2346 = vunpack.c.l.b16 %v204
    %v2347 = vunpack.c.h.b16 %v204
    %v2348 = vunpack.c.l.b16 %v205
    %v2349 = vunpack.c.h.b16 %v205
    %v2350 = vunpack.c.l.b16 %v206
    %v2351 = vunpack.c.h.b16 %v206
    %v2352 = vunpack.c.l.b16 %v207
    %v2353 = vunpack.c.h.b16 %v207
    %v2354 = vunpack.c.l.b16 %v208
    %v2355 = vunpack.c.h.b16 %v208
    %v2356 = vunpack.c.l.b16 %v209
    %v2357 = vunpack.c.h.b16 %v209
    %v2358 = vunpack.c.l.b16 %v210
    %v2359 = vunpack.c.h.b16 %v210
    %v2360 = vunpack.c.l.b16 %v211
    %v2361 = vunpack.c.h.b16 %v211
    %v2362 = vunpack.c.l.b16 %v212
    %v2363 = vunpack.c.h.b16 %v212
    %v2364 = vunpack.c.l.b16 %v213
    %v2365 = vunpack.c.h.b16 %v213
    %v2366 = vunpack.c.l.b16 %v214
    %v2367 = vunpack.c.h.b16 %v214
    %v2368 = vunpack.c.l.b16 %v215
    %v2369 = vunpack.c.h.b16 %v215
    %v2370 = vunpack.c.l.b16 %v216
    %v2371 = vunpack.c.h.b16 %v216
    %v2372 = vunpack.c.l.b16 %v217
    %v2373 = vunpack.c.h.b16 %v217
    %v2374 = vunpack.c.l.b16 %v218
    %v2375 = vunpack.c.h.b16 %v218
    %v2376 = vunpack.c.l.b16 %v219
    %v2377 = vunpack.c.h.b16 %v219
    %v2378 = vunpack.c.l.b16 %v220
    %v2379 = vunpack.c.h.b16 %v220
    %v2380 = vunpack.c.l.b16 %v221
    %v2381 = vunpack.c.h.b16 %v221
    %v2382 = vunpack.c.l.b16 %v222
    %v2383 = vunpack.c.h.b16 %v222
    %v2384 = vunpack.c.l.b16 %v223
    %v2385 = vunpack.c.h.b16 %v223
    %v2386 = vunpack.c.l.b16 %v224
    %v2387 = vunpack.c.h.b16 %v224
    %v2388 = vunpack.c.l.b16 %v225
    %v2389 = vunpack.c.h.b16 %v225
    %v2390 = vunpack.c.l.b16 %v226
    %v2391 = vunpack.c.h.b16 %v226
    %v2392 = vunpack.c.l.b16 %v227
    %v2393 = vunpack.c.h.b16 %v227
    %v2394 = vunpack.c.l.b16 %v228
    %v2395 = vunpack.c.h.b16 %v228
    %v2396 = vunpack.c.l.b16 %v229
    %v2397 = vunpack.c.h.b16 %v229
    %v2398 = vunpack.c.l.b16 %v230
    %v2399 = vunpack.c.h.b16 %v230
    %v2400 = vunpack.c.l.b16 %v231
    %v2401 = vunpack.c.h.b16 %v231
    %v2402 = vunpack.c.l.b16 %v232
    %v2403 = vunpack.c.h.b16 %v232
    %v2404 = vunpack.c.l.b16 %v233
    %v2405 = vunpack.c.h.b16 %v233
    %v2406 = vunpack.c.l.b16 %v234
    %v2407 = vunpack.c.h.b16 %v234
    %v2408 = vunpack.c.l.b16 %v235
    %v2409 = vunpack.c.h.b16 %v235
    %v2410 = vunpack.c.l.b16 %v236
    %v2411 = vunpack.c.h.b16 %v236
    %v2412 = vunpack.c.l.b16 %v237
    %v2413 = vunpack.c.h.b16 %v237
    %v2414 = vunpack.c.l.b16 %v238
    %v2415 = vunpack.c.h.b16 %v238
    %v2416 = vunpack.c.l.b16 %v239
    %v2417 = vunpack.c.h.b16 %v239
    %v2418 = vunpack.c.l.b16 %v240
    %v2419 = vunpack.c.h.b16 %v240
    %v2420 = vunpack.c.l.b16 %v241
    %v2421 = vunpack.c.h.b16 %v241
    %v2422 = vunpack.c.l.b16 %v242
    %v2423 = vunpack.c.h.b16 %v242
    %v2424 = vunpack.c.l.b16 %v243
    %v2425 = vunpack.c.h.b16 %v243
    %v2426 = vunpack.c.l.b16 %v244
    %v2427 = vunpack.c.h.b16 %v244
    %v2428 = vunpack.c.l.b16 %v245
    %v2429 = vunpack.c.h.b16 %v245
    %v2430 = vunpack.c.l.b16 %v246
    %v2431 = vunpack.c.h.b16 %v246
    %v2432 = vunpack.c.l.b16 %v247
    %v2433 = vunpack.c.h.b16 %v247
    %v2434 = vunpack.c.l.b16 %v248
    %v2435 = vunpack.c.h.b16 %v248
    %v2436 = vunpack.c.l.b16 %v249
    %v2437 = vunpack.c.h.b16 %v249
    %v2438 = vunpack.c.l.b16 %v250
    %v2439 = vunpack.c.h.b16 %v250
    %v2440 = vunpack.c.l.b16 %v251
    %v2441 = vunpack.c.h.b16 %v251
    %v2442 = vunpack.c.l.b16 %v252
    %v2443 = vunpack.c.h.b16 %v252
    %v2444 = vunpack.c.l.b16 %v253
    %v2445 = vunpack.c.h.b16 %v253
    %v2446 = vunpack.c.l.b16 %v254
    %v2447 = vunpack.c.h.b16 %v254
    %v2448 = vunpack.c.l.b16 %v255
    %v2449 = vunpack.c.h.b16 %v255
    %v2450 = vunpack.c.l.b16 %v256
    %v2451 = vunpack.c.h.b16 %v256
    %v2452 = vunpack.c.l.b16 %v257
    %v2453 = vunpack.c.h.b16 %v257
    %v2454 = vunpack.c.l.b16 %v258
    %v2455 = vunpack.c.h.b16 %v258
    %v2456 = vunpack.c.l.b16 %v259
    %v2457 = vunpack.c.h.b16 %v259
    %v2458 = vunpack.c.l.b16 %v260
    %v2459 = vunpack.c.h.b16 %v260
    %v2460 = vunpack.c.l.b16 %v261
    %v2461 = vunpack.c.h.b16 %v261
    %v2462 = vunpack.c.l.b16 %v262
    %v2463 = vunpack.c.h.b16 %v262
    %v2464 = vunpack.c.l.b16 %v263
    %v2465 = vunpack.c.h.b16 %v263
    %v2466 = vunpack.c.l.b16 %v264
    %v2467 = vunpack.c.h.b16 %v264
    %v2468 = vunpack.c.l.b16 %v265
    %v2469 = vunpack.c.h.b16 %v265
    %v2470 = vunpack.c.l.b16 %v266
    %v2471 = vunpack.c.h.b16 %v266
    %v2472 = vunpack.c.l.b16 %v267
    %v2473 = vunpack.c.h.b16 %v267
    %v2474 = vunpack.c.l.b16 %v268
    %v2475 = vunpack.c.h.b16 %v268
    %v2476 = vunpack.c.l.b16 %v269
    %v2477 = vunpack.c.h.b16 %v269
    %v2478 = vunpack.c.l.b16 %v270
    %v2479 = vunpack.c.h.b16 %v270
    %v2480 = vunpack.c.l.b16 %v271
    %v2481 = vunpack.c.h.b16 %v271
    %v2482 = vunpack.c.l.b16 %v272
    %v2483 = vunpack.c.h.b16 %v272
    %v2484 = vunpack.c.l.b16 %v273
    %v2485 = vunpack.c.h.b16 %v273
    %v2486 = vunpack.c.l.b16 %v274
    %v2487 = vunpack.c.h.b16 %v274
    %v2488 = vunpack.c.l.b16 %v275
    %v2489 = vunpack.c.h.b16 %v275
    %v2490 = vunpack.c.l.b16 %v276
    %v2491 = vunpack.c.h.b16 %v276
    %v2492 = vunpack.c.l.b16 %v277
    %v2493 = vunpack.c.h.b16 %v277
    %v2494 = vunpack.c.l.b16 %v278
    %v2495 = vunpack.c.h.b16 %v278
    %v2496 = vunpack.c.l.b16 %v279
    %v2497 = vunpack.c.h.b16 %v279
    %v2498 = vunpack.c.l.b16 %v280
    %v2499 = vunpack.c.h.b16 %v280
    %v2500 = vunpack.c.l.b16 %v281
    %v2501 = vunpack.c.h.b16 %v281
    %v2502 = vunpack.c.l.b16 %v282
    %v2503 = vunpack.c.h.b16 %v282
    %v2504 = vunpack.c.l.b16 %v283
    %v2505 = vunpack.c.h.b16 %v283
    %v2506 = vunpack.c.l.b16 %v284
    %v2507 = vunpack.c.h.b16 %v284
    %v2508 = vunpack.c.l.b16 %v285
    %v2509 = vunpack.c.h.b16 %v285
    %v2510 = vunpack.c.l.b16 %v286
    %v2511 = vunpack.c.h.b16 %v286
    %v2512 = vunpack.c.l.b16 %v287
    %v2513 = vunpack.c.h.b16 %v287
    %v2514 = vunpack.c.l.b16 %v288
    %v2515 = vunpack.c.h.b16 %v288
    %v2516 = vunpack.c.l.b16 %v289
    %v2517 = vunpack.c.h.b16 %v289
    %v2518 = vunpack.c.l.b16 %v290
    %v2519 = vunpack.c.h.b16 %v290
    %v2520 = vunpack.c.l.b16 %v291
    %v2521 = vunpack.c.h.b16 %v291
    %v2522 = vunpack.c.l.b16 %v292
    %v2523 = vunpack.c.h.b16 %v292
    %v2524 = vunpack.c.l.b16 %v293
    %v2525 = vunpack.c.h.b16 %v293
    %v2526 = vunpack.c.l.b16 %v294
    %v2527 = vunpack.c.h.b16 %v294
    %v2528 = vunpack.c.l.b16 %v295
    %v2529 = vunpack.c.h.b16 %v295
    %v2530 = vunpack.c.l.b16 %v296
    %v2531 = vunpack.c.h.b16 %v296
    %v2532 = vunpack.c.l.b16 %v297
    %v2533 = vunpack.c.h.b16 %v297
    %v2534 = vunpack.c.l.b16 %v298
    %v2535 = vunpack.c.h.b16 %v298
    %v2536 = vunpack.c.l.b16 %v299
    %v2537 = vunpack.c.h.b16 %v299
    %v2538 = vunpack.c.l.b16 %v300
    %v2539 = vunpack.c.h.b16 %v300
    %v2540 = vunpack.c.l.b16 %v301
    %v2541 = vunpack.c.h.b16 %v301
    %v2542 = vunpack.c.l.b16 %v302
    %v2543 = vunpack.c.h.b16 %v302
    %v2544 = vunpack.c.l.b16 %v303
    %v2545 = vunpack.c.h.b16 %v303
    %v2546 = vunpack.c.l.b16 %v304
    %v2547 = vunpack.c.h.b16 %v304
    %v2548 = vunpack.c.l.b16 %v305
    %v2549 = vunpack.c.h.b16 %v305
    %v2550 = vunpack.c.l.b16 %v306
    %v2551 = vunpack.c.h.b16 %v306
    %v2552 = vunpack.c.l.b16 %v307
    %v2553 = vunpack.c.h.b16 %v307
    %v2554 = vunpack.c.l.b16 %v308
    %v2555 = vunpack.c.h.b16 %v308
    %v2556 = vunpack.c.l.b16 %v309
    %v2557 = vunpack.c.h.b16 %v309
    %v2558 = vunpack.c.l.b16 %v310
    %v2559 = vunpack.c.h.b16 %v310
    %v2560 = vunpack.c.l.b16 %v311
    %v2561 = vunpack.c.h.b16 %v311
    %v2562 = vunpack.c.l.b16 %v312
    %v2563 = vunpack.c.h.b16 %v312
    %v2564 = vunpack.c.l.b16 %v313
    %v2565 = vunpack.c.h.b16 %v313
    %v2566 = vunpack.c.l.b16 %v314
    %v2567 = vunpack.c.h.b16 %v314
    %v2568 = vunpack.c.l.b16 %v315
    %v2569 = vunpack.c.h.b16 %v315
    %v2570 = vunpack.c.l.b16 %v316
    %v2571 = vunpack.c.h.b16 %v316
    %v2572 = vunpack.c.l.b16 %v317
    %v2573 = vunpack.c.h.b16 %v317
    %v2574 = vunpack.c.l.b16 %v318
    %v2575 = vunpack.c.h.b16 %v318
    %v2576 = vunpack.c.l.b16 %v319
    %v2577 = vunpack.c.h.b16 %v319
    %v2578 = vunpack.c.l.b16 %v320
    %v2579 = vunpack.c.h.b16 %v320
    %v2580 = vunpack.c.l.b16 %v321
    %v2581 = vunpack.c.h.b16 %v321
    %v2582 = vunpack.c.l.b16 %v322
    %v2583 = vunpack.c.h.b16 %v322
    %v2584 = vunpack.c.l.b16 %v323
    %v2585 = vunpack.c.h.b16 %v323
    %v2586 = vunpack.c.l.b16 %v324
    %v2587 = vunpack.c.h.b16 %v324
    %v2588 = vunpack.c.l.b16 %v325
    %v2589 = vunpack.c.h.b16 %v325
    %v2590 = vunpack.c.l.b16 %v326
    %v2591 = vunpack.c.h.b16 %v326
    %v2592 = vunpack.c.l.b16 %v327
    %v2593 = vunpack.c.h.b16 %v327
    %v2594 = vunpack.c.l.b16 %v328
    %v2595 = vunpack.c.h.b16 %v328
    %v2596 = vunpack.c.l.b16 %v329
    %v2597 = vunpack.c.h.b16 %v329
    %v2598 = vunpack.c.l.b16 %v330
    %v2599 = vunpack.c.h.b16 %v330
    %v2600 = vunpack.c.l.b16 %v331
    %v2601 = vunpack.c.h.b16 %v331
    %v2602 = vunpack.c.l.b16 %v332
    %v2603 = vunpack.c.h.b16 %v332
    %v2604 = vunpack.c.l.b16 %v333
    %v2605 = vunpack.c.h.b16 %v333
    %v2606 = vunpack.c.l.b16 %v334
    %v2607 = vunpack.c.h.b16 %v334
    %v2608 = vunpack.c.l.b16 %v335
    %v2609 = vunpack.c.h.b16 %v335
    %v2610 = vunpack.c.l.b16 %v336
    %v2611 = vunpack.c.h.b16 %v336
    %v2612 = vunpack.c.l.b16 %v337
    %v2613 = vunpack.c.h.b16 %v337
    %v2614 = vunpack.c.l.b16 %v338
    %v2615 = vunpack.c.h.b16 %v338
    %v2616 = vunpack.c.l.b16 %v339
    %v2617 = vunpack.c.h.b16 %v339
    %v2618 = vunpack.c.l.b16 %v340
    %v2619 = vunpack.c.h.b16 %v340
    %v2620 = vunpack.c.l.b16 %v341
    %v2621 = vunpack.c.h.b16 %v341
    %v2622 = vunpack.c.l.b16 %v342
    %v2623 = vunpack.c.h.b16 %v342
    %v2624 = vunpack.c.l.b16 %v343
    %v2625 = vunpack.c.h.b16 %v343
    %v2626 = vunpack.c.l.b16 %v344
    %v2627 = vunpack.c.h.b16 %v344
    %v2628 = vunpack.c.l.b16 %v345
    %v2629 = vunpack.c.h.b16 %v345
    %v2630 = vunpack.c.l.b16 %v346
    %v2631 = vunpack.c.h.b16 %v346
    %v2632 = vunpack.c.l.b16 %v347
    %v2633 = vunpack.c.h.b16 %v347
    %v2634 = vunpack.c.l.b16 %v348
    %v2635 = vunpack.c.h.b16 %v348
    %v2636 = vunpack.c.l.b16 %v349
    %v2637 = vunpack.c.h.b16 %v349
    %v2638 = vunpack.c.l.b16 %v350
    %v2639 = vunpack.c.h.b16 %v350
    %v2640 = vunpack.c.l.b16 %v351
    %v2641 = vunpack.c.h.b16 %v351
    %v2642 = vunpack.c.l.b16 %v352
    %v2643 = vunpack.c.h.b16 %v352
    %v2644 = vunpack.c.l.b16 %v353
    %v2645 = vunpack.c.h.b16 %v353
    %v2646 = vunpack.c.l.b16 %v354
    %v2647 = vunpack.c.h.b16 %v354
    %v2648 = vunpack.c.l.b16 %v355
    %v2649 = vunpack.c.h.b16 %v355
    %v2650 = vunpack.c.l.b16 %v356
    %v2651 = vunpack.c.h.b16 %v356
    %v2652 = vunpack.c.l.b16 %v357
    %v2653 = vunpack.c.h.b16 %v357
    %v2654 = vunpack.c.l.b16 %v358
    %v2655 = vunpack.c.h.b16 %v358
    %v2656 = vunpack.c.l.b16 %v359
    %v2657 = vunpack.c.h.b16 %v359
    %v2658 = vunpack.c.l.b16 %v360
    %v2659 = vunpack.c.h.b16 %v360
    %v2660 = vunpack.c.l.b16 %v361
    %v2661 = vunpack.c.h.b16 %v361
    %v2662 = vunpack.c.l.b16 %v362
    %v2663 = vunpack.c.h.b16 %v362
    %v2664 = vunpack.c.l.b16 %v363
    %v2665 = vunpack.c.h.b16 %v363
    %v2666 = vunpack.c.l.b16 %v364
    %v2667 = vunpack.c.h.b16 %v364
    %v2668 = vunpack.c.l.b16 %v365
    %v2669 = vunpack.c.h.b16 %v365
    %v2670 = vunpack.c.l.b16 %v366
    %v2671 = vunpack.c.h.b16 %v366
    %v2672 = vunpack.c.l.b16 %v367
    %v2673 = vunpack.c.h.b16 %v367
    %v2674 = vunpack.c.l.b16 %v368
    %v2675 = vunpack.c.h.b16 %v368
    %v2676 = vunpack.c.l.b16 %v369
    %v2677 = vunpack.c.h.b16 %v369
    %v2678 = vunpack.c.l.b16 %v370
    %v2679 = vunpack.c.h.b16 %v370
    %v2680 = vunpack.c.l.b16 %v371
    %v2681 = vunpack.c.h.b16 %v371
    %v2682 = vunpack.c.l.b16 %v372
    %v2683 = vunpack.c.h.b16 %v372
    %v2684 = vunpack.c.l.b16 %v373
    %v2685 = vunpack.c.h.b16 %v373
    %v2686 = vunpack.c.l.b16 %v374
    %v2687 = vunpack.c.h.b16 %v374
    %v2688 = vunpack.c.l.b16 %v375
    %v2689 = vunpack.c.h.b16 %v375
    %v2690 = vunpack.c.l.b16 %v376
    %v2691 = vunpack.c.h.b16 %v376
    %v2692 = vunpack.c.l.b16 %v377
    %v2693 = vunpack.c.h.b16 %v377
    %v2694 = vunpack.c.l.b16 %v378
    %v2695 = vunpack.c.h.b16 %v378
    %v2696 = vunpack.c.l.b16 %v379
    %v2697 = vunpack.c.h.b16 %v379
    %v2698 = vunpack.c.l.b16 %v380
    %v2699 = vunpack.c.h.b16 %v380
    %v2700 = vunpack.c.l.b16 %v381
    %v2701 = vunpack.c.h.b16 %v381
    %v2702 = vunpack.c.l.b16 %v382
    %v2703 = vunpack.c.h.b16 %v382
    %v2704 = vunpack.c.l.b16 %v383
    %v2705 = vunpack.c.h.b16 %v383
    %v2706 = vunpack.c.l.b16 %v384
    %v2707 = vunpack.c.h.b16 %v384
    %v2708 = vunpack.c.l.b16 %v385
    %v2709 = vunpack.c.h.b16 %v385
    %v2710 = vunpack.c.l.b16 %v386
    %v2711 = vunpack.c.h.b16 %v386
    %v2712 = vunpack.c.l.b16 %v387
    %v2713 = vunpack.c.h.b16 %v387
    %v2714 = vunpack.c.l.b16 %v388
    %v2715 = vunpack.c.h.b16 %v388
    %v2716 = vunpack.c.l.b16 %v389
    %v2717 = vunpack.c.h.b16 %v389
    %v2718 = vunpack.c.l.b16 %v390
    %v2719 = vunpack.c.h.b16 %v390
    %v2720 = vunpack.c.l.b16 %v391
    %v2721 = vunpack.c.h.b16 %v391
    %v2722 = vunpack.c.l.b16 %v392
    %v2723 = vunpack.c.h.b16 %v392
    %v2724 = vunpack.c.l.b16 %v393
    %v2725 = vunpack.c.h.b16 %v393
    %v2726 = vunpack.c.l.b16 %v394
    %v2727 = vunpack.c.h.b16 %v394
    %v2728 = vunpack.c.l.b16 %v395
    %v2729 = vunpack.c.h.b16 %v395
    %v2730 = vunpack.c.l.b16 %v396
    %v2731 = vunpack.c.h.b16 %v396
    %v2732 = vunpack.c.l.b16 %v397
    %v2733 = vunpack.c.h.b16 %v397
    %v2734 = vunpack.c.l.b16 %v398
    %v2735 = vunpack.c.h.b16 %v398
    %v2736 = vunpack.c.l.b16 %v399
    %v2737 = vunpack.c.h.b16 %v399
    %v2738 = vunpack.c.l.b16 %v400
    %v2739 = vunpack.c.h.b16 %v400
    %v2740 = vunpack.c.l.b16 %v401
    %v2741 = vunpack.c.h.b16 %v401
    %v2742 = vunpack.c.l.b16 %v402
    %v2743 = vunpack.c.h.b16 %v402
    %v2744 = vunpack.c.l.b16 %v403
    %v2745 = vunpack.c.h.b16 %v403
    %v2746 = vunpack.c.l.b16 %v404
    %v2747 = vunpack.c.h.b16 %v404
    %v2748 = vunpack.c.l.b16 %v405
    %v2749 = vunpack.c.h.b16 %v405
    %v2750 = vunpack.c.l.b16 %v406
    %v2751 = vunpack.c.h.b16 %v406
    %v2752 = vunpack.c.l.b16 %v407
    %v2753 = vunpack.c.h.b16 %v407
    %v2754 = vunpack.c.l.b16 %v408
    %v2755 = vunpack.c.h.b16 %v408
    %v2756 = vunpack.c.l.b16 %v409
    %v2757 = vunpack.c.h.b16 %v409
    %v2758 = vunpack.c.l.b16 %v410
    %v2759 = vunpack.c.h.b16 %v410
    %v2760 = vunpack.c.l.b16 %v411
    %v2761 = vunpack.c.h.b16 %v411
    %v2762 = vunpack.c.l.b16 %v412
    %v2763 = vunpack.c.h.b16 %v412
    %v2764 = vunpack.c.l.b16 %v413
    %v2765 = vunpack.c.h.b16 %v413
    %v2766 = vunpack.c.l.b16 %v414
    %v2767 = vunpack.c.h.b16 %v414
    %v2768 = vunpack.c.l.b16 %v415
    %v2769 = vunpack.c.h.b16 %v415
    %v2770 = vunpack.c.l.b16 %v416
    %v2771 = vunpack.c.h.b16 %v416
    %v2772 = vunpack.c.l.b16 %v417
    %v2773 = vunpack.c.h.b16 %v417
    %v2774 = vunpack.c.l.b16 %v418
    %v2775 = vunpack.c.h.b16 %v418
    %v2776 = vunpack.c.l.b16 %v419
    %v2777 = vunpack.c.h.b16 %v419
    %v2778 = vunpack.c.l.b16 %v420
    %v2779 = vunpack.c.h.b16 %v420
    %v2780 = vunpack.c.l.b16 %v421
    %v2781 = vunpack.c.h.b16 %v421
    %v2782 = vunpack.c.l.b16 %v422
    %v2783 = vunpack.c.h.b16 %v422
    %v2784 = vunpack.c.l.b16 %v423
    %v2785 = vunpack.c.h.b16 %v423
    %v2786 = vunpack.c.l.b16 %v424
    %v2787 = vunpack.c.h.b16 %v424
    %v2788 = vunpack.c.l.b16 %v425
    %v2789 = vunpack.c.h.b16 %v425
    %v2790 = vunpack.c.l.b16 %v426
    %v2791 = vunpack.c.h.b16 %v426
    %v2792 = vunpack.c.l.b16 %v427
    %v2793 = vunpack.c.h.b16 %v427
    %v2794 = vunpack.c.l.b16 %v428
    %v2795 = vunpack.c.h.b16 %v428
    %v2796 = vunpack.c.l.b16 %v429
    %v2797 = vunpack.c.h.b16 %v429
    %v2798 = vunpack.c.l.b16 %v430
    %v2799 = vunpack.c.h.b16 %v430
    %v2800 = vunpack.c.l.b16 %v431
    %v2801 = vunpack.c.h.b16 %v431
    %v2802 = vunpack.c.l.b16 %v432
    %v2803 = vunpack.c.h.b16 %v432
    %v2804 = vunpack.c.l.b16 %v433
    %v2805 = vunpack.c.h.b16 %v433
    %v2806 = vunpack.c.l.b16 %v434
    %v2807 = vunpack.c.h.b16 %v434
    %v2808 = vunpack.c.l.b16 %v435
    %v2809 = vunpack.c.h.b16 %v435
    %v2810 = vunpack.c.l.b16 %v436
    %v2811 = vunpack.c.h.b16 %v436
    %v2812 = vunpack.c.l.b16 %v437
    %v2813 = vunpack.c.h.b16 %v437
    %v2814 = vunpack.c.l.b16 %v438
    %v2815 = vunpack.c.h.b16 %v438
    %v2816 = vunpack.c.l.b16 %v439
    %v2817 = vunpack.c.h.b16 %v439
    %v2818 = vunpack.c.l.b16 %v440
    %v2819 = vunpack.c.h.b16 %v440
    %v2820 = vunpack.c.l.b16 %v441
    %v2821 = vunpack.c.h.b16 %v441
    %v2822 = vunpack.c.l.b16 %v442
    %v2823 = vunpack.c.h.b16 %v442
    %v2824 = vunpack.c.l.b16 %v443
    %v2825 = vunpack.c.h.b16 %v443
    %v2826 = vunpack.c.l.b16 %v444
    %v2827 = vunpack.c.h.b16 %v444
    %v2828 = vunpack.c.l.b16 %v445
    %v2829 = vunpack.c.h.b16 %v445
    %v2830 = vunpack.c.l.b16 %v446
    %v2831 = vunpack.c.h.b16 %v446
    %v2832 = vunpack.c.l.b16 %v447
    %v2833 = vunpack.c.h.b16 %v447
    %v2834 = vunpack.c.l.b16 %v448
    %v2835 = vunpack.c.h.b16 %v448
    %v2836 = vunpack.c.l.b16 %v449
    %v2837 = vunpack.c.h.b16 %v449
    %v2838 = vunpack.c.l.b16 %v450
    %v2839 = vunpack.c.h.b16 %v450
    %v2840 = vunpack.c.l.b16 %v451
    %v2841 = vunpack.c.h.b16 %v451
    %v2842 = vunpack.c.l.b16 %v452
    %v2843 = vunpack.c.h.b16 %v452
    %v2844 = vunpack.c.l.b16 %v453
    %v2845 = vunpack.c.h.b16 %v453
    %v2846 = vunpack.c.l.b16 %v454
    %v2847 = vunpack.c.h.b16 %v454
    %v2848 = vunpack.c.l.b16 %v455
    %v2849 = vunpack.c.h.b16 %v455
    %v2850 = vunpack.c.l.b16 %v456
    %v2851 = vunpack.c.h.b16 %v456
    %v2852 = vunpack.c.l.b16 %v457
    %v2853 = vunpack.c.h.b16 %v457
    %v2854 = vunpack.c.l.b16 %v458
    %v2855 = vunpack.c.h.b16 %v458
    %v2856 = vunpack.c.l.b16 %v459
    %v2857 = vunpack.c.h.b16 %v459
    %v2858 = vunpack.c.l.b16 %v460
    %v2859 = vunpack.c.h.b16 %v460
    %v2860 = vunpack.c.l.b16 %v461
    %v2861 = vunpack.c.h.b16 %v461
    %v2862 = vunpack.c.l.b16 %v462
    %v2863 = vunpack.c.h.b16 %v462
    %v2864 = vunpack.c.l.b16 %v463
    %v2865 = vunpack.c.h.b16 %v463
    %v2866 = vunpack.c.l.b16 %v464
    %v2867 = vunpack.c.h.b16 %v464
    %v2868 = vunpack.c.l.b16 %v465
    %v2869 = vunpack.c.h.b16 %v465
    %v2870 = vunpack.c.l.b16 %v466
    %v2871 = vunpack.c.h.b16 %v466
    %v2872 = vunpack.c.l.b16 %v467
    %v2873 = vunpack.c.h.b16 %v467
    %v2874 = vunpack.c.l.b16 %v468
    %v2875 = vunpack.c.h.b16 %v468
    %v2876 = vunpack.c.l.b16 %v469
    %v2877 = vunpack.c.h.b16 %v469
    %v2878 = vunpack.c.l.b16 %v470
    %v2879 = vunpack.c.h.b16 %v470
    %v2880 = vunpack.c.l.b16 %v471
    %v2881 = vunpack.c.h.b16 %v471
    %v2882 = vunpack.c.l.b16 %v472
    %v2883 = vunpack.c.h.b16 %v472
    %v2884 = vunpack.c.l.b16 %v473
    %v2885 = vunpack.c.h.b16 %v473
    %v2886 = vunpack.c.l.b16 %v474
    %v2887 = vunpack.c.h.b16 %v474
    %v2888 = vunpack.c.l.b16 %v475
    %v2889 = vunpack.c.h.b16 %v475
    %v2890 = vunpack.c.l.b16 %v476
    %v2891 = vunpack.c.h.b16 %v476
    %v2892 = vunpack.c.l.b16 %v477
    %v2893 = vunpack.c.h.b16 %v477
    %v2894 = vunpack.c.l.b16 %v478
    %v2895 = vunpack.c.h.b16 %v478
    %v2896 = vunpack.c.l.b16 %v479
    %v2897 = vunpack.c.h.b16 %v479
    %v2898 = vunpack.c.l.b16 %v480
    %v2899 = vunpack.c.h.b16 %v480
    %v2900 = vunpack.c.l.b16 %v481
    %v2901 = vunpack.c.h.b16 %v481
    %v2902 = vunpack.c.l.b16 %v482
    %v2903 = vunpack.c.h.b16 %v482
    %v2904 = vunpack.c.l.b16 %v483
    %v2905 = vunpack.c.h.b16 %v483
    %v2906 = vunpack.c.l.b16 %v484
    %v2907 = vunpack.c.h.b16 %v484
    %v2908 = vunpack.c.l.b16 %v485
    %v2909 = vunpack.c.h.b16 %v485
    %v2910 = vunpack.c.l.b16 %v486
    %v2911 = vunpack.c.h.b16 %v486
    %v2912 = vunpack.c.l.b16 %v487
    %v2913 = vunpack.c.h.b16 %v487
    %v2914 = vunpack.c.l.b16 %v488
    %v2915 = vunpack.c.h.b16 %v488
    %v2916 = vunpack.c.l.b16 %v489
    %v2917 = vunpack.c.h.b16 %v489
    %v2918 = vunpack.c.l.b16 %v490
    %v2919 = vunpack.c.h.b16 %v490
    %v2920 = vunpack.c.l.b16 %v491
    %v2921 = vunpack.c.h.b16 %v491
    %v2922 = vunpack.c.l.b16 %v492
    %v2923 = vunpack.c.h.b16 %v492
    %v2924 = vunpack.c.l.b16 %v493
    %v2925 = vunpack.c.h.b16 %v493
    %v2926 = vunpack.c.l.b16 %v494
    %v2927 = vunpack.c.h.b16 %v494
    %v2928 = vunpack.c.l.b16 %v495
    %v2929 = vunpack.c.h.b16 %v495
    %v2930 = vunpack.c.l.b16 %v496
    %v2931 = vunpack.c.h.b16 %v496
    %v2932 = vunpack.c.l.b16 %v497
    %v2933 = vunpack.c.h.b16 %v497
    %v2934 = vunpack.c.l.b16 %v498
    %v2935 = vunpack.c.h.b16 %v498
    %v2936 = vunpack.c.l.b16 %v499
    %v2937 = vunpack.c.h.b16 %v499
    %v2938 = vunpack.c.l.b16 %v500
    %v2939 = vunpack.c.h.b16 %v500
    %v2940 = vunpack.c.l.b16 %v501
    %v2941 = vunpack.c.h.b16 %v501
    %v2942 = vunpack.c.l.b16 %v502
    %v2943 = vunpack.c.h.b16 %v502
    %v2944 = vunpack.c.l.b16 %v503
    %v2945 = vunpack.c.h.b16 %v503
    %v2946 = vunpack.c.l.b16 %v504
    %v2947 = vunpack.c.h.b16 %v504
    %v2948 = vunpack.c.l.b16 %v505
    %v2949 = vunpack.c.h.b16 %v505
    %v2950 = vunpack.c.l.b16 %v506
    %v2951 = vunpack.c.h.b16 %v506
    %v2952 = vunpack.c.l.b16 %v507
    %v2953 = vunpack.c.h.b16 %v507
    %v2954 = vunpack.c.l.b16 %v508
    %v2955 = vunpack.c.h.b16 %v508
    %v2956 = vunpack.c.l.b16 %v509
    %v2957 = vunpack.c.h.b16 %v509
    %v2958 = vunpack.c.l.b16 %v510
    %v2959 = vunpack.c.h.b16 %v510
    %v2960 = vunpack.c.l.b16 %v511
    %v2961 = vunpack.c.h.b16 %v511
    %v2962 = vunpack.c.l.b16 %v512
    %v2963 = vunpack.c.h.b16 %v512
    %v2964 = vunpack.c.l.b16 %v513
    %v2965 = vunpack.c.h.b16 %v513
    %v2966 = vunpack.c.l.b16 %v514
    %v2967 = vunpack.c.h.b16 %v514
    %v2968 = vunpack.c.l.b16 %v515
    %v2969 = vunpack.c.h.b16 %v515
    %v2970 = vunpack.c.l.b16 %v516
    %v2971 = vunpack.c.h.b16 %v516
    %v2972 = vunpack.c.l.b16 %v517
    %v2973 = vunpack.c.h.b16 %v517
    %v2974 = vunpack.c.l.b16 %v518
    %v2975 = vunpack.c.h.b16 %v518
    %v2976 = vunpack.c.l.b16 %v519
    %v2977 = vunpack.c.h.b16 %v519
    %v2978 = vunpack.c.l.b16 %v520
    %v2979 = vunpack.c.h.b16 %v520
    %v2980 = vunpack.c.l.b16 %v521
    %v2981 = vunpack.c.h.b16 %v521
    %v2982 = vunpack.c.l.b16 %v522
    %v2983 = vunpack.c.h.b16 %v522
    %v2984 = vunpack.c.l.b16 %v523
    %v2985 = vunpack.c.h.b16 %v523
    %v2986 = vunpack.c.l.b16 %v524
    %v2987 = vunpack.c.h.b16 %v524
    %v2988 = vunpack.c.l.b16 %v525
    %v2989 = vunpack.c.h.b16 %v525
    %v2990 = vunpack.c.l.b16 %v526
    %v2991 = vunpack.c.h.b16 %v526
    %v2992 = vunpack.c.l.b16 %v527
    %v2993 = vunpack.c.h.b16 %v527
    %v2994 = vunpack.c.l.b16 %v528
    %v2995 = vunpack.c.h.b16 %v528
    %v2996 = vunpack.c.l.b16 %v529
    %v2997 = vunpack.c.h.b16 %v529
    %v2998 = vunpack.c.l.b16 %v530
    %v2999 = vunpack.c.h.b16 %v530
    %v3000 = vunpack.c.l.b16 %v531
    %v3001 = vunpack.c.h.b16 %v531
    %v3002 = vunpack.c.l.b16 %v532
    %v3003 = vunpack.c.h.b16 %v532
    %v3004 = vunpack.c.l.b16 %v533
    %v3005 = vunpack.c.h.b16 %v533
    %v3006 = vunpack.c.l.b16 %v534
    %v3007 = vunpack.c.h.b16 %v534
    %v3008 = vunpack.c.l.b16 %v535
    %v3009 = vunpack.c.h.b16 %v535
    %v3010 = vunpack.c.l.b16 %v536
    %v3011 = vunpack.c.h.b16 %v536
    %v3012 = vunpack.c.l.b16 %v537
    %v3013 = vunpack.c.h.b16 %v537
    %v3014 = vunpack.c.l.b16 %v538
    %v3015 = vunpack.c.h.b16 %v538
    %v3016 = vunpack.c.l.b16 %v539
    %v3017 = vunpack.c.h.b16 %v539
    %v3018 = vunpack.c.l.b16 %v540
    %v3019 = vunpack.c.h.b16 %v540
    %v3020 = vunpack.c.l.b16 %v541
    %v3021 = vunpack.c.h.b16 %v541
    %v3022 = vunpack.c.l.b16 %v542
    %v3023 = vunpack.c.h.b16 %v542
    %v3024 = vunpack.c.l.b16 %v543
    %v3025 = vunpack.c.h.b16 %v543
    %v3026 = vunpack.c.l.b16 %v544
    %v3027 = vunpack.c.h.b16 %v544
    %v3028 = vunpack.c.l.b16 %v545
    %v3029 = vunpack.c.h.b16 %v545
    %v3030 = vunpack.c.l.b16 %v546
    %v3031 = vunpack.c.h.b16 %v546
    %v3032 = vunpack.c.l.b16 %v547
    %v3033 = vunpack.c.h.b16 %v547
    %v3034 = vunpack.c.l.b16 %v548
    %v3035 = vunpack.c.h.b16 %v548
    %v3036 = vunpack.c.l.b16 %v549
    %v3037 = vunpack.c.h.b16 %v549
    %v3038 = vunpack.c.l.b16 %v550
    %v3039 = vunpack.c.h.b16 %v550
    %v3040 = vunpack.c.l.b16 %v551
    %v3041 = vunpack.c.h.b16 %v551
    %v3042 = vunpack.c.l.b16 %v552
    %v3043 = vunpack.c.h.b16 %v552
    %v3044 = vunpack.c.l.b16 %v553
    %v3045 = vunpack.c.h.b16 %v553
    %v3046 = vunpack.c.l.b16 %v554
    %v3047 = vunpack.c.h.b16 %v554
    %v3048 = vunpack.c.l.b16 %v555
    %v3049 = vunpack.c.h.b16 %v555
    %v3050 = vunpack.c.l.b16 %v556
    %v3051 = vunpack.c.h.b16 %v556
    %v3052 = vunpack.c.l.b16 %v557
    %v3053 = vunpack.c.h.b16 %v557
    %v3054 = vunpack.c.l.b16 %v558
    %v3055 = vunpack.c.h.b16 %v558
    %v3056 = vunpack.c.l.b16 %v559
    %v3057 = vunpack.c.h.b16 %v559
    %v3058 = vunpack.c.l.b16 %v560
    %v3059 = vunpack.c.h.b16 %v560
    %v3060 = vunpack.c.l.b16 %v561
    %v3061 = vunpack.c.h.b16 %v561
    %v3062 = vunpack.c.l.b16 %v562
    %v3063 = vunpack.c.h.b16 %v562
    %v3064 = vunpack.c.l.b16 %v563
    %v3065 = vunpack.c.h.b16 %v563
    %v3066 = vunpack.c.l.b16 %v564
    %v3067 = vunpack.c.h.b16 %v564
    %v3068 = vunpack.c.l.b16 %v565
    %v3069 = vunpack.c.h.b16 %v565
    %v3070 = vunpack.c.l.b16 %v566
    %v3071 = vunpack.c.h.b16 %v566
    %v3072 = vunpack.c.l.b16 %v567
    %v3073 = vunpack.c.h.b16 %v567
    %v3074 = vunpack.c.l.b16 %v568
    %v3075 = vunpack.c.h.b16 %v568
    %v3076 = vunpack.c.l.b16 %v569
    %v3077 = vunpack.c.h.b16 %v569
    %v3078 = vunpack.c.l.b16 %v570
    %v3079 = vunpack.c.h.b16 %v570
    %v3080 = vunpack.c.l.b16 %v571
    %v3081 = vunpack.c.h.b16 %v571
    %v3082 = vunpack.c.l.b16 %v572
    %v3083 = vunpack.c.h.b16 %v572
    %v3084 = vunpack.c.l.b16 %v573
    %v3085 = vunpack.c.h.b16 %v573
    %v3086 = vunpack.c.l.b16 %v574
    %v3087 = vunpack.c.h.b16 %v574
    %v3088 = vunpack.c.l.b16 %v575
    %v3089 = vunpack.c.h.b16 %v575
    %v3090 = vunpack.c.l.b16 %v576
    %v3091 = vunpack.c.h.b16 %v576
    %v3092 = vunpack.c.l.b16 %v577
    %v3093 = vunpack.c.h.b16 %v577
    %v3094 = vunpack.c.l.b16 %v578
    %v3095 = vunpack.c.h.b16 %v578
    %v3096 = vunpack.c.l.b16 %v579
    %v3097 = vunpack.c.h.b16 %v579
    %v3098 = vunpack.c.l.b16 %v580
    %v3099 = vunpack.c.h.b16 %v580
    %v3100 = vunpack.c.l.b16 %v581
    %v3101 = vunpack.c.h.b16 %v581
    %v3102 = vunpack.c.l.b16 %v582
    %v3103 = vunpack.c.h.b16 %v582
    %v3104 = vunpack.c.l.b16 %v583
    %v3105 = vunpack.c.h.b16 %v583
    %v3106 = vunpack.c.l.b16 %v584
    %v3107 = vunpack.c.h.b16 %v584
    %v3108 = vunpack.c.l.b16 %v585
    %v3109 = vunpack.c.h.b16 %v585
    %v3110 = vunpack.c.l.b16 %v586
    %v3111 = vunpack.c.h.b16 %v586
    %v3112 = vunpack.c.l.b16 %v587
    %v3113 = vunpack.c.h.b16 %v587
    %v3114 = vunpack.c.l.b16 %v588
    %v3115 = vunpack.c.h.b16 %v588
    %v3116 = vunpack.c.l.b16 %v589
    %v3117 = vunpack.c.h.b16 %v589
    %v3118 = vunpack.c.l.b16 %v590
    %v3119 = vunpack.c.h.b16 %v590
    %v3120 = vunpack.c.l.b16 %v591
    %v3121 = vunpack.c.h.b16 %v591
    %v3122 = vunpack.c.l.b16 %v592
    %v3123 = vunpack.c.h.b16 %v592
    %v3124 = vunpack.c.l.b16 %v593
    %v3125 = vunpack.c.h.b16 %v593
    %v3126 = vunpack.c.l.b16 %v594
    %v3127 = vunpack.c.h.b16 %v594
    %v3128 = vunpack.c.l.b16 %v595
    %v3129 = vunpack.c.h.b16 %v595
    %v3130 = vunpack.c.l.b16 %v596
    %v3131 = vunpack.c.h.b16 %v596
    %v3132 = vunpack.c.l.b16 %v597
    %v3133 = vunpack.c.h.b16 %v597
    %v3134 = vunpack.c.l.b16 %v598
    %v3135 = vunpack.c.h.b16 %v598
    %v3136 = vunpack.c.l.b16 %v599
    %v3137 = vunpack.c.h.b16 %v599
    %v3138 = vunpack.c.l.b16 %v600
    %v3139 = vunpack.c.h.b16 %v600
    %v3140 = vunpack.c.l.b16 %v601
    %v3141 = vunpack.c.h.b16 %v601
    %v3142 = vunpack.c.l.b16 %v602
    %v3143 = vunpack.c.h.b16 %v602
    %v3144 = vunpack.c.l.b16 %v603
    %v3145 = vunpack.c.h.b16 %v603
    %v3146 = vunpack.c.l.b16 %v604
    %v3147 = vunpack.c.h.b16 %v604
    %v3148 = vunpack.c.l.b16 %v605
    %v3149 = vunpack.c.h.b16 %v605
    %v3150 = vunpack.c.l.b16 %v606
    %v3151 = vunpack.c.h.b16 %v606
    %v3152 = vunpack.c.l.b16 %v607
    %v3153 = vunpack.c.h.b16 %v607
    %v3154 = vunpack.c.l.b16 %v608
    %v3155 = vunpack.c.h.b16 %v608
    %v3156 = vunpack.c.l.b16 %v609
    %v3157 = vunpack.c.h.b16 %v609
    %v3158 = vunpack.c.l.b16 %v610
    %v3159 = vunpack.c.h.b16 %v610
    %v3160 = vunpack.c.l.b16 %v611
    %v3161 = vunpack.c.h.b16 %v611
    %v3162 = vunpack.c.l.b16 %v612
    %v3163 = vunpack.c.h.b16 %v612
    %v3164 = vunpack.c.l.b16 %v613
    %v3165 = vunpack.c.h.b16 %v613
    %v3166 = vunpack.c.l.b16 %v614
    %v3167 = vunpack.c.h.b16 %v614
    %v3168 = vunpack.c.l.b16 %v615
    %v3169 = vunpack.c.h.b16 %v615
    %v3170 = vunpack.c.l.b16 %v616
    %v3171 = vunpack.c.h.b16 %v616
    %v3172 = vunpack.c.l.b16 %v617
    %v3173 = vunpack.c.h.b16 %v617
    %v3174 = vunpack.c.l.b16 %v618
    %v3175 = vunpack.c.h.b16 %v618
    %v3176 = vunpack.c.l.b16 %v619
    %v3177 = vunpack.c.h.b16 %v619
    %v3178 = vunpack.c.l.b16 %v620
    %v3179 = vunpack.c.h.b16 %v620
    %v3180 = vunpack.c.l.b16 %v621
    %v3181 = vunpack.c.h.b16 %v621
    %v3182 = vunpack.c.l.b16 %v622
    %v3183 = vunpack.c.h.b16 %v622
    %v3184 = vunpack.c.l.b16 %v623
    %v3185 = vunpack.c.h.b16 %v623
    %v3186 = vunpack.c.l.b16 %v624
    %v3187 = vunpack.c.h.b16 %v624
    %v3188 = vunpack.c.l.b16 %v625
    %v3189 = vunpack.c.h.b16 %v625
    %v3190 = vunpack.c.l.b16 %v626
    %v3191 = vunpack.c.h.b16 %v626
    %v3192 = vunpack.c.l.b16 %v627
    %v3193 = vunpack.c.h.b16 %v627
    %v3194 = vunpack.c.l.b16 %v628
    %v3195 = vunpack.c.h.b16 %v628
    %v3196 = vunpack.c.l.b16 %v629
    %v3197 = vunpack.c.h.b16 %v629
    %v3198 = vunpack.c.l.b16 %v630
    %v3199 = vunpack.c.h.b16 %v630
    %v3200 = vunpack.c.l.b16 %v631
    %v3201 = vunpack.c.h.b16 %v631
    %v3202 = vunpack.c.l.b16 %v632
    %v3203 = vunpack.c.h.b16 %v632
    %v3204 = vunpack.c.l.b16 %v633
    %v3205 = vunpack.c.h.b16 %v633
    %v3206 = vunpack.c.l.b16 %v634
    %v3207 = vunpack.c.h.b16 %v634
    %v3208 = vunpack.c.l.b16 %v635
    %v3209 = vunpack.c.h.b16 %v635
    %v3210 = vunpack.c.l.b16 %v636
    %v3211 = vunpack.c.h.b16 %v636
    %v3212 = vunpack.c.l.b16 %v637
    %v3213 = vunpack.c.h.b16 %v637
    %v3214 = vunpack.c.l.b16 %v638
    %v3215 = vunpack.c.h.b16 %v638
    %v3216 = vunpack.c.l.b16 %v639
    %v3217 = vunpack.c.h.b16 %v639
    %v3218 = vunpack.c.l.b16 %v640
    %v3219 = vunpack.c.h.b16 %v640
    %v3220 = vunpack.c.l.b16 %v641
    %v3221 = vunpack.c.h.b16 %v641
    %v3222 = vunpack.c.l.b16 %v642
    %v3223 = vunpack.c.h.b16 %v642
    %v3224 = vunpack.c.l.b16 %v643
    %v3225 = vunpack.c.h.b16 %v643
    %v3226 = vunpack.c.l.b16 %v644
    %v3227 = vunpack.c.h.b16 %v644
    %v3228 = vunpack.c.l.b16 %v645
    %v3229 = vunpack.c.h.b16 %v645
    %v3230 = vunpack.c.l.b16 %v646
    %v3231 = vunpack.c.h.b16 %v646
    %v3232 = vunpack.c.l.b16 %v647
    %v3233 = vunpack.c.h.b16 %v647
    %v3234 = vunpack.c.l.b16 %v648
    %v3235 = vunpack.c.h.b16 %v648
    %v3236 = vunpack.c.l.b16 %v649
    %v3237 = vunpack.c.h.b16 %v649
    %v3238 = vunpack.c.l.b16 %v650
    %v3239 = vunpack.c.h.b16 %v650
    %v3240 = vunpack.c.l.b16 %v651
    %v3241 = vunpack.c.h.b16 %v651
    %v3242 = vunpack.c.l.b16 %v652
    %v3243 = vunpack.c.h.b16 %v652
    %v3244 = vunpack.c.l.b16 %v653
    %v3245 = vunpack.c.h.b16 %v653
    %v3246 = vunpack.c.l.b16 %v654
    %v3247 = vunpack.c.h.b16 %v654
    %v3248 = vunpack.c.l.b16 %v655
    %v3249 = vunpack.c.h.b16 %v655
    %v3250 = vunpack.c.l.b16 %v656
    %v3251 = vunpack.c.h.b16 %v656
    %v3252 = vunpack.c.l.b16 %v657
    %v3253 = vunpack.c.h.b16 %v657
    %v3254 = vunpack.c.l.b16 %v658
    %v3255 = vunpack.c.h.b16 %v658
    %v3256 = vunpack.c.l.b16 %v659
    %v3257 = vunpack.c.h.b16 %v659
    %v3258 = vunpack.c.l.b16 %v660
    %v3259 = vunpack.c.h.b16 %v660
    %v3260 = vunpack.c.l.b16 %v661
    %v3261 = vunpack.c.h.b16 %v661
    %v3262 = vunpack.c.l.b16 %v662
    %v3263 = vunpack.c.h.b16 %v662
    %v3264 = vunpack.c.l.b16 %v663
    %v3265 = vunpack.c.h.b16 %v663
    %v3266 = vunpack.c.l.b16 %v664
    %v3267 = vunpack.c.h.b16 %v664
    %v3268 = vunpack.c.l.b16 %v665
    %v3269 = vunpack.c.h.b16 %v665
    %v3270 = vunpack.c.l.b16 %v666
    %v3271 = vunpack.c.h.b16 %v666
    %v3272 = vunpack.c.l.b16 %v667
    %v3273 = vunpack.c.h.b16 %v667
    %v3274 = vunpack.c.l.b16 %v668
    %v3275 = vunpack.c.h.b16 %v668
    %v3276 = vunpack.c.l.b16 %v669
    %v3277 = vunpack.c.h.b16 %v669
    %v3278 = vunpack.c.l.b16 %v670
    %v3279 = vunpack.c.h.b16 %v670
    %v3280 = vunpack.c.l.b16 %v671
    %v3281 = vunpack.c.h.b16 %v671
    %v3282 = vunpack.c.l.b16 %v672
    %v3283 = vunpack.c.h.b16 %v672
    %v3284 = vunpack.c.l.b16 %v673
    %v3285 = vunpack.c.h.b16 %v673
    %v3286 = vunpack.c.l.b16 %v674
    %v3287 = vunpack.c.h.b16 %v674
    %v3288 = vunpack.c.l.b16 %v675
    %v3289 = vunpack.c.h.b16 %v675
    %v3290 = vunpack.c.l.b16 %v676
    %v3291 = vunpack.c.h.b16 %v676
    %v3292 = vunpack.c.l.b16 %v677
    %v3293 = vunpack.c.h.b16 %v677
    %v3294 = vunpack.c.l.b16 %v678
    %v3295 = vunpack.c.h.b16 %v678
    %v3296 = vunpack.c.l.b16 %v679
    %v3297 = vunpack.c.h.b16 %v679
    %v3298 = vunpack.c.l.b16 %v680
    %v3299 = vunpack.c.h.b16 %v680
    %v3300 = vunpack.c.l.b16 %v681
    %v3301 = vunpack.c.h.b16 %v681
    %v3302 = vunpack.c.l.b16 %v682
    %v3303 = vunpack.c.h.b16 %v682
    %v3304 = vunpack.c.l.b16 %v683
    %v3305 = vunpack.c.h.b16 %v683
    %v3306 = vunpack.c.l.b16 %v684
    %v3307 = vunpack.c.h.b16 %v684
    %v3308 = vunpack.c.l.b16 %v685
    %v3309 = vunpack.c.h.b16 %v685
    %v3310 = vunpack.c.l.b16 %v686
    %v3311 = vunpack.c.h.b16 %v686
    %v3312 = vunpack.c.l.b16 %v687
    %v3313 = vunpack.c.h.b16 %v687
    %v3314 = vunpack.c.l.b16 %v688
    %v3315 = vunpack.c.h.b16 %v688
    %v3316 = vunpack.c.l.b16 %v689
    %v3317 = vunpack.c.h.b16 %v689
    %v3318 = vunpack.c.l.b16 %v690
    %v3319 = vunpack.c.h.b16 %v690
    %v3320 = vunpack.c.l.b16 %v691
    %v3321 = vunpack.c.h.b16 %v691
    %v3322 = vunpack.c.l.b16 %v692
    %v3323 = vunpack.c.h.b16 %v692
    %v3324 = vunpack.c.l.b16 %v693
    %v3325 = vunpack.c.h.b16 %v693
    %v3326 = vunpack.c.l.b16 %v694
    %v3327 = vunpack.c.h.b16 %v694
    %v3328 = vunpack.c.l.b16 %v695
    %v3329 = vunpack.c.h.b16 %v695
    %v3330 = vunpack.c.l.b16 %v696
    %v3331 = vunpack.c.h.b16 %v696
    %v3332 = vunpack.c.l.b16 %v697
    %v3333 = vunpack.c.h.b16 %v697
    %v3334 = vunpack.c.l.b16 %v698
    %v3335 = vunpack.c.h.b16 %v698
    %v3336 = vunpack.c.l.b16 %v699
    %v3337 = vunpack.c.h.b16 %v699
    %v3338 = vunpack.c.l.b16 %v700
    %v3339 = vunpack.c.h.b16 %v700
    %v3340 = vunpack.c.l.b16 %v701
    %v3341 = vunpack.c.h.b16 %v701
    %v3342 = vunpack.c.l.b16 %v702
    %v3343 = vunpack.c.h.b16 %v702
    %v3344 = vunpack.c.l.b16 %v703
    %v3345 = vunpack.c.h.b16 %v703
    %v3346 = vunpack.c.l.b16 %v704
    %v3347 = vunpack.c.h.b16 %v704
    %v3348 = vunpack.c.l.b16 %v705
    %v3349 = vunpack.c.h.b16 %v705
    %v3350 = vunpack.c.l.b16 %v706
    %v3351 = vunpack.c.h.b16 %v706
    %v3352 = vunpack.c.l.b16 %v707
    %v3353 = vunpack.c.h.b16 %v707
    %v3354 = vunpack.c.l.b16 %v708
    %v3355 = vunpack.c.h.b16 %v708
    %v3356 = vunpack.c.l.b16 %v709
    %v3357 = vunpack.c.h.b16 %v709
    %v3358 = vunpack.c.l.b16 %v710
    %v3359 = vunpack.c.h.b16 %v710
    %v3360 = vunpack.c.l.b16 %v711
    %v3361 = vunpack.c.h.b16 %v711
    %v3362 = vunpack.c.l.b16 %v712
    %v3363 = vunpack.c.h.b16 %v712
    %v3364 = vunpack.c.l.b16 %v713
    %v3365 = vunpack.c.h.b16 %v713
    %v3366 = vunpack.c.l.b16 %v714
    %v3367 = vunpack.c.h.b16 %v714
    %v3368 = vunpack.c.l.b16 %v715
    %v3369 = vunpack.c.h.b16 %v715
    %v3370 = vunpack.c.l.b16 %v716
    %v3371 = vunpack.c.h.b16 %v716
    %v3372 = vunpack.c.l.b16 %v717
    %v3373 = vunpack.c.h.b16 %v717
    %v3374 = vunpack.c.l.b16 %v718
    %v3375 = vunpack.c.h.b16 %v718
    %v3376 = vunpack.c.l.b16 %v719
    %v3377 = vunpack.c.h.b16 %v719
    %v3378 = vunpack.c.l.b16 %v720
    %v3379 = vunpack.c.h.b16 %v720
    %v3380 = vunpack.c.l.b16 %v721
    %v3381 = vunpack.c.h.b16 %v721
    %v3382 = vunpack.c.l.b16 %v722
    %v3383 = vunpack.c.h.b16 %v722
    %v3384 = vunpack.c.l.b16 %v723
    %v3385 = vunpack.c.h.b16 %v723
    %v3386 = vunpack.c.l.b16 %v724
    %v3387 = vunpack.c.h.b16 %v724
    %v3388 = vunpack.c.l.b16 %v725
    %v3389 = vunpack.c.h.b16 %v725
    %v3390 = vunpack.c.l.b16 %v726
    %v3391 = vunpack.c.h.b16 %v726
    %v3392 = vunpack.c.l.b16 %v727
    %v3393 = vunpack.c.h.b16 %v727
    %v3394 = vunpack.c.l.b16 %v728
    %v3395 = vunpack.c.h.b16 %v728
    %v3396 = vunpack.c.l.b16 %v729
    %v3397 = vunpack.c.h.b16 %v729
    %v3398 = vunpack.c.l.b16 %v730
    %v3399 = vunpack.c.h.b16 %v730
    %v3400 = vunpack.c.l.b16 %v731
    %v3401 = vunpack.c.h.b16 %v731
    %v3402 = vunpack.c.l.b16 %v732
    %v3403 = vunpack.c.h.b16 %v732
    %v3404 = vunpack.c.l.b16 %v733
    %v3405 = vunpack.c.h.b16 %v733
    %v3406 = vunpack.c.l.b16 %v734
    %v3407 = vunpack.c.h.b16 %v734
    %v3408 = vunpack.c.l.b16 %v735
    %v3409 = vunpack.c.h.b16 %v735
    %v3410 = vunpack.c.l.b16 %v736
    %v3411 = vunpack.c.h.b16 %v736
    %v3412 = vunpack.c.l.b16 %v737
    %v3413 = vunpack.c.h.b16 %v737
    %v3414 = vunpack.c.l.b16 %v738
    %v3415 = vunpack.c.h.b16 %v738
    %v3416 = vunpack.c.l.b16 %v739
    %v3417 = vunpack.c.h.b16 %v739
    %v3418 = vunpack.c.l.b16 %v740
    %v3419 = vunpack.c.h.b16 %v740
    %v3420 = vunpack.c.l.b16 %v741
    %v3421 = vunpack.c.h.b16 %v741
    %v3422 = vunpack.c.l.b16 %v742
    %v3423 = vunpack.c.h.b16 %v742
    %v3424 = vunpack.c.l.b16 %v743
    %v3425 = vunpack.c.h.b16 %v743
    %v3426 = vunpack.c.l.b16 %v744
    %v3427 = vunpack.c.h.b16 %v744
    %v3428 = vunpack.c.l.b16 %v745
    %v3429 = vunpack.c.h.b16 %v745
    %v3430 = vunpack.c.l.b16 %v746
    %v3431 = vunpack.c.h.b16 %v746
    %v3432 = vunpack.c.l.b16 %v747
    %v3433 = vunpack.c.h.b16 %v747
    %v3434 = vunpack.c.l.b16 %v748
    %v3435 = vunpack.c.h.b16 %v748
    %v3436 = vunpack.c.l.b16 %v749
    %v3437 = vunpack.c.h.b16 %v749
    %v3438 = vunpack.c.l.b16 %v750
    %v3439 = vunpack.c.h.b16 %v750
    %v3440 = vunpack.c.l.b16 %v751
    %v3441 = vunpack.c.h.b16 %v751
    %v3442 = vunpack.c.l.b16 %v752
    %v3443 = vunpack.c.h.b16 %v752
    %v3444 = vunpack.c.l.b16 %v753
    %v3445 = vunpack.c.h.b16 %v753
    %v3446 = vunpack.c.l.b16 %v754
    %v3447 = vunpack.c.h.b16 %v754
    %v3448 = vunpack.c.l.b16 %v755
    %v3449 = vunpack.c.h.b16 %v755
    %v3450 = vunpack.c.l.b16 %v756
    %v3451 = vunpack.c.h.b16 %v756
    %v3452 = vunpack.c.l.b16 %v757
    %v3453 = vunpack.c.h.b16 %v757
    %v3454 = vunpack.c.l.b16 %v758
    %v3455 = vunpack.c.h.b16 %v758
    %v3456 = vunpack.c.l.b16 %v759
    %v3457 = vunpack.c.h.b16 %v759
    %v3458 = vunpack.c.l.b16 %v760
    %v3459 = vunpack.c.h.b16 %v760
    %v3460 = vunpack.c.l.b16 %v761
    %v3461 = vunpack.c.h.b16 %v761
    %v3462 = vunpack.c.l.b16 %v762
    %v3463 = vunpack.c.h.b16 %v762
    %v3464 = vunpack.c.l.b16 %v763
    %v3465 = vunpack.c.h.b16 %v763
    %v3466 = vunpack.c.l.b16 %v764
    %v3467 = vunpack.c.h.b16 %v764
    %v3468 = vunpack.c.l.b16 %v765
    %v3469 = vunpack.c.h.b16 %v765
    %v3470 = vunpack.c.l.b16 %v766
    %v3471 = vunpack.c.h.b16 %v766
    %v3472 = vunpack.c.l.b16 %v767
    %v3473 = vunpack.c.h.b16 %v767
    %v3474 = vunpack.c.l.b16 %v768
    %v3475 = vunpack.c.h.b16 %v768
    %v3476 = vunpack.c.l.b16 %v769
    %v3477 = vunpack.c.h.b16 %v769
    %v3478 = vunpack.c.l.b16 %v770
    %v3479 = vunpack.c.h.b16 %v770
    %v3480 = vunpack.c.l.b16 %v771
    %v3481 = vunpack.c.h.b16 %v771
    %v3482 = vunpack.c.l.b16 %v772
    %v3483 = vunpack.c.h.b16 %v772
    %v3484 = vunpack.c.l.b16 %v773
    %v3485 = vunpack.c.h.b16 %v773
    %v3486 = vunpack.c.l.b16 %v774
    %v3487 = vunpack.c.h.b16 %v774
    %v3488 = vunpack.c.l.b16 %v775
    %v3489 = vunpack.c.h.b16 %v775
    %v3490 = vunpack.c.l.b16 %v776
    %v3491 = vunpack.c.h.b16 %v776
    %v3492 = vunpack.c.l.b16 %v777
    %v3493 = vunpack.c.h.b16 %v777
    %v3494 = vunpack.c.l.b16 %v778
    %v3495 = vunpack.c.h.b16 %v778
    %v3496 = vunpack.c.l.b16 %v779
    %v3497 = vunpack.c.h.b16 %v779
    %v3498 = vunpack.c.l.b16 %v780
    %v3499 = vunpack.c.h.b16 %v780
    %v3500 = vunpack.c.l.b16 %v781
    %v3501 = vunpack.c.h.b16 %v781
    %v3502 = vunpack.c.l.b16 %v782
    %v3503 = vunpack.c.h.b16 %v782
    %v3504 = vunpack.c.l.b16 %v783
    %v3505 = vunpack.c.h.b16 %v783
    %v3506 = vunpack.c.l.b16 %v784
    %v3507 = vunpack.c.h.b16 %v784
    %v3508 = vunpack.c.l.b16 %v785
    %v3509 = vunpack.c.h.b16 %v785
    %v3510 = vunpack.c.l.b16 %v786
    %v3511 = vunpack.c.h.b16 %v786
    %v3512 = vunpack.c.l.b16 %v787
    %v3513 = vunpack.c.h.b16 %v787
    %v3514 = vunpack.c.l.b16 %v788
    %v3515 = vunpack.c.h.b16 %v788
    %v3516 = vunpack.c.l.b16 %v789
    %v3517 = vunpack.c.h.b16 %v789
    %v3518 = vunpack.c.l.b16 %v790
    %v3519 = vunpack.c.h.b16 %v790
    %v3520 = vunpack.c.l.b16 %v791
    %v3521 = vunpack.c.h.b16 %v791
    %v3522 = vunpack.c.l.b16 %v792
    %v3523 = vunpack.c.h.b16 %v792
    %v3524 = vunpack.c.l.b16 %v793
    %v3525 = vunpack.c.h.b16 %v793
    %v3526 = vunpack.c.l.b16 %v794
    %v3527 = vunpack.c.h.b16 %v794
    %v3528 = vunpack.c.l.b16 %v795
    %v3529 = vunpack.c.h.b16 %v795
    %v3530 = vunpack.c.l.b16 %v796
    %v3531 = vunpack.c.h.b16 %v796
    %v3532 = vunpack.c.l.b16 %v797
    %v3533 = vunpack.c.h.b16 %v797
    %v3534 = vunpack.c.l.b16 %v798
    %v3535 = vunpack.c.h.b16 %v798
    %v3536 = vunpack.c.l.b16 %v799
    %v3537 = vunpack.c.h.b16 %v799
    %v3538 = vunpack.c.l.b16 %v800
    %v3539 = vunpack.c.h.b16 %v800
    %v3540 = vunpack.c.l.b16 %v801
    %v3541 = vunpack.c.h.b16 %v801
    %v3542 = vunpack.c.l.b16 %v802
    %v3543 = vunpack.c.h.b16 %v802
    %v3544 = vunpack.c.l.b16 %v803
    %v3545 = vunpack.c.h.b16 %v803
    %v3546 = vunpack.c.l.b16 %v804
    %v3547 = vunpack.c.h.b16 %v804
    %v3548 = vunpack.c.l.b16 %v805
    %v3549 = vunpack.c.h.b16 %v805
    %v3550 = vunpack.c.l.b16 %v806
    %v3551 = vunpack.c.h.b16 %v806
    %v3552 = vunpack.c.l.b16 %v807
    %v3553 = vunpack.c.h.b16 %v807
    %v3554 = vunpack.c.l.b16 %v808
    %v3555 = vunpack.c.h.b16 %v808
    %v3556 = vunpack.c.l.b16 %v809
    %v3557 = vunpack.c.h.b16 %v809
    %v3558 = vunpack.c.l.b16 %v810
    %v3559 = vunpack.c.h.b16 %v810
    %v3560 = vunpack.c.l.b16 %v811
    %v3561 = vunpack.c.h.b16 %v811
    %v3562 = vunpack.c.l.b16 %v812
    %v3563 = vunpack.c.h.b16 %v812
    %v3564 = vunpack.c.l.b16 %v813
    %v3565 = vunpack.c.h.b16 %v813
    %v3566 = vunpack.c.l.b16 %v814
    %v3567 = vunpack.c.h.b16 %v814
    %v3568 = vunpack.c.l.b16 %v815
    %v3569 = vunpack.c.h.b16 %v815
    %v3570 = vunpack.c.l.b16 %v816
    %v3571 = vunpack.c.h.b16 %v816
    %v3572 = vunpack.c.l.b16 %v817
    %v3573 = vunpack.c.h.b16 %v817
    %v3574 = vunpack.c.l.b16 %v818
    %v3575 = vunpack.c.h.b16 %v818
    %v3576 = vunpack.c.l.b16 %v819
    %v3577 = vunpack.c.h.b16 %v819
    %v3578 = vunpack.c.l.b16 %v820
    %v3579 = vunpack.c.h.b16 %v820
    %v3580 = vunpack.c.l.b16 %v821
    %v3581 = vunpack.c.h.b16 %v821
    %v3582 = vunpack.c.l.b16 %v822
    %v3583 = vunpack.c.h.b16 %v822
    %v3584 = vunpack.c.l.b16 %v823
    %v3585 = vunpack.c.h.b16 %v823
    %v3586 = vunpack.c.l.b16 %v824
    %v3587 = vunpack.c.h.b16 %v824
    %v3588 = vunpack.c.l.b16 %v825
    %v3589 = vunpack.c.h.b16 %v825
    %v3590 = vunpack.c.l.b16 %v826
    %v3591 = vunpack.c.h.b16 %v826
    %v3592 = vunpack.c.l.b16 %v827
    %v3593 = vunpack.c.h.b16 %v827
    %v3594 = vunpack.c.l.b16 %v828
    %v3595 = vunpack.c.h.b16 %v828
    %v3596 = vunpack.c.l.b16 %v829
    %v3597 = vunpack.c.h.b16 %v829
    %v3598 = vunpack.c.l.b16 %v830
    %v3599 = vunpack.c.h.b16 %v830
    %v3600 = vunpack.c.l.b16 %v831
    %v3601 = vunpack.c.h.b16 %v831
    %v3602 = vunpack.c.l.b16 %v832
    %v3603 = vunpack.c.h.b16 %v832
    %v3604 = vunpack.c.l.b16 %v833
    %v3605 = vunpack.c.h.b16 %v833
    %v3606 = vunpack.c.l.b16 %v834
    %v3607 = vunpack.c.h.b16 %v834
    %v3608 = vunpack.c.l.b16 %v835
    %v3609 = vunpack.c.h.b16 %v835
    %v3610 = vunpack.c.l.b16 %v836
    %v3611 = vunpack.c.h.b16 %v836
    %v3612 = vunpack.c.l.b16 %v837
    %v3613 = vunpack.c.h.b16 %v837
    %v3614 = vunpack.c.l.b16 %v838
    %v3615 = vunpack.c.h.b16 %v838
    %v3616 = vunpack.c.l.b16 %v839
    %v3617 = vunpack.c.h.b16 %v839
    %v3618 = vunpack.c.l.b16 %v840
    %v3619 = vunpack.c.h.b16 %v840
    %v3620 = vunpack.c.l.b16 %v841
    %v3621 = vunpack.c.h.b16 %v841
    %v3622 = vunpack.c.l.b16 %v842
    %v3623 = vunpack.c.h.b16 %v842
    %v3624 = vunpack.c.l.b16 %v843
    %v3625 = vunpack.c.h.b16 %v843
    %v3626 = vunpack.c.l.b16 %v844
    %v3627 = vunpack.c.h.b16 %v844
    %v3628 = vunpack.c.l.b16 %v845
    %v3629 = vunpack.c.h.b16 %v845
    %v3630 = vunpack.c.l.b16 %v846
    %v3631 = vunpack.c.h.b16 %v846
    %v3632 = vunpack.c.l.b16 %v847
    %v3633 = vunpack.c.h.b16 %v847
    %v3634 = vunpack.c.l.b16 %v848
    %v3635 = vunpack.c.h.b16 %v848
    %v3636 = vunpack.c.l.b16 %v849
    %v3637 = vunpack.c.h.b16 %v849
    %v3638 = vunpack.c.l.b16 %v850
    %v3639 = vunpack.c.h.b16 %v850
    %v3640 = vunpack.c.l.b16 %v851
    %v3641 = vunpack.c.h.b16 %v851
    %v3642 = vunpack.c.l.b16 %v852
    %v3643 = vunpack.c.h.b16 %v852
    %v3644 = vunpack.c.l.b16 %v853
    %v3645 = vunpack.c.h.b16 %v853
    %v3646 = vunpack.c.l.b16 %v854
    %v3647 = vunpack.c.h.b16 %v854
    %v3648 = vunpack.c.l.b16 %v855
    %v3649 = vunpack.c.h.b16 %v855
    %v3650 = vunpack.c.l.b16 %v856
    %v3651 = vunpack.c.h.b16 %v856
    %v3652 = vunpack.c.l.b16 %v857
    %v3653 = vunpack.c.h.b16 %v857
    %v3654 = vunpack.c.l.b16 %v858
    %v3655 = vunpack.c.h.b16 %v858
    %v3656 = vunpack.c.l.b16 %v859
    %v3657 = vunpack.c.h.b16 %v859
    %v3658 = vunpack.c.l.b16 %v860
    %v3659 = vunpack.c.h.b16 %v860
    %v3660 = vunpack.c.l.b16 %v861
    %v3661 = vunpack.c.h.b16 %v861
    %v3662 = vunpack.c.l.b16 %v862
    %v3663 = vunpack.c.h.b16 %v862
    %v3664 = vunpack.c.l.b16 %v863
    %v3665 = vunpack.c.h.b16 %v863
    %v3666 = vunpack.c.l.b16 %v864
    %v3667 = vunpack.c.h.b16 %v864
    %v3668 = vunpack.c.l.b16 %v865
    %v3669 = vunpack.c.h.b16 %v865
    %v3670 = vunpack.c.l.b16 %v866
    %v3671 = vunpack.c.h.b16 %v866
    %v3672 = vunpack.c.l.b16 %v867
    %v3673 = vunpack.c.h.b16 %v867
    %v3674 = vunpack.c.l.b16 %v868
    %v3675 = vunpack.c.h.b16 %v868
    %v3676 = vunpack.c.l.b16 %v869
    %v3677 = vunpack.c.h.b16 %v869
    %v3678 = vunpack.c.l.b16 %v870
    %v3679 = vunpack.c.h.b16 %v870
    %v3680 = vunpack.c.l.b16 %v871
    %v3681 = vunpack.c.h.b16 %v871
    %v3682 = vunpack.c.l.b16 %v872
    %v3683 = vunpack.c.h.b16 %v872
    %v3684 = vunpack.c.l.b16 %v873
    %v3685 = vunpack.c.h.b16 %v873
    %v3686 = vunpack.c.l.b16 %v874
    %v3687 = vunpack.c.h.b16 %v874
    %v3688 = vunpack.c.l.b16 %v875
    %v3689 = vunpack.c.h.b16 %v875
    %v3690 = vunpack.c.l.b16 %v876
    %v3691 = vunpack.c.h.b16 %v876
    %v3692 = vunpack.c.l.b16 %v877
    %v3693 = vunpack.c.h.b16 %v877
    %v3694 = vunpack.c.l.b16 %v878
    %v3695 = vunpack.c.h.b16 %v878
    %v3696 = vunpack.c.l.b16 %v879
    %v3697 = vunpack.c.h.b16 %v879
    %v3698 = vunpack.c.l.b16 %v880
    %v3699 = vunpack.c.h.b16 %v880
    %v3700 = vunpack.c.l.b16 %v881
    %v3701 = vunpack.c.h.b16 %v881
    %v3702 = vunpack.c.l.b16 %v882
    %v3703 = vunpack.c.h.b16 %v882
    %v3704 = vunpack.c.l.b16 %v883
    %v3705 = vunpack.c.h.b16 %v883
    %v3706 = vunpack.c.l.b16 %v884
    %v3707 = vunpack.c.h.b16 %v884
    %v3708 = vunpack.c.l.b16 %v885
    %v3709 = vunpack.c.h.b16 %v885
    %v3710 = vunpack.c.l.b16 %v886
    %v3711 = vunpack.c.h.b16 %v886
    %v3712 = vunpack.c.l.b16 %v887
    %v3713 = vunpack.c.h.b16 %v887
    %v3714 = vunpack.c.l.b16 %v888
    %v3715 = vunpack.c.h.b16 %v888
    %v3716 = vunpack.c.l.b16 %v889
    %v3717 = vunpack.c.h.b16 %v889
    %v3718 = vunpack.c.l.b16 %v890
    %v3719 = vunpack.c.h.b16 %v890
    %v3720 = vunpack.c.l.b16 %v891
    %v3721 = vunpack.c.h.b16 %v891
    %v3722 = vunpack.c.l.b16 %v892
    %v3723 = vunpack.c.h.b16 %v892
    %v3724 = vunpack.c.l.b16 %v893
    %v3725 = vunpack.c.h.b16 %v893
    %v3726 = vunpack.c.l.b16 %v894
    %v3727 = vunpack.c.h.b16 %v894
    %v3728 = vunpack.c.l.b16 %v895
    %v3729 = vunpack.c.h.b16 %v895
    %v3730 = vunpack.c.l.b16 %v896
    %v3731 = vunpack.c.h.b16 %v896
    %v3732 = vunpack.c.l.b16 %v897
    %v3733 = vunpack.c.h.b16 %v897
    %v3734 = vunpack.c.l.b16 %v898
    %v3735 = vunpack.c.h.b16 %v898
    %v3736 = vunpack.c.l.b16 %v899
    %v3737 = vunpack.c.h.b16 %v899
    %v3738 = vunpack.c.l.b16 %v900
    %v3739 = vunpack.c.h.b16 %v900
    %v3740 = vunpack.c.l.b16 %v901
    %v3741 = vunpack.c.h.b16 %v901
    %v3742 = vunpack.c.l.b16 %v902
    %v3743 = vunpack.c.h.b16 %v902
    %v3744 = vunpack.c.l.b16 %v903
    %v3745 = vunpack.c.h.b16 %v903
    %v3746 = vunpack.c.l.b16 %v904
    %v3747 = vunpack.c.h.b16 %v904
    %v3748 = vunpack.c.l.b16 %v905
    %v3749 = vunpack.c.h.b16 %v905
    %v3750 = vunpack.c.l.b16 %v906
    %v3751 = vunpack.c.h.b16 %v906
    %v3752 = vunpack.c.l.b16 %v907
    %v3753 = vunpack.c.h.b16 %v907
    %v3754 = vunpack.c.l.b16 %v908
    %v3755 = vunpack.c.h.b16 %v908
    %v3756 = vunpack.c.l.b16 %v909
    %v3757 = vunpack.c.h.b16 %v909
    %v3758 = vunpack.c.l.b16 %v910
    %v3759 = vunpack.c.h.b16 %v910
    %v3760 = vunpack.c.l.b16 %v911
    %v3761 = vunpack.c.h.b16 %v911
    %v3762 = vunpack.c.l.b16 %v912
    %v3763 = vunpack.c.h.b16 %v912
    %v3764 = vunpack.c.l.b16 %v913
    %v3765 = vunpack.c.h.b16 %v913
    %v3766 = vunpack.c.l.b16 %v914
    %v3767 = vunpack.c.h.b16 %v914
    %v3768 = vunpack.c.l.b16 %v915
    %v3769 = vunpack.c.h.b16 %v915
    %v3770 = vunpack.c.l.b16 %v916
    %v3771 = vunpack.c.h.b16 %v916
    %v3772 = vunpack.c.l.b16 %v917
    %v3773 = vunpack.c.h.b16 %v917
    %v3774 = vunpack.c.l.b16 %v918
    %v3775 = vunpack.c.h.b16 %v918
    %v3776 = vunpack.c.l.b16 %v919
    %v3777 = vunpack.c.h.b16 %v919
    %v3778 = vunpack.c.l.b16 %v920
    %v3779 = vunpack.c.h.b16 %v920
    %v3780 = vunpack.c.l.b16 %v921
    %v3781 = vunpack.c.h.b16 %v921
    %v3782 = vunpack.c.l.b16 %v922
    %v3783 = vunpack.c.h.b16 %v922
    %v3784 = vunpack.c.l.b16 %v923
    %v3785 = vunpack.c.h.b16 %v923
    %v3786 = vunpack.c.l.b16 %v924
    %v3787 = vunpack.c.h.b16 %v924
    %v3788 = vunpack.c.l.b16 %v925
    %v3789 = vunpack.c.h.b16 %v925
    %v3790 = vunpack.c.l.b16 %v926
    %v3791 = vunpack.c.h.b16 %v926
    %v3792 = vunpack.c.l.b16 %v927
    %v3793 = vunpack.c.h.b16 %v927
    %v3794 = vunpack.c.l.b16 %v928
    %v3795 = vunpack.c.h.b16 %v928
    %v3796 = vunpack.c.l.b16 %v929
    %v3797 = vunpack.c.h.b16 %v929
    %v3798 = vunpack.c.l.b16 %v930
    %v3799 = vunpack.c.h.b16 %v930
    %v3800 = vunpack.c.l.b16 %v931
    %v3801 = vunpack.c.h.b16 %v931
    %v3802 = vunpack.c.l.b16 %v932
    %v3803 = vunpack.c.h.b16 %v932
    %v3804 = vunpack.c.l.b16 %v933
    %v3805 = vunpack.c.h.b16 %v933
    %v3806 = vunpack.c.l.b16 %v934
    %v3807 = vunpack.c.h.b16 %v934
    %v3808 = vunpack.c.l.b16 %v935
    %v3809 = vunpack.c.h.b16 %v935
    %v3810 = vunpack.c.l.b16 %v936
    %v3811 = vunpack.c.h.b16 %v936
    %v3812 = vunpack.c.l.b16 %v937
    %v3813 = vunpack.c.h.b16 %v937
    %v3814 = vunpack.c.l.b16 %v938
    %v3815 = vunpack.c.h.b16 %v938
    %v3816 = vunpack.c.l.b16 %v939
    %v3817 = vunpack.c.h.b16 %v939
    %v3818 = vunpack.c.l.b16 %v940
    %v3819 = vunpack.c.h.b16 %v940
    %v3820 = vunpack.c.l.b16 %v941
    %v3821 = vunpack.c.h.b16 %v941
    %v3822 = vunpack.c.l.b16 %v942
    %v3823 = vunpack.c.h.b16 %v942
    %v3824 = vunpack.c.l.b16 %v943
    %v3825 = vunpack.c.h.b16 %v943
    %v3826 = vunpack.c.l.b16 %v944
    %v3827 = vunpack.c.h.b16 %v944
    %v3828 = vunpack.c.l.b16 %v945
    %v3829 = vunpack.c.h.b16 %v945
    %v3830 = vunpack.c.l.b16 %v946
    %v3831 = vunpack.c.h.b16 %v946
    %v3832 = vunpack.c.l.b16 %v947
    %v3833 = vunpack.c.h.b16 %v947
    %v3834 = vunpack.c.l.b16 %v948
    %v3835 = vunpack.c.h.b16 %v948
    %v3836 = vunpack.c.l.b16 %v949
    %v3837 = vunpack.c.h.b16 %v949
    %v3838 = vunpack.c.l.b16 %v950
    %v3839 = vunpack.c.h.b16 %v950
    %v3840 = vunpack.c.l.b16 %v951
    %v3841 = vunpack.c.h.b16 %v951
    %v3842 = vunpack.c.l.b16 %v952
    %v3843 = vunpack.c.h.b16 %v952
    %v3844 = vunpack.c.l.b16 %v953
    %v3845 = vunpack.c.h.b16 %v953
    %v3846 = vunpack.c.l.b16 %v954
    %v3847 = vunpack.c.h.b16 %v954
    %v3848 = vunpack.c.l.b16 %v955
    %v3849 = vunpack.c.h.b16 %v955
    %v3850 = vunpack.c.l.b16 %v956
    %v3851 = vunpack.c.h.b16 %v956
    %v3852 = vunpack.c.l.b16 %v957
    %v3853 = vunpack.c.h.b16 %v957
    %v3854 = vunpack.c.l.b16 %v958
    %v3855 = vunpack.c.h.b16 %v958
    %v3856 = vunpack.c.l.b16 %v959
    %v3857 = vunpack.c.h.b16 %v959
    %v3858 = vunpack.c.l.b16 %v960
    %v3859 = vunpack.c.h.b16 %v960
    %v3860 = vunpack.c.l.b16 %v961
    %v3861 = vunpack.c.h.b16 %v961
    %v3862 = vunpack.c.l.b16 %v962
    %v3863 = vunpack.c.h.b16 %v962
    %v3864 = vunpack.c.l.b16 %v963
    %v3865 = vunpack.c.h.b16 %v963
    %v3866 = vunpack.c.l.b16 %v964
    %v3867 = vunpack.c.h.b16 %v964
    %v3868 = vunpack.c.l.b16 %v965
    %v3869 = vunpack.c.h.b16 %v965
    %v3870 = vunpack.c.l.b16 %v966
    %v3871 = vunpack.c.h.b16 %v966
    %v3872 = vunpack.c.l.b16 %v967
    %v3873 = vunpack.c.h.b16 %v967
    %v3874 = vunpack.c.l.b16 %v968
    %v3875 = vunpack.c.h.b16 %v968
    %v3876 = vunpack.c.l.b16 %v969
    %v3877 = vunpack.c.h.b16 %v969
    %v3878 = vunpack.c.l.b16 %v970
    %v3879 = vunpack.c.h.b16 %v970
    %v3880 = vunpack.c.l.b16 %v971
    %v3881 = vunpack.c.h.b16 %v971
    %v3882 = vunpack.c.l.b16 %v972
    %v3883 = vunpack.c.h.b16 %v972
    %v3884 = vunpack.c.l.b16 %v973
    %v3885 = vunpack.c.h.b16 %v973
    %v3886 = vunpack.c.l.b16 %v974
    %v3887 = vunpack.c.h.b16 %v974
    %v3888 = vunpack.c.l.b16 %v975
    %v3889 = vunpack.c.h.b16 %v975
    %v3890 = vunpack.c.l.b16 %v976
    %v3891 = vunpack.c.h.b16 %v976
    %v3892 = vunpack.c.l.b16 %v977
    %v3893 = vunpack.c.h.b16 %v977
    %v3894 = vunpack.c.l.b16 %v978
    %v3895 = vunpack.c.h.b16 %v978
    %v3896 = vunpack.c.l.b16 %v979
    %v3897 = vunpack.c.h.b16 %v979
    %v3898 = vunpack.c.l.b16 %v980
    %v3899 = vunpack.c.h.b16 %v980
    %v3900 = vunpack.c.l.b16 %v981
    %v3901 = vunpack.c.h.b16 %v981
    %v3902 = vunpack.c.l.b16 %v982
    %v3903 = vunpack.c.h.b16 %v982
    %v3904 = vunpack.c.l.b16 %v983
    %v3905 = vunpack.c.h.b16 %v983
    %v3906 = vunpack.c.l.b16 %v984
    %v3907 = vunpack.c.h.b16 %v984
    %v3908 = vunpack.c.l.b16 %v985
    %v3909 = vunpack.c.h.b16 %v985
    %v3910 = vunpack.c.l.b16 %v986
    %v3911 = vunpack.c.h.b16 %v986
    %v3912 = vunpack.c.l.b16 %v987
    %v3913 = vunpack.c.h.b16 %v987
    %v3914 = vunpack.c.l.b16 %v988
    %v3915 = vunpack.c.h.b16 %v988
    %v3916 = vunpack.c.l.b16 %v989
    %v3917 = vunpack.c.h.b16 %v989
    %v3918 = vunpack.c.l.b16 %v990
    %v3919 = vunpack.c.h.b16 %v990
    %v3920 = vunpack.c.l.b16 %v991
    %v3921 = vunpack.c.h.b16 %v991
    %v3922 = vunpack.c.l.b16 %v992
    %v3923 = vunpack.c.h.b16 %v992
    %v3924 = vunpack.c.l.b16 %v993
    %v3925 = vunpack.c.h.b16 %v993
    %v3926 = vunpack.c.l.b16 %v994
    %v3927 = vunpack.c.h.b16 %v994
    %v3928 = vunpack.c.l.b16 %v995
    %v3929 = vunpack.c.h.b16 %v995
    %v3930 = vunpack.c.l.b16 %v996
    %v3931 = vunpack.c.h.b16 %v996
    %v3932 = vunpack.c.l.b16 %v997
    %v3933 = vunpack.c.h.b16 %v997
    %v3934 = vunpack.c.l.b16 %v998
    %v3935 = vunpack.c.h.b16 %v998
    %v3936 = vunpack.c.l.b16 %v999
    %v3937 = vunpack.c.h.b16 %v999
    %v3938 = vunpack.c.l.b16 %v1000
    %v3939 = vunpack.c.h.b16 %v1000
    %v3940 = vunpack.c.l.b16 %v1001
    %v3941 = vunpack.c.h.b16 %v1001
    %v3942 = vunpack.c.l.b16 %v1002
    %v3943 = vunpack.c.h.b16 %v1002
    %v3944 = vunpack.c.l.b16 %v1003
    %v3945 = vunpack.c.h.b16 %v1003
    %v3946 = vunpack.c.l.b16 %v1004
    %v3947 = vunpack.c.h.b16 %v1004
    %v3948 = vunpack.c.l.b16 %v1005
    %v3949 = vunpack.c.h.b16 %v1005
    %v3950 = vunpack.c.l.b16 %v1006
    %v3951 = vunpack.c.h.b16 %v1006
    %v3952 = vunpack.c.l.b16 %v1007
    %v3953 = vunpack.c.h.b16 %v1007
    %v3954 = vunpack.c.l.b16 %v1008
    %v3955 = vunpack.c.h.b16 %v1008
    %v3956 = vunpack.c.l.b16 %v1009
    %v3957 = vunpack.c.h.b16 %v1009
    %v3958 = vunpack.c.l.b16 %v1010
    %v3959 = vunpack.c.h.b16 %v1010
    %v3960 = vunpack.c.l.b16 %v1011
    %v3961 = vunpack.c.h.b16 %v1011
    %v3962 = vunpack.c.l.b16 %v1012
    %v3963 = vunpack.c.h.b16 %v1012
    %v3964 = vunpack.c.l.b16 %v1013
    %v3965 = vunpack.c.h.b16 %v1013
    %v3966 = vunpack.c.l.b16 %v1014
    %v3967 = vunpack.c.h.b16 %v1014
    %v3968 = vunpack.c.l.b16 %v1015
    %v3969 = vunpack.c.h.b16 %v1015
    %v3970 = vunpack.c.l.b16 %v1016
    %v3971 = vunpack.c.h.b16 %v1016
    %v3972 = vunpack.c.l.b16 %v1017
    %v3973 = vunpack.c.h.b16 %v1017
    %v3974 = vunpack.c.l.b16 %v1018
    %v3975 = vunpack.c.h.b16 %v1018
    %v3976 = vunpack.c.l.b16 %v1019
    %v3977 = vunpack.c.h.b16 %v1019
    %v3978 = vunpack.c.l.b16 %v1020
    %v3979 = vunpack.c.h.b16 %v1020
    %v3980 = vunpack.c.l.b16 %v1021
    %v3981 = vunpack.c.h.b16 %v1021
    %v3982 = vunpack.c.l.b16 %v1022
    %v3983 = vunpack.c.h.b16 %v1022
    %v3984 = vunpack.c.l.b16 %v1023
    %v3985 = vunpack.c.h.b16 %v1023
    %v3986 = vunpack.c.l.b16 %v1024
    %v3987 = vunpack.c.h.b16 %v1024
    %v3988 = vunpack.c.l.b16 %v1025
    %v3989 = vunpack.c.h.b16 %v1025
    %v3990 = vunpack.c.l.b16 %v1026
    %v3991 = vunpack.c.h.b16 %v1026
    %v3992 = vunpack.c.l.b16 %v1027
    %v3993 = vunpack.c.h.b16 %v1027
    %v3994 = vunpack.c.l.b16 %v1028
    %v3995 = vunpack.c.h.b16 %v1028
    %v3996 = vunpack.c.l.b16 %v1029
    %v3997 = vunpack.c.h.b16 %v1029
    %v3998 = vunpack.c.l.b16 %v1030
    %v3999 = vunpack.c.h.b16 %v1030
    %v4000 = vunpack.c.l.b16 %v1031
    %v4001 = vunpack.c.h.b16 %v1031
    %v4002 = vunpack.c.l.b16 %v1032
    %v4003 = vunpack.c.h.b16 %v1032
    %v4004 = vunpack.c.l.b16 %v1033
    %v4005 = vunpack.c.h.b16 %v1033
    %v4006 = vunpack.c.l.b16 %v1034
    %v4007 = vunpack.c.h.b16 %v1034
    %v4008 = vunpack.c.l.b16 %v1035
    %v4009 = vunpack.c.h.b16 %v1035
    %v4010 = vunpack.c.l.b16 %v1036
    %v4011 = vunpack.c.h.b16 %v1036
    %v4012 = vunpack.c.l.b16 %v1037
    %v4013 = vunpack.c.h.b16 %v1037
    %v4014 = vunpack.c.l.b16 %v1038
    %v4015 = vunpack.c.h.b16 %v1038
    %v4016 = vunpack.c.l.b16 %v1039
    %v4017 = vunpack.c.h.b16 %v1039
    %v4018 = vunpack.c.l.b16 %v1040
    %v4019 = vunpack.c.h.b16 %v1040
    %v4020 = vunpack.c.l.b16 %v1041
    %v4021 = vunpack.c.h.b16 %v1041
    %v4022 = vunpack.c.l.b16 %v1042
    %v4023 = vunpack.c.h.b16 %v1042
    %v4024 = vunpack.c.l.b16 %v1043
    %v4025 = vunpack.c.h.b16 %v1043
    %v4026 = vunpack.c.l.b16 %v1044
    %v4027 = vunpack.c.h.b16 %v1044
    %v4028 = vunpack.c.l.b16 %v1045
    %v4029 = vunpack.c.h.b16 %v1045
    %v4030 = vunpack.c.l.b16 %v1046
    %v4031 = vunpack.c.h.b16 %v1046
    %v4032 = vunpack.c.l.b16 %v1047
    %v4033 = vunpack.c.h.b16 %v1047
    %v4034 = vunpack.c.l.b16 %v1048
    %v4035 = vunpack.c.h.b16 %v1048
    %v4036 = vunpack.c.l.b16 %v1049
    %v4037 = vunpack.c.h.b16 %v1049
    %v4038 = vunpack.c.l.b16 %v1050
    %v4039 = vunpack.c.h.b16 %v1050
    %v4040 = vunpack.c.l.b16 %v1051
    %v4041 = vunpack.c.h.b16 %v1051
    %v4042 = vunpack.c.l.b16 %v1052
    %v4043 = vunpack.c.h.b16 %v1052
    %v4044 = vunpack.c.l.b16 %v1053
    %v4045 = vunpack.c.h.b16 %v1053
    %v4046 = vunpack.c.l.b16 %v1054
    %v4047 = vunpack.c.h.b16 %v1054
    %v4048 = vunpack.c.l.b16 %v1055
    %v4049 = vunpack.c.h.b16 %v1055
    %v4050 = vunpack.c.l.b16 %v1056
    %v4051 = vunpack.c.h.b16 %v1056
    %v4052 = vunpack.c.l.b16 %v1057
    %v4053 = vunpack.c.h.b16 %v1057
    %v4054 = vunpack.c.l.b16 %v1058
    %v4055 = vunpack.c.h.b16 %v1058
    %v4056 = vunpack.c.l.b16 %v1059
    %v4057 = vunpack.c.h.b16 %v1059
    %v4058 = vunpack.c.l.b16 %v1060
    %v4059 = vunpack.c.h.b16 %v1060
    %v4060 = vunpack.c.l.b16 %v1061
    %v4061 = vunpack.c.h.b16 %v1061
    %v4062 = vunpack.c.l.b16 %v1062
    %v4063 = vunpack.c.h.b16 %v1062
    %v4064 = vunpack.c.l.b16 %v1063
    %v4065 = vunpack.c.h.b16 %v1063
    %v4066 = vunpack.c.l.b16 %v1064
    %v4067 = vunpack.c.h.b16 %v1064
    %v4068 = vunpack.c.l.b16 %v1065
    %v4069 = vunpack.c.h.b16 %v1065
    %v4070 = vunpack.c.l.b16 %v1066
    %v4071 = vunpack.c.h.b16 %v1066
    %v4072 = vunpack.c.l.b16 %v1067
    %v4073 = vunpack.c.h.b16 %v1067
    %v4074 = vunpack.c.l.b16 %v1068
    %v4075 = vunpack.c.h.b16 %v1068
    %v4076 = vunpack.c.l.b16 %v1069
    %v4077 = vunpack.c.h.b16 %v1069
    %v4078 = vunpack.c.l.b16 %v1070
    %v4079 = vunpack.c.h.b16 %v1070
    %v4080 = vunpack.c.l.b16 %v1071
    %v4081 = vunpack.c.h.b16 %v1071
    %v4082 = vunpack.c.l.b16 %v1072
    %v4083 = vunpack.c.h.b16 %v1072
    %v4084 = vunpack.c.l.b16 %v1073
    %v4085 = vunpack.c.h.b16 %v1073
    %v4086 = vunpack.c.l.b16 %v1074
    %v4087 = vunpack.c.h.b16 %v1074
    %v4088 = vunpack.c.l.b16 %v1075
    %v4089 = vunpack.c.h.b16 %v1075
    %v4090 = vunpack.c.l.b16 %v1076
    %v4091 = vunpack.c.h.b16 %v1076
    %v4092 = vunpack.c.l.b16 %v1077
    %v4093 = vunpack.c.h.b16 %v1077
    %v4094 = vunpack.c.l.b16 %v1078
    %v4095 = vunpack.c.h.b16 %v1078
    %v4096 = vunpack.c.l.b16 %v1079
    %v4097 = vunpack.c.h.b16 %v1079
    %v4098 = vunpack.c.l.b16 %v1080
    %v4099 = vunpack.c.h.b16 %v1080
    %v4100 = vunpack.c.l.b16 %v1081
    %v4101 = vunpack.c.h.b16 %v1081
    %v4102 = vunpack.c.l.b16 %v1082
    %v4103 = vunpack.c.h.b16 %v1082
    %v4104 = vunpack.c.l.b16 %v1083
    %v4105 = vunpack.c.h.b16 %v1083
    %v4106 = vunpack.c.l.b16 %v1084
    %v4107 = vunpack.c.h.b16 %v1084
    %v4108 = vunpack.c.l.b16 %v1085
    %v4109 = vunpack.c.h.b16 %v1085
    %v4110 = vunpack.c.l.b16 %v1086
    %v4111 = vunpack.c.h.b16 %v1086
    %v4112 = vunpack.c.l.b16 %v1087
    %v4113 = vunpack.c.h.b16 %v1087
    %v4114 = vunpack.c.l.b16 %v1088
    %v4115 = vunpack.c.h.b16 %v1088
    %v4116 = vunpack.c.l.b16 %v1089
    %v4117 = vunpack.c.h.b16 %v1089
    %v4118 = vunpack.c.l.b16 %v1090
    %v4119 = vunpack.c.h.b16 %v1090
    %v4120 = vunpack.c.l.b16 %v1091
    %v4121 = vunpack.c.h.b16 %v1091
    %v4122 = vunpack.c.l.b16 %v1092
    %v4123 = vunpack.c.h.b16 %v1092
    %v4124 = vunpack.c.l.b16 %v1093
    %v4125 = vunpack.c.h.b16 %v1093
    %v4126 = vunpack.c.l.b16 %v1094
    %v4127 = vunpack.c.h.b16 %v1094
    %v4128 = vunpack.c.l.b16 %v1095
    %v4129 = vunpack.c.h.b16 %v1095
    %v4130 = vunpack.c.l.b16 %v1096
    %v4131 = vunpack.c.h.b16 %v1096
    %v4132 = vunpack.c.l.b16 %v1097
    %v4133 = vunpack.c.h.b16 %v1097
    %v4134 = vunpack.c.l.b16 %v1098
    %v4135 = vunpack.c.h.b16 %v1098
    %v4136 = vunpack.c.l.b16 %v1099
    %v4137 = vunpack.c.h.b16 %v1099
    %v4138 = vunpack.c.l.b16 %v1100
    %v4139 = vunpack.c.h.b16 %v1100
    %v4140 = vunpack.c.l.b16 %v1101
    %v4141 = vunpack.c.h.b16 %v1101
    %v4142 = vunpack.c.l.b16 %v1102
    %v4143 = vunpack.c.h.b16 %v1102
    %v4144 = vunpack.c.l.b16 %v1103
    %v4145 = vunpack.c.h.b16 %v1103
    %v4146 = vunpack.c.l.b16 %v1104
    %v4147 = vunpack.c.h.b16 %v1104
    %v4148 = vunpack.c.l.b16 %v1105
    %v4149 = vunpack.c.h.b16 %v1105
    %v4150 = vunpack.c.l.b16 %v1106
    %v4151 = vunpack.c.h.b16 %v1106
    %v4152 = vunpack.c.l.b16 %v1107
    %v4153 = vunpack.c.h.b16 %v1107
    %v4154 = vunpack.c.l.b16 %v1108
    %v4155 = vunpack.c.h.b16 %v1108
    %v4156 = vunpack.c.l.b16 %v1109
    %v4157 = vunpack.c.h.b16 %v1109
    %v4158 = vunpack.c.l.b16 %v1110
    %v4159 = vunpack.c.h.b16 %v1110
    %v4160 = vunpack.c.l.b16 %v1111
    %v4161 = vunpack.c.h.b16 %v1111
    %v4162 = vunpack.c.l.b16 %v1112
    %v4163 = vunpack.c.h.b16 %v1112
    %v4164 = vunpack.c.l.b16 %v1113
    %v4165 = vunpack.c.h.b16 %v1113
    %v4166 = vunpack.c.l.b16 %v1114
    %v4167 = vunpack.c.h.b16 %v1114
    %v4168 = vpack.c.b16 %v2252, %v2248
    %v4169 = vpack.c.b16 %v2253, %v2249
    %v4170 = vpack.c.b16 %v2254, %v2250
    %v4171 = vpack.c.b16 %v2255, %v2251
    %v4172 = vpack.c.b16 %v2260, %v2256
    %v4173 = vpack.c.b16 %v2261, %v2257
    %v4174 = vpack.c.b16 %v2262, %v2258
    %v4175 = vpack.c.b16 %v2263, %v2259
    %v4176 = vpack.c.b16 %v2268, %v2264
    %v4177 = vpack.c.b16 %v2269, %v2265
    %v4178 = vpack.c.b16 %v2270, %v2266
    %v4179 = vpack.c.b16 %v2271, %v2267
    %v4180 = vpack.c.b16 %v2276, %v2272
    %v4181 = vpack.c.b16 %v2277, %v2273
    %v4182 = vpack.c.b16 %v2278, %v2274
    %v4183 = vpack.c.b16 %v2279, %v2275
    %v4184 = vpack.c.b16 %v2284, %v2280
    %v4185 = vpack.c.b16 %v2285, %v2281
    %v4186 = vpack.c.b16 %v2286, %v2282
    %v4187 = vpack.c.b16 %v2287, %v2283
    %v4188 = vpack.c.b16 %v2292, %v2288
    %v4189 = vpack.c.b16 %v2293, %v2289
    %v4190 = vpack.c.b16 %v2294, %v2290
    %v4191 = vpack.c.b16 %v2295, %v2291
    %v4192 = vpack.c.b16 %v2300, %v2296
    %v4193 = vpack.c.b16 %v2301, %v2297
    %v4194 = vpack.c.b16 %v2302, %v2298
    %v4195 = vpack.c.b16 %v2303, %v2299
    %v4196 = vpack.c.b16 %v2308, %v2304
    %v4197 = vpack.c.b16 %v2309, %v2305
    %v4198 = vpack.c.b16 %v2310, %v2306
    %v4199 = vpack.c.b16 %v2311, %v2307
    %v4200 = vpack.c.b16 %v2316, %v2312
    %v4201 = vpack.c.b16 %v2317, %v2313
    %v4202 = vpack.c.b16 %v2318, %v2314
    %v4203 = vpack.c.b16 %v2319, %v2315
    %v4204 = vpack.c.b16 %v2324, %v2320
    %v4205 = vpack.c.b16 %v2325, %v2321
    %v4206 = vpack.c.b16 %v2326, %v2322
    %v4207 = vpack.c.b16 %v2327, %v2323
    %v4208 = vpack.c.b16 %v2332, %v2328
    %v4209 = vpack.c.b16 %v2333, %v2329
    %v4210 = vpack.c.b16 %v2334, %v2330
    %v4211 = vpack.c.b16 %v2335, %v2331
    %v4212 = vpack.c.b16 %v2340, %v2336
    %v4213 = vpack.c.b16 %v2341, %v2337
    %v4214 = vpack.c.b16 %v2342, %v2338
    %v4215 = vpack.c.b16 %v2343, %v2339
    %v4216 = vpack.c.b16 %v2348, %v2344
    %v4217 = vpack.c.b16 %v2349, %v2345
    %v4218 = vpack.c.b16 %v2350, %v2346
    %v4219 = vpack.c.b16 %v2351, %v2347
    %v4220 = vpack.c.b16 %v2356, %v2352
    %v4221 = vpack.c.b16 %v2357, %v2353
    %v4222 = vpack.c.b16 %v2358, %v2354
    %v4223 = vpack.c.b16 %v2359, %v2355
    %v4224 = vpack.c.b16 %v2364, %v2360
    %v4225 = vpack.c.b16 %v2365, %v2361
    %v4226 = vpack.c.b16 %v2366, %v2362
    %v4227 = vpack.c.b16 %v2367, %v2363
    %v4228 = vpack.c.b16 %v2372, %v2368
    %v4229 = vpack.c.b16 %v2373, %v2369
    %v4230 = vpack.c.b16 %v2374, %v2370
    %v4231 = vpack.c.b16 %v2375, %v2371
    %v4232 = vpack.c.b16 %v2380, %v2376
    %v4233 = vpack.c.b16 %v2381, %v2377
    %v4234 = vpack.c.b16 %v2382, %v2378
    %v4235 = vpack.c.b16 %v2383, %v2379
    %v4236 = vpack.c.b16 %v2388, %v2384
    %v4237 = vpack.c.b16 %v2389, %v2385
    %v4238 = vpack.c.b16 %v2390, %v2386
    %v4239 = vpack.c.b16 %v2391, %v2387
    %v4240 = vpack.c.b16 %v2396, %v2392
    %v4241 = vpack.c.b16 %v2397, %v2393
    %v4242 = vpack.c.b16 %v2398, %v2394
    %v4243 = vpack.c.b16 %v2399, %v2395
    %v4244 = vpack.c.b16 %v2404, %v2400
    %v4245 = vpack.c.b16 %v2405, %v2401
    %v4246 = vpack.c.b16 %v2406, %v2402
    %v4247 = vpack.c.b16 %v2407, %v2403
    %v4248 = vpack.c.b16 %v2412, %v2408
    %v4249 = vpack.c.b16 %v2413, %v2409
    %v4250 = vpack.c.b16 %v2414, %v2410
    %v4251 = vpack.c.b16 %v2415, %v2411
    %v4252 = vpack.c.b16 %v2420, %v2416
    %v4253 = vpack.c.b16 %v2421, %v2417
    %v4254 = vpack.c.b16 %v2422, %v2418
    %v4255 = vpack.c.b16 %v2423, %v2419
    %v4256 = vpack.c.b16 %v2428, %v2424
    %v4257 = vpack.c.b16 %v2429, %v2425
    %v4258 = vpack.c.b16 %v2430, %v2426
    %v4259 = vpack.c.b16 %v2431, %v2427
    %v4260 = vpack.c.b16 %v2436, %v2432
    %v4261 = vpack.c.b16 %v2437, %v2433
    %v4262 = vpack.c.b16 %v2438, %v2434
    %v4263 = vpack.c.b16 %v2439, %v2435
    %v4264 = vpack.c.b16 %v2444, %v2440
    %v4265 = vpack.c.b16 %v2445, %v2441
    %v4266 = vpack.c.b16 %v2446, %v2442
    %v4267 = vpack.c.b16 %v2447, %v2443
    %v4268 = vpack.c.b16 %v2452, %v2448
    %v4269 = vpack.c.b16 %v2453, %v2449
    %v4270 = vpack.c.b16 %v2454, %v2450
    %v4271 = vpack.c.b16 %v2455, %v2451
    %v4272 = vpack.c.b16 %v2460, %v2456
    %v4273 = vpack.c.b16 %v2461, %v2457
    %v4274 = vpack.c.b16 %v2462, %v2458
    %v4275 = vpack.c.b16 %v2463, %v2459
    %v4276 = vpack.c.b16 %v2468, %v2464
    %v4277 = vpack.c.b16 %v2469, %v2465
    %v4278 = vpack.c.b16 %v2470, %v2466
    %v4279 = vpack.c.b16 %v2471, %v2467
    %v4280 = vpack.c.b16 %v2476, %v2472
    %v4281 = vpack.c.b16 %v2477, %v2473
    %v4282 = vpack.c.b16 %v2478, %v2474
    %v4283 = vpack.c.b16 %v2479, %v2475
    %v4284 = vpack.c.b16 %v2484, %v2480
    %v4285 = vpack.c.b16 %v2485, %v2481
    %v4286 = vpack.c.b16 %v2486, %v2482
    %v4287 = vpack.c.b16 %v2487, %v2483
    %v4288 = vpack.c.b16 %v2492, %v2488
    %v4289 = vpack.c.b16 %v2493, %v2489
    %v4290 = vpack.c.b16 %v2494, %v2490
    %v4291 = vpack.c.b16 %v2495, %v2491
    %v4292 = vpack.c.b16 %v2500, %v2496
    %v4293 = vpack.c.b16 %v2501, %v2497
    %v4294 = vpack.c.b16 %v2502, %v2498
    %v4295 = vpack.c.b16 %v2503, %v2499
    %v4296 = vpack.c.b16 %v2508, %v2504
    %v4297 = vpack.c.b16 %v2509, %v2505
    %v4298 = vpack.c.b16 %v2510, %v2506
    %v4299 = vpack.c.b16 %v2511, %v2507
    %v4300 = vpack.c.b16 %v2516, %v2512
    %v4301 = vpack.c.b16 %v2517, %v2513
    %v4302 = vpack.c.b16 %v2518, %v2514
    %v4303 = vpack.c.b16 %v2519, %v2515
    %v4304 = vpack.c.b16 %v2524, %v2520
    %v4305 = vpack.c.b16 %v2525, %v2521
    %v4306 = vpack.c.b16 %v2526, %v2522
    %v4307 = vpack.c.b16 %v2527, %v2523
    %v4308 = vpack.c.b16 %v2532, %v2528
    %v4309 = vpack.c.b16 %v2533, %v2529
    %v4310 = vpack.c.b16 %v2534, %v2530
    %v4311 = vpack.c.b16 %v2535, %v2531
    %v4312 = vpack.c.b16 %v2540, %v2536
    %v4313 = vpack.c.b16 %v2541, %v2537
    %v4314 = vpack.c.b16 %v2542, %v2538
    %v4315 = vpack.c.b16 %v2543, %v2539
    %v4316 = vpack.c.b16 %v2548, %v2544
    %v4317 = vpack.c.b16 %v2549, %v2545
    %v4318 = vpack.c.b16 %v2550, %v2546
    %v4319 = vpack.c.b16 %v2551, %v2547
    %v4320 = vpack.c.b16 %v2556, %v2552
    %v4321 = vpack.c.b16 %v2557, %v2553
    %v4322 = vpack.c.b16 %v2558, %v2554
    %v4323 = vpack.c.b16 %v2559, %v2555
    %v4324 = vpack.c.b16 %v2564, %v2560
    %v4325 = vpack.c.b16 %v2565, %v2561
    %v4326 = vpack.c.b16 %v2566, %v2562
    %v4327 = vpack.c.b16 %v2567, %v2563
    %v4328 = vpack.c.b16 %v2572, %v2568
    %v4329 = vpack.c.b16 %v2573, %v2569
    %v4330 = vpack.c.b16 %v2574, %v2570
    %v4331 = vpack.c.b16 %v2575, %v2571
    %v4332 = vpack.c.b16 %v2580, %v2576
    %v4333 = vpack.c.b16 %v2581, %v2577
    %v4334 = vpack.c.b16 %v2582, %v2578
    %v4335 = vpack.c.b16 %v2583, %v2579
    %v4336 = vpack.c.b16 %v2588, %v2584
    %v4337 = vpack.c.b16 %v2589, %v2585
    %v4338 = vpack.c.b16 %v2590, %v2586
    %v4339 = vpack.c.b16 %v2591, %v2587
    %v4340 = vpack.c.b16 %v2596, %v2592
    %v4341 = vpack.c.b16 %v2597, %v2593
    %v4342 = vpack.c.b16 %v2598, %v2594
    %v4343 = vpack.c.b16 %v2599, %v2595
    %v4344 = vpack.c.b16 %v2604, %v2600
    %v4345 = vpack.c.b16 %v2605, %v2601
    %v4346 = vpack.c.b16 %v2606, %v2602
    %v4347 = vpack.c.b16 %v2607, %v2603
    %v4348 = vpack.c.b16 %v2612, %v2608
    %v4349 = vpack.c.b16 %v2613, %v2609
    %v4350 = vpack.c.b16 %v2614, %v2610
    %v4351 = vpack.c.b16 %v2615, %v2611
    %v4352 = vpack.c.b16 %v2620, %v2616
    %v4353 = vpack.c.b16 %v2621, %v2617
    %v4354 = vpack.c.b16 %v2622, %v2618
    %v4355 = vpack.c.b16 %v2623, %v2619
    %v4356 = vpack.c.b16 %v2628, %v2624
    %v4357 = vpack.c.b16 %v2629, %v2625
    %v4358 = vpack.c.b16 %v2630, %v2626
    %v4359 = vpack.c.b16 %v2631, %v2627
    %v4360 = vpack.c.b16 %v2636, %v2632
    %v4361 = vpack.c.b16 %v2637, %v2633
    %v4362 = vpack.c.b16 %v2638, %v2634
    %v4363 = vpack.c.b16 %v2639, %v2635
    %v4364 = vpack.c.b16 %v2644, %v2640
    %v4365 = vpack.c.b16 %v2645, %v2641
    %v4366 = vpack.c.b16 %v2646, %v2642
    %v4367 = vpack.c.b16 %v2647, %v2643
    %v4368 = vpack.c.b16 %v2652, %v2648
    %v4369 = vpack.c.b16 %v2653, %v2649
    %v4370 = vpack.c.b16 %v2654, %v2650
    %v4371 = vpack.c.b16 %v2655, %v2651
    %v4372 = vpack.c.b16 %v2660, %v2656
    %v4373 = vpack.c.b16 %v2661, %v2657
    %v4374 = vpack.c.b16 %v2662, %v2658
    %v4375 = vpack.c.b16 %v2663, %v2659
    %v4376 = vpack.c.b16 %v2668, %v2664
    %v4377 = vpack.c.b16 %v2669, %v2665
    %v4378 = vpack.c.b16 %v2670, %v2666
    %v4379 = vpack.c.b16 %v2671, %v2667
    %v4380 = vpack.c.b16 %v2676, %v2672
    %v4381 = vpack.c.b16 %v2677, %v2673
    %v4382 = vpack.c.b16 %v2678, %v2674
    %v4383 = vpack.c.b16 %v2679, %v2675
    %v4384 = vpack.c.b16 %v2684, %v2680
    %v4385 = vpack.c.b16 %v2685, %v2681
    %v4386 = vpack.c.b16 %v2686, %v2682
    %v4387 = vpack.c.b16 %v2687, %v2683
    %v4388 = vpack.c.b16 %v2692, %v2688
    %v4389 = vpack.c.b16 %v2693, %v2689
    %v4390 = vpack.c.b16 %v2694, %v2690
    %v4391 = vpack.c.b16 %v2695, %v2691
    %v4392 = vpack.c.b16 %v2700, %v2696
    %v4393 = vpack.c.b16 %v2701, %v2697
    %v4394 = vpack.c.b16 %v2702, %v2698
    %v4395 = vpack.c.b16 %v2703, %v2699
    %v4396 = vpack.c.b16 %v2708, %v2704
    %v4397 = vpack.c.b16 %v2709, %v2705
    %v4398 = vpack.c.b16 %v2710, %v2706
    %v4399 = vpack.c.b16 %v2711, %v2707
    %v4400 = vpack.c.b16 %v2716, %v2712
    %v4401 = vpack.c.b16 %v2717, %v2713
    %v4402 = vpack.c.b16 %v2718, %v2714
    %v4403 = vpack.c.b16 %v2719, %v2715
    %v4404 = vpack.c.b16 %v2724, %v2720
    %v4405 = vpack.c.b16 %v2725, %v2721
    %v4406 = vpack.c.b16 %v2726, %v2722
    %v4407 = vpack.c.b16 %v2727, %v2723
    %v4408 = vpack.c.b16 %v2732, %v2728
    %v4409 = vpack.c.b16 %v2733, %v2729
    %v4410 = vpack.c.b16 %v2734, %v2730
    %v4411 = vpack.c.b16 %v2735, %v2731
    %v4412 = vpack.c.b16 %v2740, %v2736
    %v4413 = vpack.c.b16 %v2741, %v2737
    %v4414 = vpack.c.b16 %v2742, %v2738
    %v4415 = vpack.c.b16 %v2743, %v2739
    %v4416 = vpack.c.b16 %v2748, %v2744
    %v4417 = vpack.c.b16 %v2749, %v2745
    %v4418 = vpack.c.b16 %v2750, %v2746
    %v4419 = vpack.c.b16 %v2751, %v2747
    %v4420 = vpack.c.b16 %v2756, %v2752
    %v4421 = vpack.c.b16 %v2757, %v2753
    %v4422 = vpack.c.b16 %v2758, %v2754
    %v4423 = vpack.c.b16 %v2759, %v2755
    %v4424 = vpack.c.b16 %v2764, %v2760
    %v4425 = vpack.c.b16 %v2765, %v2761
    %v4426 = vpack.c.b16 %v2766, %v2762
    %v4427 = vpack.c.b16 %v2767, %v2763
    %v4428 = vpack.c.b16 %v2772, %v2768
    %v4429 = vpack.c.b16 %v2773, %v2769
    %v4430 = vpack.c.b16 %v2774, %v2770
    %v4431 = vpack.c.b16 %v2775, %v2771
    %v4432 = vpack.c.b16 %v2780, %v2776
    %v4433 = vpack.c.b16 %v2781, %v2777
    %v4434 = vpack.c.b16 %v2782, %v2778
    %v4435 = vpack.c.b16 %v2783, %v2779
    %v4436 = vpack.c.b16 %v2788, %v2784
    %v4437 = vpack.c.b16 %v2789, %v2785
    %v4438 = vpack.c.b16 %v2790, %v2786
    %v4439 = vpack.c.b16 %v2791, %v2787
    %v4440 = vpack.c.b16 %v2796, %v2792
    %v4441 = vpack.c.b16 %v2797, %v2793
    %v4442 = vpack.c.b16 %v2798, %v2794
    %v4443 = vpack.c.b16 %v2799, %v2795
    %v4444 = vpack.c.b16 %v2804, %v2800
    %v4445 = vpack.c.b16 %v2805, %v2801
    %v4446 = vpack.c.b16 %v2806, %v2802
    %v4447 = vpack.c.b16 %v2807, %v2803
    %v4448 = vpack.c.b16 %v2812, %v2808
    %v4449 = vpack.c.b16 %v2813, %v2809
    %v4450 = vpack.c.b16 %v2814, %v2810
    %v4451 = vpack.c.b16 %v2815, %v2811
    %v4452 = vpack.c.b16 %v2820, %v2816
    %v4453 = vpack.c.b16 %v2821, %v2817
    %v4454 = vpack.c.b16 %v2822, %v2818
    %v4455 = vpack.c.b16 %v2823, %v2819
    %v4456 = vpack.c.b16 %v2828, %v2824
    %v4457 = vpack.c.b16 %v2829, %v2825
    %v4458 = vpack.c.b16 %v2830, %v2826
    %v4459 = vpack.c.b16 %v2831, %v2827
    %v4460 = vpack.c.b16 %v2836, %v2832
    %v4461 = vpack.c.b16 %v2837, %v2833
    %v4462 = vpack.c.b16 %v2838, %v2834
    %v4463 = vpack.c.b16 %v2839, %v2835
    %v4464 = vpack.c.b16 %v2844, %v2840
    %v4465 = vpack.c.b16 %v2845, %v2841
    %v4466 = vpack.c.b16 %v2846, %v2842
    %v4467 = vpack.c.b16 %v2847, %v2843
    %v4468 = vpack.c.b16 %v2852, %v2848
    %v4469 = vpack.c.b16 %v2853, %v2849
    %v4470 = vpack.c.b16 %v2854, %v2850
    %v4471 = vpack.c.b16 %v2855, %v2851
    %v4472 = vpack.c.b16 %v2860, %v2856
    %v4473 = vpack.c.b16 %v2861, %v2857
    %v4474 = vpack.c.b16 %v2862, %v2858
    %v4475 = vpack.c.b16 %v2863, %v2859
    %v4476 = vpack.c.b16 %v2868, %v2864
    %v4477 = vpack.c.b16 %v2869, %v2865
    %v4478 = vpack.c.b16 %v2870, %v2866
    %v4479 = vpack.c.b16 %v2871, %v2867
    %v4480 = vpack.c.b16 %v2876, %v2872
    %v4481 = vpack.c.b16 %v2877, %v2873
    %v4482 = vpack.c.b16 %v2878, %v2874
    %v4483 = vpack.c.b16 %v2879, %v2875
    %v4484 = vpack.c.b16 %v2884, %v2880
    %v4485 = vpack.c.b16 %v2885, %v2881
    %v4486 = vpack.c.b16 %v2886, %v2882
    %v4487 = vpack.c.b16 %v2887, %v2883
    %v4488 = vpack.c.b16 %v2892, %v2888
    %v4489 = vpack.c.b16 %v2893, %v2889
    %v4490 = vpack.c.b16 %v2894, %v2890
    %v4491 = vpack.c.b16 %v2895, %v2891
    %v4492 = vpack.c.b16 %v2900, %v2896
    %v4493 = vpack.c.b16 %v2901, %v2897
    %v4494 = vpack.c.b16 %v2902, %v2898
    %v4495 = vpack.c.b16 %v2903, %v2899
    %v4496 = vpack.c.b16 %v2908, %v2904
    %v4497 = vpack.c.b16 %v2909, %v2905
    %v4498 = vpack.c.b16 %v2910, %v2906
    %v4499 = vpack.c.b16 %v2911, %v2907
    %v4500 = vpack.c.b16 %v2916, %v2912
    %v4501 = vpack.c.b16 %v2917, %v2913
    %v4502 = vpack.c.b16 %v2918, %v2914
    %v4503 = vpack.c.b16 %v2919, %v2915
    %v4504 = vpack.c.b16 %v2924, %v2920
    %v4505 = vpack.c.b16 %v2925, %v2921
    %v4506 = vpack.c.b16 %v2926, %v2922
    %v4507 = vpack.c.b16 %v2927, %v2923
    %v4508 = vpack.c.b16 %v2932, %v2928
    %v4509 = vpack.c.b16 %v2933, %v2929
    %v4510 = vpack.c.b16 %v2934, %v2930
    %v4511 = vpack.c.b16 %v2935, %v2931
    %v4512 = vpack.c.b16 %v2940, %v2936
    %v4513 = vpack.c.b16 %v2941, %v2937
    %v4514 = vpack.c.b16 %v2942, %v2938
    %v4515 = vpack.c.b16 %v2943, %v2939
    %v4516 = vpack.c.b16 %v2948, %v2944
    %v4517 = vpack.c.b16 %v2949, %v2945
    %v4518 = vpack.c.b16 %v2950, %v2946
    %v4519 = vpack.c.b16 %v2951, %v2947
    %v4520 = vpack.c.b16 %v2956, %v2952
    %v4521 = vpack.c.b16 %v2957, %v2953
    %v4522 = vpack.c.b16 %v2958, %v2954
    %v4523 = vpack.c.b16 %v2959, %v2955
    %v4524 = vpack.c.b16 %v2964, %v2960
    %v4525 = vpack.c.b16 %v2965, %v2961
    %v4526 = vpack.c.b16 %v2966, %v2962
    %v4527 = vpack.c.b16 %v2967, %v2963
    %v4528 = vpack.c.b16 %v2972, %v2968
    %v4529 = vpack.c.b16 %v2973, %v2969
    %v4530 = vpack.c.b16 %v2974, %v2970
    %v4531 = vpack.c.b16 %v2975, %v2971
    %v4532 = vpack.c.b16 %v2980, %v2976
    %v4533 = vpack.c.b16 %v2981, %v2977
    %v4534 = vpack.c.b16 %v2982, %v2978
    %v4535 = vpack.c.b16 %v2983, %v2979
    %v4536 = vpack.c.b16 %v2988, %v2984
    %v4537 = vpack.c.b16 %v2989, %v2985
    %v4538 = vpack.c.b16 %v2990, %v2986
    %v4539 = vpack.c.b16 %v2991, %v2987
    %v4540 = vpack.c.b16 %v2996, %v2992
    %v4541 = vpack.c.b16 %v2997, %v2993
    %v4542 = vpack.c.b16 %v2998, %v2994
    %v4543 = vpack.c.b16 %v2999, %v2995
    %v4544 = vpack.c.b16 %v3004, %v3000
    %v4545 = vpack.c.b16 %v3005, %v3001
    %v4546 = vpack.c.b16 %v3006, %v3002
    %v4547 = vpack.c.b16 %v3007, %v3003
    %v4548 = vpack.c.b16 %v3012, %v3008
    %v4549 = vpack.c.b16 %v3013, %v3009
    %v4550 = vpack.c.b16 %v3014, %v3010
    %v4551 = vpack.c.b16 %v3015, %v3011
    %v4552 = vpack.c.b16 %v3020, %v3016
    %v4553 = vpack.c.b16 %v3021, %v3017
    %v4554 = vpack.c.b16 %v3022, %v3018
    %v4555 = vpack.c.b16 %v3023, %v3019
    %v4556 = vpack.c.b16 %v3028, %v3024
    %v4557 = vpack.c.b16 %v3029, %v3025
    %v4558 = vpack.c.b16 %v3030, %v3026
    %v4559 = vpack.c.b16 %v3031, %v3027
    %v4560 = vpack.c.b16 %v3036, %v3032
    %v4561 = vpack.c.b16 %v3037, %v3033
    %v4562 = vpack.c.b16 %v3038, %v3034
    %v4563 = vpack.c.b16 %v3039, %v3035
    %v4564 = vpack.c.b16 %v3044, %v3040
    %v4565 = vpack.c.b16 %v3045, %v3041
    %v4566 = vpack.c.b16 %v3046, %v3042
    %v4567 = vpack.c.b16 %v3047, %v3043
    %v4568 = vpack.c.b16 %v3052, %v3048
    %v4569 = vpack.c.b16 %v3053, %v3049
    %v4570 = vpack.c.b16 %v3054, %v3050
    %v4571 = vpack.c.b16 %v3055, %v3051
    %v4572 = vpack.c.b16 %v3060, %v3056
    %v4573 = vpack.c.b16 %v3061, %v3057
    %v4574 = vpack.c.b16 %v3062, %v3058
    %v4575 = vpack.c.b16 %v3063, %v3059
    %v4576 = vpack.c.b16 %v3068, %v3064
    %v4577 = vpack.c.b16 %v3069, %v3065
    %v4578 = vpack.c.b16 %v3070, %v3066
    %v4579 = vpack.c.b16 %v3071, %v3067
    %v4580 = vpack.c.b16 %v3076, %v3072
    %v4581 = vpack.c.b16 %v3077, %v3073
    %v4582 = vpack.c.b16 %v3078, %v3074
    %v4583 = vpack.c.b16 %v3079, %v3075
    %v4584 = vpack.c.b16 %v3084, %v3080
    %v4585 = vpack.c.b16 %v3085, %v3081
    %v4586 = vpack.c.b16 %v3086, %v3082
    %v4587 = vpack.c.b16 %v3087, %v3083
    %v4588 = vpack.c.b16 %v3092, %v3088
    %v4589 = vpack.c.b16 %v3093, %v3089
    %v4590 = vpack.c.b16 %v3094, %v3090
    %v4591 = vpack.c.b16 %v3095, %v3091
    %v4592 = vpack.c.b16 %v3100, %v3096
    %v4593 = vpack.c.b16 %v3101, %v3097
    %v4594 = vpack.c.b16 %v3102, %v3098
    %v4595 = vpack.c.b16 %v3103, %v3099
    %v4596 = vpack.c.b16 %v3108, %v3104
    %v4597 = vpack.c.b16 %v3109, %v3105
    %v4598 = vpack.c.b16 %v3110, %v3106
    %v4599 = vpack.c.b16 %v3111, %v3107
    %v4600 = vpack.c.b16 %v3116, %v3112
    %v4601 = vpack.c.b16 %v3117, %v3113
    %v4602 = vpack.c.b16 %v3118, %v3114
    %v4603 = vpack.c.b16 %v3119, %v3115
    %v4604 = vpack.c.b16 %v3124, %v3120
    %v4605 = vpack.c.b16 %v3125, %v3121
    %v4606 = vpack.c.b16 %v3126, %v3122
    %v4607 = vpack.c.b16 %v3127, %v3123
    %v4608 = vpack.c.b16 %v3132, %v3128
    %v4609 = vpack.c.b16 %v3133, %v3129
    %v4610 = vpack.c.b16 %v3134, %v3130
    %v4611 = vpack.c.b16 %v3135, %v3131
    %v4612 = vpack.c.b16 %v3140, %v3136
    %v4613 = vpack.c.b16 %v3141, %v3137
    %v4614 = vpack.c.b16 %v3142, %v3138
    %v4615 = vpack.c.b16 %v3143, %v3139
    %v4616 = vpack.c.b16 %v3148, %v3144
    %v4617 = vpack.c.b16 %v3149, %v3145
    %v4618 = vpack.c.b16 %v3150, %v3146
    %v4619 = vpack.c.b16 %v3151, %v3147
    %v4620 = vpack.c.b16 %v3156, %v3152
    %v4621 = vpack.c.b16 %v3157, %v3153
    %v4622 = vpack.c.b16 %v3158, %v3154
    %v4623 = vpack.c.b16 %v3159, %v3155
    %v4624 = vpack.c.b16 %v3164, %v3160
    %v4625 = vpack.c.b16 %v3165, %v3161
    %v4626 = vpack.c.b16 %v3166, %v3162
    %v4627 = vpack.c.b16 %v3167, %v3163
    %v4628 = vpack.c.b16 %v3172, %v3168
    %v4629 = vpack.c.b16 %v3173, %v3169
    %v4630 = vpack.c.b16 %v3174, %v3170
    %v4631 = vpack.c.b16 %v3175, %v3171
    %v4632 = vpack.c.b16 %v3180, %v3176
    %v4633 = vpack.c.b16 %v3181, %v3177
    %v4634 = vpack.c.b16 %v3182, %v3178
    %v4635 = vpack.c.b16 %v3183, %v3179
    %v4636 = vpack.c.b16 %v3188, %v3184
    %v4637 = vpack.c.b16 %v3189, %v3185
    %v4638 = vpack.c.b16 %v3190, %v3186
    %v4639 = vpack.c.b16 %v3191, %v3187
    %v4640 = vpack.c.b16 %v3196, %v3192
    %v4641 = vpack.c.b16 %v3197, %v3193
    %v4642 = vpack.c.b16 %v3198, %v3194
    %v4643 = vpack.c.b16 %v3199, %v3195
    %v4644 = vpack.c.b16 %v3204, %v3200
    %v4645 = vpack.c.b16 %v3205, %v3201
    %v4646 = vpack.c.b16 %v3206, %v3202
    %v4647 = vpack.c.b16 %v3207, %v3203
    %v4648 = vpack.c.b16 %v3212, %v3208
    %v4649 = vpack.c.b16 %v3213, %v3209
    %v4650 = vpack.c.b16 %v3214, %v3210
    %v4651 = vpack.c.b16 %v3215, %v3211
    %v4652 = vpack.c.b16 %v3220, %v3216
    %v4653 = vpack.c.b16 %v3221, %v3217
    %v4654 = vpack.c.b16 %v3222, %v3218
    %v4655 = vpack.c.b16 %v3223, %v3219
    %v4656 = vpack.c.b16 %v3228, %v3224
    %v4657 = vpack.c.b16 %v3229, %v3225
    %v4658 = vpack.c.b16 %v3230, %v3226
    %v4659 = vpack.c.b16 %v3231, %v3227
    %v4660 = vpack.c.b16 %v3236, %v3232
    %v4661 = vpack.c.b16 %v3237, %v3233
    %v4662 = vpack.c.b16 %v3238, %v3234
    %v4663 = vpack.c.b16 %v3239, %v3235
    %v4664 = vpack.c.b16 %v3244, %v3240
    %v4665 = vpack.c.b16 %v3245, %v3241
    %v4666 = vpack.c.b16 %v3246, %v3242
    %v4667 = vpack.c.b16 %v3247, %v3243
    %v4668 = vpack.c.b16 %v3252, %v3248
    %v4669 = vpack.c.b16 %v3253, %v3249
    %v4670 = vpack.c.b16 %v3254, %v3250
    %v4671 = vpack.c.b16 %v3255, %v3251
    %v4672 = vpack.c.b16 %v3260, %v3256
    %v4673 = vpack.c.b16 %v3261, %v3257
    %v4674 = vpack.c.b16 %v3262, %v3258
    %v4675 = vpack.c.b16 %v3263, %v3259
    %v4676 = vpack.c.b16 %v3268, %v3264
    %v4677 = vpack.c.b16 %v3269, %v3265
    %v4678 = vpack.c.b16 %v3270, %v3266
    %v4679 = vpack.c.b16 %v3271, %v3267
    %v4680 = vpack.c.b16 %v3276, %v3272
    %v4681 = vpack.c.b16 %v3277, %v3273
    %v4682 = vpack.c.b16 %v3278, %v3274
    %v4683 = vpack.c.b16 %v3279, %v3275
    %v4684 = vpack.c.b16 %v3284, %v3280
    %v4685 = vpack.c.b16 %v3285, %v3281
    %v4686 = vpack.c.b16 %v3286, %v3282
    %v4687 = vpack.c.b16 %v3287, %v3283
    %v4688 = vpack.c.b16 %v3292, %v3288
    %v4689 = vpack.c.b16 %v3293, %v3289
    %v4690 = vpack.c.b16 %v3294, %v3290
    %v4691 = vpack.c.b16 %v3295, %v3291
    %v4692 = vpack.c.b16 %v3300, %v3296
    %v4693 = vpack.c.b16 %v3301, %v3297
    %v4694 = vpack.c.b16 %v3302, %v3298
    %v4695 = vpack.c.b16 %v3303, %v3299
    %v4696 = vpack.c.b16 %v3308, %v3304
    %v4697 = vpack.c.b16 %v3309, %v3305
    %v4698 = vpack.c.b16 %v3310, %v3306
    %v4699 = vpack.c.b16 %v3311, %v3307
    %v4700 = vpack.c.b16 %v3316, %v3312
    %v4701 = vpack.c.b16 %v3317, %v3313
    %v4702 = vpack.c.b16 %v3318, %v3314
    %v4703 = vpack.c.b16 %v3319, %v3315
    %v4704 = vpack.c.b16 %v3324, %v3320
    %v4705 = vpack.c.b16 %v3325, %v3321
    %v4706 = vpack.c.b16 %v3326, %v3322
    %v4707 = vpack.c.b16 %v3327, %v3323
    %v4708 = vpack.c.b16 %v3332, %v3328
    %v4709 = vpack.c.b16 %v3333, %v3329
    %v4710 = vpack.c.b16 %v3334, %v3330
    %v4711 = vpack.c.b16 %v3335, %v3331
    %v4712 = vpack.c.b16 %v3340, %v3336
    %v4713 = vpack.c.b16 %v3341, %v3337
    %v4714 = vpack.c.b16 %v3342, %v3338
    %v4715 = vpack.c.b16 %v3343, %v3339
    %v4716 = vpack.c.b16 %v3348, %v3344
    %v4717 = vpack.c.b16 %v3349, %v3345
    %v4718 = vpack.c.b16 %v3350, %v3346
    %v4719 = vpack.c.b16 %v3351, %v3347
    %v4720 = vpack.c.b16 %v3356, %v3352
    %v4721 = vpack.c.b16 %v3357, %v3353
    %v4722 = vpack.c.b16 %v3358, %v3354
    %v4723 = vpack.c.b16 %v3359, %v3355
    %v4724 = vpack.c.b16 %v3364, %v3360
    %v4725 = vpack.c.b16 %v3365, %v3361
    %v4726 = vpack.c.b16 %v3366, %v3362
    %v4727 = vpack.c.b16 %v3367, %v3363
    %v4728 = vpack.c.b16 %v3372, %v3368
    %v4729 = vpack.c.b16 %v3373, %v3369
    %v4730 = vpack.c.b16 %v3374, %v3370
    %v4731 = vpack.c.b16 %v3375, %v3371
    %v4732 = vpack.c.b16 %v3380, %v3376
    %v4733 = vpack.c.b16 %v3381, %v3377
    %v4734 = vpack.c.b16 %v3382, %v3378
    %v4735 = vpack.c.b16 %v3383, %v3379
    %v4736 = vpack.c.b16 %v3388, %v3384
    %v4737 = vpack.c.b16 %v3389, %v3385
    %v4738 = vpack.c.b16 %v3390, %v3386
    %v4739 = vpack.c.b16 %v3391, %v3387
    %v4740 = vpack.c.b16 %v3396, %v3392
    %v4741 = vpack.c.b16 %v3397, %v3393
    %v4742 = vpack.c.b16 %v3398, %v3394
    %v4743 = vpack.c.b16 %v3399, %v3395
    %v4744 = vpack.c.b16 %v3404, %v3400
    %v4745 = vpack.c.b16 %v3405, %v3401
    %v4746 = vpack.c.b16 %v3406, %v3402
    %v4747 = vpack.c.b16 %v3407, %v3403
    %v4748 = vpack.c.b16 %v3412, %v3408
    %v4749 = vpack.c.b16 %v3413, %v3409
    %v4750 = vpack.c.b16 %v3414, %v3410
    %v4751 = vpack.c.b16 %v3415, %v3411
    %v4752 = vpack.c.b16 %v3420, %v3416
    %v4753 = vpack.c.b16 %v3421, %v3417
    %v4754 = vpack.c.b16 %v3422, %v3418
    %v4755 = vpack.c.b16 %v3423, %v3419
    %v4756 = vpack.c.b16 %v3428, %v3424
    %v4757 = vpack.c.b16 %v3429, %v3425
    %v4758 = vpack.c.b16 %v3430, %v3426
    %v4759 = vpack.c.b16 %v3431, %v3427
    %v4760 = vpack.c.b16 %v3436, %v3432
    %v4761 = vpack.c.b16 %v3437, %v3433
    %v4762 = vpack.c.b16 %v3438, %v3434
    %v4763 = vpack.c.b16 %v3439, %v3435
    %v4764 = vpack.c.b16 %v3444, %v3440
    %v4765 = vpack.c.b16 %v3445, %v3441
    %v4766 = vpack.c.b16 %v3446, %v3442
    %v4767 = vpack.c.b16 %v3447, %v3443
    %v4768 = vpack.c.b16 %v3452, %v3448
    %v4769 = vpack.c.b16 %v3453, %v3449
    %v4770 = vpack.c.b16 %v3454, %v3450
    %v4771 = vpack.c.b16 %v3455, %v3451
    %v4772 = vpack.c.b16 %v3460, %v3456
    %v4773 = vpack.c.b16 %v3461, %v3457
    %v4774 = vpack.c.b16 %v3462, %v3458
    %v4775 = vpack.c.b16 %v3463, %v3459
    %v4776 = vpack.c.b16 %v3468, %v3464
    %v4777 = vpack.c.b16 %v3469, %v3465
    %v4778 = vpack.c.b16 %v3470, %v3466
    %v4779 = vpack.c.b16 %v3471, %v3467
    %v4780 = vpack.c.b16 %v3476, %v3472
    %v4781 = vpack.c.b16 %v3477, %v3473
    %v4782 = vpack.c.b16 %v3478, %v3474
    %v4783 = vpack.c.b16 %v3479, %v3475
    %v4784 = vpack.c.b16 %v3484, %v3480
    %v4785 = vpack.c.b16 %v3485, %v3481
    %v4786 = vpack.c.b16 %v3486, %v3482
    %v4787 = vpack.c.b16 %v3487, %v3483
    %v4788 = vpack.c.b16 %v3492, %v3488
    %v4789 = vpack.c.b16 %v3493, %v3489
    %v4790 = vpack.c.b16 %v3494, %v3490
    %v4791 = vpack.c.b16 %v3495, %v3491
    %v4792 = vpack.c.b16 %v3500, %v3496
    %v4793 = vpack.c.b16 %v3501, %v3497
    %v4794 = vpack.c.b16 %v3502, %v3498
    %v4795 = vpack.c.b16 %v3503, %v3499
    %v4796 = vpack.c.b16 %v3508, %v3504
    %v4797 = vpack.c.b16 %v3509, %v3505
    %v4798 = vpack.c.b16 %v3510, %v3506
    %v4799 = vpack.c.b16 %v3511, %v3507
    %v4800 = vpack.c.b16 %v3516, %v3512
    %v4801 = vpack.c.b16 %v3517, %v3513
    %v4802 = vpack.c.b16 %v3518, %v3514
    %v4803 = vpack.c.b16 %v3519, %v3515
    %v4804 = vpack.c.b16 %v3524, %v3520
    %v4805 = vpack.c.b16 %v3525, %v3521
    %v4806 = vpack.c.b16 %v3526, %v3522
    %v4807 = vpack.c.b16 %v3527, %v3523
    %v4808 = vpack.c.b16 %v3532, %v3528
    %v4809 = vpack.c.b16 %v3533, %v3529
    %v4810 = vpack.c.b16 %v3534, %v3530
    %v4811 = vpack.c.b16 %v3535, %v3531
    %v4812 = vpack.c.b16 %v3540, %v3536
    %v4813 = vpack.c.b16 %v3541, %v3537
    %v4814 = vpack.c.b16 %v3542, %v3538
    %v4815 = vpack.c.b16 %v3543, %v3539
    %v4816 = vpack.c.b16 %v3548, %v3544
    %v4817 = vpack.c.b16 %v3549, %v3545
    %v4818 = vpack.c.b16 %v3550, %v3546
    %v4819 = vpack.c.b16 %v3551, %v3547
    %v4820 = vpack.c.b16 %v3556, %v3552
    %v4821 = vpack.c.b16 %v3557, %v3553
    %v4822 = vpack.c.b16 %v3558, %v3554
    %v4823 = vpack.c.b16 %v3559, %v3555
    %v4824 = vpack.c.b16 %v3564, %v3560
    %v4825 = vpack.c.b16 %v3565, %v3561
    %v4826 = vpack.c.b16 %v3566, %v3562
    %v4827 = vpack.c.b16 %v3567, %v3563
    %v4828 = vpack.c.b16 %v3572, %v3568
    %v4829 = vpack.c.b16 %v3573, %v3569
    %v4830 = vpack.c.b16 %v3574, %v3570
    %v4831 = vpack.c.b16 %v3575, %v3571
    %v4832 = vpack.c.b16 %v3580, %v3576
    %v4833 = vpack.c.b16 %v3581, %v3577
    %v4834 = vpack.c.b16 %v3582, %v3578
    %v4835 = vpack.c.b16 %v3583, %v3579
    %v4836 = vpack.c.b16 %v3588, %v3584
    %v4837 = vpack.c.b16 %v3589, %v3585
    %v4838 = vpack.c.b16 %v3590, %v3586
    %v4839 = vpack.c.b16 %v3591, %v3587
    %v4840 = vpack.c.b16 %v3596, %v3592
    %v4841 = vpack.c.b16 %v3597, %v3593
    %v4842 = vpack.c.b16 %v3598, %v3594
    %v4843 = vpack.c.b16 %v3599, %v3595
    %v4844 = vpack.c.b16 %v3604, %v3600
    %v4845 = vpack.c.b16 %v3605, %v3601
    %v4846 = vpack.c.b16 %v3606, %v3602
    %v4847 = vpack.c.b16 %v3607, %v3603
    %v4848 = vpack.c.b16 %v3612, %v3608
    %v4849 = vpack.c.b16 %v3613, %v3609
    %v4850 = vpack.c.b16 %v3614, %v3610
    %v4851 = vpack.c.b16 %v3615, %v3611
    %v4852 = vpack.c.b16 %v3620, %v3616
    %v4853 = vpack.c.b16 %v3621, %v3617
    %v4854 = vpack.c.b16 %v3622, %v3618
    %v4855 = vpack.c.b16 %v3623, %v3619
    %v4856 = vpack.c.b16 %v3628, %v3624
    %v4857 = vpack.c.b16 %v3629, %v3625
    %v4858 = vpack.c.b16 %v3630, %v3626
    %v4859 = vpack.c.b16 %v3631, %v3627
    %v4860 = vpack.c.b16 %v3636, %v3632
    %v4861 = vpack.c.b16 %v3637, %v3633
    %v4862 = vpack.c.b16 %v3638, %v3634
    %v4863 = vpack.c.b16 %v3639, %v3635
    %v4864 = vpack.c.b16 %v3644, %v3640
    %v4865 = vpack.c.b16 %v3645, %v3641
    %v4866 = vpack.c.b16 %v3646, %v3642
    %v4867 = vpack.c.b16 %v3647, %v3643
    %v4868 = vpack.c.b16 %v3652, %v3648
    %v4869 = vpack.c.b16 %v3653, %v3649
    %v4870 = vpack.c.b16 %v3654, %v3650
    %v4871 = vpack.c.b16 %v3655, %v3651
    %v4872 = vpack.c.b16 %v3660, %v3656
    %v4873 = vpack.c.b16 %v3661, %v3657
    %v4874 = vpack.c.b16 %v3662, %v3658
    %v4875 = vpack.c.b16 %v3663, %v3659
    %v4876 = vpack.c.b16 %v3668, %v3664
    %v4877 = vpack.c.b16 %v3669, %v3665
    %v4878 = vpack.c.b16 %v3670, %v3666
    %v4879 = vpack.c.b16 %v3671, %v3667
    %v4880 = vpack.c.b16 %v3676, %v3672
    %v4881 = vpack.c.b16 %v3677, %v3673
    %v4882 = vpack.c.b16 %v3678, %v3674
    %v4883 = vpack.c.b16 %v3679, %v3675
    %v4884 = vpack.c.b16 %v3684, %v3680
    %v4885 = vpack.c.b16 %v3685, %v3681
    %v4886 = vpack.c.b16 %v3686, %v3682
    %v4887 = vpack.c.b16 %v3687, %v3683
    %v4888 = vpack.c.b16 %v3692, %v3688
    %v4889 = vpack.c.b16 %v3693, %v3689
    %v4890 = vpack.c.b16 %v3694, %v3690
    %v4891 = vpack.c.b16 %v3695, %v3691
    %v4892 = vpack.c.b16 %v3700, %v3696
    %v4893 = vpack.c.b16 %v3701, %v3697
    %v4894 = vpack.c.b16 %v3702, %v3698
    %v4895 = vpack.c.b16 %v3703, %v3699
    %v4896 = vpack.c.b16 %v3708, %v3704
    %v4897 = vpack.c.b16 %v3709, %v3705
    %v4898 = vpack.c.b16 %v3710, %v3706
    %v4899 = vpack.c.b16 %v3711, %v3707
    %v4900 = vpack.c.b16 %v3716, %v3712
    %v4901 = vpack.c.b16 %v3717, %v3713
    %v4902 = vpack.c.b16 %v3718, %v3714
    %v4903 = vpack.c.b16 %v3719, %v3715
    %v4904 = vpack.c.b16 %v3724, %v3720
    %v4905 = vpack.c.b16 %v3725, %v3721
    %v4906 = vpack.c.b16 %v3726, %v3722
    %v4907 = vpack.c.b16 %v3727, %v3723
    %v4908 = vpack.c.b16 %v3732, %v3728
    %v4909 = vpack.c.b16 %v3733, %v3729
    %v4910 = vpack.c.b16 %v3734, %v3730
    %v4911 = vpack.c.b16 %v3735, %v3731
    %v4912 = vpack.c.b16 %v3740, %v3736
    %v4913 = vpack.c.b16 %v3741, %v3737
    %v4914 = vpack.c.b16 %v3742, %v3738
    %v4915 = vpack.c.b16 %v3743, %v3739
    %v4916 = vpack.c.b16 %v3748, %v3744
    %v4917 = vpack.c.b16 %v3749, %v3745
    %v4918 = vpack.c.b16 %v3750, %v3746
    %v4919 = vpack.c.b16 %v3751, %v3747
    %v4920 = vpack.c.b16 %v3756, %v3752
    %v4921 = vpack.c.b16 %v3757, %v3753
    %v4922 = vpack.c.b16 %v3758, %v3754
    %v4923 = vpack.c.b16 %v3759, %v3755
    %v4924 = vpack.c.b16 %v3764, %v3760
    %v4925 = vpack.c.b16 %v3765, %v3761
    %v4926 = vpack.c.b16 %v3766, %v3762
    %v4927 = vpack.c.b16 %v3767, %v3763
    %v4928 = vpack.c.b16 %v3772, %v3768
    %v4929 = vpack.c.b16 %v3773, %v3769
    %v4930 = vpack.c.b16 %v3774, %v3770
    %v4931 = vpack.c.b16 %v3775, %v3771
    %v4932 = vpack.c.b16 %v3780, %v3776
    %v4933 = vpack.c.b16 %v3781, %v3777
    %v4934 = vpack.c.b16 %v3782, %v3778
    %v4935 = vpack.c.b16 %v3783, %v3779
    %v4936 = vpack.c.b16 %v3788, %v3784
    %v4937 = vpack.c.b16 %v3789, %v3785
    %v4938 = vpack.c.b16 %v3790, %v3786
    %v4939 = vpack.c.b16 %v3791, %v3787
    %v4940 = vpack.c.b16 %v3796, %v3792
    %v4941 = vpack.c.b16 %v3797, %v3793
    %v4942 = vpack.c.b16 %v3798, %v3794
    %v4943 = vpack.c.b16 %v3799, %v3795
    %v4944 = vpack.c.b16 %v3804, %v3800
    %v4945 = vpack.c.b16 %v3805, %v3801
    %v4946 = vpack.c.b16 %v3806, %v3802
    %v4947 = vpack.c.b16 %v3807, %v3803
    %v4948 = vpack.c.b16 %v3812, %v3808
    %v4949 = vpack.c.b16 %v3813, %v3809
    %v4950 = vpack.c.b16 %v3814, %v3810
    %v4951 = vpack.c.b16 %v3815, %v3811
    %v4952 = vpack.c.b16 %v3820, %v3816
    %v4953 = vpack.c.b16 %v3821, %v3817
    %v4954 = vpack.c.b16 %v3822, %v3818
    %v4955 = vpack.c.b16 %v3823, %v3819
    %v4956 = vpack.c.b16 %v3828, %v3824
    %v4957 = vpack.c.b16 %v3829, %v3825
    %v4958 = vpack.c.b16 %v3830, %v3826
    %v4959 = vpack.c.b16 %v3831, %v3827
    %v4960 = vpack.c.b16 %v3836, %v3832
    %v4961 = vpack.c.b16 %v3837, %v3833
    %v4962 = vpack.c.b16 %v3838, %v3834
    %v4963 = vpack.c.b16 %v3839, %v3835
    %v4964 = vpack.c.b16 %v3844, %v3840
    %v4965 = vpack.c.b16 %v3845, %v3841
    %v4966 = vpack.c.b16 %v3846, %v3842
    %v4967 = vpack.c.b16 %v3847, %v3843
    %v4968 = vpack.c.b16 %v3852, %v3848
    %v4969 = vpack.c.b16 %v3853, %v3849
    %v4970 = vpack.c.b16 %v3854, %v3850
    %v4971 = vpack.c.b16 %v3855, %v3851
    %v4972 = vpack.c.b16 %v3860, %v3856
    %v4973 = vpack.c.b16 %v3861, %v3857
    %v4974 = vpack.c.b16 %v3862, %v3858
    %v4975 = vpack.c.b16 %v3863, %v3859
    %v4976 = vpack.c.b16 %v3868, %v3864
    %v4977 = vpack.c.b16 %v3869, %v3865
    %v4978 = vpack.c.b16 %v3870, %v3866
    %v4979 = vpack.c.b16 %v3871, %v3867
    %v4980 = vpack.c.b16 %v3876, %v3872
    %v4981 = vpack.c.b16 %v3877, %v3873
    %v4982 = vpack.c.b16 %v3878, %v3874
    %v4983 = vpack.c.b16 %v3879, %v3875
    %v4984 = vpack.c.b16 %v3884, %v3880
    %v4985 = vpack.c.b16 %v3885, %v3881
    %v4986 = vpack.c.b16 %v3886, %v3882
    %v4987 = vpack.c.b16 %v3887, %v3883
    %v4988 = vpack.c.b16 %v3892, %v3888
    %v4989 = vpack.c.b16 %v3893, %v3889
    %v4990 = vpack.c.b16 %v3894, %v3890
    %v4991 = vpack.c.b16 %v3895, %v3891
    %v4992 = vpack.c.b16 %v3900, %v3896
    %v4993 = vpack.c.b16 %v3901, %v3897
    %v4994 = vpack.c.b16 %v3902, %v3898
    %v4995 = vpack.c.b16 %v3903, %v3899
    %v4996 = vpack.c.b16 %v3908, %v3904
    %v4997 = vpack.c.b16 %v3909, %v3905
    %v4998 = vpack.c.b16 %v3910, %v3906
    %v4999 = vpack.c.b16 %v3911, %v3907
    %v5000 = vpack.c.b16 %v3916, %v3912
    %v5001 = vpack.c.b16 %v3917, %v3913
    %v5002 = vpack.c.b16 %v3918, %v3914
    %v5003 = vpack.c.b16 %v3919, %v3915
    %v5004 = vpack.c.b16 %v3924, %v3920
    %v5005 = vpack.c.b16 %v3925, %v3921
    %v5006 = vpack.c.b16 %v3926, %v3922
    %v5007 = vpack.c.b16 %v3927, %v3923
    %v5008 = vpack.c.b16 %v3932, %v3928
    %v5009 = vpack.c.b16 %v3933, %v3929
    %v5010 = vpack.c.b16 %v3934, %v3930
    %v5011 = vpack.c.b16 %v3935, %v3931
    %v5012 = vpack.c.b16 %v3940, %v3936
    %v5013 = vpack.c.b16 %v3941, %v3937
    %v5014 = vpack.c.b16 %v3942, %v3938
    %v5015 = vpack.c.b16 %v3943, %v3939
    %v5016 = vpack.c.b16 %v3948, %v3944
    %v5017 = vpack.c.b16 %v3949, %v3945
    %v5018 = vpack.c.b16 %v3950, %v3946
    %v5019 = vpack.c.b16 %v3951, %v3947
    %v5020 = vpack.c.b16 %v3956, %v3952
    %v5021 = vpack.c.b16 %v3957, %v3953
    %v5022 = vpack.c.b16 %v3958, %v3954
    %v5023 = vpack.c.b16 %v3959, %v3955
    %v5024 = vpack.c.b16 %v3964, %v3960
    %v5025 = vpack.c.b16 %v3965, %v3961
    %v5026 = vpack.c.b16 %v3966, %v3962
    %v5027 = vpack.c.b16 %v3967, %v3963
    %v5028 = vpack.c.b16 %v3972, %v3968
    %v5029 = vpack.c.b16 %v3973, %v3969
    %v5030 = vpack.c.b16 %v3974, %v3970
    %v5031 = vpack.c.b16 %v3975, %v3971
    %v5032 = vpack.c.b16 %v3980, %v3976
    %v5033 = vpack.c.b16 %v3981, %v3977
    %v5034 = vpack.c.b16 %v3982, %v3978
    %v5035 = vpack.c.b16 %v3983, %v3979
    %v5036 = vpack.c.b16 %v3988, %v3984
    %v5037 = vpack.c.b16 %v3989, %v3985
    %v5038 = vpack.c.b16 %v3990, %v3986
    %v5039 = vpack.c.b16 %v3991, %v3987
    %v5040 = vpack.c.b16 %v3996, %v3992
    %v5041 = vpack.c.b16 %v3997, %v3993
    %v5042 = vpack.c.b16 %v3998, %v3994
    %v5043 = vpack.c.b16 %v3999, %v3995
    %v5044 = vpack.c.b16 %v4004, %v4000
    %v5045 = vpack.c.b16 %v4005, %v4001
    %v5046 = vpack.c.b16 %v4006, %v4002
    %v5047 = vpack.c.b16 %v4007, %v4003
    %v5048 = vpack.c.b16 %v4012, %v4008
    %v5049 = vpack.c.b16 %v4013, %v4009
    %v5050 = vpack.c.b16 %v4014, %v4010
    %v5051 = vpack.c.b16 %v4015, %v4011
    %v5052 = vpack.c.b16 %v4020, %v4016
    %v5053 = vpack.c.b16 %v4021, %v4017
    %v5054 = vpack.c.b16 %v4022, %v4018
    %v5055 = vpack.c.b16 %v4023, %v4019
    %v5056 = vpack.c.b16 %v4028, %v4024
    %v5057 = vpack.c.b16 %v4029, %v4025
    %v5058 = vpack.c.b16 %v4030, %v4026
    %v5059 = vpack.c.b16 %v4031, %v4027
    %v5060 = vpack.c.b16 %v4036, %v4032
    %v5061 = vpack.c.b16 %v4037, %v4033
    %v5062 = vpack.c.b16 %v4038, %v4034
    %v5063 = vpack.c.b16 %v4039, %v4035
    %v5064 = vpack.c.b16 %v4044, %v4040
    %v5065 = vpack.c.b16 %v4045, %v4041
    %v5066 = vpack.c.b16 %v4046, %v4042
    %v5067 = vpack.c.b16 %v4047, %v4043
    %v5068 = vpack.c.b16 %v4052, %v4048
    %v5069 = vpack.c.b16 %v4053, %v4049
    %v5070 = vpack.c.b16 %v4054, %v4050
    %v5071 = vpack.c.b16 %v4055, %v4051
    %v5072 = vpack.c.b16 %v4060, %v4056
    %v5073 = vpack.c.b16 %v4061, %v4057
    %v5074 = vpack.c.b16 %v4062, %v4058
    %v5075 = vpack.c.b16 %v4063, %v4059
    %v5076 = vpack.c.b16 %v4068, %v4064
    %v5077 = vpack.c.b16 %v4069, %v4065
    %v5078 = vpack.c.b16 %v4070, %v4066
    %v5079 = vpack.c.b16 %v4071, %v4067
    %v5080 = vpack.c.b16 %v4076, %v4072
    %v5081 = vpack.c.b16 %v4077, %v4073
    %v5082 = vpack.c.b16 %v4078, %v4074
    %v5083 = vpack.c.b16 %v4079, %v4075
    %v5084 = vpack.c.b16 %v4084, %v4080
    %v5085 = vpack.c.b16 %v4085, %v4081
    %v5086 = vpack.c.b16 %v4086, %v4082
    %v5087 = vpack.c.b16 %v4087, %v4083
    %v5088 = vpack.c.b16 %v4092, %v4088
    %v5089 = vpack.c.b16 %v4093, %v4089
    %v5090 = vpack.c.b16 %v4094, %v4090
    %v5091 = vpack.c.b16 %v4095, %v4091
    %v5092 = vpack.c.b16 %v4100, %v4096
    %v5093 = vpack.c.b16 %v4101, %v4097
    %v5094 = vpack.c.b16 %v4102, %v4098
    %v5095 = vpack.c.b16 %v4103, %v4099
    %v5096 = vpack.c.b16 %v4108, %v4104
    %v5097 = vpack.c.b16 %v4109, %v4105
    %v5098 = vpack.c.b16 %v4110, %v4106
    %v5099 = vpack.c.b16 %v4111, %v4107
    %v5100 = vpack.c.b16 %v4116, %v4112
    %v5101 = vpack.c.b16 %v4117, %v4113
    %v5102 = vpack.c.b16 %v4118, %v4114
    %v5103 = vpack.c.b16 %v4119, %v4115
    %v5104 = vpack.c.b16 %v4124, %v4120
    %v5105 = vpack.c.b16 %v4125, %v4121
    %v5106 = vpack.c.b16 %v4126, %v4122
    %v5107 = vpack.c.b16 %v4127, %v4123
    %v5108 = vpack.c.b16 %v4132, %v4128
    %v5109 = vpack.c.b16 %v4133, %v4129
    %v5110 = vpack.c.b16 %v4134, %v4130
    %v5111 = vpack.c.b16 %v4135, %v4131
    %v5112 = vpack.c.b16 %v4140, %v4136
    %v5113 = vpack.c.b16 %v4141, %v4137
    %v5114 = vpack.c.b16 %v4142, %v4138
    %v5115 = vpack.c.b16 %v4143, %v4139
    %v5116 = vpack.c.b16 %v4148, %v4144
    %v5117 = vpack.c.b16 %v4149, %v4145
    %v5118 = vpack.c.b16 %v4150, %v4146
    %v5119 = vpack.c.b16 %v4151, %v4147
    %v5120 = vpack.c.b16 %v4156, %v4152
    %v5121 = vpack.c.b16 %v4157, %v4153
    %v5122 = vpack.c.b16 %v4158, %v4154
    %v5123 = vpack.c.b16 %v4159, %v4155
    %v5124 = vpack.c.b16 %v4164, %v4160
    %v5125 = vpack.c.b16 %v4165, %v4161
    %v5126 = vpack.c.b16 %v4166, %v4162
    %v5127 = vpack.c.b16 %v4167, %v4163
    %6088 = vmatpush.bf16.msra.mxu0 %v4196
    %6089 = vmatpush.bf16.msra.mxu0 %v4192
    %6090 = vmatpush.bf16.msra.mxu0 %v4188
    %6091 = vmatpush.bf16.msra.mxu0 %v4184
    %6092 = vmatpush.bf16.msra.mxu0 %v4180
    %6093 = vmatpush.bf16.msra.mxu0 %v4176
    %6094 = vmatpush.bf16.msra.mxu0 %v4172
    %6095 = vmatpush.bf16.msra.mxu0 %v4168
    %6096 = vmatmul.bf16.gmra.mxu0 %v1222
    %v6097 = vpop.f32.mrf.mxu0
    %v6098 = vadd.f32 %v1178, %v6097
    %v6099 = vpop.f32.mrf.mxu0
    %6100 = vdwg.mxu0
    %6101 = vmatpush.bf16.msra.mxu0 %v4228
    %6102 = vmatpush.bf16.msra.mxu0 %v4224
    %6103 = vmatpush.bf16.msra.mxu0 %v4220
    %6104 = vmatpush.bf16.msra.mxu0 %v4216
    %6105 = vmatpush.bf16.msra.mxu0 %v4212
    %6106 = vmatpush.bf16.msra.mxu0 %v4208
    %6107 = vmatpush.bf16.msra.mxu0 %v4204
    %6108 = vmatpush.bf16.msra.mxu0 %v4200
    %6109 = vmatmul.bf16.gmra.mxu0 %v1223
    %v6110 = vpop.f32.mrf.mxu0
    %v6111 = vadd.f32 %v6098, %v6110
    %v6112 = vpop.f32.mrf.mxu0
    %6113 = vdwg.mxu0
    %6114 = vmatpush.bf16.msra.mxu0 %v4260
    %6115 = vmatpush.bf16.msra.mxu0 %v4256
    %6116 = vmatpush.bf16.msra.mxu0 %v4252
    %6117 = vmatpush.bf16.msra.mxu0 %v4248
    %6118 = vmatpush.bf16.msra.mxu0 %v4244
    %6119 = vmatpush.bf16.msra.mxu0 %v4240
    %6120 = vmatpush.bf16.msra.mxu0 %v4236
    %6121 = vmatpush.bf16.msra.mxu0 %v4232
    %6122 = vmatmul.bf16.gmra.mxu0 %v1224
    %v6123 = vpop.f32.mrf.mxu0
    %v6124 = vadd.f32 %v6111, %v6123
    %v6125 = vpop.f32.mrf.mxu0
    %6126 = vdwg.mxu0
    %6127 = vmatpush.bf16.msra.mxu0 %v4292
    %6128 = vmatpush.bf16.msra.mxu0 %v4288
    %6129 = vmatpush.bf16.msra.mxu0 %v4284
    %6130 = vmatpush.bf16.msra.mxu0 %v4280
    %6131 = vmatpush.bf16.msra.mxu0 %v4276
    %6132 = vmatpush.bf16.msra.mxu0 %v4272
    %6133 = vmatpush.bf16.msra.mxu0 %v4268
    %6134 = vmatpush.bf16.msra.mxu0 %v4264
    %6135 = vmatmul.bf16.gmra.mxu0 %v1225
    %v6136 = vpop.f32.mrf.mxu0
    %v6137 = vadd.f32 %v6124, %v6136
    %v6138 = vpop.f32.mrf.mxu0
    %6139 = vdwg.mxu0
    %6140 = vmatpush.bf16.msra.mxu0 %v4324
    %6141 = vmatpush.bf16.msra.mxu0 %v4320
    %6142 = vmatpush.bf16.msra.mxu0 %v4316
    %6143 = vmatpush.bf16.msra.mxu0 %v4312
    %6144 = vmatpush.bf16.msra.mxu0 %v4308
    %6145 = vmatpush.bf16.msra.mxu0 %v4304
    %6146 = vmatpush.bf16.msra.mxu0 %v4300
    %6147 = vmatpush.bf16.msra.mxu0 %v4296
    %6148 = vmatmul.bf16.gmra.mxu0 %v1226
    %v6149 = vpop.f32.mrf.mxu0
    %v6150 = vadd.f32 %v6137, %v6149
    %v6151 = vpop.f32.mrf.mxu0
    %6152 = vdwg.mxu0
    %6153 = vmatpush.bf16.msra.mxu0 %v4356
    %6154 = vmatpush.bf16.msra.mxu0 %v4352
    %6155 = vmatpush.bf16.msra.mxu0 %v4348
    %6156 = vmatpush.bf16.msra.mxu0 %v4344
    %6157 = vmatpush.bf16.msra.mxu0 %v4340
    %6158 = vmatpush.bf16.msra.mxu0 %v4336
    %6159 = vmatpush.bf16.msra.mxu0 %v4332
    %6160 = vmatpush.bf16.msra.mxu0 %v4328
    %6161 = vmatmul.bf16.gmra.mxu0 %v1227
    %v6162 = vpop.f32.mrf.mxu0
    %v6163 = vadd.f32 %v6150, %v6162
    %v6164 = vpop.f32.mrf.mxu0
    %6165 = vdwg.mxu0
    %6166 = vmatpush.bf16.msra.mxu0 %v4388
    %6167 = vmatpush.bf16.msra.mxu0 %v4384
    %6168 = vmatpush.bf16.msra.mxu0 %v4380
    %6169 = vmatpush.bf16.msra.mxu0 %v4376
    %6170 = vmatpush.bf16.msra.mxu0 %v4372
    %6171 = vmatpush.bf16.msra.mxu0 %v4368
    %6172 = vmatpush.bf16.msra.mxu0 %v4364
    %6173 = vmatpush.bf16.msra.mxu0 %v4360
    %6174 = vmatmul.bf16.gmra.mxu0 %v1228
    %v6175 = vpop.f32.mrf.mxu0
    %v6176 = vadd.f32 %v6163, %v6175
    %v6177 = vpop.f32.mrf.mxu0
    %6178 = vdwg.mxu0
    %6179 = vmatpush.bf16.msra.mxu0 %v4420
    %6180 = vmatpush.bf16.msra.mxu0 %v4416
    %6181 = vmatpush.bf16.msra.mxu0 %v4412
    %6182 = vmatpush.bf16.msra.mxu0 %v4408
    %6183 = vmatpush.bf16.msra.mxu0 %v4404
    %6184 = vmatpush.bf16.msra.mxu0 %v4400
    %6185 = vmatpush.bf16.msra.mxu0 %v4396
    %6186 = vmatpush.bf16.msra.mxu0 %v4392
    %6187 = vmatmul.bf16.gmra.mxu0 %v1229
    %v6188 = vpop.f32.mrf.mxu0
    %v6189 = vadd.f32 %v6176, %v6188
    %v6190 = vpop.f32.mrf.mxu0
    %6191 = vdwg.mxu0
    %6192 = vmatpush.bf16.msra.mxu0 %v4452
    %6193 = vmatpush.bf16.msra.mxu0 %v4448
    %6194 = vmatpush.bf16.msra.mxu0 %v4444
    %6195 = vmatpush.bf16.msra.mxu0 %v4440
    %6196 = vmatpush.bf16.msra.mxu0 %v4436
    %6197 = vmatpush.bf16.msra.mxu0 %v4432
    %6198 = vmatpush.bf16.msra.mxu0 %v4428
    %6199 = vmatpush.bf16.msra.mxu0 %v4424
    %6200 = vmatmul.bf16.gmra.mxu0 %v1232
    %v6201 = vpop.f32.mrf.mxu0
    %v6202 = vadd.f32 %v6189, %v6201
    %v6203 = vpop.f32.mrf.mxu0
    %6204 = vdwg.mxu0
    %6205 = vmatpush.bf16.msra.mxu0 %v4484
    %6206 = vmatpush.bf16.msra.mxu0 %v4480
    %6207 = vmatpush.bf16.msra.mxu0 %v4476
    %6208 = vmatpush.bf16.msra.mxu0 %v4472
    %6209 = vmatpush.bf16.msra.mxu0 %v4468
    %6210 = vmatpush.bf16.msra.mxu0 %v4464
    %6211 = vmatpush.bf16.msra.mxu0 %v4460
    %6212 = vmatpush.bf16.msra.mxu0 %v4456
    %6213 = vmatmul.bf16.gmra.mxu0 %v1233
    %v6214 = vpop.f32.mrf.mxu0
    %v6215 = vadd.f32 %v6202, %v6214
    %v6216 = vpop.f32.mrf.mxu0
    %6217 = vdwg.mxu0
    %6218 = vmatpush.bf16.msra.mxu0 %v4516
    %6219 = vmatpush.bf16.msra.mxu0 %v4512
    %6220 = vmatpush.bf16.msra.mxu0 %v4508
    %6221 = vmatpush.bf16.msra.mxu0 %v4504
    %6222 = vmatpush.bf16.msra.mxu0 %v4500
    %6223 = vmatpush.bf16.msra.mxu0 %v4496
    %6224 = vmatpush.bf16.msra.mxu0 %v4492
    %6225 = vmatpush.bf16.msra.mxu0 %v4488
    %6226 = vmatmul.bf16.gmra.mxu0 %v1234
    %v6227 = vpop.f32.mrf.mxu0
    %v6228 = vadd.f32 %v6215, %v6227
    %v6229 = vpop.f32.mrf.mxu0
    %6230 = vdwg.mxu0
    %6231 = vmatpush.bf16.msra.mxu0 %v4548
    %6232 = vmatpush.bf16.msra.mxu0 %v4544
    %6233 = vmatpush.bf16.msra.mxu0 %v4540
    %6234 = vmatpush.bf16.msra.mxu0 %v4536
    %6235 = vmatpush.bf16.msra.mxu0 %v4532
    %6236 = vmatpush.bf16.msra.mxu0 %v4528
    %6237 = vmatpush.bf16.msra.mxu0 %v4524
    %6238 = vmatpush.bf16.msra.mxu0 %v4520
    %6239 = vmatmul.bf16.gmra.mxu0 %v1235
    %v6240 = vpop.f32.mrf.mxu0
    %v6241 = vadd.f32 %v6228, %v6240
    %v6242 = vpop.f32.mrf.mxu0
    %6243 = vdwg.mxu0
    %6244 = vmatpush.bf16.msra.mxu0 %v4580
    %6245 = vmatpush.bf16.msra.mxu0 %v4576
    %6246 = vmatpush.bf16.msra.mxu0 %v4572
    %6247 = vmatpush.bf16.msra.mxu0 %v4568
    %6248 = vmatpush.bf16.msra.mxu0 %v4564
    %6249 = vmatpush.bf16.msra.mxu0 %v4560
    %6250 = vmatpush.bf16.msra.mxu0 %v4556
    %6251 = vmatpush.bf16.msra.mxu0 %v4552
    %6252 = vmatmul.bf16.gmra.mxu0 %v1236
    %v6253 = vpop.f32.mrf.mxu0
    %v6254 = vadd.f32 %v6241, %v6253
    %v6255 = vpop.f32.mrf.mxu0
    %6256 = vdwg.mxu0
    %6257 = vmatpush.bf16.msra.mxu0 %v4612
    %6258 = vmatpush.bf16.msra.mxu0 %v4608
    %6259 = vmatpush.bf16.msra.mxu0 %v4604
    %6260 = vmatpush.bf16.msra.mxu0 %v4600
    %6261 = vmatpush.bf16.msra.mxu0 %v4596
    %6262 = vmatpush.bf16.msra.mxu0 %v4592
    %6263 = vmatpush.bf16.msra.mxu0 %v4588
    %6264 = vmatpush.bf16.msra.mxu0 %v4584
    %6265 = vmatmul.bf16.gmra.mxu0 %v1237
    %v6266 = vpop.f32.mrf.mxu0
    %v6267 = vadd.f32 %v6254, %v6266
    %v6268 = vpop.f32.mrf.mxu0
    %6269 = vdwg.mxu0
    %6270 = vmatpush.bf16.msra.mxu0 %v4644
    %6271 = vmatpush.bf16.msra.mxu0 %v4640
    %6272 = vmatpush.bf16.msra.mxu0 %v4636
    %6273 = vmatpush.bf16.msra.mxu0 %v4632
    %6274 = vmatpush.bf16.msra.mxu0 %v4628
    %6275 = vmatpush.bf16.msra.mxu0 %v4624
    %6276 = vmatpush.bf16.msra.mxu0 %v4620
    %6277 = vmatpush.bf16.msra.mxu0 %v4616
    %6278 = vmatmul.bf16.gmra.mxu0 %v1238
    %v6279 = vpop.f32.mrf.mxu0
    %v6280 = vadd.f32 %v6267, %v6279
    %v6281 = vpop.f32.mrf.mxu0
    %6282 = vdwg.mxu0
    %6283 = vmatpush.bf16.msra.mxu0 %v4676
    %6284 = vmatpush.bf16.msra.mxu0 %v4672
    %6285 = vmatpush.bf16.msra.mxu0 %v4668
    %6286 = vmatpush.bf16.msra.mxu0 %v4664
    %6287 = vmatpush.bf16.msra.mxu0 %v4660
    %6288 = vmatpush.bf16.msra.mxu0 %v4656
    %6289 = vmatpush.bf16.msra.mxu0 %v4652
    %6290 = vmatpush.bf16.msra.mxu0 %v4648
    %6291 = vmatmul.bf16.gmra.mxu0 %v1239
    %v6292 = vpop.f32.mrf.mxu0
    %v6293 = vadd.f32 %v6280, %v6292
    %v6294 = vpop.f32.mrf.mxu0
    %6295 = vdwg.mxu0
    %6296 = vmatpush.bf16.msra.mxu0 %v4708
    %6297 = vmatpush.bf16.msra.mxu0 %v4704
    %6298 = vmatpush.bf16.msra.mxu0 %v4700
    %6299 = vmatpush.bf16.msra.mxu0 %v4696
    %6300 = vmatpush.bf16.msra.mxu0 %v4692
    %6301 = vmatpush.bf16.msra.mxu0 %v4688
    %6302 = vmatpush.bf16.msra.mxu0 %v4684
    %6303 = vmatpush.bf16.msra.mxu0 %v4680
    %6304 = vmatmul.bf16.gmra.mxu0 %v1242
    %v6305 = vpop.f32.mrf.mxu0
    %v6306 = vadd.f32 %v6293, %v6305
    %v6307 = vpop.f32.mrf.mxu0
    %6308 = vdwg.mxu0
    %6309 = vmatpush.bf16.msra.mxu0 %v4740
    %6310 = vmatpush.bf16.msra.mxu0 %v4736
    %6311 = vmatpush.bf16.msra.mxu0 %v4732
    %6312 = vmatpush.bf16.msra.mxu0 %v4728
    %6313 = vmatpush.bf16.msra.mxu0 %v4724
    %6314 = vmatpush.bf16.msra.mxu0 %v4720
    %6315 = vmatpush.bf16.msra.mxu0 %v4716
    %6316 = vmatpush.bf16.msra.mxu0 %v4712
    %6317 = vmatmul.bf16.gmra.mxu0 %v1243
    %v6318 = vpop.f32.mrf.mxu0
    %v6319 = vadd.f32 %v6306, %v6318
    %v6320 = vpop.f32.mrf.mxu0
    %6321 = vdwg.mxu0
    %6322 = vmatpush.bf16.msra.mxu0 %v4772
    %6323 = vmatpush.bf16.msra.mxu0 %v4768
    %6324 = vmatpush.bf16.msra.mxu0 %v4764
    %6325 = vmatpush.bf16.msra.mxu0 %v4760
    %6326 = vmatpush.bf16.msra.mxu0 %v4756
    %6327 = vmatpush.bf16.msra.mxu0 %v4752
    %6328 = vmatpush.bf16.msra.mxu0 %v4748
    %6329 = vmatpush.bf16.msra.mxu0 %v4744
    %6330 = vmatmul.bf16.gmra.mxu0 %v1244
    %v6331 = vpop.f32.mrf.mxu0
    %v6332 = vadd.f32 %v6319, %v6331
    %v6333 = vpop.f32.mrf.mxu0
    %6334 = vdwg.mxu0
    %6335 = vmatpush.bf16.msra.mxu0 %v4804
    %6336 = vmatpush.bf16.msra.mxu0 %v4800
    %6337 = vmatpush.bf16.msra.mxu0 %v4796
    %6338 = vmatpush.bf16.msra.mxu0 %v4792
    %6339 = vmatpush.bf16.msra.mxu0 %v4788
    %6340 = vmatpush.bf16.msra.mxu0 %v4784
    %6341 = vmatpush.bf16.msra.mxu0 %v4780
    %6342 = vmatpush.bf16.msra.mxu0 %v4776
    %6343 = vmatmul.bf16.gmra.mxu0 %v1245
    %v6344 = vpop.f32.mrf.mxu0
    %v6345 = vadd.f32 %v6332, %v6344
    %v6346 = vpop.f32.mrf.mxu0
    %6347 = vdwg.mxu0
    %6348 = vmatpush.bf16.msra.mxu0 %v4836
    %6349 = vmatpush.bf16.msra.mxu0 %v4832
    %6350 = vmatpush.bf16.msra.mxu0 %v4828
    %6351 = vmatpush.bf16.msra.mxu0 %v4824
    %6352 = vmatpush.bf16.msra.mxu0 %v4820
    %6353 = vmatpush.bf16.msra.mxu0 %v4816
    %6354 = vmatpush.bf16.msra.mxu0 %v4812
    %6355 = vmatpush.bf16.msra.mxu0 %v4808
    %6356 = vmatmul.bf16.gmra.mxu0 %v1246
    %v6357 = vpop.f32.mrf.mxu0
    %v6358 = vadd.f32 %v6345, %v6357
    %v6359 = vpop.f32.mrf.mxu0
    %6360 = vdwg.mxu0
    %6361 = vmatpush.bf16.msra.mxu0 %v4868
    %6362 = vmatpush.bf16.msra.mxu0 %v4864
    %6363 = vmatpush.bf16.msra.mxu0 %v4860
    %6364 = vmatpush.bf16.msra.mxu0 %v4856
    %6365 = vmatpush.bf16.msra.mxu0 %v4852
    %6366 = vmatpush.bf16.msra.mxu0 %v4848
    %6367 = vmatpush.bf16.msra.mxu0 %v4844
    %6368 = vmatpush.bf16.msra.mxu0 %v4840
    %6369 = vmatmul.bf16.gmra.mxu0 %v1247
    %v6370 = vpop.f32.mrf.mxu0
    %v6371 = vadd.f32 %v6358, %v6370
    %v6372 = vpop.f32.mrf.mxu0
    %6373 = vdwg.mxu0
    %6374 = vmatpush.bf16.msra.mxu0 %v4900
    %6375 = vmatpush.bf16.msra.mxu0 %v4896
    %6376 = vmatpush.bf16.msra.mxu0 %v4892
    %6377 = vmatpush.bf16.msra.mxu0 %v4888
    %6378 = vmatpush.bf16.msra.mxu0 %v4884
    %6379 = vmatpush.bf16.msra.mxu0 %v4880
    %6380 = vmatpush.bf16.msra.mxu0 %v4876
    %6381 = vmatpush.bf16.msra.mxu0 %v4872
    %6382 = vmatmul.bf16.gmra.mxu0 %v1248
    %v6383 = vpop.f32.mrf.mxu0
    %v6384 = vadd.f32 %v6371, %v6383
    %v6385 = vpop.f32.mrf.mxu0
    %6386 = vdwg.mxu0
    %6387 = vmatpush.bf16.msra.mxu0 %v4932
    %6388 = vmatpush.bf16.msra.mxu0 %v4928
    %6389 = vmatpush.bf16.msra.mxu0 %v4924
    %6390 = vmatpush.bf16.msra.mxu0 %v4920
    %6391 = vmatpush.bf16.msra.mxu0 %v4916
    %6392 = vmatpush.bf16.msra.mxu0 %v4912
    %6393 = vmatpush.bf16.msra.mxu0 %v4908
    %6394 = vmatpush.bf16.msra.mxu0 %v4904
    %6395 = vmatmul.bf16.gmra.mxu0 %v1249
    %v6396 = vpop.f32.mrf.mxu0
    %v6397 = vadd.f32 %v6384, %v6396
    %v6398 = vpop.f32.mrf.mxu0
    %6399 = vdwg.mxu0
    %6400 = vmatpush.bf16.msra.mxu0 %v4964
    %6401 = vmatpush.bf16.msra.mxu0 %v4960
    %6402 = vmatpush.bf16.msra.mxu0 %v4956
    %6403 = vmatpush.bf16.msra.mxu0 %v4952
    %6404 = vmatpush.bf16.msra.mxu0 %v4948
    %6405 = vmatpush.bf16.msra.mxu0 %v4944
    %6406 = vmatpush.bf16.msra.mxu0 %v4940
    %6407 = vmatpush.bf16.msra.mxu0 %v4936
    %6408 = vmatmul.bf16.gmra.mxu0 %v1252
    %v6409 = vpop.f32.mrf.mxu0
    %v6410 = vadd.f32 %v6397, %v6409
    %v6411 = vpop.f32.mrf.mxu0
    %6412 = vdwg.mxu0
    %6413 = vmatpush.bf16.msra.mxu0 %v4996
    %6414 = vmatpush.bf16.msra.mxu0 %v4992
    %6415 = vmatpush.bf16.msra.mxu0 %v4988
    %6416 = vmatpush.bf16.msra.mxu0 %v4984
    %6417 = vmatpush.bf16.msra.mxu0 %v4980
    %6418 = vmatpush.bf16.msra.mxu0 %v4976
    %6419 = vmatpush.bf16.msra.mxu0 %v4972
    %6420 = vmatpush.bf16.msra.mxu0 %v4968
    %6421 = vmatmul.bf16.gmra.mxu0 %v1253
    %v6422 = vpop.f32.mrf.mxu0
    %v6423 = vadd.f32 %v6410, %v6422
    %v6424 = vpop.f32.mrf.mxu0
    %6425 = vdwg.mxu0
    %6426 = vmatpush.bf16.msra.mxu0 %v5028
    %6427 = vmatpush.bf16.msra.mxu0 %v5024
    %6428 = vmatpush.bf16.msra.mxu0 %v5020
    %6429 = vmatpush.bf16.msra.mxu0 %v5016
    %6430 = vmatpush.bf16.msra.mxu0 %v5012
    %6431 = vmatpush.bf16.msra.mxu0 %v5008
    %6432 = vmatpush.bf16.msra.mxu0 %v5004
    %6433 = vmatpush.bf16.msra.mxu0 %v5000
    %6434 = vmatmul.bf16.gmra.mxu0 %v1254
    %v6435 = vpop.f32.mrf.mxu0
    %v6436 = vadd.f32 %v6423, %v6435
    %v6437 = vpop.f32.mrf.mxu0
    %6438 = vdwg.mxu0
    %6439 = vmatpush.bf16.msra.mxu0 %v5060
    %6440 = vmatpush.bf16.msra.mxu0 %v5056
    %6441 = vmatpush.bf16.msra.mxu0 %v5052
    %6442 = vmatpush.bf16.msra.mxu0 %v5048
    %6443 = vmatpush.bf16.msra.mxu0 %v5044
    %6444 = vmatpush.bf16.msra.mxu0 %v5040
    %6445 = vmatpush.bf16.msra.mxu0 %v5036
    %6446 = vmatpush.bf16.msra.mxu0 %v5032
    %6447 = vmatmul.bf16.gmra.mxu0 %v1255
    %v6448 = vpop.f32.mrf.mxu0
    %v6449 = vadd.f32 %v6436, %v6448
    %v6450 = vpop.f32.mrf.mxu0
    %6451 = vdwg.mxu0
    %6452 = vmatpush.bf16.msra.mxu0 %v5092
    %6453 = vmatpush.bf16.msra.mxu0 %v5088
    %6454 = vmatpush.bf16.msra.mxu0 %v5084
    %6455 = vmatpush.bf16.msra.mxu0 %v5080
    %6456 = vmatpush.bf16.msra.mxu0 %v5076
    %6457 = vmatpush.bf16.msra.mxu0 %v5072
    %6458 = vmatpush.bf16.msra.mxu0 %v5068
    %6459 = vmatpush.bf16.msra.mxu0 %v5064
    %6460 = vmatmul.bf16.gmra.mxu0 %v1256
    %v6461 = vpop.f32.mrf.mxu0
    %v6462 = vadd.f32 %v6449, %v6461
    %v6463 = vpop.f32.mrf.mxu0
    %6464 = vdwg.mxu0
    %6465 = vmatpush.bf16.msra.mxu0 %v5124
    %6466 = vmatpush.bf16.msra.mxu0 %v5120
    %6467 = vmatpush.bf16.msra.mxu0 %v5116
    %6468 = vmatpush.bf16.msra.mxu0 %v5112
    %6469 = vmatpush.bf16.msra.mxu0 %v5108
    %6470 = vmatpush.bf16.msra.mxu0 %v5104
    %6471 = vmatpush.bf16.msra.mxu0 %v5100
    %6472 = vmatpush.bf16.msra.mxu0 %v5096
    %6473 = vmatmul.bf16.gmra.mxu0 %v1257
    %v6474 = vpop.f32.mrf.mxu0
    %v6475 = vadd.f32 %v6462, %v6474
    %v6476 = vpop.f32.mrf.mxu0
    %6477 = vdwg.mxu0
    %6478 = vmatpush.bf16.msra.mxu0 %v4197
    %6479 = vmatpush.bf16.msra.mxu0 %v4193
    %6480 = vmatpush.bf16.msra.mxu0 %v4189
    %6481 = vmatpush.bf16.msra.mxu0 %v4185
    %6482 = vmatpush.bf16.msra.mxu0 %v4181
    %6483 = vmatpush.bf16.msra.mxu0 %v4177
    %6484 = vmatpush.bf16.msra.mxu0 %v4173
    %6485 = vmatpush.bf16.msra.mxu0 %v4169
    %6486 = vmatmul.bf16.gmra.mxu0 %v1222
    %v6487 = vpop.f32.mrf.mxu0
    %v6488 = vadd.f32 %v1191, %v6487
    %v6489 = vpop.f32.mrf.mxu0
    %6490 = vdwg.mxu0
    %6491 = vmatpush.bf16.msra.mxu0 %v4229
    %6492 = vmatpush.bf16.msra.mxu0 %v4225
    %6493 = vmatpush.bf16.msra.mxu0 %v4221
    %6494 = vmatpush.bf16.msra.mxu0 %v4217
    %6495 = vmatpush.bf16.msra.mxu0 %v4213
    %6496 = vmatpush.bf16.msra.mxu0 %v4209
    %6497 = vmatpush.bf16.msra.mxu0 %v4205
    %6498 = vmatpush.bf16.msra.mxu0 %v4201
    %6499 = vmatmul.bf16.gmra.mxu0 %v1223
    %v6500 = vpop.f32.mrf.mxu0
    %v6501 = vadd.f32 %v6488, %v6500
    %v6502 = vpop.f32.mrf.mxu0
    %6503 = vdwg.mxu0
    %6504 = vmatpush.bf16.msra.mxu0 %v4261
    %6505 = vmatpush.bf16.msra.mxu0 %v4257
    %6506 = vmatpush.bf16.msra.mxu0 %v4253
    %6507 = vmatpush.bf16.msra.mxu0 %v4249
    %6508 = vmatpush.bf16.msra.mxu0 %v4245
    %6509 = vmatpush.bf16.msra.mxu0 %v4241
    %6510 = vmatpush.bf16.msra.mxu0 %v4237
    %6511 = vmatpush.bf16.msra.mxu0 %v4233
    %6512 = vmatmul.bf16.gmra.mxu0 %v1224
    %v6513 = vpop.f32.mrf.mxu0
    %v6514 = vadd.f32 %v6501, %v6513
    %v6515 = vpop.f32.mrf.mxu0
    %6516 = vdwg.mxu0
    %6517 = vmatpush.bf16.msra.mxu0 %v4293
    %6518 = vmatpush.bf16.msra.mxu0 %v4289
    %6519 = vmatpush.bf16.msra.mxu0 %v4285
    %6520 = vmatpush.bf16.msra.mxu0 %v4281
    %6521 = vmatpush.bf16.msra.mxu0 %v4277
    %6522 = vmatpush.bf16.msra.mxu0 %v4273
    %6523 = vmatpush.bf16.msra.mxu0 %v4269
    %6524 = vmatpush.bf16.msra.mxu0 %v4265
    %6525 = vmatmul.bf16.gmra.mxu0 %v1225
    %v6526 = vpop.f32.mrf.mxu0
    %v6527 = vadd.f32 %v6514, %v6526
    %v6528 = vpop.f32.mrf.mxu0
    %6529 = vdwg.mxu0
    %6530 = vmatpush.bf16.msra.mxu0 %v4325
    %6531 = vmatpush.bf16.msra.mxu0 %v4321
    %6532 = vmatpush.bf16.msra.mxu0 %v4317
    %6533 = vmatpush.bf16.msra.mxu0 %v4313
    %6534 = vmatpush.bf16.msra.mxu0 %v4309
    %6535 = vmatpush.bf16.msra.mxu0 %v4305
    %6536 = vmatpush.bf16.msra.mxu0 %v4301
    %6537 = vmatpush.bf16.msra.mxu0 %v4297
    %6538 = vmatmul.bf16.gmra.mxu0 %v1226
    %v6539 = vpop.f32.mrf.mxu0
    %v6540 = vadd.f32 %v6527, %v6539
    %v6541 = vpop.f32.mrf.mxu0
    %6542 = vdwg.mxu0
    %6543 = vmatpush.bf16.msra.mxu0 %v4357
    %6544 = vmatpush.bf16.msra.mxu0 %v4353
    %6545 = vmatpush.bf16.msra.mxu0 %v4349
    %6546 = vmatpush.bf16.msra.mxu0 %v4345
    %6547 = vmatpush.bf16.msra.mxu0 %v4341
    %6548 = vmatpush.bf16.msra.mxu0 %v4337
    %6549 = vmatpush.bf16.msra.mxu0 %v4333
    %6550 = vmatpush.bf16.msra.mxu0 %v4329
    %6551 = vmatmul.bf16.gmra.mxu0 %v1227
    %v6552 = vpop.f32.mrf.mxu0
    %v6553 = vadd.f32 %v6540, %v6552
    %v6554 = vpop.f32.mrf.mxu0
    %6555 = vdwg.mxu0
    %6556 = vmatpush.bf16.msra.mxu0 %v4389
    %6557 = vmatpush.bf16.msra.mxu0 %v4385
    %6558 = vmatpush.bf16.msra.mxu0 %v4381
    %6559 = vmatpush.bf16.msra.mxu0 %v4377
    %6560 = vmatpush.bf16.msra.mxu0 %v4373
    %6561 = vmatpush.bf16.msra.mxu0 %v4369
    %6562 = vmatpush.bf16.msra.mxu0 %v4365
    %6563 = vmatpush.bf16.msra.mxu0 %v4361
    %6564 = vmatmul.bf16.gmra.mxu0 %v1228
    %v6565 = vpop.f32.mrf.mxu0
    %v6566 = vadd.f32 %v6553, %v6565
    %v6567 = vpop.f32.mrf.mxu0
    %6568 = vdwg.mxu0
    %6569 = vmatpush.bf16.msra.mxu0 %v4421
    %6570 = vmatpush.bf16.msra.mxu0 %v4417
    %6571 = vmatpush.bf16.msra.mxu0 %v4413
    %6572 = vmatpush.bf16.msra.mxu0 %v4409
    %6573 = vmatpush.bf16.msra.mxu0 %v4405
    %6574 = vmatpush.bf16.msra.mxu0 %v4401
    %6575 = vmatpush.bf16.msra.mxu0 %v4397
    %6576 = vmatpush.bf16.msra.mxu0 %v4393
    %6577 = vmatmul.bf16.gmra.mxu0 %v1229
    %v6578 = vpop.f32.mrf.mxu0
    %v6579 = vadd.f32 %v6566, %v6578
    %v6580 = vpop.f32.mrf.mxu0
    %6581 = vdwg.mxu0
    %6582 = vmatpush.bf16.msra.mxu0 %v4453
    %6583 = vmatpush.bf16.msra.mxu0 %v4449
    %6584 = vmatpush.bf16.msra.mxu0 %v4445
    %6585 = vmatpush.bf16.msra.mxu0 %v4441
    %6586 = vmatpush.bf16.msra.mxu0 %v4437
    %6587 = vmatpush.bf16.msra.mxu0 %v4433
    %6588 = vmatpush.bf16.msra.mxu0 %v4429
    %6589 = vmatpush.bf16.msra.mxu0 %v4425
    %6590 = vmatmul.bf16.gmra.mxu0 %v1232
    %v6591 = vpop.f32.mrf.mxu0
    %v6592 = vadd.f32 %v6579, %v6591
    %v6593 = vpop.f32.mrf.mxu0
    %6594 = vdwg.mxu0
    %6595 = vmatpush.bf16.msra.mxu0 %v4485
    %6596 = vmatpush.bf16.msra.mxu0 %v4481
    %6597 = vmatpush.bf16.msra.mxu0 %v4477
    %6598 = vmatpush.bf16.msra.mxu0 %v4473
    %6599 = vmatpush.bf16.msra.mxu0 %v4469
    %6600 = vmatpush.bf16.msra.mxu0 %v4465
    %6601 = vmatpush.bf16.msra.mxu0 %v4461
    %6602 = vmatpush.bf16.msra.mxu0 %v4457
    %6603 = vmatmul.bf16.gmra.mxu0 %v1233
    %v6604 = vpop.f32.mrf.mxu0
    %v6605 = vadd.f32 %v6592, %v6604
    %v6606 = vpop.f32.mrf.mxu0
    %6607 = vdwg.mxu0
    %6608 = vmatpush.bf16.msra.mxu0 %v4517
    %6609 = vmatpush.bf16.msra.mxu0 %v4513
    %6610 = vmatpush.bf16.msra.mxu0 %v4509
    %6611 = vmatpush.bf16.msra.mxu0 %v4505
    %6612 = vmatpush.bf16.msra.mxu0 %v4501
    %6613 = vmatpush.bf16.msra.mxu0 %v4497
    %6614 = vmatpush.bf16.msra.mxu0 %v4493
    %6615 = vmatpush.bf16.msra.mxu0 %v4489
    %6616 = vmatmul.bf16.gmra.mxu0 %v1234
    %v6617 = vpop.f32.mrf.mxu0
    %v6618 = vadd.f32 %v6605, %v6617
    %v6619 = vpop.f32.mrf.mxu0
    %6620 = vdwg.mxu0
    %6621 = vmatpush.bf16.msra.mxu0 %v4549
    %6622 = vmatpush.bf16.msra.mxu0 %v4545
    %6623 = vmatpush.bf16.msra.mxu0 %v4541
    %6624 = vmatpush.bf16.msra.mxu0 %v4537
    %6625 = vmatpush.bf16.msra.mxu0 %v4533
    %6626 = vmatpush.bf16.msra.mxu0 %v4529
    %6627 = vmatpush.bf16.msra.mxu0 %v4525
    %6628 = vmatpush.bf16.msra.mxu0 %v4521
    %6629 = vmatmul.bf16.gmra.mxu0 %v1235
    %v6630 = vpop.f32.mrf.mxu0
    %v6631 = vadd.f32 %v6618, %v6630
    %v6632 = vpop.f32.mrf.mxu0
    %6633 = vdwg.mxu0
    %6634 = vmatpush.bf16.msra.mxu0 %v4581
    %6635 = vmatpush.bf16.msra.mxu0 %v4577
    %6636 = vmatpush.bf16.msra.mxu0 %v4573
    %6637 = vmatpush.bf16.msra.mxu0 %v4569
    %6638 = vmatpush.bf16.msra.mxu0 %v4565
    %6639 = vmatpush.bf16.msra.mxu0 %v4561
    %6640 = vmatpush.bf16.msra.mxu0 %v4557
    %6641 = vmatpush.bf16.msra.mxu0 %v4553
    %6642 = vmatmul.bf16.gmra.mxu0 %v1236
    %v6643 = vpop.f32.mrf.mxu0
    %v6644 = vadd.f32 %v6631, %v6643
    %v6645 = vpop.f32.mrf.mxu0
    %6646 = vdwg.mxu0
    %6647 = vmatpush.bf16.msra.mxu0 %v4613
    %6648 = vmatpush.bf16.msra.mxu0 %v4609
    %6649 = vmatpush.bf16.msra.mxu0 %v4605
    %6650 = vmatpush.bf16.msra.mxu0 %v4601
    %6651 = vmatpush.bf16.msra.mxu0 %v4597
    %6652 = vmatpush.bf16.msra.mxu0 %v4593
    %6653 = vmatpush.bf16.msra.mxu0 %v4589
    %6654 = vmatpush.bf16.msra.mxu0 %v4585
    %6655 = vmatmul.bf16.gmra.mxu0 %v1237
    %v6656 = vpop.f32.mrf.mxu0
    %v6657 = vadd.f32 %v6644, %v6656
    %v6658 = vpop.f32.mrf.mxu0
    %6659 = vdwg.mxu0
    %6660 = vmatpush.bf16.msra.mxu0 %v4645
    %6661 = vmatpush.bf16.msra.mxu0 %v4641
    %6662 = vmatpush.bf16.msra.mxu0 %v4637
    %6663 = vmatpush.bf16.msra.mxu0 %v4633
    %6664 = vmatpush.bf16.msra.mxu0 %v4629
    %6665 = vmatpush.bf16.msra.mxu0 %v4625
    %6666 = vmatpush.bf16.msra.mxu0 %v4621
    %6667 = vmatpush.bf16.msra.mxu0 %v4617
    %6668 = vmatmul.bf16.gmra.mxu0 %v1238
    %v6669 = vpop.f32.mrf.mxu0
    %v6670 = vadd.f32 %v6657, %v6669
    %v6671 = vpop.f32.mrf.mxu0
    %6672 = vdwg.mxu0
    %6673 = vmatpush.bf16.msra.mxu0 %v4677
    %6674 = vmatpush.bf16.msra.mxu0 %v4673
    %6675 = vmatpush.bf16.msra.mxu0 %v4669
    %6676 = vmatpush.bf16.msra.mxu0 %v4665
    %6677 = vmatpush.bf16.msra.mxu0 %v4661
    %6678 = vmatpush.bf16.msra.mxu0 %v4657
    %6679 = vmatpush.bf16.msra.mxu0 %v4653
    %6680 = vmatpush.bf16.msra.mxu0 %v4649
    %6681 = vmatmul.bf16.gmra.mxu0 %v1239
    %v6682 = vpop.f32.mrf.mxu0
    %v6683 = vadd.f32 %v6670, %v6682
    %v6684 = vpop.f32.mrf.mxu0
    %6685 = vdwg.mxu0
    %6686 = vmatpush.bf16.msra.mxu0 %v4709
    %6687 = vmatpush.bf16.msra.mxu0 %v4705
    %6688 = vmatpush.bf16.msra.mxu0 %v4701
    %6689 = vmatpush.bf16.msra.mxu0 %v4697
    %6690 = vmatpush.bf16.msra.mxu0 %v4693
    %6691 = vmatpush.bf16.msra.mxu0 %v4689
    %6692 = vmatpush.bf16.msra.mxu0 %v4685
    %6693 = vmatpush.bf16.msra.mxu0 %v4681
    %6694 = vmatmul.bf16.gmra.mxu0 %v1242
    %v6695 = vpop.f32.mrf.mxu0
    %v6696 = vadd.f32 %v6683, %v6695
    %v6697 = vpop.f32.mrf.mxu0
    %6698 = vdwg.mxu0
    %6699 = vmatpush.bf16.msra.mxu0 %v4741
    %6700 = vmatpush.bf16.msra.mxu0 %v4737
    %6701 = vmatpush.bf16.msra.mxu0 %v4733
    %6702 = vmatpush.bf16.msra.mxu0 %v4729
    %6703 = vmatpush.bf16.msra.mxu0 %v4725
    %6704 = vmatpush.bf16.msra.mxu0 %v4721
    %6705 = vmatpush.bf16.msra.mxu0 %v4717
    %6706 = vmatpush.bf16.msra.mxu0 %v4713
    %6707 = vmatmul.bf16.gmra.mxu0 %v1243
    %v6708 = vpop.f32.mrf.mxu0
    %v6709 = vadd.f32 %v6696, %v6708
    %v6710 = vpop.f32.mrf.mxu0
    %6711 = vdwg.mxu0
    %6712 = vmatpush.bf16.msra.mxu0 %v4773
    %6713 = vmatpush.bf16.msra.mxu0 %v4769
    %6714 = vmatpush.bf16.msra.mxu0 %v4765
    %6715 = vmatpush.bf16.msra.mxu0 %v4761
    %6716 = vmatpush.bf16.msra.mxu0 %v4757
    %6717 = vmatpush.bf16.msra.mxu0 %v4753
    %6718 = vmatpush.bf16.msra.mxu0 %v4749
    %6719 = vmatpush.bf16.msra.mxu0 %v4745
    %6720 = vmatmul.bf16.gmra.mxu0 %v1244
    %v6721 = vpop.f32.mrf.mxu0
    %v6722 = vadd.f32 %v6709, %v6721
    %v6723 = vpop.f32.mrf.mxu0
    %6724 = vdwg.mxu0
    %6725 = vmatpush.bf16.msra.mxu0 %v4805
    %6726 = vmatpush.bf16.msra.mxu0 %v4801
    %6727 = vmatpush.bf16.msra.mxu0 %v4797
    %6728 = vmatpush.bf16.msra.mxu0 %v4793
    %6729 = vmatpush.bf16.msra.mxu0 %v4789
    %6730 = vmatpush.bf16.msra.mxu0 %v4785
    %6731 = vmatpush.bf16.msra.mxu0 %v4781
    %6732 = vmatpush.bf16.msra.mxu0 %v4777
    %6733 = vmatmul.bf16.gmra.mxu0 %v1245
    %v6734 = vpop.f32.mrf.mxu0
    %v6735 = vadd.f32 %v6722, %v6734
    %v6736 = vpop.f32.mrf.mxu0
    %6737 = vdwg.mxu0
    %6738 = vmatpush.bf16.msra.mxu0 %v4837
    %6739 = vmatpush.bf16.msra.mxu0 %v4833
    %6740 = vmatpush.bf16.msra.mxu0 %v4829
    %6741 = vmatpush.bf16.msra.mxu0 %v4825
    %6742 = vmatpush.bf16.msra.mxu0 %v4821
    %6743 = vmatpush.bf16.msra.mxu0 %v4817
    %6744 = vmatpush.bf16.msra.mxu0 %v4813
    %6745 = vmatpush.bf16.msra.mxu0 %v4809
    %6746 = vmatmul.bf16.gmra.mxu0 %v1246
    %v6747 = vpop.f32.mrf.mxu0
    %v6748 = vadd.f32 %v6735, %v6747
    %v6749 = vpop.f32.mrf.mxu0
    %6750 = vdwg.mxu0
    %6751 = vmatpush.bf16.msra.mxu0 %v4869
    %6752 = vmatpush.bf16.msra.mxu0 %v4865
    %6753 = vmatpush.bf16.msra.mxu0 %v4861
    %6754 = vmatpush.bf16.msra.mxu0 %v4857
    %6755 = vmatpush.bf16.msra.mxu0 %v4853
    %6756 = vmatpush.bf16.msra.mxu0 %v4849
    %6757 = vmatpush.bf16.msra.mxu0 %v4845
    %6758 = vmatpush.bf16.msra.mxu0 %v4841
    %6759 = vmatmul.bf16.gmra.mxu0 %v1247
    %v6760 = vpop.f32.mrf.mxu0
    %v6761 = vadd.f32 %v6748, %v6760
    %v6762 = vpop.f32.mrf.mxu0
    %6763 = vdwg.mxu0
    %6764 = vmatpush.bf16.msra.mxu0 %v4901
    %6765 = vmatpush.bf16.msra.mxu0 %v4897
    %6766 = vmatpush.bf16.msra.mxu0 %v4893
    %6767 = vmatpush.bf16.msra.mxu0 %v4889
    %6768 = vmatpush.bf16.msra.mxu0 %v4885
    %6769 = vmatpush.bf16.msra.mxu0 %v4881
    %6770 = vmatpush.bf16.msra.mxu0 %v4877
    %6771 = vmatpush.bf16.msra.mxu0 %v4873
    %6772 = vmatmul.bf16.gmra.mxu0 %v1248
    %v6773 = vpop.f32.mrf.mxu0
    %v6774 = vadd.f32 %v6761, %v6773
    %v6775 = vpop.f32.mrf.mxu0
    %6776 = vdwg.mxu0
    %6777 = vmatpush.bf16.msra.mxu0 %v4933
    %6778 = vmatpush.bf16.msra.mxu0 %v4929
    %6779 = vmatpush.bf16.msra.mxu0 %v4925
    %6780 = vmatpush.bf16.msra.mxu0 %v4921
    %6781 = vmatpush.bf16.msra.mxu0 %v4917
    %6782 = vmatpush.bf16.msra.mxu0 %v4913
    %6783 = vmatpush.bf16.msra.mxu0 %v4909
    %6784 = vmatpush.bf16.msra.mxu0 %v4905
    %6785 = vmatmul.bf16.gmra.mxu0 %v1249
    %v6786 = vpop.f32.mrf.mxu0
    %v6787 = vadd.f32 %v6774, %v6786
    %v6788 = vpop.f32.mrf.mxu0
    %6789 = vdwg.mxu0
    %6790 = vmatpush.bf16.msra.mxu0 %v4965
    %6791 = vmatpush.bf16.msra.mxu0 %v4961
    %6792 = vmatpush.bf16.msra.mxu0 %v4957
    %6793 = vmatpush.bf16.msra.mxu0 %v4953
    %6794 = vmatpush.bf16.msra.mxu0 %v4949
    %6795 = vmatpush.bf16.msra.mxu0 %v4945
    %6796 = vmatpush.bf16.msra.mxu0 %v4941
    %6797 = vmatpush.bf16.msra.mxu0 %v4937
    %6798 = vmatmul.bf16.gmra.mxu0 %v1252
    %v6799 = vpop.f32.mrf.mxu0
    %v6800 = vadd.f32 %v6787, %v6799
    %v6801 = vpop.f32.mrf.mxu0
    %6802 = vdwg.mxu0
    %6803 = vmatpush.bf16.msra.mxu0 %v4997
    %6804 = vmatpush.bf16.msra.mxu0 %v4993
    %6805 = vmatpush.bf16.msra.mxu0 %v4989
    %6806 = vmatpush.bf16.msra.mxu0 %v4985
    %6807 = vmatpush.bf16.msra.mxu0 %v4981
    %6808 = vmatpush.bf16.msra.mxu0 %v4977
    %6809 = vmatpush.bf16.msra.mxu0 %v4973
    %6810 = vmatpush.bf16.msra.mxu0 %v4969
    %6811 = vmatmul.bf16.gmra.mxu0 %v1253
    %v6812 = vpop.f32.mrf.mxu0
    %v6813 = vadd.f32 %v6800, %v6812
    %v6814 = vpop.f32.mrf.mxu0
    %6815 = vdwg.mxu0
    %6816 = vmatpush.bf16.msra.mxu0 %v5029
    %6817 = vmatpush.bf16.msra.mxu0 %v5025
    %6818 = vmatpush.bf16.msra.mxu0 %v5021
    %6819 = vmatpush.bf16.msra.mxu0 %v5017
    %6820 = vmatpush.bf16.msra.mxu0 %v5013
    %6821 = vmatpush.bf16.msra.mxu0 %v5009
    %6822 = vmatpush.bf16.msra.mxu0 %v5005
    %6823 = vmatpush.bf16.msra.mxu0 %v5001
    %6824 = vmatmul.bf16.gmra.mxu0 %v1254
    %v6825 = vpop.f32.mrf.mxu0
    %v6826 = vadd.f32 %v6813, %v6825
    %v6827 = vpop.f32.mrf.mxu0
    %6828 = vdwg.mxu0
    %6829 = vmatpush.bf16.msra.mxu0 %v5061
    %6830 = vmatpush.bf16.msra.mxu0 %v5057
    %6831 = vmatpush.bf16.msra.mxu0 %v5053
    %6832 = vmatpush.bf16.msra.mxu0 %v5049
    %6833 = vmatpush.bf16.msra.mxu0 %v5045
    %6834 = vmatpush.bf16.msra.mxu0 %v5041
    %6835 = vmatpush.bf16.msra.mxu0 %v5037
    %6836 = vmatpush.bf16.msra.mxu0 %v5033
    %6837 = vmatmul.bf16.gmra.mxu0 %v1255
    %v6838 = vpop.f32.mrf.mxu0
    %v6839 = vadd.f32 %v6826, %v6838
    %v6840 = vpop.f32.mrf.mxu0
    %6841 = vdwg.mxu0
    %6842 = vmatpush.bf16.msra.mxu0 %v5093
    %6843 = vmatpush.bf16.msra.mxu0 %v5089
    %6844 = vmatpush.bf16.msra.mxu0 %v5085
    %6845 = vmatpush.bf16.msra.mxu0 %v5081
    %6846 = vmatpush.bf16.msra.mxu0 %v5077
    %6847 = vmatpush.bf16.msra.mxu0 %v5073
    %6848 = vmatpush.bf16.msra.mxu0 %v5069
    %6849 = vmatpush.bf16.msra.mxu0 %v5065
    %6850 = vmatmul.bf16.gmra.mxu0 %v1256
    %v6851 = vpop.f32.mrf.mxu0
    %v6852 = vadd.f32 %v6839, %v6851
    %v6853 = vpop.f32.mrf.mxu0
    %6854 = vdwg.mxu0
    %6855 = vmatpush.bf16.msra.mxu0 %v5125
    %6856 = vmatpush.bf16.msra.mxu0 %v5121
    %6857 = vmatpush.bf16.msra.mxu0 %v5117
    %6858 = vmatpush.bf16.msra.mxu0 %v5113
    %6859 = vmatpush.bf16.msra.mxu0 %v5109
    %6860 = vmatpush.bf16.msra.mxu0 %v5105
    %6861 = vmatpush.bf16.msra.mxu0 %v5101
    %6862 = vmatpush.bf16.msra.mxu0 %v5097
    %6863 = vmatmul.bf16.gmra.mxu0 %v1257
    %v6864 = vpop.f32.mrf.mxu0
    %v6865 = vadd.f32 %v6852, %v6864
    %v6866 = vpop.f32.mrf.mxu0
    %6867 = vdwg.mxu0
    %6868 = vmatpush.bf16.msra.mxu0 %v4198
    %6869 = vmatpush.bf16.msra.mxu0 %v4194
    %6870 = vmatpush.bf16.msra.mxu0 %v4190
    %6871 = vmatpush.bf16.msra.mxu0 %v4186
    %6872 = vmatpush.bf16.msra.mxu0 %v4182
    %6873 = vmatpush.bf16.msra.mxu0 %v4178
    %6874 = vmatpush.bf16.msra.mxu0 %v4174
    %6875 = vmatpush.bf16.msra.mxu0 %v4170
    %6876 = vmatmul.bf16.gmra.mxu0 %v1222
    %v6877 = vpop.f32.mrf.mxu0
    %v6878 = vadd.f32 %v1204, %v6877
    %v6879 = vpop.f32.mrf.mxu0
    %6880 = vdwg.mxu0
    %6881 = vmatpush.bf16.msra.mxu0 %v4230
    %6882 = vmatpush.bf16.msra.mxu0 %v4226
    %6883 = vmatpush.bf16.msra.mxu0 %v4222
    %6884 = vmatpush.bf16.msra.mxu0 %v4218
    %6885 = vmatpush.bf16.msra.mxu0 %v4214
    %6886 = vmatpush.bf16.msra.mxu0 %v4210
    %6887 = vmatpush.bf16.msra.mxu0 %v4206
    %6888 = vmatpush.bf16.msra.mxu0 %v4202
    %6889 = vmatmul.bf16.gmra.mxu0 %v1223
    %v6890 = vpop.f32.mrf.mxu0
    %v6891 = vadd.f32 %v6878, %v6890
    %v6892 = vpop.f32.mrf.mxu0
    %6893 = vdwg.mxu0
    %6894 = vmatpush.bf16.msra.mxu0 %v4262
    %6895 = vmatpush.bf16.msra.mxu0 %v4258
    %6896 = vmatpush.bf16.msra.mxu0 %v4254
    %6897 = vmatpush.bf16.msra.mxu0 %v4250
    %6898 = vmatpush.bf16.msra.mxu0 %v4246
    %6899 = vmatpush.bf16.msra.mxu0 %v4242
    %6900 = vmatpush.bf16.msra.mxu0 %v4238
    %6901 = vmatpush.bf16.msra.mxu0 %v4234
    %6902 = vmatmul.bf16.gmra.mxu0 %v1224
    %v6903 = vpop.f32.mrf.mxu0
    %v6904 = vadd.f32 %v6891, %v6903
    %v6905 = vpop.f32.mrf.mxu0
    %6906 = vdwg.mxu0
    %6907 = vmatpush.bf16.msra.mxu0 %v4294
    %6908 = vmatpush.bf16.msra.mxu0 %v4290
    %6909 = vmatpush.bf16.msra.mxu0 %v4286
    %6910 = vmatpush.bf16.msra.mxu0 %v4282
    %6911 = vmatpush.bf16.msra.mxu0 %v4278
    %6912 = vmatpush.bf16.msra.mxu0 %v4274
    %6913 = vmatpush.bf16.msra.mxu0 %v4270
    %6914 = vmatpush.bf16.msra.mxu0 %v4266
    %6915 = vmatmul.bf16.gmra.mxu0 %v1225
    %v6916 = vpop.f32.mrf.mxu0
    %v6917 = vadd.f32 %v6904, %v6916
    %v6918 = vpop.f32.mrf.mxu0
    %6919 = vdwg.mxu0
    %6920 = vmatpush.bf16.msra.mxu0 %v4326
    %6921 = vmatpush.bf16.msra.mxu0 %v4322
    %6922 = vmatpush.bf16.msra.mxu0 %v4318
    %6923 = vmatpush.bf16.msra.mxu0 %v4314
    %6924 = vmatpush.bf16.msra.mxu0 %v4310
    %6925 = vmatpush.bf16.msra.mxu0 %v4306
    %6926 = vmatpush.bf16.msra.mxu0 %v4302
    %6927 = vmatpush.bf16.msra.mxu0 %v4298
    %6928 = vmatmul.bf16.gmra.mxu0 %v1226
    %v6929 = vpop.f32.mrf.mxu0
    %v6930 = vadd.f32 %v6917, %v6929
    %v6931 = vpop.f32.mrf.mxu0
    %6932 = vdwg.mxu0
    %6933 = vmatpush.bf16.msra.mxu0 %v4358
    %6934 = vmatpush.bf16.msra.mxu0 %v4354
    %6935 = vmatpush.bf16.msra.mxu0 %v4350
    %6936 = vmatpush.bf16.msra.mxu0 %v4346
    %6937 = vmatpush.bf16.msra.mxu0 %v4342
    %6938 = vmatpush.bf16.msra.mxu0 %v4338
    %6939 = vmatpush.bf16.msra.mxu0 %v4334
    %6940 = vmatpush.bf16.msra.mxu0 %v4330
    %6941 = vmatmul.bf16.gmra.mxu0 %v1227
    %v6942 = vpop.f32.mrf.mxu0
    %v6943 = vadd.f32 %v6930, %v6942
    %v6944 = vpop.f32.mrf.mxu0
    %6945 = vdwg.mxu0
    %6946 = vmatpush.bf16.msra.mxu0 %v4390
    %6947 = vmatpush.bf16.msra.mxu0 %v4386
    %6948 = vmatpush.bf16.msra.mxu0 %v4382
    %6949 = vmatpush.bf16.msra.mxu0 %v4378
    %6950 = vmatpush.bf16.msra.mxu0 %v4374
    %6951 = vmatpush.bf16.msra.mxu0 %v4370
    %6952 = vmatpush.bf16.msra.mxu0 %v4366
    %6953 = vmatpush.bf16.msra.mxu0 %v4362
    %6954 = vmatmul.bf16.gmra.mxu0 %v1228
    %v6955 = vpop.f32.mrf.mxu0
    %v6956 = vadd.f32 %v6943, %v6955
    %v6957 = vpop.f32.mrf.mxu0
    %6958 = vdwg.mxu0
    %6959 = vmatpush.bf16.msra.mxu0 %v4422
    %6960 = vmatpush.bf16.msra.mxu0 %v4418
    %6961 = vmatpush.bf16.msra.mxu0 %v4414
    %6962 = vmatpush.bf16.msra.mxu0 %v4410
    %6963 = vmatpush.bf16.msra.mxu0 %v4406
    %6964 = vmatpush.bf16.msra.mxu0 %v4402
    %6965 = vmatpush.bf16.msra.mxu0 %v4398
    %6966 = vmatpush.bf16.msra.mxu0 %v4394
    %6967 = vmatmul.bf16.gmra.mxu0 %v1229
    %v6968 = vpop.f32.mrf.mxu0
    %v6969 = vadd.f32 %v6956, %v6968
    %v6970 = vpop.f32.mrf.mxu0
    %6971 = vdwg.mxu0
    %6972 = vmatpush.bf16.msra.mxu0 %v4454
    %6973 = vmatpush.bf16.msra.mxu0 %v4450
    %6974 = vmatpush.bf16.msra.mxu0 %v4446
    %6975 = vmatpush.bf16.msra.mxu0 %v4442
    %6976 = vmatpush.bf16.msra.mxu0 %v4438
    %6977 = vmatpush.bf16.msra.mxu0 %v4434
    %6978 = vmatpush.bf16.msra.mxu0 %v4430
    %6979 = vmatpush.bf16.msra.mxu0 %v4426
    %6980 = vmatmul.bf16.gmra.mxu0 %v1232
    %v6981 = vpop.f32.mrf.mxu0
    %v6982 = vadd.f32 %v6969, %v6981
    %v6983 = vpop.f32.mrf.mxu0
    %6984 = vdwg.mxu0
    %6985 = vmatpush.bf16.msra.mxu0 %v4486
    %6986 = vmatpush.bf16.msra.mxu0 %v4482
    %6987 = vmatpush.bf16.msra.mxu0 %v4478
    %6988 = vmatpush.bf16.msra.mxu0 %v4474
    %6989 = vmatpush.bf16.msra.mxu0 %v4470
    %6990 = vmatpush.bf16.msra.mxu0 %v4466
    %6991 = vmatpush.bf16.msra.mxu0 %v4462
    %6992 = vmatpush.bf16.msra.mxu0 %v4458
    %6993 = vmatmul.bf16.gmra.mxu0 %v1233
    %v6994 = vpop.f32.mrf.mxu0
    %v6995 = vadd.f32 %v6982, %v6994
    %v6996 = vpop.f32.mrf.mxu0
    %6997 = vdwg.mxu0
    %6998 = vmatpush.bf16.msra.mxu0 %v4518
    %6999 = vmatpush.bf16.msra.mxu0 %v4514
    %7000 = vmatpush.bf16.msra.mxu0 %v4510
    %7001 = vmatpush.bf16.msra.mxu0 %v4506
    %7002 = vmatpush.bf16.msra.mxu0 %v4502
    %7003 = vmatpush.bf16.msra.mxu0 %v4498
    %7004 = vmatpush.bf16.msra.mxu0 %v4494
    %7005 = vmatpush.bf16.msra.mxu0 %v4490
    %7006 = vmatmul.bf16.gmra.mxu0 %v1234
    %v7007 = vpop.f32.mrf.mxu0
    %v7008 = vadd.f32 %v6995, %v7007
    %v7009 = vpop.f32.mrf.mxu0
    %7010 = vdwg.mxu0
    %7011 = vmatpush.bf16.msra.mxu0 %v4550
    %7012 = vmatpush.bf16.msra.mxu0 %v4546
    %7013 = vmatpush.bf16.msra.mxu0 %v4542
    %7014 = vmatpush.bf16.msra.mxu0 %v4538
    %7015 = vmatpush.bf16.msra.mxu0 %v4534
    %7016 = vmatpush.bf16.msra.mxu0 %v4530
    %7017 = vmatpush.bf16.msra.mxu0 %v4526
    %7018 = vmatpush.bf16.msra.mxu0 %v4522
    %7019 = vmatmul.bf16.gmra.mxu0 %v1235
    %v7020 = vpop.f32.mrf.mxu0
    %v7021 = vadd.f32 %v7008, %v7020
    %v7022 = vpop.f32.mrf.mxu0
    %7023 = vdwg.mxu0
    %7024 = vmatpush.bf16.msra.mxu0 %v4582
    %7025 = vmatpush.bf16.msra.mxu0 %v4578
    %7026 = vmatpush.bf16.msra.mxu0 %v4574
    %7027 = vmatpush.bf16.msra.mxu0 %v4570
    %7028 = vmatpush.bf16.msra.mxu0 %v4566
    %7029 = vmatpush.bf16.msra.mxu0 %v4562
    %7030 = vmatpush.bf16.msra.mxu0 %v4558
    %7031 = vmatpush.bf16.msra.mxu0 %v4554
    %7032 = vmatmul.bf16.gmra.mxu0 %v1236
    %v7033 = vpop.f32.mrf.mxu0
    %v7034 = vadd.f32 %v7021, %v7033
    %v7035 = vpop.f32.mrf.mxu0
    %7036 = vdwg.mxu0
    %7037 = vmatpush.bf16.msra.mxu0 %v4614
    %7038 = vmatpush.bf16.msra.mxu0 %v4610
    %7039 = vmatpush.bf16.msra.mxu0 %v4606
    %7040 = vmatpush.bf16.msra.mxu0 %v4602
    %7041 = vmatpush.bf16.msra.mxu0 %v4598
    %7042 = vmatpush.bf16.msra.mxu0 %v4594
    %7043 = vmatpush.bf16.msra.mxu0 %v4590
    %7044 = vmatpush.bf16.msra.mxu0 %v4586
    %7045 = vmatmul.bf16.gmra.mxu0 %v1237
    %v7046 = vpop.f32.mrf.mxu0
    %v7047 = vadd.f32 %v7034, %v7046
    %v7048 = vpop.f32.mrf.mxu0
    %7049 = vdwg.mxu0
    %7050 = vmatpush.bf16.msra.mxu0 %v4646
    %7051 = vmatpush.bf16.msra.mxu0 %v4642
    %7052 = vmatpush.bf16.msra.mxu0 %v4638
    %7053 = vmatpush.bf16.msra.mxu0 %v4634
    %7054 = vmatpush.bf16.msra.mxu0 %v4630
    %7055 = vmatpush.bf16.msra.mxu0 %v4626
    %7056 = vmatpush.bf16.msra.mxu0 %v4622
    %7057 = vmatpush.bf16.msra.mxu0 %v4618
    %7058 = vmatmul.bf16.gmra.mxu0 %v1238
    %v7059 = vpop.f32.mrf.mxu0
    %v7060 = vadd.f32 %v7047, %v7059
    %v7061 = vpop.f32.mrf.mxu0
    %7062 = vdwg.mxu0
    %7063 = vmatpush.bf16.msra.mxu0 %v4678
    %7064 = vmatpush.bf16.msra.mxu0 %v4674
    %7065 = vmatpush.bf16.msra.mxu0 %v4670
    %7066 = vmatpush.bf16.msra.mxu0 %v4666
    %7067 = vmatpush.bf16.msra.mxu0 %v4662
    %7068 = vmatpush.bf16.msra.mxu0 %v4658
    %7069 = vmatpush.bf16.msra.mxu0 %v4654
    %7070 = vmatpush.bf16.msra.mxu0 %v4650
    %7071 = vmatmul.bf16.gmra.mxu0 %v1239
    %v7072 = vpop.f32.mrf.mxu0
    %v7073 = vadd.f32 %v7060, %v7072
    %v7074 = vpop.f32.mrf.mxu0
    %7075 = vdwg.mxu0
    %7076 = vmatpush.bf16.msra.mxu0 %v4710
    %7077 = vmatpush.bf16.msra.mxu0 %v4706
    %7078 = vmatpush.bf16.msra.mxu0 %v4702
    %7079 = vmatpush.bf16.msra.mxu0 %v4698
    %7080 = vmatpush.bf16.msra.mxu0 %v4694
    %7081 = vmatpush.bf16.msra.mxu0 %v4690
    %7082 = vmatpush.bf16.msra.mxu0 %v4686
    %7083 = vmatpush.bf16.msra.mxu0 %v4682
    %7084 = vmatmul.bf16.gmra.mxu0 %v1242
    %v7085 = vpop.f32.mrf.mxu0
    %v7086 = vadd.f32 %v7073, %v7085
    %v7087 = vpop.f32.mrf.mxu0
    %7088 = vdwg.mxu0
    %7089 = vmatpush.bf16.msra.mxu0 %v4742
    %7090 = vmatpush.bf16.msra.mxu0 %v4738
    %7091 = vmatpush.bf16.msra.mxu0 %v4734
    %7092 = vmatpush.bf16.msra.mxu0 %v4730
    %7093 = vmatpush.bf16.msra.mxu0 %v4726
    %7094 = vmatpush.bf16.msra.mxu0 %v4722
    %7095 = vmatpush.bf16.msra.mxu0 %v4718
    %7096 = vmatpush.bf16.msra.mxu0 %v4714
    %7097 = vmatmul.bf16.gmra.mxu0 %v1243
    %v7098 = vpop.f32.mrf.mxu0
    %v7099 = vadd.f32 %v7086, %v7098
    %v7100 = vpop.f32.mrf.mxu0
    %7101 = vdwg.mxu0
    %7102 = vmatpush.bf16.msra.mxu0 %v4774
    %7103 = vmatpush.bf16.msra.mxu0 %v4770
    %7104 = vmatpush.bf16.msra.mxu0 %v4766
    %7105 = vmatpush.bf16.msra.mxu0 %v4762
    %7106 = vmatpush.bf16.msra.mxu0 %v4758
    %7107 = vmatpush.bf16.msra.mxu0 %v4754
    %7108 = vmatpush.bf16.msra.mxu0 %v4750
    %7109 = vmatpush.bf16.msra.mxu0 %v4746
    %7110 = vmatmul.bf16.gmra.mxu0 %v1244
    %v7111 = vpop.f32.mrf.mxu0
    %v7112 = vadd.f32 %v7099, %v7111
    %v7113 = vpop.f32.mrf.mxu0
    %7114 = vdwg.mxu0
    %7115 = vmatpush.bf16.msra.mxu0 %v4806
    %7116 = vmatpush.bf16.msra.mxu0 %v4802
    %7117 = vmatpush.bf16.msra.mxu0 %v4798
    %7118 = vmatpush.bf16.msra.mxu0 %v4794
    %7119 = vmatpush.bf16.msra.mxu0 %v4790
    %7120 = vmatpush.bf16.msra.mxu0 %v4786
    %7121 = vmatpush.bf16.msra.mxu0 %v4782
    %7122 = vmatpush.bf16.msra.mxu0 %v4778
    %7123 = vmatmul.bf16.gmra.mxu0 %v1245
    %v7124 = vpop.f32.mrf.mxu0
    %v7125 = vadd.f32 %v7112, %v7124
    %v7126 = vpop.f32.mrf.mxu0
    %7127 = vdwg.mxu0
    %7128 = vmatpush.bf16.msra.mxu0 %v4838
    %7129 = vmatpush.bf16.msra.mxu0 %v4834
    %7130 = vmatpush.bf16.msra.mxu0 %v4830
    %7131 = vmatpush.bf16.msra.mxu0 %v4826
    %7132 = vmatpush.bf16.msra.mxu0 %v4822
    %7133 = vmatpush.bf16.msra.mxu0 %v4818
    %7134 = vmatpush.bf16.msra.mxu0 %v4814
    %7135 = vmatpush.bf16.msra.mxu0 %v4810
    %7136 = vmatmul.bf16.gmra.mxu0 %v1246
    %v7137 = vpop.f32.mrf.mxu0
    %v7138 = vadd.f32 %v7125, %v7137
    %v7139 = vpop.f32.mrf.mxu0
    %7140 = vdwg.mxu0
    %7141 = vmatpush.bf16.msra.mxu0 %v4870
    %7142 = vmatpush.bf16.msra.mxu0 %v4866
    %7143 = vmatpush.bf16.msra.mxu0 %v4862
    %7144 = vmatpush.bf16.msra.mxu0 %v4858
    %7145 = vmatpush.bf16.msra.mxu0 %v4854
    %7146 = vmatpush.bf16.msra.mxu0 %v4850
    %7147 = vmatpush.bf16.msra.mxu0 %v4846
    %7148 = vmatpush.bf16.msra.mxu0 %v4842
    %7149 = vmatmul.bf16.gmra.mxu0 %v1247
    %v7150 = vpop.f32.mrf.mxu0
    %v7151 = vadd.f32 %v7138, %v7150
    %v7152 = vpop.f32.mrf.mxu0
    %7153 = vdwg.mxu0
    %7154 = vmatpush.bf16.msra.mxu0 %v4902
    %7155 = vmatpush.bf16.msra.mxu0 %v4898
    %7156 = vmatpush.bf16.msra.mxu0 %v4894
    %7157 = vmatpush.bf16.msra.mxu0 %v4890
    %7158 = vmatpush.bf16.msra.mxu0 %v4886
    %7159 = vmatpush.bf16.msra.mxu0 %v4882
    %7160 = vmatpush.bf16.msra.mxu0 %v4878
    %7161 = vmatpush.bf16.msra.mxu0 %v4874
    %7162 = vmatmul.bf16.gmra.mxu0 %v1248
    %v7163 = vpop.f32.mrf.mxu0
    %v7164 = vadd.f32 %v7151, %v7163
    %v7165 = vpop.f32.mrf.mxu0
    %7166 = vdwg.mxu0
    %7167 = vmatpush.bf16.msra.mxu0 %v4934
    %7168 = vmatpush.bf16.msra.mxu0 %v4930
    %7169 = vmatpush.bf16.msra.mxu0 %v4926
    %7170 = vmatpush.bf16.msra.mxu0 %v4922
    %7171 = vmatpush.bf16.msra.mxu0 %v4918
    %7172 = vmatpush.bf16.msra.mxu0 %v4914
    %7173 = vmatpush.bf16.msra.mxu0 %v4910
    %7174 = vmatpush.bf16.msra.mxu0 %v4906
    %7175 = vmatmul.bf16.gmra.mxu0 %v1249
    %v7176 = vpop.f32.mrf.mxu0
    %v7177 = vadd.f32 %v7164, %v7176
    %v7178 = vpop.f32.mrf.mxu0
    %7179 = vdwg.mxu0
    %7180 = vmatpush.bf16.msra.mxu0 %v4966
    %7181 = vmatpush.bf16.msra.mxu0 %v4962
    %7182 = vmatpush.bf16.msra.mxu0 %v4958
    %7183 = vmatpush.bf16.msra.mxu0 %v4954
    %7184 = vmatpush.bf16.msra.mxu0 %v4950
    %7185 = vmatpush.bf16.msra.mxu0 %v4946
    %7186 = vmatpush.bf16.msra.mxu0 %v4942
    %7187 = vmatpush.bf16.msra.mxu0 %v4938
    %7188 = vmatmul.bf16.gmra.mxu0 %v1252
    %v7189 = vpop.f32.mrf.mxu0
    %v7190 = vadd.f32 %v7177, %v7189
    %v7191 = vpop.f32.mrf.mxu0
    %7192 = vdwg.mxu0
    %7193 = vmatpush.bf16.msra.mxu0 %v4998
    %7194 = vmatpush.bf16.msra.mxu0 %v4994
    %7195 = vmatpush.bf16.msra.mxu0 %v4990
    %7196 = vmatpush.bf16.msra.mxu0 %v4986
    %7197 = vmatpush.bf16.msra.mxu0 %v4982
    %7198 = vmatpush.bf16.msra.mxu0 %v4978
    %7199 = vmatpush.bf16.msra.mxu0 %v4974
    %7200 = vmatpush.bf16.msra.mxu0 %v4970
    %7201 = vmatmul.bf16.gmra.mxu0 %v1253
    %v7202 = vpop.f32.mrf.mxu0
    %v7203 = vadd.f32 %v7190, %v7202
    %v7204 = vpop.f32.mrf.mxu0
    %7205 = vdwg.mxu0
    %7206 = vmatpush.bf16.msra.mxu0 %v5030
    %7207 = vmatpush.bf16.msra.mxu0 %v5026
    %7208 = vmatpush.bf16.msra.mxu0 %v5022
    %7209 = vmatpush.bf16.msra.mxu0 %v5018
    %7210 = vmatpush.bf16.msra.mxu0 %v5014
    %7211 = vmatpush.bf16.msra.mxu0 %v5010
    %7212 = vmatpush.bf16.msra.mxu0 %v5006
    %7213 = vmatpush.bf16.msra.mxu0 %v5002
    %7214 = vmatmul.bf16.gmra.mxu0 %v1254
    %v7215 = vpop.f32.mrf.mxu0
    %v7216 = vadd.f32 %v7203, %v7215
    %v7217 = vpop.f32.mrf.mxu0
    %7218 = vdwg.mxu0
    %7219 = vmatpush.bf16.msra.mxu0 %v5062
    %7220 = vmatpush.bf16.msra.mxu0 %v5058
    %7221 = vmatpush.bf16.msra.mxu0 %v5054
    %7222 = vmatpush.bf16.msra.mxu0 %v5050
    %7223 = vmatpush.bf16.msra.mxu0 %v5046
    %7224 = vmatpush.bf16.msra.mxu0 %v5042
    %7225 = vmatpush.bf16.msra.mxu0 %v5038
    %7226 = vmatpush.bf16.msra.mxu0 %v5034
    %7227 = vmatmul.bf16.gmra.mxu0 %v1255
    %v7228 = vpop.f32.mrf.mxu0
    %v7229 = vadd.f32 %v7216, %v7228
    %v7230 = vpop.f32.mrf.mxu0
    %7231 = vdwg.mxu0
    %7232 = vmatpush.bf16.msra.mxu0 %v5094
    %7233 = vmatpush.bf16.msra.mxu0 %v5090
    %7234 = vmatpush.bf16.msra.mxu0 %v5086
    %7235 = vmatpush.bf16.msra.mxu0 %v5082
    %7236 = vmatpush.bf16.msra.mxu0 %v5078
    %7237 = vmatpush.bf16.msra.mxu0 %v5074
    %7238 = vmatpush.bf16.msra.mxu0 %v5070
    %7239 = vmatpush.bf16.msra.mxu0 %v5066
    %7240 = vmatmul.bf16.gmra.mxu0 %v1256
    %v7241 = vpop.f32.mrf.mxu0
    %v7242 = vadd.f32 %v7229, %v7241
    %v7243 = vpop.f32.mrf.mxu0
    %7244 = vdwg.mxu0
    %7245 = vmatpush.bf16.msra.mxu0 %v5126
    %7246 = vmatpush.bf16.msra.mxu0 %v5122
    %7247 = vmatpush.bf16.msra.mxu0 %v5118
    %7248 = vmatpush.bf16.msra.mxu0 %v5114
    %7249 = vmatpush.bf16.msra.mxu0 %v5110
    %7250 = vmatpush.bf16.msra.mxu0 %v5106
    %7251 = vmatpush.bf16.msra.mxu0 %v5102
    %7252 = vmatpush.bf16.msra.mxu0 %v5098
    %7253 = vmatmul.bf16.gmra.mxu0 %v1257
    %v7254 = vpop.f32.mrf.mxu0
    %v7255 = vadd.f32 %v7242, %v7254
    %v7256 = vpop.f32.mrf.mxu0
    %7257 = vdwg.mxu0
    %7258 = vmatpush.bf16.msra.mxu0 %v4199
    %7259 = vmatpush.bf16.msra.mxu0 %v4195
    %7260 = vmatpush.bf16.msra.mxu0 %v4191
    %7261 = vmatpush.bf16.msra.mxu0 %v4187
    %7262 = vmatpush.bf16.msra.mxu0 %v4183
    %7263 = vmatpush.bf16.msra.mxu0 %v4179
    %7264 = vmatpush.bf16.msra.mxu0 %v4175
    %7265 = vmatpush.bf16.msra.mxu0 %v4171
    %7266 = vmatmul.bf16.gmra.mxu0 %v1222
    %v7267 = vpop.f32.mrf.mxu0
    %v7268 = vadd.f32 %v1217, %v7267
    %v7269 = vpop.f32.mrf.mxu0
    %7270 = vdwg.mxu0
    %7271 = vmatpush.bf16.msra.mxu0 %v4231
    %7272 = vmatpush.bf16.msra.mxu0 %v4227
    %7273 = vmatpush.bf16.msra.mxu0 %v4223
    %7274 = vmatpush.bf16.msra.mxu0 %v4219
    %7275 = vmatpush.bf16.msra.mxu0 %v4215
    %7276 = vmatpush.bf16.msra.mxu0 %v4211
    %7277 = vmatpush.bf16.msra.mxu0 %v4207
    %7278 = vmatpush.bf16.msra.mxu0 %v4203
    %7279 = vmatmul.bf16.gmra.mxu0 %v1223
    %v7280 = vpop.f32.mrf.mxu0
    %v7281 = vadd.f32 %v7268, %v7280
    %v7282 = vpop.f32.mrf.mxu0
    %7283 = vdwg.mxu0
    %7284 = vmatpush.bf16.msra.mxu0 %v4263
    %7285 = vmatpush.bf16.msra.mxu0 %v4259
    %7286 = vmatpush.bf16.msra.mxu0 %v4255
    %7287 = vmatpush.bf16.msra.mxu0 %v4251
    %7288 = vmatpush.bf16.msra.mxu0 %v4247
    %7289 = vmatpush.bf16.msra.mxu0 %v4243
    %7290 = vmatpush.bf16.msra.mxu0 %v4239
    %7291 = vmatpush.bf16.msra.mxu0 %v4235
    %7292 = vmatmul.bf16.gmra.mxu0 %v1224
    %v7293 = vpop.f32.mrf.mxu0
    %v7294 = vadd.f32 %v7281, %v7293
    %v7295 = vpop.f32.mrf.mxu0
    %7296 = vdwg.mxu0
    %7297 = vmatpush.bf16.msra.mxu0 %v4295
    %7298 = vmatpush.bf16.msra.mxu0 %v4291
    %7299 = vmatpush.bf16.msra.mxu0 %v4287
    %7300 = vmatpush.bf16.msra.mxu0 %v4283
    %7301 = vmatpush.bf16.msra.mxu0 %v4279
    %7302 = vmatpush.bf16.msra.mxu0 %v4275
    %7303 = vmatpush.bf16.msra.mxu0 %v4271
    %7304 = vmatpush.bf16.msra.mxu0 %v4267
    %7305 = vmatmul.bf16.gmra.mxu0 %v1225
    %v7306 = vpop.f32.mrf.mxu0
    %v7307 = vadd.f32 %v7294, %v7306
    %v7308 = vpop.f32.mrf.mxu0
    %7309 = vdwg.mxu0
    %7310 = vmatpush.bf16.msra.mxu0 %v4327
    %7311 = vmatpush.bf16.msra.mxu0 %v4323
    %7312 = vmatpush.bf16.msra.mxu0 %v4319
    %7313 = vmatpush.bf16.msra.mxu0 %v4315
    %7314 = vmatpush.bf16.msra.mxu0 %v4311
    %7315 = vmatpush.bf16.msra.mxu0 %v4307
    %7316 = vmatpush.bf16.msra.mxu0 %v4303
    %7317 = vmatpush.bf16.msra.mxu0 %v4299
    %7318 = vmatmul.bf16.gmra.mxu0 %v1226
    %v7319 = vpop.f32.mrf.mxu0
    %v7320 = vadd.f32 %v7307, %v7319
    %v7321 = vpop.f32.mrf.mxu0
    %7322 = vdwg.mxu0
    %7323 = vmatpush.bf16.msra.mxu0 %v4359
    %7324 = vmatpush.bf16.msra.mxu0 %v4355
    %7325 = vmatpush.bf16.msra.mxu0 %v4351
    %7326 = vmatpush.bf16.msra.mxu0 %v4347
    %7327 = vmatpush.bf16.msra.mxu0 %v4343
    %7328 = vmatpush.bf16.msra.mxu0 %v4339
    %7329 = vmatpush.bf16.msra.mxu0 %v4335
    %7330 = vmatpush.bf16.msra.mxu0 %v4331
    %7331 = vmatmul.bf16.gmra.mxu0 %v1227
    %v7332 = vpop.f32.mrf.mxu0
    %v7333 = vadd.f32 %v7320, %v7332
    %v7334 = vpop.f32.mrf.mxu0
    %7335 = vdwg.mxu0
    %7336 = vmatpush.bf16.msra.mxu0 %v4391
    %7337 = vmatpush.bf16.msra.mxu0 %v4387
    %7338 = vmatpush.bf16.msra.mxu0 %v4383
    %7339 = vmatpush.bf16.msra.mxu0 %v4379
    %7340 = vmatpush.bf16.msra.mxu0 %v4375
    %7341 = vmatpush.bf16.msra.mxu0 %v4371
    %7342 = vmatpush.bf16.msra.mxu0 %v4367
    %7343 = vmatpush.bf16.msra.mxu0 %v4363
    %7344 = vmatmul.bf16.gmra.mxu0 %v1228
    %v7345 = vpop.f32.mrf.mxu0
    %v7346 = vadd.f32 %v7333, %v7345
    %v7347 = vpop.f32.mrf.mxu0
    %7348 = vdwg.mxu0
    %7349 = vmatpush.bf16.msra.mxu0 %v4423
    %7350 = vmatpush.bf16.msra.mxu0 %v4419
    %7351 = vmatpush.bf16.msra.mxu0 %v4415
    %7352 = vmatpush.bf16.msra.mxu0 %v4411
    %7353 = vmatpush.bf16.msra.mxu0 %v4407
    %7354 = vmatpush.bf16.msra.mxu0 %v4403
    %7355 = vmatpush.bf16.msra.mxu0 %v4399
    %7356 = vmatpush.bf16.msra.mxu0 %v4395
    %7357 = vmatmul.bf16.gmra.mxu0 %v1229
    %v7358 = vpop.f32.mrf.mxu0
    %v7359 = vadd.f32 %v7346, %v7358
    %v7360 = vpop.f32.mrf.mxu0
    %7361 = vdwg.mxu0
    %7362 = vmatpush.bf16.msra.mxu0 %v4455
    %7363 = vmatpush.bf16.msra.mxu0 %v4451
    %7364 = vmatpush.bf16.msra.mxu0 %v4447
    %7365 = vmatpush.bf16.msra.mxu0 %v4443
    %7366 = vmatpush.bf16.msra.mxu0 %v4439
    %7367 = vmatpush.bf16.msra.mxu0 %v4435
    %7368 = vmatpush.bf16.msra.mxu0 %v4431
    %7369 = vmatpush.bf16.msra.mxu0 %v4427
    %7370 = vmatmul.bf16.gmra.mxu0 %v1232
    %v7371 = vpop.f32.mrf.mxu0
    %v7372 = vadd.f32 %v7359, %v7371
    %v7373 = vpop.f32.mrf.mxu0
    %7374 = vdwg.mxu0
    %7375 = vmatpush.bf16.msra.mxu0 %v4487
    %7376 = vmatpush.bf16.msra.mxu0 %v4483
    %7377 = vmatpush.bf16.msra.mxu0 %v4479
    %7378 = vmatpush.bf16.msra.mxu0 %v4475
    %7379 = vmatpush.bf16.msra.mxu0 %v4471
    %7380 = vmatpush.bf16.msra.mxu0 %v4467
    %7381 = vmatpush.bf16.msra.mxu0 %v4463
    %7382 = vmatpush.bf16.msra.mxu0 %v4459
    %7383 = vmatmul.bf16.gmra.mxu0 %v1233
    %v7384 = vpop.f32.mrf.mxu0
    %v7385 = vadd.f32 %v7372, %v7384
    %v7386 = vpop.f32.mrf.mxu0
    %7387 = vdwg.mxu0
    %7388 = vmatpush.bf16.msra.mxu0 %v4519
    %7389 = vmatpush.bf16.msra.mxu0 %v4515
    %7390 = vmatpush.bf16.msra.mxu0 %v4511
    %7391 = vmatpush.bf16.msra.mxu0 %v4507
    %7392 = vmatpush.bf16.msra.mxu0 %v4503
    %7393 = vmatpush.bf16.msra.mxu0 %v4499
    %7394 = vmatpush.bf16.msra.mxu0 %v4495
    %7395 = vmatpush.bf16.msra.mxu0 %v4491
    %7396 = vmatmul.bf16.gmra.mxu0 %v1234
    %v7397 = vpop.f32.mrf.mxu0
    %v7398 = vadd.f32 %v7385, %v7397
    %v7399 = vpop.f32.mrf.mxu0
    %7400 = vdwg.mxu0
    %7401 = vmatpush.bf16.msra.mxu0 %v4551
    %7402 = vmatpush.bf16.msra.mxu0 %v4547
    %7403 = vmatpush.bf16.msra.mxu0 %v4543
    %7404 = vmatpush.bf16.msra.mxu0 %v4539
    %7405 = vmatpush.bf16.msra.mxu0 %v4535
    %7406 = vmatpush.bf16.msra.mxu0 %v4531
    %7407 = vmatpush.bf16.msra.mxu0 %v4527
    %7408 = vmatpush.bf16.msra.mxu0 %v4523
    %7409 = vmatmul.bf16.gmra.mxu0 %v1235
    %v7410 = vpop.f32.mrf.mxu0
    %v7411 = vadd.f32 %v7398, %v7410
    %v7412 = vpop.f32.mrf.mxu0
    %7413 = vdwg.mxu0
    %7414 = vmatpush.bf16.msra.mxu0 %v4583
    %7415 = vmatpush.bf16.msra.mxu0 %v4579
    %7416 = vmatpush.bf16.msra.mxu0 %v4575
    %7417 = vmatpush.bf16.msra.mxu0 %v4571
    %7418 = vmatpush.bf16.msra.mxu0 %v4567
    %7419 = vmatpush.bf16.msra.mxu0 %v4563
    %7420 = vmatpush.bf16.msra.mxu0 %v4559
    %7421 = vmatpush.bf16.msra.mxu0 %v4555
    %7422 = vmatmul.bf16.gmra.mxu0 %v1236
    %v7423 = vpop.f32.mrf.mxu0
    %v7424 = vadd.f32 %v7411, %v7423
    %v7425 = vpop.f32.mrf.mxu0
    %7426 = vdwg.mxu0
    %7427 = vmatpush.bf16.msra.mxu0 %v4615
    %7428 = vmatpush.bf16.msra.mxu0 %v4611
    %7429 = vmatpush.bf16.msra.mxu0 %v4607
    %7430 = vmatpush.bf16.msra.mxu0 %v4603
    %7431 = vmatpush.bf16.msra.mxu0 %v4599
    %7432 = vmatpush.bf16.msra.mxu0 %v4595
    %7433 = vmatpush.bf16.msra.mxu0 %v4591
    %7434 = vmatpush.bf16.msra.mxu0 %v4587
    %7435 = vmatmul.bf16.gmra.mxu0 %v1237
    %v7436 = vpop.f32.mrf.mxu0
    %v7437 = vadd.f32 %v7424, %v7436
    %v7438 = vpop.f32.mrf.mxu0
    %7439 = vdwg.mxu0
    %7440 = vmatpush.bf16.msra.mxu0 %v4647
    %7441 = vmatpush.bf16.msra.mxu0 %v4643
    %7442 = vmatpush.bf16.msra.mxu0 %v4639
    %7443 = vmatpush.bf16.msra.mxu0 %v4635
    %7444 = vmatpush.bf16.msra.mxu0 %v4631
    %7445 = vmatpush.bf16.msra.mxu0 %v4627
    %7446 = vmatpush.bf16.msra.mxu0 %v4623
    %7447 = vmatpush.bf16.msra.mxu0 %v4619
    %7448 = vmatmul.bf16.gmra.mxu0 %v1238
    %v7449 = vpop.f32.mrf.mxu0
    %v7450 = vadd.f32 %v7437, %v7449
    %v7451 = vpop.f32.mrf.mxu0
    %7452 = vdwg.mxu0
    %7453 = vmatpush.bf16.msra.mxu0 %v4679
    %7454 = vmatpush.bf16.msra.mxu0 %v4675
    %7455 = vmatpush.bf16.msra.mxu0 %v4671
    %7456 = vmatpush.bf16.msra.mxu0 %v4667
    %7457 = vmatpush.bf16.msra.mxu0 %v4663
    %7458 = vmatpush.bf16.msra.mxu0 %v4659
    %7459 = vmatpush.bf16.msra.mxu0 %v4655
    %7460 = vmatpush.bf16.msra.mxu0 %v4651
    %7461 = vmatmul.bf16.gmra.mxu0 %v1239
    %v7462 = vpop.f32.mrf.mxu0
    %v7463 = vadd.f32 %v7450, %v7462
    %v7464 = vpop.f32.mrf.mxu0
    %7465 = vdwg.mxu0
    %7466 = vmatpush.bf16.msra.mxu0 %v4711
    %7467 = vmatpush.bf16.msra.mxu0 %v4707
    %7468 = vmatpush.bf16.msra.mxu0 %v4703
    %7469 = vmatpush.bf16.msra.mxu0 %v4699
    %7470 = vmatpush.bf16.msra.mxu0 %v4695
    %7471 = vmatpush.bf16.msra.mxu0 %v4691
    %7472 = vmatpush.bf16.msra.mxu0 %v4687
    %7473 = vmatpush.bf16.msra.mxu0 %v4683
    %7474 = vmatmul.bf16.gmra.mxu0 %v1242
    %v7475 = vpop.f32.mrf.mxu0
    %v7476 = vadd.f32 %v7463, %v7475
    %v7477 = vpop.f32.mrf.mxu0
    %7478 = vdwg.mxu0
    %7479 = vmatpush.bf16.msra.mxu0 %v4743
    %7480 = vmatpush.bf16.msra.mxu0 %v4739
    %7481 = vmatpush.bf16.msra.mxu0 %v4735
    %7482 = vmatpush.bf16.msra.mxu0 %v4731
    %7483 = vmatpush.bf16.msra.mxu0 %v4727
    %7484 = vmatpush.bf16.msra.mxu0 %v4723
    %7485 = vmatpush.bf16.msra.mxu0 %v4719
    %7486 = vmatpush.bf16.msra.mxu0 %v4715
    %7487 = vmatmul.bf16.gmra.mxu0 %v1243
    %v7488 = vpop.f32.mrf.mxu0
    %v7489 = vadd.f32 %v7476, %v7488
    %v7490 = vpop.f32.mrf.mxu0
    %7491 = vdwg.mxu0
    %7492 = vmatpush.bf16.msra.mxu0 %v4775
    %7493 = vmatpush.bf16.msra.mxu0 %v4771
    %7494 = vmatpush.bf16.msra.mxu0 %v4767
    %7495 = vmatpush.bf16.msra.mxu0 %v4763
    %7496 = vmatpush.bf16.msra.mxu0 %v4759
    %7497 = vmatpush.bf16.msra.mxu0 %v4755
    %7498 = vmatpush.bf16.msra.mxu0 %v4751
    %7499 = vmatpush.bf16.msra.mxu0 %v4747
    %7500 = vmatmul.bf16.gmra.mxu0 %v1244
    %v7501 = vpop.f32.mrf.mxu0
    %v7502 = vadd.f32 %v7489, %v7501
    %v7503 = vpop.f32.mrf.mxu0
    %7504 = vdwg.mxu0
    %7505 = vmatpush.bf16.msra.mxu0 %v4807
    %7506 = vmatpush.bf16.msra.mxu0 %v4803
    %7507 = vmatpush.bf16.msra.mxu0 %v4799
    %7508 = vmatpush.bf16.msra.mxu0 %v4795
    %7509 = vmatpush.bf16.msra.mxu0 %v4791
    %7510 = vmatpush.bf16.msra.mxu0 %v4787
    %7511 = vmatpush.bf16.msra.mxu0 %v4783
    %7512 = vmatpush.bf16.msra.mxu0 %v4779
    %7513 = vmatmul.bf16.gmra.mxu0 %v1245
    %v7514 = vpop.f32.mrf.mxu0
    %v7515 = vadd.f32 %v7502, %v7514
    %v7516 = vpop.f32.mrf.mxu0
    %7517 = vdwg.mxu0
    %7518 = vmatpush.bf16.msra.mxu0 %v4839
    %7519 = vmatpush.bf16.msra.mxu0 %v4835
    %7520 = vmatpush.bf16.msra.mxu0 %v4831
    %7521 = vmatpush.bf16.msra.mxu0 %v4827
    %7522 = vmatpush.bf16.msra.mxu0 %v4823
    %7523 = vmatpush.bf16.msra.mxu0 %v4819
    %7524 = vmatpush.bf16.msra.mxu0 %v4815
    %7525 = vmatpush.bf16.msra.mxu0 %v4811
    %7526 = vmatmul.bf16.gmra.mxu0 %v1246
    %v7527 = vpop.f32.mrf.mxu0
    %v7528 = vadd.f32 %v7515, %v7527
    %v7529 = vpop.f32.mrf.mxu0
    %7530 = vdwg.mxu0
    %7531 = vmatpush.bf16.msra.mxu0 %v4871
    %7532 = vmatpush.bf16.msra.mxu0 %v4867
    %7533 = vmatpush.bf16.msra.mxu0 %v4863
    %7534 = vmatpush.bf16.msra.mxu0 %v4859
    %7535 = vmatpush.bf16.msra.mxu0 %v4855
    %7536 = vmatpush.bf16.msra.mxu0 %v4851
    %7537 = vmatpush.bf16.msra.mxu0 %v4847
    %7538 = vmatpush.bf16.msra.mxu0 %v4843
    %7539 = vmatmul.bf16.gmra.mxu0 %v1247
    %v7540 = vpop.f32.mrf.mxu0
    %v7541 = vadd.f32 %v7528, %v7540
    %v7542 = vpop.f32.mrf.mxu0
    %7543 = vdwg.mxu0
    %7544 = vmatpush.bf16.msra.mxu0 %v4903
    %7545 = vmatpush.bf16.msra.mxu0 %v4899
    %7546 = vmatpush.bf16.msra.mxu0 %v4895
    %7547 = vmatpush.bf16.msra.mxu0 %v4891
    %7548 = vmatpush.bf16.msra.mxu0 %v4887
    %7549 = vmatpush.bf16.msra.mxu0 %v4883
    %7550 = vmatpush.bf16.msra.mxu0 %v4879
    %7551 = vmatpush.bf16.msra.mxu0 %v4875
    %7552 = vmatmul.bf16.gmra.mxu0 %v1248
    %v7553 = vpop.f32.mrf.mxu0
    %v7554 = vadd.f32 %v7541, %v7553
    %v7555 = vpop.f32.mrf.mxu0
    %7556 = vdwg.mxu0
    %7557 = vmatpush.bf16.msra.mxu0 %v4935
    %7558 = vmatpush.bf16.msra.mxu0 %v4931
    %7559 = vmatpush.bf16.msra.mxu0 %v4927
    %7560 = vmatpush.bf16.msra.mxu0 %v4923
    %7561 = vmatpush.bf16.msra.mxu0 %v4919
    %7562 = vmatpush.bf16.msra.mxu0 %v4915
    %7563 = vmatpush.bf16.msra.mxu0 %v4911
    %7564 = vmatpush.bf16.msra.mxu0 %v4907
    %7565 = vmatmul.bf16.gmra.mxu0 %v1249
    %v7566 = vpop.f32.mrf.mxu0
    %v7567 = vadd.f32 %v7554, %v7566
    %v7568 = vpop.f32.mrf.mxu0
    %7569 = vdwg.mxu0
    %7570 = vmatpush.bf16.msra.mxu0 %v4967
    %7571 = vmatpush.bf16.msra.mxu0 %v4963
    %7572 = vmatpush.bf16.msra.mxu0 %v4959
    %7573 = vmatpush.bf16.msra.mxu0 %v4955
    %7574 = vmatpush.bf16.msra.mxu0 %v4951
    %7575 = vmatpush.bf16.msra.mxu0 %v4947
    %7576 = vmatpush.bf16.msra.mxu0 %v4943
    %7577 = vmatpush.bf16.msra.mxu0 %v4939
    %7578 = vmatmul.bf16.gmra.mxu0 %v1252
    %v7579 = vpop.f32.mrf.mxu0
    %v7580 = vadd.f32 %v7567, %v7579
    %v7581 = vpop.f32.mrf.mxu0
    %7582 = vdwg.mxu0
    %7583 = vmatpush.bf16.msra.mxu0 %v4999
    %7584 = vmatpush.bf16.msra.mxu0 %v4995
    %7585 = vmatpush.bf16.msra.mxu0 %v4991
    %7586 = vmatpush.bf16.msra.mxu0 %v4987
    %7587 = vmatpush.bf16.msra.mxu0 %v4983
    %7588 = vmatpush.bf16.msra.mxu0 %v4979
    %7589 = vmatpush.bf16.msra.mxu0 %v4975
    %7590 = vmatpush.bf16.msra.mxu0 %v4971
    %7591 = vmatmul.bf16.gmra.mxu0 %v1253
    %v7592 = vpop.f32.mrf.mxu0
    %v7593 = vadd.f32 %v7580, %v7592
    %v7594 = vpop.f32.mrf.mxu0
    %7595 = vdwg.mxu0
    %7596 = vmatpush.bf16.msra.mxu0 %v5031
    %7597 = vmatpush.bf16.msra.mxu0 %v5027
    %7598 = vmatpush.bf16.msra.mxu0 %v5023
    %7599 = vmatpush.bf16.msra.mxu0 %v5019
    %7600 = vmatpush.bf16.msra.mxu0 %v5015
    %7601 = vmatpush.bf16.msra.mxu0 %v5011
    %7602 = vmatpush.bf16.msra.mxu0 %v5007
    %7603 = vmatpush.bf16.msra.mxu0 %v5003
    %7604 = vmatmul.bf16.gmra.mxu0 %v1254
    %v7605 = vpop.f32.mrf.mxu0
    %v7606 = vadd.f32 %v7593, %v7605
    %v7607 = vpop.f32.mrf.mxu0
    %7608 = vdwg.mxu0
    %7609 = vmatpush.bf16.msra.mxu0 %v5063
    %7610 = vmatpush.bf16.msra.mxu0 %v5059
    %7611 = vmatpush.bf16.msra.mxu0 %v5055
    %7612 = vmatpush.bf16.msra.mxu0 %v5051
    %7613 = vmatpush.bf16.msra.mxu0 %v5047
    %7614 = vmatpush.bf16.msra.mxu0 %v5043
    %7615 = vmatpush.bf16.msra.mxu0 %v5039
    %7616 = vmatpush.bf16.msra.mxu0 %v5035
    %7617 = vmatmul.bf16.gmra.mxu0 %v1255
    %v7618 = vpop.f32.mrf.mxu0
    %v7619 = vadd.f32 %v7606, %v7618
    %v7620 = vpop.f32.mrf.mxu0
    %7621 = vdwg.mxu0
    %7622 = vmatpush.bf16.msra.mxu0 %v5095
    %7623 = vmatpush.bf16.msra.mxu0 %v5091
    %7624 = vmatpush.bf16.msra.mxu0 %v5087
    %7625 = vmatpush.bf16.msra.mxu0 %v5083
    %7626 = vmatpush.bf16.msra.mxu0 %v5079
    %7627 = vmatpush.bf16.msra.mxu0 %v5075
    %7628 = vmatpush.bf16.msra.mxu0 %v5071
    %7629 = vmatpush.bf16.msra.mxu0 %v5067
    %7630 = vmatmul.bf16.gmra.mxu0 %v1256
    %v7631 = vpop.f32.mrf.mxu0
    %v7632 = vadd.f32 %v7619, %v7631
    %v7633 = vpop.f32.mrf.mxu0
    %7634 = vdwg.mxu0
    %7635 = vmatpush.bf16.msra.mxu0 %v5127
    %7636 = vmatpush.bf16.msra.mxu0 %v5123
    %7637 = vmatpush.bf16.msra.mxu0 %v5119
    %7638 = vmatpush.bf16.msra.mxu0 %v5115
    %7639 = vmatpush.bf16.msra.mxu0 %v5111
    %7640 = vmatpush.bf16.msra.mxu0 %v5107
    %7641 = vmatpush.bf16.msra.mxu0 %v5103
    %7642 = vmatpush.bf16.msra.mxu0 %v5099
    %7643 = vmatmul.bf16.gmra.mxu0 %v1257
    %v7644 = vpop.f32.mrf.mxu0
    %v7645 = vadd.f32 %v7632, %v7644
    %v7646 = vpop.f32.mrf.mxu0
    %7647 = vdwg.mxu0
    %v7648 = vld [vmem:[#allocation11] sm:$0xf]
    %v7650 = vperm.slane %v7648, 0
    %v7651 = vperm.slane %v7648, 1
    %v7652 = vperm.slane %v7648, 2
    %v7653 = vperm.slane %v7648, 3
    %v7658 = vadd.f32 %v6475, %v7650
    %v7659 = vadd.f32 %v6865, %v7651
    %v7660 = vadd.f32 %v7255, %v7652
    %v7661 = vadd.f32 %v7645, %v7653
    %v7662 = vmax.f32 %v7658, 0.0
    %v7663 = vmax.f32 %v7659, 0.0
    %v7664 = vmax.f32 %v7660, 0.0
    %v7665 = vmax.f32 %v7661, 0.0
    %v7666 = vpack.c.bf16 %v7662, %v7662
    %v7667 = vpack.c.bf16 %v7663, %v7663
    %v7668 = vpack.c.bf16 %v7664, %v7664
    %v7669 = vpack.c.bf16 %v7665, %v7665
    %v7670 = vld [vmem:[#allocation12] sm:$0xf]
    %v7671 = vld [vmem:[#allocation12 + $0x4] sm:$0xf]
    %v7672 = vld [vmem:[#allocation12 + $0x8] sm:$0xf]
    %v7673 = vld [vmem:[#allocation12 + $0xc] sm:$0xf]
    %v7674 = vld [vmem:[#allocation12 + $0x10] sm:$0xf]
    %v7675 = vld [vmem:[#allocation12 + $0x14] sm:$0xf]
    %v7676 = vld [vmem:[#allocation12 + $0x18] sm:$0xf]
    %v7677 = vld [vmem:[#allocation12 + $0x1c] sm:$0xf]
    %v7678 = vld [vmem:[#allocation12 + $0x20] sm:$0xf]
    %v7679 = vld [vmem:[#allocation12 + $0x24] sm:$0xf]
    %v7680 = vld [vmem:[#allocation12 + $0x28] sm:$0xf]
    %v7681 = vld [vmem:[#allocation12 + $0x2c] sm:$0xf]
    %v7682 = vld [vmem:[#allocation12 + $0x30] sm:$0xf]
    %v7683 = vld [vmem:[#allocation12 + $0x34] sm:$0xf]
    %v7684 = vld [vmem:[#allocation12 + $0x38] sm:$0xf]
    %v7685 = vld [vmem:[#allocation12 + $0x3c] sm:$0xf]
    %v7686 = vld [vmem:[#allocation12 + $0x40] sm:$0xf]
    %v7687 = vld [vmem:[#allocation12 + $0x44] sm:$0xf]
    %v7688 = vld [vmem:[#allocation12 + $0x48] sm:$0xf]
    %v7689 = vld [vmem:[#allocation12 + $0x4c] sm:$0xf]
    %v7690 = vld [vmem:[#allocation12 + $0x50] sm:$0xf]
    %v7691 = vld [vmem:[#allocation12 + $0x54] sm:$0xf]
    %v7692 = vld [vmem:[#allocation12 + $0x58] sm:$0xf]
    %v7693 = vld [vmem:[#allocation12 + $0x5c] sm:$0xf]
    %v7694 = vld [vmem:[#allocation12 + $0x60] sm:$0xf]
    %v7695 = vld [vmem:[#allocation12 + $0x64] sm:$0xf]
    %v7696 = vld [vmem:[#allocation12 + $0x68] sm:$0xf]
    %v7697 = vld [vmem:[#allocation12 + $0x6c] sm:$0xf]
    %v7698 = vld [vmem:[#allocation12 + $0x70] sm:$0xf]
    %v7699 = vld [vmem:[#allocation12 + $0x74] sm:$0xf]
    %v7700 = vld [vmem:[#allocation12 + $0x78] sm:$0xf]
    %v7701 = vld [vmem:[#allocation12 + $0x7c] sm:$0xf]
    %v7702 = vld [vmem:[#allocation12 + $0x80] sm:$0xf]
    %v7703 = vld [vmem:[#allocation12 + $0x84] sm:$0xf]
    %v7704 = vld [vmem:[#allocation12 + $0x88] sm:$0xf]
    %v7705 = vld [vmem:[#allocation12 + $0x8c] sm:$0xf]
    %v7706 = vld [vmem:[#allocation12 + $0x90] sm:$0xf]
    %v7707 = vld [vmem:[#allocation12 + $0x94] sm:$0xf]
    %v7708 = vld [vmem:[#allocation12 + $0x98] sm:$0xf]
    %v7709 = vld [vmem:[#allocation12 + $0x9c] sm:$0xf]
    %v7710 = vld [vmem:[#allocation12 + $0xa0] sm:$0xf]
    %v7711 = vld [vmem:[#allocation12 + $0xa4] sm:$0xf]
    %v7712 = vld [vmem:[#allocation12 + $0xa8] sm:$0xf]
    %v7713 = vld [vmem:[#allocation12 + $0xac] sm:$0xf]
    %v7714 = vld [vmem:[#allocation12 + $0xb0] sm:$0xf]
    %v7715 = vld [vmem:[#allocation12 + $0xb4] sm:$0xf]
    %v7716 = vld [vmem:[#allocation12 + $0xb8] sm:$0xf]
    %v7717 = vld [vmem:[#allocation12 + $0xbc] sm:$0xf]
    %v7718 = vld [vmem:[#allocation12 + $0xc0] sm:$0xf]
    %v7719 = vld [vmem:[#allocation12 + $0xc4] sm:$0xf]
    %v7720 = vld [vmem:[#allocation12 + $0xc8] sm:$0xf]
    %v7721 = vld [vmem:[#allocation12 + $0xcc] sm:$0xf]
    %v7722 = vld [vmem:[#allocation12 + $0xd0] sm:$0xf]
    %v7723 = vld [vmem:[#allocation12 + $0xd4] sm:$0xf]
    %v7724 = vld [vmem:[#allocation12 + $0xd8] sm:$0xf]
    %v7725 = vld [vmem:[#allocation12 + $0xdc] sm:$0xf]
    %v7726 = vld [vmem:[#allocation12 + $0xe0] sm:$0xf]
    %v7727 = vld [vmem:[#allocation12 + $0xe4] sm:$0xf]
    %v7728 = vld [vmem:[#allocation12 + $0xe8] sm:$0xf]
    %v7729 = vld [vmem:[#allocation12 + $0xec] sm:$0xf]
    %v7730 = vld [vmem:[#allocation12 + $0xf0] sm:$0xf]
    %v7731 = vld [vmem:[#allocation12 + $0xf4] sm:$0xf]
    %v7732 = vld [vmem:[#allocation12 + $0xf8] sm:$0xf]
    %v7733 = vld [vmem:[#allocation12 + $0xfc] sm:$0xf]
    %v7734 = vld [vmem:[#allocation14] sm:$0x1]
    %v7736 = vperm.slane %v7734, 0
    %v7802 = vunpack.c.l.b16 %v7670
    %v7803 = vunpack.c.l.b16 %v7671
    %v7804 = vunpack.c.l.b16 %v7672
    %v7805 = vunpack.c.l.b16 %v7673
    %v7806 = vunpack.c.l.b16 %v7674
    %v7807 = vunpack.c.l.b16 %v7675
    %v7808 = vunpack.c.l.b16 %v7676
    %v7809 = vunpack.c.l.b16 %v7677
    %v7810 = vunpack.c.l.b16 %v7678
    %v7811 = vunpack.c.l.b16 %v7679
    %v7812 = vunpack.c.l.b16 %v7680
    %v7813 = vunpack.c.l.b16 %v7681
    %v7814 = vunpack.c.l.b16 %v7682
    %v7815 = vunpack.c.l.b16 %v7683
    %v7816 = vunpack.c.l.b16 %v7684
    %v7817 = vunpack.c.l.b16 %v7685
    %v7818 = vunpack.c.l.b16 %v7686
    %v7819 = vunpack.c.l.b16 %v7687
    %v7820 = vunpack.c.l.b16 %v7688
    %v7821 = vunpack.c.l.b16 %v7689
    %v7822 = vunpack.c.l.b16 %v7690
    %v7823 = vunpack.c.l.b16 %v7691
    %v7824 = vunpack.c.l.b16 %v7692
    %v7825 = vunpack.c.l.b16 %v7693
    %v7826 = vunpack.c.l.b16 %v7694
    %v7827 = vunpack.c.l.b16 %v7695
    %v7828 = vunpack.c.l.b16 %v7696
    %v7829 = vunpack.c.l.b16 %v7697
    %v7830 = vunpack.c.l.b16 %v7698
    %v7831 = vunpack.c.l.b16 %v7699
    %v7832 = vunpack.c.l.b16 %v7700
    %v7833 = vunpack.c.l.b16 %v7701
    %v7834 = vunpack.c.l.b16 %v7702
    %v7835 = vunpack.c.l.b16 %v7703
    %v7836 = vunpack.c.l.b16 %v7704
    %v7837 = vunpack.c.l.b16 %v7705
    %v7838 = vunpack.c.l.b16 %v7706
    %v7839 = vunpack.c.l.b16 %v7707
    %v7840 = vunpack.c.l.b16 %v7708
    %v7841 = vunpack.c.l.b16 %v7709
    %v7842 = vunpack.c.l.b16 %v7710
    %v7843 = vunpack.c.l.b16 %v7711
    %v7844 = vunpack.c.l.b16 %v7712
    %v7845 = vunpack.c.l.b16 %v7713
    %v7846 = vunpack.c.l.b16 %v7714
    %v7847 = vunpack.c.l.b16 %v7715
    %v7848 = vunpack.c.l.b16 %v7716
    %v7849 = vunpack.c.l.b16 %v7717
    %v7850 = vunpack.c.l.b16 %v7718
    %v7851 = vunpack.c.l.b16 %v7719
    %v7852 = vunpack.c.l.b16 %v7720
    %v7853 = vunpack.c.l.b16 %v7721
    %v7854 = vunpack.c.l.b16 %v7722
    %v7855 = vunpack.c.l.b16 %v7723
    %v7856 = vunpack.c.l.b16 %v7724
    %v7857 = vunpack.c.l.b16 %v7725
    %v7858 = vunpack.c.l.b16 %v7726
    %v7859 = vunpack.c.l.b16 %v7727
    %v7860 = vunpack.c.l.b16 %v7728
    %v7861 = vunpack.c.l.b16 %v7729
    %v7862 = vunpack.c.l.b16 %v7730
    %v7863 = vunpack.c.l.b16 %v7731
    %v7864 = vunpack.c.l.b16 %v7732
    %v7865 = vunpack.c.l.b16 %v7733
    %v7866 = vpack.c.b16 %v7803, %v7802
    %v7867 = vpack.c.b16 %v7805, %v7804
    %v7868 = vpack.c.b16 %v7807, %v7806
    %v7869 = vpack.c.b16 %v7809, %v7808
    %v7870 = vpack.c.b16 %v7811, %v7810
    %v7871 = vpack.c.b16 %v7813, %v7812
    %v7872 = vpack.c.b16 %v7815, %v7814
    %v7873 = vpack.c.b16 %v7817, %v7816
    %v7874 = vpack.c.b16 %v7819, %v7818
    %v7875 = vpack.c.b16 %v7821, %v7820
    %v7876 = vpack.c.b16 %v7823, %v7822
    %v7877 = vpack.c.b16 %v7825, %v7824
    %v7878 = vpack.c.b16 %v7827, %v7826
    %v7879 = vpack.c.b16 %v7829, %v7828
    %v7880 = vpack.c.b16 %v7831, %v7830
    %v7881 = vpack.c.b16 %v7833, %v7832
    %v7882 = vpack.c.b16 %v7835, %v7834
    %v7883 = vpack.c.b16 %v7837, %v7836
    %v7884 = vpack.c.b16 %v7839, %v7838
    %v7885 = vpack.c.b16 %v7841, %v7840
    %v7886 = vpack.c.b16 %v7843, %v7842
    %v7887 = vpack.c.b16 %v7845, %v7844
    %v7888 = vpack.c.b16 %v7847, %v7846
    %v7889 = vpack.c.b16 %v7849, %v7848
    %v7890 = vpack.c.b16 %v7851, %v7850
    %v7891 = vpack.c.b16 %v7853, %v7852
    %v7892 = vpack.c.b16 %v7855, %v7854
    %v7893 = vpack.c.b16 %v7857, %v7856
    %v7894 = vpack.c.b16 %v7859, %v7858
    %v7895 = vpack.c.b16 %v7861, %v7860
    %v7896 = vpack.c.b16 %v7863, %v7862
    %v7897 = vpack.c.b16 %v7865, %v7864
    %7930 = vmatpush.bf16.msra.mxu0 %v7873
    %7931 = vmatpush.bf16.msra.mxu0 %v7872
    %7932 = vmatpush.bf16.msra.mxu0 %v7871
    %7933 = vmatpush.bf16.msra.mxu0 %v7870
    %7934 = vmatpush.bf16.msra.mxu0 %v7869
    %7935 = vmatpush.bf16.msra.mxu0 %v7868
    %7936 = vmatpush.bf16.msra.mxu0 %v7867
    %7937 = vmatpush.bf16.msra.mxu0 %v7866
    %7938 = vmatmul.bf16.gmra.mxu0 %v7666
    %v7939 = vpop.f32.mrf.mxu0
    %v7940 = vadd.f32 %v7736, %v7939
    %v7941 = vpop.f32.mrf.mxu0
    %7942 = vdwg.mxu0
    %7943 = vmatpush.bf16.msra.mxu0 %v7881
    %7944 = vmatpush.bf16.msra.mxu0 %v7880
    %7945 = vmatpush.bf16.msra.mxu0 %v7879
    %7946 = vmatpush.bf16.msra.mxu0 %v7878
    %7947 = vmatpush.bf16.msra.mxu0 %v7877
    %7948 = vmatpush.bf16.msra.mxu0 %v7876
    %7949 = vmatpush.bf16.msra.mxu0 %v7875
    %7950 = vmatpush.bf16.msra.mxu0 %v7874
    %7951 = vmatmul.bf16.gmra.mxu0 %v7667
    %v7952 = vpop.f32.mrf.mxu0
    %v7953 = vadd.f32 %v7940, %v7952
    %v7954 = vpop.f32.mrf.mxu0
    %7955 = vdwg.mxu0
    %7956 = vmatpush.bf16.msra.mxu0 %v7889
    %7957 = vmatpush.bf16.msra.mxu0 %v7888
    %7958 = vmatpush.bf16.msra.mxu0 %v7887
    %7959 = vmatpush.bf16.msra.mxu0 %v7886
    %7960 = vmatpush.bf16.msra.mxu0 %v7885
    %7961 = vmatpush.bf16.msra.mxu0 %v7884
    %7962 = vmatpush.bf16.msra.mxu0 %v7883
    %7963 = vmatpush.bf16.msra.mxu0 %v7882
    %7964 = vmatmul.bf16.gmra.mxu0 %v7668
    %v7965 = vpop.f32.mrf.mxu0
    %v7966 = vadd.f32 %v7953, %v7965
    %v7967 = vpop.f32.mrf.mxu0
    %7968 = vdwg.mxu0
    %7969 = vmatpush.bf16.msra.mxu0 %v7897
    %7970 = vmatpush.bf16.msra.mxu0 %v7896
    %7971 = vmatpush.bf16.msra.mxu0 %v7895
    %7972 = vmatpush.bf16.msra.mxu0 %v7894
    %7973 = vmatpush.bf16.msra.mxu0 %v7893
    %7974 = vmatpush.bf16.msra.mxu0 %v7892
    %7975 = vmatpush.bf16.msra.mxu0 %v7891
    %7976 = vmatpush.bf16.msra.mxu0 %v7890
    %7977 = vmatmul.bf16.gmra.mxu0 %v7669
    %v7978 = vpop.f32.mrf.mxu0
    %v7979 = vadd.f32 %v7966, %v7978
    %v7980 = vpop.f32.mrf.mxu0
    %7981 = vdwg.mxu0
    %v7982 = vmax.f32 %v7979, 0.0
    %v7983 = vld [vmem:[#allocation15] sm:$0x1]
    %v7985 = vperm.slane %v7983, 0
    %v7987 = vmul.f32 %v7982, %v7985
    %vm7988 = vcmask 1041408
    %v7989 = vsel %vm7988, %v7987, 0.0
    %7990 = vadd.xlane.f32.xlu0 %v7989
    %v7991 = vpop.xlane.xlu0 %7990
    %v7992 = vld [vmem:[#allocation2] sm:$0x1]
    %7994 = vset.pattern.permute.xlu0 0
    %7995 = vperm.xlu0 %7994, %v7992
    %v7996 = vpop.permute.xlu0 %7995
    %v7998 = vperm.slane %v7996, 0
    %v7999 = vadd.f32 %v7991, %v7998
    %v8001 = vlaneseq
    %v8002 = vand.u32 %v8001, 127
    %v8003 = vperm.slane %v7999, %v8002
    %vm8005 = vcmask 8192
    %8006 = vst.msk [vmem:[#allocation17] sm:$0x1] %vm8005, %v8003
    // Predicated region
    $region70: #{tpu_custom_call.1} parent=1 // pred_check
      _
    $region71: #{tpu_custom_call.1} parent=1 // pred_check_branch
      %8008 = sbr.rel (0) target = $region73
    $region72: #{tpu_custom_call.1} parent=1 // pred_region
      %8010 = vsyncadd [#allocation5], 0
      %s8012 = sshll.u32 [#allocation17], 4
      %s8013 = int_to_ptr.vmem [resolvable:$true] %s8012
      %s8014 = sshll.u32 %s9, 4
      %s8015 = int_to_ptr.hbm [resolvable:$true] %s8014
      %8017 = dma.vmem_to_hbm [thread:$0]  %s8013, 16, %s8015, [#allocation5]
    $region73: #{tpu_custom_call.1} parent=1 // pred_fallthru
      _
    // Predicated region
    $region74: #{tpu_custom_call.1} parent=1 // pred_check
      _
    $region75: #{tpu_custom_call.1} parent=1 // pred_check_branch
      %8019 = sbr.rel (0) target = $region77
    $region76: #{tpu_custom_call.1} parent=1 // pred_region
      %8021 = dma.done [#allocation5], 16
    $region77: #{tpu_custom_call.1} parent=1 // pred_fallthru
      _
    %8022 = vsyncpa [#allocation4], 1
    %8023 = vsyncpa [#allocation7], 1
    %8024 = vsyncpa [#allocation10], 1
    %8025 = vsyncpa [#allocation13], 1
    %8026 = vsyncpa [#allocation16], 1
    %8027 = vsyncpa [#allocation5], 1

</llo_original>
